<compile_context>
chip_gen: v7x
topology: tpu7x:2x2x1
jax: 0.10.0
libtpu: 0.0.40
codegen_flags: <defaults>
</compile_context>

<pallas_src>
import functools
import math

import jax
import jax.numpy as jnp
from jax.experimental import pallas as pl
from jax.experimental.pallas import tpu as pltpu


# ---------------------------------------------------------------------------
# tiling helpers
# ---------------------------------------------------------------------------

def _row_tile(n, pref=128):
    """Sublane (second-minor) tile: multiple of 8 dividing n, else full n."""
    if n % 8 != 0 or n <= pref:
        return n
    t = pref - pref % 8
    while n % t != 0:
        t -= 8
    return t


def _col_tile(n, pref=512):
    """Lane (minor) tile: multiple of 128 dividing n, else full n."""
    if n % 128 != 0 or n <= pref:
        return n
    t = pref - pref % 128
    while n % t != 0:
        t -= 128
    return t


# ---------------------------------------------------------------------------
# kernels
# ---------------------------------------------------------------------------

def _layernorm_f32(x_ref, g_ref, b_ref, eps):
    x = x_ref[...].astype(jnp.float32)
    mu = jnp.mean(x, axis=-1, keepdims=True)
    xc = x - mu
    var = jnp.mean(xc * xc, axis=-1, keepdims=True)
    return (xc * jax.lax.rsqrt(var + eps) * g_ref[...].astype(jnp.float32)
            + b_ref[...].astype(jnp.float32))


def _ln_matmul_kernel(*refs, eps, mm_dtype, has_bias):
    """out[i, j] = LayerNorm(x[i]) @ w[:, j] (+ bias[j]).

    grid = (row tiles, output-column tiles).  The normalized row tile is
    computed once per row block (j == 0) into VMEM scratch and reused for
    every output-column tile.
    """
    if has_bias:
        x_ref, g_ref, b_ref, w_ref, bias_ref, o_ref, xn_sc = refs
    else:
        x_ref, g_ref, b_ref, w_ref, o_ref, xn_sc = refs
        bias_ref = None

    @pl.when(pl.program_id(1) == 0)
    def _():
        xn_sc[...] = _layernorm_f32(x_ref, g_ref, b_ref, eps).astype(xn_sc.dtype)

    acc = jnp.dot(xn_sc[...], w_ref[...].astype(mm_dtype),
                  preferred_element_type=jnp.float32)
    if has_bias:
        acc = acc + bias_ref[...].astype(jnp.float32)
    o_ref[...] = acc.astype(o_ref.dtype)


def _ln_geglu_kernel(x_ref, g_ref, b_ref, wa_ref, wg_ref, ba_ref, bg_ref,
                     o_ref, xn_sc, *, eps, mm_dtype):
    """out = a * gelu(gate); a = LN(x) @ wa + ba, gate = LN(x) @ wg + bg."""
    @pl.when(pl.program_id(1) == 0)
    def _():
        xn_sc[...] = _layernorm_f32(x_ref, g_ref, b_ref, eps).astype(xn_sc.dtype)

    xn = xn_sc[...]
    a = (jnp.dot(xn, wa_ref[...].astype(mm_dtype),
                 preferred_element_type=jnp.float32)
         + ba_ref[...].astype(jnp.float32))
    g = (jnp.dot(xn, wg_ref[...].astype(mm_dtype),
                 preferred_element_type=jnp.float32)
         + bg_ref[...].astype(jnp.float32))
    gelu = 0.5 * g * (1.0 + jax.lax.erf(g * (1.0 / math.sqrt(2.0))))  # exact GELU
    o_ref[...] = (a * gelu).astype(o_ref.dtype)


def _matmul_bias_res_kernel(y_ref, w_ref, bias_ref, res_ref, o_ref, acc_sc,
                            *, mm_dtype):
    """out = y @ w + bias + residual, K-tiled with a resident f32 accumulator."""
    k = pl.program_id(2)

    @pl.when(k == 0)
    def _():
        acc_sc[...] = jnp.zeros_like(acc_sc)

    acc_sc[...] += jnp.dot(y_ref[...].astype(mm_dtype),
                           w_ref[...].astype(mm_dtype),
                           preferred_element_type=jnp.float32)

    @pl.when(k == pl.num_programs(2) - 1)
    def _():
        o_ref[...] = (acc_sc[...] + bias_ref[...].astype(jnp.float32)
                      + res_ref[...].astype(jnp.float32)).astype(o_ref.dtype)


def _flash_attn_kernel(q_ref, k_ref, v_ref, o_ref, m_sc, l_sc, acc_sc,
                       *, scale, mm_dtype):
    """Online-softmax attention over KV tiles; (batch, head, q-tile) on the grid."""
    ki = pl.program_id(3)

    @pl.when(ki == 0)
    def _():
        m_sc[...] = jnp.full(m_sc.shape, -jnp.inf, m_sc.dtype)
        l_sc[...] = jnp.zeros_like(l_sc)
        acc_sc[...] = jnp.zeros_like(acc_sc)

    # Scale q (TQ x D) instead of the (TQ x TK) score matrix.
    q = (q_ref[0].astype(jnp.float32) * scale).astype(mm_dtype)
    k = k_ref[0].astype(mm_dtype)
    s = jax.lax.dot_general(q, k, (((1,), (1,)), ((), ())),
                            preferred_element_type=jnp.float32)      # (TQ, TK)

    m_prev = m_sc[...]
    m_new = jnp.maximum(m_prev, jnp.max(s, axis=-1, keepdims=True))
    alpha = jnp.exp(m_prev - m_new)
    p = jnp.exp(s - m_new)
    l_sc[...] = alpha * l_sc[...] + jnp.sum(p, axis=-1, keepdims=True)
    acc_sc[...] = alpha * acc_sc[...] + jnp.dot(
        p.astype(mm_dtype), v_ref[0].astype(mm_dtype),
        preferred_element_type=jnp.float32)
    m_sc[...] = m_new

    @pl.when(ki == pl.num_programs(3) - 1)
    def _():
        o_ref[0] = (acc_sc[...] * pl.reciprocal(l_sc[...], approx=True)
                    ).astype(o_ref.dtype)


# ---------------------------------------------------------------------------
# pallas_call wrappers
# ---------------------------------------------------------------------------

def ln_matmul(x2, gamma, beta, w, bias, *, eps, mm_dtype, tm=128, tn=512):
    R, K = x2.shape
    N = w.shape[1]
    TM, TN = _row_tile(R, tm), _col_tile(N, tn)
    in_specs = [pl.BlockSpec((TM, K), lambda i, j: (i, 0)),
                pl.BlockSpec((1, K), lambda i, j: (0, 0)),
                pl.BlockSpec((1, K), lambda i, j: (0, 0)),
                pl.BlockSpec((K, TN), lambda i, j: (0, j))]
    args = [x2, gamma.reshape(1, K), beta.reshape(1, K), w]
    if bias is not None:
        in_specs.append(pl.BlockSpec((1, TN), lambda i, j: (0, j)))
        args.append(bias.reshape(1, N))
    return pl.pallas_call(
        functools.partial(_ln_matmul_kernel, eps=eps, mm_dtype=mm_dtype,
                          has_bias=bias is not None),
        out_shape=jax.ShapeDtypeStruct((R, N), x2.dtype),
        grid=(R // TM, N // TN),
        in_specs=in_specs,
        out_specs=pl.BlockSpec((TM, TN), lambda i, j: (i, j)),
        scratch_shapes=[pltpu.VMEM((TM, K), mm_dtype)],
        compiler_params=pltpu.CompilerParams(
            dimension_semantics=("parallel", "arbitrary")),
    )(*args)


def ln_geglu(x2, gamma, beta, wa, wg, ba, bg, *, eps, mm_dtype, tm=128, tn=512):
    R, K = x2.shape
    N = wa.shape[1]
    TM, TN = _row_tile(R, tm), _col_tile(N, tn)
    wcol = pl.BlockSpec((K, TN), lambda i, j: (0, j))
    bcol = pl.BlockSpec((1, TN), lambda i, j: (0, j))
    return pl.pallas_call(
        functools.partial(_ln_geglu_kernel, eps=eps, mm_dtype=mm_dtype),
        out_shape=jax.ShapeDtypeStruct((R, N), x2.dtype),
        grid=(R // TM, N // TN),
        in_specs=[pl.BlockSpec((TM, K), lambda i, j: (i, 0)),
                  pl.BlockSpec((1, K), lambda i, j: (0, 0)),
                  pl.BlockSpec((1, K), lambda i, j: (0, 0)),
                  wcol, wcol, bcol, bcol],
        out_specs=pl.BlockSpec((TM, TN), lambda i, j: (i, j)),
        scratch_shapes=[pltpu.VMEM((TM, K), mm_dtype)],
        compiler_params=pltpu.CompilerParams(
            dimension_semantics=("parallel", "arbitrary")),
    )(x2, gamma.reshape(1, K), beta.reshape(1, K), wa, wg,
      ba.reshape(1, N), bg.reshape(1, N))


def matmul_bias_residual(y, w, bias, res, *, mm_dtype, tm=128, tn=512, tk=256):
    R, K = y.shape
    N = w.shape[1]
    TM, TN, TK = _row_tile(R, tm), _col_tile(N, tn), _col_tile(K, tk)
    return pl.pallas_call(
        functools.partial(_matmul_bias_res_kernel, mm_dtype=mm_dtype),
        out_shape=jax.ShapeDtypeStruct((R, N), res.dtype),
        grid=(R // TM, N // TN, K // TK),
        in_specs=[pl.BlockSpec((TM, TK), lambda i, j, k: (i, k)),
                  pl.BlockSpec((TK, TN), lambda i, j, k: (k, j)),
                  pl.BlockSpec((1, TN), lambda i, j, k: (0, j)),
                  pl.BlockSpec((TM, TN), lambda i, j, k: (i, j))],
        out_specs=pl.BlockSpec((TM, TN), lambda i, j, k: (i, j)),
        scratch_shapes=[pltpu.VMEM((TM, TN), jnp.float32)],
        compiler_params=pltpu.CompilerParams(
            dimension_semantics=("parallel", "parallel", "arbitrary")),
    )(y, w, bias.reshape(1, N), res)


def flash_attention(qkv, heads, d_head, *, mm_dtype, tq=128, tk=128):
    """qkv: (B, N, 3*heads*d_head) packed [q | k | v]; returns (B, N, heads*d_head)."""
    B, N, three_inner = qkv.shape
    inner = heads * d_head
    assert three_inner == 3 * inner
    # TODO(synk): d_head that is not a multiple of 128 needs a multi-head-per-block
    # variant to keep lane-dense stores; not implemented here.
    assert d_head % 128 == 0, "this kernel requires d_head % 128 == 0"
    TQ, TK = _row_tile(N, tq), _row_tile(N, tk)
    scale = 1.0 / math.sqrt(d_head)
    return pl.pallas_call(
        functools.partial(_flash_attn_kernel, scale=scale, mm_dtype=mm_dtype),
        out_shape=jax.ShapeDtypeStruct((B, N, inner), qkv.dtype),
        grid=(B, heads, N // TQ, N // TK),
        in_specs=[
            pl.BlockSpec((1, TQ, d_head), lambda b, h, qi, ki: (b, qi, h)),
            pl.BlockSpec((1, TK, d_head), lambda b, h, qi, ki: (b, ki, heads + h)),
            pl.BlockSpec((1, TK, d_head), lambda b, h, qi, ki: (b, ki, 2 * heads + h)),
        ],
        out_specs=pl.BlockSpec((1, TQ, d_head), lambda b, h, qi, ki: (b, qi, h)),
        scratch_shapes=[pltpu.VMEM((TQ, 1), jnp.float32),
                        pltpu.VMEM((TQ, 1), jnp.float32),
                        pltpu.VMEM((TQ, d_head), jnp.float32)],
        compiler_params=pltpu.CompilerParams(
            dimension_semantics=("parallel", "parallel", "parallel", "arbitrary")),
    )(qkv, qkv, qkv)


# ---------------------------------------------------------------------------
# module forward
# ---------------------------------------------------------------------------

def basic_transformer_block_forward(x, p, *, heads, d_head,
                                    mm_dtype=jnp.float32):
    """BasicTransformerSingleLayerBlock._forward (context=None, dropout=0)."""
    B, N, dim = x.shape
    inner = heads * d_head
    R = B * N
    x2 = x.reshape(R, dim)

    # --- attn1(norm1(x)) + x ---
    qkv = ln_matmul(x2, p["ln1_g"], p["ln1_b"], p["wqkv"], None,
                    eps=1e-5, mm_dtype=mm_dtype)                    # (R, 3*inner)
    attn = flash_attention(qkv.reshape(B, N, 3 * inner), heads, d_head,
                           mm_dtype=mm_dtype)                       # (B, N, inner)
    x2 = matmul_bias_residual(attn.reshape(R, inner), p["wo"], p["bo"], x2,
                              mm_dtype=mm_dtype)                    # (R, dim)

    # --- ff(norm2(x)) + x ---
    h = ln_geglu(x2, p["ln2_g"], p["ln2_b"], p["w1a"], p["w1g"],
                 p["b1a"], p["b1g"], eps=1e-5, mm_dtype=mm_dtype)   # (R, 4*dim)
    x2 = matmul_bias_residual(h, p["w2"], p["b2"], x2, mm_dtype=mm_dtype)
    return x2.reshape(B, N, dim)


# ---------------------------------------------------------------------------
# parameters & pure-JAX reference
# ---------------------------------------------------------------------------

def make_params(key, dim, n_heads, d_head):
    inner = n_heads * d_head
    ff_inner = 4 * dim
    ks = iter(jax.random.split(key, 16))

    def rnd(shape, s=0.05):
        return jax.random.normal(next(ks), shape, jnp.float32) * s

    return dict(
        ln1_g=jnp.ones((dim,), jnp.float32), ln1_b=jnp.zeros((dim,), jnp.float32),
        ln2_g=jnp.ones((dim,), jnp.float32), ln2_b=jnp.zeros((dim,), jnp.float32),
        wqkv=rnd((dim, 3 * inner)),                 # [to_q | to_k | to_v], no bias
        wo=rnd((inner, dim)), bo=rnd((dim,)),       # to_out[0]
        w1a=rnd((dim, ff_inner)), b1a=rnd((ff_inner,)),   # GEGLU proj, "x" half
        w1g=rnd((dim, ff_inner)), b1g=rnd((ff_inner,)),   # GEGLU proj, gate half
        w2=rnd((ff_inner, dim)), b2=rnd((dim,)),          # ff.net[2]
    )


def reference_forward(x, p, heads, d_head):
    """Pure-JAX f32 reference of the PyTorch forward semantics."""
    B, N, dim = x.shape
    inner = heads * d_head

    def ln(t, g, b, eps=1e-5):
        mu = t.mean(-1, keepdims=True)
        var = ((t - mu) ** 2).mean(-1, keepdims=True)
        return (t - mu) * jax.lax.rsqrt(var + eps) * g + b

    xn = ln(x, p["ln1_g"], p["ln1_b"])
    qkv = xn @ p["wqkv"]
    q, k, v = jnp.split(qkv, 3, axis=-1)

    def split_heads(t):
        return t.reshape(B, N, heads, d_head).transpose(0, 2, 1, 3)

    q, k, v = map(split_heads, (q, k, v))
    s = jnp.einsum("bhqd,bhkd->bhqk", q, k) / math.sqrt(d_head)
    a = jax.nn.softmax(s, axis=-1)
    o = jnp.einsum("bhqk,bhkd->bhqd", a, v).transpose(0, 2, 1, 3).reshape(B, N, inner)
    x = o @ p["wo"] + p["bo"] + x

    xn = ln(x, p["ln2_g"], p["ln2_b"])
    aa = xn @ p["w1a"] + p["b1a"]
    gg = xn @ p["w1g"] + p["b1g"]
    h = aa * (0.5 * gg * (1.0 + jax.lax.erf(gg / math.sqrt(2.0))))
    x = h @ p["w2"] + p["b2"] + x
    return x


# ---------------------------------------------------------------------------

if __name__ == "__main__":
    B, N, dim = 2, 256, 128
    n_heads, d_head = 2, 128            # inner_dim = 256 (lane-dense head blocks)

    key = jax.random.PRNGKey(0)
    kx, kp = jax.random.split(key)
    x = jax.random.normal(kx, (B, N, dim), jnp.float32)
    params = make_params(kp, dim, n_heads, d_head)

    ref = jax.block_until_ready(reference_forward(x, params, n_heads, d_head))

    # f32 matmul path
    fwd = jax.jit(functools.partial(basic_transformer_block_forward,
                                    heads=n_heads, d_head=d_head,
                                    mm_dtype=jnp.float32))
    out = jax.block_until_ready(fwd(x, params))
    assert out.shape == (B, N, dim), out.shape
    assert bool(jnp.allclose(out, ref, atol=5e-2, rtol=5e-2)), \
        float(jnp.max(jnp.abs(out - ref)))

    # bf16 MXU path: weights in bf16, activations / statistics / accum in f32
    params_bf16 = jax.tree_util.tree_map(lambda a: a.astype(jnp.bfloat16), params)
    fwd_bf16 = jax.jit(functools.partial(basic_transformer_block_forward,
                                         heads=n_heads, d_head=d_head,
                                         mm_dtype=jnp.bfloat16))
    out_bf16 = jax.block_until_ready(fwd_bf16(x, params_bf16))
    assert bool(jnp.all(jnp.isfinite(out_bf16)))
    assert bool(jnp.allclose(out_bf16, ref, atol=0.25, rtol=0.1)), \
        float(jnp.max(jnp.abs(out_bf16 - ref)))

    print("KERNEL_OK")
</pallas_src>

<mosaic_0001>
module attributes {stable_mosaic.version = 11 : i64} {
  func.func @_flash_attn_kernel(%arg0: i32, %arg1: i32, %arg2: i32, %arg3: i32, %arg4: memref<1x128x128xf32, #tpu.memory_space<vmem>>, %arg5: memref<1x128x128xf32, #tpu.memory_space<vmem>>, %arg6: memref<1x128x128xf32, #tpu.memory_space<vmem>>, %arg7: memref<1x128x128xf32, #tpu.memory_space<vmem>>, %arg8: memref<128x1xf32, #tpu.memory_space<vmem>>, %arg9: memref<128x1xf32, #tpu.memory_space<vmem>>, %arg10: memref<128x128xf32, #tpu.memory_space<vmem>>) attributes {dimension_semantics = [#tpu.dimension_semantics<parallel>, #tpu.dimension_semantics<parallel>, #tpu.dimension_semantics<parallel>, #tpu.dimension_semantics<arbitrary>], iteration_bounds = array<i64: 2, 2, 2, 2>, scalar_prefetch = 0 : i64, scratch_operands = 3 : i64, tpu.core_type = #tpu.core_type<tc>, window_params = [{transform_indices = @transform_0, window_bounds = array<i64: 1, 128, 128>}, {transform_indices = @transform_1, window_bounds = array<i64: 1, 128, 128>}, {transform_indices = @transform_2, window_bounds = array<i64: 1, 128, 128>}, {transform_indices = @transform_3, window_bounds = array<i64: 1, 128, 128>}]} {
    %c0_i32 = arith.constant 0 : i32
    %0 = arith.cmpi eq, %arg3, %c0_i32 : i32
    %1 = arith.extui %0 : i1 to i32
    %c0_i32_0 = arith.constant 0 : i32
    %2 = arith.cmpi ne, %1, %c0_i32_0 : i32
    scf.if %2 {
      %cst_26 = arith.constant 0xFF800000 : f32
      %37 = vector.broadcast %cst_26 : f32 to vector<128x1xf32>
      %c0_27 = arith.constant 0 : index
      %c0_28 = arith.constant 0 : index
      %38 = vector.load %arg8[%c0_27, %c0_28] : memref<128x1xf32, #tpu.memory_space<vmem>>, vector<128x1xf32>
      tpu.vector_store %arg8[%c0_27, %c0_28], %37 {strides = array<i32>} : memref<128x1xf32, #tpu.memory_space<vmem>>, vector<128x1xf32>,
      %cst_29 = arith.constant 0.000000e+00 : f32
      %39 = vector.broadcast %cst_29 : f32 to vector<128x1xf32>
      %c0_30 = arith.constant 0 : index
      %c0_31 = arith.constant 0 : index
      %40 = vector.load %arg9[%c0_30, %c0_31] : memref<128x1xf32, #tpu.memory_space<vmem>>, vector<128x1xf32>
      tpu.vector_store %arg9[%c0_30, %c0_31], %39 {strides = array<i32>} : memref<128x1xf32, #tpu.memory_space<vmem>>, vector<128x1xf32>,
      %cst_32 = arith.constant 0.000000e+00 : f32
      %41 = vector.broadcast %cst_32 : f32 to vector<128x128xf32>
      %c0_33 = arith.constant 0 : index
      %c0_34 = arith.constant 0 : index
      %42 = vector.load %arg10[%c0_33, %c0_34] : memref<128x128xf32, #tpu.memory_space<vmem>>, vector<128x128xf32>
      tpu.vector_store %arg10[%c0_33, %c0_34], %41 {strides = array<i32>} : memref<128x128xf32, #tpu.memory_space<vmem>>, vector<128x128xf32>,
    } else {
    }
    %c0 = arith.constant 0 : index
    %c0_1 = arith.constant 0 : index
    %c0_2 = arith.constant 0 : index
    %3 = vector.load %arg4[%c0, %c0_1, %c0_2] : memref<1x128x128xf32, #tpu.memory_space<vmem>>, vector<1x128x128xf32>
    %4 = vector.shape_cast %3 : vector<1x128x128xf32> to vector<128x128xf32>
    %cst = arith.constant 0.0883883461 : f32
    %5 = vector.broadcast %cst : f32 to vector<128x128xf32>
    %6 = arith.mulf %4, %5 : vector<128x128xf32>
    %c0_3 = arith.constant 0 : index
    %c0_4 = arith.constant 0 : index
    %c0_5 = arith.constant 0 : index
    %7 = vector.load %arg5[%c0_3, %c0_4, %c0_5] : memref<1x128x128xf32, #tpu.memory_space<vmem>>, vector<1x128x128xf32>
    %8 = vector.shape_cast %7 : vector<1x128x128xf32> to vector<128x128xf32>
    %cst_6 = arith.constant dense<0.000000e+00> : vector<128x128xf32>
    %9 = tpu.matmul %6, %8, %cst_6 {dimension_numbers = #tpu.dot_dimension_numbers<[1], [1], [0], [0], [0, 0, 1, 0], [], []>} : vector<128x128xf32>, vector<128x128xf32>, vector<128x128xf32> -> vector<128x128xf32>
    %c0_7 = arith.constant 0 : index
    %c0_8 = arith.constant 0 : index
    %10 = vector.load %arg8[%c0_7, %c0_8] : memref<128x1xf32, #tpu.memory_space<vmem>>, vector<128x1xf32>
    %cst_9 = arith.constant dense<0xFF800000> : vector<128xf32>
    %11 = vector.multi_reduction <maximumf>, %9, %cst_9 [1] : vector<128x128xf32> to vector<128xf32>
    %12 = vector.shape_cast %11 : vector<128xf32> to vector<128x1xf32>
    %13 = arith.maximumf %10, %12 : vector<128x1xf32>
    %14 = arith.subf %10, %13 : vector<128x1xf32>
    %15 = math.exp %14 : vector<128x1xf32>
    %16 = vector.broadcast %13 : vector<128x1xf32> to vector<128x128xf32>
    %17 = arith.subf %9, %16 : vector<128x128xf32>
    %18 = math.exp %17 : vector<128x128xf32>
    %c0_10 = arith.constant 0 : index
    %c0_11 = arith.constant 0 : index
    %19 = vector.load %arg9[%c0_10, %c0_11] : memref<128x1xf32, #tpu.memory_space<vmem>>, vector<128x1xf32>
    %20 = arith.mulf %15, %19 : vector<128x1xf32>
    %cst_12 = arith.constant dense<0.000000e+00> : vector<128xf32>
    %21 = vector.multi_reduction <add>, %18, %cst_12 [1] : vector<128x128xf32> to vector<128xf32>
    %22 = vector.shape_cast %21 : vector<128xf32> to vector<128x1xf32>
    %23 = arith.addf %20, %22 : vector<128x1xf32>
    %c0_13 = arith.constant 0 : index
    %c0_14 = arith.constant 0 : index
    %24 = vector.load %arg9[%c0_13, %c0_14] : memref<128x1xf32, #tpu.memory_space<vmem>>, vector<128x1xf32>
    tpu.vector_store %arg9[%c0_13, %c0_14], %23 {strides = array<i32>} : memref<128x1xf32, #tpu.memory_space<vmem>>, vector<128x1xf32>,
    %c0_15 = arith.constant 0 : index
    %c0_16 = arith.constant 0 : index
    %25 = vector.load %arg10[%c0_15, %c0_16] : memref<128x128xf32, #tpu.memory_space<vmem>>, vector<128x128xf32>
    %26 = vector.broadcast %15 : vector<128x1xf32> to vector<128x128xf32>
    %27 = arith.mulf %26, %25 : vector<128x128xf32>
    %c0_17 = arith.constant 0 : index
    %c0_18 = arith.constant 0 : index
    %c0_19 = arith.constant 0 : index
    %28 = vector.load %arg6[%c0_17, %c0_18, %c0_19] : memref<1x128x128xf32, #tpu.memory_space<vmem>>, vector<1x128x128xf32>
    %29 = vector.shape_cast %28 : vector<1x128x128xf32> to vector<128x128xf32>
    %cst_20 = arith.constant dense<0.000000e+00> : vector<128x128xf32>
    %30 = tpu.matmul %18, %29, %cst_20 {dimension_numbers = #tpu.dot_dimension_numbers<[1], [0], [0], [1], [0, 0, 1, 1], [], []>} : vector<128x128xf32>, vector<128x128xf32>, vector<128x128xf32> -> vector<128x128xf32>
    %31 = arith.addf %27, %30 : vector<128x128xf32>
    %c0_21 = arith.constant 0 : index
    %c0_22 = arith.constant 0 : index
    %32 = vector.load %arg10[%c0_21, %c0_22] : memref<128x128xf32, #tpu.memory_space<vmem>>, vector<128x128xf32>
    tpu.vector_store %arg10[%c0_21, %c0_22], %31 {strides = array<i32>} : memref<128x128xf32, #tpu.memory_space<vmem>>, vector<128x128xf32>,
    %c0_23 = arith.constant 0 : index
    %c0_24 = arith.constant 0 : index
    %33 = vector.load %arg8[%c0_23, %c0_24] : memref<128x1xf32, #tpu.memory_space<vmem>>, vector<128x1xf32>
    tpu.vector_store %arg8[%c0_23, %c0_24], %13 {strides = array<i32>} : memref<128x1xf32, #tpu.memory_space<vmem>>, vector<128x1xf32>,
    %c1_i32 = arith.constant 1 : i32
    %34 = arith.cmpi eq, %arg3, %c1_i32 : i32
    %35 = arith.extui %34 : i1 to i32
    %c0_i32_25 = arith.constant 0 : i32
    %36 = arith.cmpi ne, %35, %c0_i32_25 : i32
    scf.if %36 {
      %c0_26 = arith.constant 0 : index
      %c0_27 = arith.constant 0 : index
      %37 = vector.load %arg10[%c0_26, %c0_27] : memref<128x128xf32, #tpu.memory_space<vmem>>, vector<128x128xf32>
      %c0_28 = arith.constant 0 : index
      %c0_29 = arith.constant 0 : index
      %38 = vector.load %arg9[%c0_28, %c0_29] : memref<128x1xf32, #tpu.memory_space<vmem>>, vector<128x1xf32>
      %39 = tpu.reciprocal %38 {approx = true} : vector<128x1xf32> -> vector<128x1xf32>
      %40 = vector.broadcast %39 : vector<128x1xf32> to vector<128x128xf32>
      %41 = arith.mulf %37, %40 : vector<128x128xf32>
      %c0_30 = arith.constant 0 : index
      %c0_31 = arith.constant 0 : index
      %c0_32 = arith.constant 0 : index
      %42 = vector.load %arg7[%c0_30, %c0_31, %c0_32] : memref<1x128x128xf32, #tpu.memory_space<vmem>>, vector<1x128x128xf32>
      %43 = vector.shape_cast %42 : vector<1x128x128xf32> to vector<128x128xf32>
      %44 = vector.shape_cast %41 : vector<128x128xf32> to vector<1x128x128xf32>
      tpu.vector_store %arg7[%c0_30, %c0_31, %c0_32], %44 {strides = array<i32>} : memref<1x128x128xf32, #tpu.memory_space<vmem>>, vector<1x128x128xf32>,
    } else {
    }
    return
  }
  func.func @transform_0(%arg0: i32, %arg1: i32, %arg2: i32, %arg3: i32) -> (i32, i32, i32) {
    %c0_i32 = arith.constant 0 : i32
    return %arg0, %arg2, %arg1 : i32, i32, i32
  }
  func.func @transform_1(%arg0: i32, %arg1: i32, %arg2: i32, %arg3: i32) -> (i32, i32, i32) {
    %c2_i32 = arith.constant 2 : i32
    %0 = arith.addi %c2_i32, %arg1 : i32
    %c0_i32 = arith.constant 0 : i32
    return %arg0, %arg3, %0 : i32, i32, i32
  }
  func.func @transform_2(%arg0: i32, %arg1: i32, %arg2: i32, %arg3: i32) -> (i32, i32, i32) {
    %c4_i32 = arith.constant 4 : i32
    %0 = arith.addi %c4_i32, %arg1 : i32
    %c0_i32 = arith.constant 0 : i32
    return %arg0, %arg3, %0 : i32, i32, i32
  }
  func.func @transform_3(%arg0: i32, %arg1: i32, %arg2: i32, %arg3: i32) -> (i32, i32, i32) {
    %c0_i32 = arith.constant 0 : i32
    return %arg0, %arg2, %arg1 : i32, i32, i32
  }
}

module attributes {stable_mosaic.version = 11 : i64} {
  func.func @_matmul_bias_res_kernel(%arg0: i32, %arg1: i32, %arg2: i32, %arg3: memref<128x256xf32, #tpu.memory_space<vmem>>, %arg4: memref<256x128xf32, #tpu.memory_space<vmem>>, %arg5: memref<1x128xf32, #tpu.memory_space<vmem>>, %arg6: memref<128x128xf32, #tpu.memory_space<vmem>>, %arg7: memref<128x128xf32, #tpu.memory_space<vmem>>, %arg8: memref<128x128xf32, #tpu.memory_space<vmem>>) attributes {dimension_semantics = [#tpu.dimension_semantics<parallel>, #tpu.dimension_semantics<parallel>, #tpu.dimension_semantics<arbitrary>], iteration_bounds = array<i64: 4, 1, 1>, scalar_prefetch = 0 : i64, scratch_operands = 1 : i64, tpu.core_type = #tpu.core_type<tc>, window_params = [{transform_indices = @transform_0, window_bounds = array<i64: 128, 256>}, {transform_indices = @transform_1, window_bounds = array<i64: 256, 128>}, {transform_indices = @transform_2, window_bounds = array<i64: 1, 128>}, {transform_indices = @transform_3, window_bounds = array<i64: 128, 128>}, {transform_indices = @transform_4, window_bounds = array<i64: 128, 128>}]} {
    %c0_i32 = arith.constant 0 : i32
    %0 = arith.cmpi eq, %arg2, %c0_i32 : i32
    %1 = arith.extui %0 : i1 to i32
    %c0_i32_0 = arith.constant 0 : i32
    %2 = arith.cmpi ne, %1, %c0_i32_0 : i32
    scf.if %2 {
      %cst_10 = arith.constant 0.000000e+00 : f32
      %12 = vector.broadcast %cst_10 : f32 to vector<128x128xf32>
      %c0_11 = arith.constant 0 : index
      %c0_12 = arith.constant 0 : index
      %13 = vector.load %arg8[%c0_11, %c0_12] : memref<128x128xf32, #tpu.memory_space<vmem>>, vector<128x128xf32>
      tpu.vector_store %arg8[%c0_11, %c0_12], %12 {strides = array<i32>} : memref<128x128xf32, #tpu.memory_space<vmem>>, vector<128x128xf32>,
    } else {
    }
    %c0 = arith.constant 0 : index
    %c0_1 = arith.constant 0 : index
    %3 = vector.load %arg8[%c0, %c0_1] : memref<128x128xf32, #tpu.memory_space<vmem>>, vector<128x128xf32>
    %c0_2 = arith.constant 0 : index
    %c0_3 = arith.constant 0 : index
    %4 = vector.load %arg3[%c0_2, %c0_3] : memref<128x256xf32, #tpu.memory_space<vmem>>, vector<128x256xf32>
    %c0_4 = arith.constant 0 : index
    %c0_5 = arith.constant 0 : index
    %5 = vector.load %arg4[%c0_4, %c0_5] : memref<256x128xf32, #tpu.memory_space<vmem>>, vector<256x128xf32>
    %cst = arith.constant dense<0.000000e+00> : vector<128x128xf32>
    %6 = tpu.matmul %4, %5, %cst {dimension_numbers = #tpu.dot_dimension_numbers<[1], [0], [0], [1], [0, 0, 1, 1], [], []>} : vector<128x256xf32>, vector<256x128xf32>, vector<128x128xf32> -> vector<128x128xf32>
    %7 = arith.addf %3, %6 : vector<128x128xf32>
    %c0_6 = arith.constant 0 : index
    %c0_7 = arith.constant 0 : index
    %8 = vector.load %arg8[%c0_6, %c0_7] : memref<128x128xf32, #tpu.memory_space<vmem>>, vector<128x128xf32>
    tpu.vector_store %arg8[%c0_6, %c0_7], %7 {strides = array<i32>} : memref<128x128xf32, #tpu.memory_space<vmem>>, vector<128x128xf32>,
    %c0_i32_8 = arith.constant 0 : i32
    %9 = arith.cmpi eq, %arg2, %c0_i32_8 : i32
    %10 = arith.extui %9 : i1 to i32
    %c0_i32_9 = arith.constant 0 : i32
    %11 = arith.cmpi ne, %10, %c0_i32_9 : i32
    scf.if %11 {
      %c0_10 = arith.constant 0 : index
      %c0_11 = arith.constant 0 : index
      %12 = vector.load %arg8[%c0_10, %c0_11] : memref<128x128xf32, #tpu.memory_space<vmem>>, vector<128x128xf32>
      %c0_12 = arith.constant 0 : index
      %c0_13 = arith.constant 0 : index
      %13 = vector.load %arg5[%c0_12, %c0_13] : memref<1x128xf32, #tpu.memory_space<vmem>>, vector<1x128xf32>
      %14 = vector.broadcast %13 : vector<1x128xf32> to vector<128x128xf32>
      %15 = arith.addf %12, %14 : vector<128x128xf32>
      %c0_14 = arith.constant 0 : index
      %c0_15 = arith.constant 0 : index
      %16 = vector.load %arg6[%c0_14, %c0_15] : memref<128x128xf32, #tpu.memory_space<vmem>>, vector<128x128xf32>
      %17 = arith.addf %15, %16 : vector<128x128xf32>
      %c0_16 = arith.constant 0 : index
      %c0_17 = arith.constant 0 : index
      %18 = vector.load %arg7[%c0_16, %c0_17] : memref<128x128xf32, #tpu.memory_space<vmem>>, vector<128x128xf32>
      tpu.vector_store %arg7[%c0_16, %c0_17], %17 {strides = array<i32>} : memref<128x128xf32, #tpu.memory_space<vmem>>, vector<128x128xf32>,
    } else {
    }
    return
  }
  func.func @transform_0(%arg0: i32, %arg1: i32, %arg2: i32) -> (i32, i32) {
    %c0_i32 = arith.constant 0 : i32
    return %arg0, %arg2 : i32, i32
  }
  func.func @transform_1(%arg0: i32, %arg1: i32, %arg2: i32) -> (i32, i32) {
    %c0_i32 = arith.constant 0 : i32
    return %arg2, %arg1 : i32, i32
  }
  func.func @transform_2(%arg0: i32, %arg1: i32, %arg2: i32) -> (i32, i32) {
    %c0_i32 = arith.constant 0 : i32
    %c0_i32_0 = arith.constant 0 : i32
    return %c0_i32, %arg1 : i32, i32
  }
  func.func @transform_3(%arg0: i32, %arg1: i32, %arg2: i32) -> (i32, i32) {
    %c0_i32 = arith.constant 0 : i32
    return %arg0, %arg1 : i32, i32
  }
  func.func @transform_4(%arg0: i32, %arg1: i32, %arg2: i32) -> (i32, i32) {
    %c0_i32 = arith.constant 0 : i32
    return %arg0, %arg1 : i32, i32
  }
}

module attributes {stable_mosaic.version = 11 : i64} {
  func.func @_ln_geglu_kernel(%arg0: i32, %arg1: i32, %arg2: memref<128x128xf32, #tpu.memory_space<vmem>>, %arg3: memref<1x128xf32, #tpu.memory_space<vmem>>, %arg4: memref<1x128xf32, #tpu.memory_space<vmem>>, %arg5: memref<128x512xf32, #tpu.memory_space<vmem>>, %arg6: memref<128x512xf32, #tpu.memory_space<vmem>>, %arg7: memref<1x512xf32, #tpu.memory_space<vmem>>, %arg8: memref<1x512xf32, #tpu.memory_space<vmem>>, %arg9: memref<128x512xf32, #tpu.memory_space<vmem>>, %arg10: memref<128x128xf32, #tpu.memory_space<vmem>>) attributes {dimension_semantics = [#tpu.dimension_semantics<parallel>, #tpu.dimension_semantics<arbitrary>], iteration_bounds = array<i64: 4, 1>, scalar_prefetch = 0 : i64, scratch_operands = 1 : i64, tpu.core_type = #tpu.core_type<tc>, window_params = [{transform_indices = @transform_0, window_bounds = array<i64: 128, 128>}, {pipeline_mode = #tpu.pipeline_mode<synchronous>, transform_indices = @transform_1, window_bounds = array<i64: 1, 128>}, {pipeline_mode = #tpu.pipeline_mode<synchronous>, transform_indices = @transform_2, window_bounds = array<i64: 1, 128>}, {transform_indices = @transform_3, window_bounds = array<i64: 128, 512>}, {transform_indices = @transform_4, window_bounds = array<i64: 128, 512>}, {transform_indices = @transform_5, window_bounds = array<i64: 1, 512>}, {transform_indices = @transform_6, window_bounds = array<i64: 1, 512>}, {transform_indices = @transform_7, window_bounds = array<i64: 128, 512>}]} {
    %c0_i32 = arith.constant 0 : i32
    %0 = arith.cmpi eq, %arg1, %c0_i32 : i32
    %1 = arith.extui %0 : i1 to i32
    %c0_i32_0 = arith.constant 0 : i32
    %2 = arith.cmpi ne, %1, %c0_i32_0 : i32
    scf.if %2 {
      %c0_16 = arith.constant 0 : index
      %c0_17 = arith.constant 0 : index
      %24 = vector.load %arg2[%c0_16, %c0_17] : memref<128x128xf32, #tpu.memory_space<vmem>>, vector<128x128xf32>
      %cst_18 = arith.constant dense<0.000000e+00> : vector<128xf32>
      %25 = vector.multi_reduction <add>, %24, %cst_18 [1] : vector<128x128xf32> to vector<128xf32>
      %26 = vector.shape_cast %25 : vector<128xf32> to vector<128x1xf32>
      %cst_19 = arith.constant 1.280000e+02 : f32
      %27 = vector.broadcast %cst_19 : f32 to vector<128x1xf32>
      %28 = arith.divf %26, %27 : vector<128x1xf32>
      %29 = vector.broadcast %28 : vector<128x1xf32> to vector<128x128xf32>
      %30 = arith.subf %24, %29 : vector<128x128xf32>
      %31 = arith.mulf %30, %30 : vector<128x128xf32>
      %cst_20 = arith.constant dense<0.000000e+00> : vector<128xf32>
      %32 = vector.multi_reduction <add>, %31, %cst_20 [1] : vector<128x128xf32> to vector<128xf32>
      %33 = vector.shape_cast %32 : vector<128xf32> to vector<128x1xf32>
      %cst_21 = arith.constant 1.280000e+02 : f32
      %34 = vector.broadcast %cst_21 : f32 to vector<128x1xf32>
      %35 = arith.divf %33, %34 : vector<128x1xf32>
      %cst_22 = arith.constant 9.99999974E-6 : f32
      %36 = vector.broadcast %cst_22 : f32 to vector<128x1xf32>
      %37 = arith.addf %35, %36 : vector<128x1xf32>
      %38 = math.rsqrt %37 : vector<128x1xf32>
      %39 = vector.broadcast %38 : vector<128x1xf32> to vector<128x128xf32>
      %40 = arith.mulf %30, %39 : vector<128x128xf32>
      %c0_23 = arith.constant 0 : index
      %c0_24 = arith.constant 0 : index
      %41 = vector.load %arg3[%c0_23, %c0_24] : memref<1x128xf32, #tpu.memory_space<vmem>>, vector<1x128xf32>
      %42 = vector.broadcast %41 : vector<1x128xf32> to vector<128x128xf32>
      %43 = arith.mulf %40, %42 : vector<128x128xf32>
      %c0_25 = arith.constant 0 : index
      %c0_26 = arith.constant 0 : index
      %44 = vector.load %arg4[%c0_25, %c0_26] : memref<1x128xf32, #tpu.memory_space<vmem>>, vector<1x128xf32>
      %45 = vector.broadcast %44 : vector<1x128xf32> to vector<128x128xf32>
      %46 = arith.addf %43, %45 : vector<128x128xf32>
      %c0_27 = arith.constant 0 : index
      %c0_28 = arith.constant 0 : index
      %47 = vector.load %arg10[%c0_27, %c0_28] : memref<128x128xf32, #tpu.memory_space<vmem>>, vector<128x128xf32>
      tpu.vector_store %arg10[%c0_27, %c0_28], %46 {strides = array<i32>} : memref<128x128xf32, #tpu.memory_space<vmem>>, vector<128x128xf32>,
    } else {
    }
    %c0 = arith.constant 0 : index
    %c0_1 = arith.constant 0 : index
    %3 = vector.load %arg10[%c0, %c0_1] : memref<128x128xf32, #tpu.memory_space<vmem>>, vector<128x128xf32>
    %c0_2 = arith.constant 0 : index
    %c0_3 = arith.constant 0 : index
    %4 = vector.load %arg5[%c0_2, %c0_3] : memref<128x512xf32, #tpu.memory_space<vmem>>, vector<128x512xf32>
    %cst = arith.constant dense<0.000000e+00> : vector<128x512xf32>
    %5 = tpu.matmul %3, %4, %cst {dimension_numbers = #tpu.dot_dimension_numbers<[1], [0], [0], [1], [0, 0, 1, 1], [], []>} : vector<128x128xf32>, vector<128x512xf32>, vector<128x512xf32> -> vector<128x512xf32>
    %c0_4 = arith.constant 0 : index
    %c0_5 = arith.constant 0 : index
    %6 = vector.load %arg7[%c0_4, %c0_5] : memref<1x512xf32, #tpu.memory_space<vmem>>, vector<1x512xf32>
    %7 = vector.broadcast %6 : vector<1x512xf32> to vector<128x512xf32>
    %8 = arith.addf %5, %7 : vector<128x512xf32>
    %c0_6 = arith.constant 0 : index
    %c0_7 = arith.constant 0 : index
    %9 = vector.load %arg6[%c0_6, %c0_7] : memref<128x512xf32, #tpu.memory_space<vmem>>, vector<128x512xf32>
    %cst_8 = arith.constant dense<0.000000e+00> : vector<128x512xf32>
    %10 = tpu.matmul %3, %9, %cst_8 {dimension_numbers = #tpu.dot_dimension_numbers<[1], [0], [0], [1], [0, 0, 1, 1], [], []>} : vector<128x128xf32>, vector<128x512xf32>, vector<128x512xf32> -> vector<128x512xf32>
    %c0_9 = arith.constant 0 : index
    %c0_10 = arith.constant 0 : index
    %11 = vector.load %arg8[%c0_9, %c0_10] : memref<1x512xf32, #tpu.memory_space<vmem>>, vector<1x512xf32>
    %12 = vector.broadcast %11 : vector<1x512xf32> to vector<128x512xf32>
    %13 = arith.addf %10, %12 : vector<128x512xf32>
    %cst_11 = arith.constant 5.000000e-01 : f32
    %14 = vector.broadcast %cst_11 : f32 to vector<128x512xf32>
    %15 = arith.mulf %14, %13 : vector<128x512xf32>
    %cst_12 = arith.constant 0.707106769 : f32
    %16 = vector.broadcast %cst_12 : f32 to vector<128x512xf32>
    %17 = arith.mulf %13, %16 : vector<128x512xf32>
    %18 = math.erf %17 : vector<128x512xf32>
    %cst_13 = arith.constant 1.000000e+00 : f32
    %19 = vector.broadcast %cst_13 : f32 to vector<128x512xf32>
    %20 = arith.addf %19, %18 : vector<128x512xf32>
    %21 = arith.mulf %15, %20 : vector<128x512xf32>
    %22 = arith.mulf %8, %21 : vector<128x512xf32>
    %c0_14 = arith.constant 0 : index
    %c0_15 = arith.constant 0 : index
    %23 = vector.load %arg9[%c0_14, %c0_15] : memref<128x512xf32, #tpu.memory_space<vmem>>, vector<128x512xf32>
    tpu.vector_store %arg9[%c0_14, %c0_15], %22 {strides = array<i32>} : memref<128x512xf32, #tpu.memory_space<vmem>>, vector<128x512xf32>,
    return
  }
  func.func @transform_0(%arg0: i32, %arg1: i32) -> (i32, i32) {
    %c0_i32 = arith.constant 0 : i32
    %c0_i32_0 = arith.constant 0 : i32
    return %arg0, %c0_i32 : i32, i32
  }
  func.func @transform_1(%arg0: i32, %arg1: i32) -> (i32, i32) {
    %c0_i32 = arith.constant 0 : i32
    %c0_i32_0 = arith.constant 0 : i32
    %c0_i32_1 = arith.constant 0 : i32
    return %c0_i32, %c0_i32_0 : i32, i32
  }
  func.func @transform_2(%arg0: i32, %arg1: i32) -> (i32, i32) {
    %c0_i32 = arith.constant 0 : i32
    %c0_i32_0 = arith.constant 0 : i32
    %c0_i32_1 = arith.constant 0 : i32
    return %c0_i32, %c0_i32_0 : i32, i32
  }
  func.func @transform_3(%arg0: i32, %arg1: i32) -> (i32, i32) {
    %c0_i32 = arith.constant 0 : i32
    %c0_i32_0 = arith.constant 0 : i32
    return %c0_i32, %arg1 : i32, i32
  }
  func.func @transform_4(%arg0: i32, %arg1: i32) -> (i32, i32) {
    %c0_i32 = arith.constant 0 : i32
    %c0_i32_0 = arith.constant 0 : i32
    return %c0_i32, %arg1 : i32, i32
  }
  func.func @transform_5(%arg0: i32, %arg1: i32) -> (i32, i32) {
    %c0_i32 = arith.constant 0 : i32
    %c0_i32_0 = arith.constant 0 : i32
    return %c0_i32, %arg1 : i32, i32
  }
  func.func @transform_6(%arg0: i32, %arg1: i32) -> (i32, i32) {
    %c0_i32 = arith.constant 0 : i32
    %c0_i32_0 = arith.constant 0 : i32
    return %c0_i32, %arg1 : i32, i32
  }
  func.func @transform_7(%arg0: i32, %arg1: i32) -> (i32, i32) {
    %c0_i32 = arith.constant 0 : i32
    return %arg0, %arg1 : i32, i32
  }
}

module attributes {stable_mosaic.version = 11 : i64} {
  func.func @_ln_matmul_kernel(%arg0: i32, %arg1: i32, %arg2: memref<128x128xf32, #tpu.memory_space<vmem>>, %arg3: memref<1x128xf32, #tpu.memory_space<vmem>>, %arg4: memref<1x128xf32, #tpu.memory_space<vmem>>, %arg5: memref<128x384xf32, #tpu.memory_space<vmem>>, %arg6: memref<128x384xf32, #tpu.memory_space<vmem>>, %arg7: memref<128x128xf32, #tpu.memory_space<vmem>>) attributes {dimension_semantics = [#tpu.dimension_semantics<parallel>, #tpu.dimension_semantics<arbitrary>], iteration_bounds = array<i64: 4, 2>, scalar_prefetch = 0 : i64, scratch_operands = 1 : i64, tpu.core_type = #tpu.core_type<tc>, window_params = [{transform_indices = @transform_0, window_bounds = array<i64: 128, 128>}, {pipeline_mode = #tpu.pipeline_mode<synchronous>, transform_indices = @transform_1, window_bounds = array<i64: 1, 128>}, {pipeline_mode = #tpu.pipeline_mode<synchronous>, transform_indices = @transform_2, window_bounds = array<i64: 1, 128>}, {transform_indices = @transform_3, window_bounds = array<i64: 128, 384>}, {transform_indices = @transform_4, window_bounds = array<i64: 128, 384>}]} {
    %c0_i32 = arith.constant 0 : i32
    %0 = arith.cmpi eq, %arg1, %c0_i32 : i32
    %1 = arith.extui %0 : i1 to i32
    %c0_i32_0 = arith.constant 0 : i32
    %2 = arith.cmpi ne, %1, %c0_i32_0 : i32
    scf.if %2 {
      %c0_6 = arith.constant 0 : index
      %c0_7 = arith.constant 0 : index
      %7 = vector.load %arg2[%c0_6, %c0_7] : memref<128x128xf32, #tpu.memory_space<vmem>>, vector<128x128xf32>
      %cst_8 = arith.constant dense<0.000000e+00> : vector<128xf32>
      %8 = vector.multi_reduction <add>, %7, %cst_8 [1] : vector<128x128xf32> to vector<128xf32>
      %9 = vector.shape_cast %8 : vector<128xf32> to vector<128x1xf32>
      %cst_9 = arith.constant 1.280000e+02 : f32
      %10 = vector.broadcast %cst_9 : f32 to vector<128x1xf32>
      %11 = arith.divf %9, %10 : vector<128x1xf32>
      %12 = vector.broadcast %11 : vector<128x1xf32> to vector<128x128xf32>
      %13 = arith.subf %7, %12 : vector<128x128xf32>
      %14 = arith.mulf %13, %13 : vector<128x128xf32>
      %cst_10 = arith.constant dense<0.000000e+00> : vector<128xf32>
      %15 = vector.multi_reduction <add>, %14, %cst_10 [1] : vector<128x128xf32> to vector<128xf32>
      %16 = vector.shape_cast %15 : vector<128xf32> to vector<128x1xf32>
      %cst_11 = arith.constant 1.280000e+02 : f32
      %17 = vector.broadcast %cst_11 : f32 to vector<128x1xf32>
      %18 = arith.divf %16, %17 : vector<128x1xf32>
      %cst_12 = arith.constant 9.99999974E-6 : f32
      %19 = vector.broadcast %cst_12 : f32 to vector<128x1xf32>
      %20 = arith.addf %18, %19 : vector<128x1xf32>
      %21 = math.rsqrt %20 : vector<128x1xf32>
      %22 = vector.broadcast %21 : vector<128x1xf32> to vector<128x128xf32>
      %23 = arith.mulf %13, %22 : vector<128x128xf32>
      %c0_13 = arith.constant 0 : index
      %c0_14 = arith.constant 0 : index
      %24 = vector.load %arg3[%c0_13, %c0_14] : memref<1x128xf32, #tpu.memory_space<vmem>>, vector<1x128xf32>
      %25 = vector.broadcast %24 : vector<1x128xf32> to vector<128x128xf32>
      %26 = arith.mulf %23, %25 : vector<128x128xf32>
      %c0_15 = arith.constant 0 : index
      %c0_16 = arith.constant 0 : index
      %27 = vector.load %arg4[%c0_15, %c0_16] : memref<1x128xf32, #tpu.memory_space<vmem>>, vector<1x128xf32>
      %28 = vector.broadcast %27 : vector<1x128xf32> to vector<128x128xf32>
      %29 = arith.addf %26, %28 : vector<128x128xf32>
      %c0_17 = arith.constant 0 : index
      %c0_18 = arith.constant 0 : index
      %30 = vector.load %arg7[%c0_17, %c0_18] : memref<128x128xf32, #tpu.memory_space<vmem>>, vector<128x128xf32>
      tpu.vector_store %arg7[%c0_17, %c0_18], %29 {strides = array<i32>} : memref<128x128xf32, #tpu.memory_space<vmem>>, vector<128x128xf32>,
    } else {
    }
    %c0 = arith.constant 0 : index
    %c0_1 = arith.constant 0 : index
    %3 = vector.load %arg7[%c0, %c0_1] : memref<128x128xf32, #tpu.memory_space<vmem>>, vector<128x128xf32>
    %c0_2 = arith.constant 0 : index
    %c0_3 = arith.constant 0 : index
    %4 = vector.load %arg5[%c0_2, %c0_3] : memref<128x384xf32, #tpu.memory_space<vmem>>, vector<128x384xf32>
    %cst = arith.constant dense<0.000000e+00> : vector<128x384xf32>
    %5 = tpu.matmul %3, %4, %cst {dimension_numbers = #tpu.dot_dimension_numbers<[1], [0], [0], [1], [0, 0, 1, 1], [], []>} : vector<128x128xf32>, vector<128x384xf32>, vector<128x384xf32> -> vector<128x384xf32>
    %c0_4 = arith.constant 0 : index
    %c0_5 = arith.constant 0 : index
    %6 = vector.load %arg6[%c0_4, %c0_5] : memref<128x384xf32, #tpu.memory_space<vmem>>, vector<128x384xf32>
    tpu.vector_store %arg6[%c0_4, %c0_5], %5 {strides = array<i32>} : memref<128x384xf32, #tpu.memory_space<vmem>>, vector<128x384xf32>,
    return
  }
  func.func @transform_0(%arg0: i32, %arg1: i32) -> (i32, i32) {
    %c0_i32 = arith.constant 0 : i32
    %c0_i32_0 = arith.constant 0 : i32
    return %arg0, %c0_i32 : i32, i32
  }
  func.func @transform_1(%arg0: i32, %arg1: i32) -> (i32, i32) {
    %c0_i32 = arith.constant 0 : i32
    %c0_i32_0 = arith.constant 0 : i32
    %c0_i32_1 = arith.constant 0 : i32
    return %c0_i32, %c0_i32_0 : i32, i32
  }
  func.func @transform_2(%arg0: i32, %arg1: i32) -> (i32, i32) {
    %c0_i32 = arith.constant 0 : i32
    %c0_i32_0 = arith.constant 0 : i32
    %c0_i32_1 = arith.constant 0 : i32
    return %c0_i32, %c0_i32_0 : i32, i32
  }
  func.func @transform_3(%arg0: i32, %arg1: i32) -> (i32, i32) {
    %c0_i32 = arith.constant 0 : i32
    %c0_i32_0 = arith.constant 0 : i32
    return %c0_i32, %arg1 : i32, i32
  }
  func.func @transform_4(%arg0: i32, %arg1: i32) -> (i32, i32) {
    %c0_i32 = arith.constant 0 : i32
    return %arg0, %arg1 : i32, i32
  }
}

module attributes {stable_mosaic.version = 11 : i64} {
  func.func @_matmul_bias_res_kernel(%arg0: i32, %arg1: i32, %arg2: i32, %arg3: memref<128x256xf32, #tpu.memory_space<vmem>>, %arg4: memref<256x128xf32, #tpu.memory_space<vmem>>, %arg5: memref<1x128xf32, #tpu.memory_space<vmem>>, %arg6: memref<128x128xf32, #tpu.memory_space<vmem>>, %arg7: memref<128x128xf32, #tpu.memory_space<vmem>>, %arg8: memref<128x128xf32, #tpu.memory_space<vmem>>) attributes {dimension_semantics = [#tpu.dimension_semantics<parallel>, #tpu.dimension_semantics<parallel>, #tpu.dimension_semantics<arbitrary>], iteration_bounds = array<i64: 4, 1, 2>, scalar_prefetch = 0 : i64, scratch_operands = 1 : i64, tpu.core_type = #tpu.core_type<tc>, window_params = [{transform_indices = @transform_0, window_bounds = array<i64: 128, 256>}, {transform_indices = @transform_1, window_bounds = array<i64: 256, 128>}, {transform_indices = @transform_2, window_bounds = array<i64: 1, 128>}, {transform_indices = @transform_3, window_bounds = array<i64: 128, 128>}, {transform_indices = @transform_4, window_bounds = array<i64: 128, 128>}]} {
    %c0_i32 = arith.constant 0 : i32
    %0 = arith.cmpi eq, %arg2, %c0_i32 : i32
    %1 = arith.extui %0 : i1 to i32
    %c0_i32_0 = arith.constant 0 : i32
    %2 = arith.cmpi ne, %1, %c0_i32_0 : i32
    scf.if %2 {
      %cst_9 = arith.constant 0.000000e+00 : f32
      %12 = vector.broadcast %cst_9 : f32 to vector<128x128xf32>
      %c0_10 = arith.constant 0 : index
      %c0_11 = arith.constant 0 : index
      %13 = vector.load %arg8[%c0_10, %c0_11] : memref<128x128xf32, #tpu.memory_space<vmem>>, vector<128x128xf32>
      tpu.vector_store %arg8[%c0_10, %c0_11], %12 {strides = array<i32>} : memref<128x128xf32, #tpu.memory_space<vmem>>, vector<128x128xf32>,
    } else {
    }
    %c0 = arith.constant 0 : index
    %c0_1 = arith.constant 0 : index
    %3 = vector.load %arg8[%c0, %c0_1] : memref<128x128xf32, #tpu.memory_space<vmem>>, vector<128x128xf32>
    %c0_2 = arith.constant 0 : index
    %c0_3 = arith.constant 0 : index
    %4 = vector.load %arg3[%c0_2, %c0_3] : memref<128x256xf32, #tpu.memory_space<vmem>>, vector<128x256xf32>
    %c0_4 = arith.constant 0 : index
    %c0_5 = arith.constant 0 : index
    %5 = vector.load %arg4[%c0_4, %c0_5] : memref<256x128xf32, #tpu.memory_space<vmem>>, vector<256x128xf32>
    %cst = arith.constant dense<0.000000e+00> : vector<128x128xf32>
    %6 = tpu.matmul %4, %5, %cst {dimension_numbers = #tpu.dot_dimension_numbers<[1], [0], [0], [1], [0, 0, 1, 1], [], []>} : vector<128x256xf32>, vector<256x128xf32>, vector<128x128xf32> -> vector<128x128xf32>
    %7 = arith.addf %3, %6 : vector<128x128xf32>
    %c0_6 = arith.constant 0 : index
    %c0_7 = arith.constant 0 : index
    %8 = vector.load %arg8[%c0_6, %c0_7] : memref<128x128xf32, #tpu.memory_space<vmem>>, vector<128x128xf32>
    tpu.vector_store %arg8[%c0_6, %c0_7], %7 {strides = array<i32>} : memref<128x128xf32, #tpu.memory_space<vmem>>, vector<128x128xf32>,
    %c1_i32 = arith.constant 1 : i32
    %9 = arith.cmpi eq, %arg2, %c1_i32 : i32
    %10 = arith.extui %9 : i1 to i32
    %c0_i32_8 = arith.constant 0 : i32
    %11 = arith.cmpi ne, %10, %c0_i32_8 : i32
    scf.if %11 {
      %c0_9 = arith.constant 0 : index
      %c0_10 = arith.constant 0 : index
      %12 = vector.load %arg8[%c0_9, %c0_10] : memref<128x128xf32, #tpu.memory_space<vmem>>, vector<128x128xf32>
      %c0_11 = arith.constant 0 : index
      %c0_12 = arith.constant 0 : index
      %13 = vector.load %arg5[%c0_11, %c0_12] : memref<1x128xf32, #tpu.memory_space<vmem>>, vector<1x128xf32>
      %14 = vector.broadcast %13 : vector<1x128xf32> to vector<128x128xf32>
      %15 = arith.addf %12, %14 : vector<128x128xf32>
      %c0_13 = arith.constant 0 : index
      %c0_14 = arith.constant 0 : index
      %16 = vector.load %arg6[%c0_13, %c0_14] : memref<128x128xf32, #tpu.memory_space<vmem>>, vector<128x128xf32>
      %17 = arith.addf %15, %16 : vector<128x128xf32>
      %c0_15 = arith.constant 0 : index
      %c0_16 = arith.constant 0 : index
      %18 = vector.load %arg7[%c0_15, %c0_16] : memref<128x128xf32, #tpu.memory_space<vmem>>, vector<128x128xf32>
      tpu.vector_store %arg7[%c0_15, %c0_16], %17 {strides = array<i32>} : memref<128x128xf32, #tpu.memory_space<vmem>>, vector<128x128xf32>,
    } else {
    }
    return
  }
  func.func @transform_0(%arg0: i32, %arg1: i32, %arg2: i32) -> (i32, i32) {
    %c0_i32 = arith.constant 0 : i32
    return %arg0, %arg2 : i32, i32
  }
  func.func @transform_1(%arg0: i32, %arg1: i32, %arg2: i32) -> (i32, i32) {
    %c0_i32 = arith.constant 0 : i32
    return %arg2, %arg1 : i32, i32
  }
  func.func @transform_2(%arg0: i32, %arg1: i32, %arg2: i32) -> (i32, i32) {
    %c0_i32 = arith.constant 0 : i32
    %c0_i32_0 = arith.constant 0 : i32
    return %c0_i32, %arg1 : i32, i32
  }
  func.func @transform_3(%arg0: i32, %arg1: i32, %arg2: i32) -> (i32, i32) {
    %c0_i32 = arith.constant 0 : i32
    return %arg0, %arg1 : i32, i32
  }
  func.func @transform_4(%arg0: i32, %arg1: i32, %arg2: i32) -> (i32, i32) {
    %c0_i32 = arith.constant 0 : i32
    return %arg0, %arg1 : i32, i32
  }
}

</mosaic_0001>

<llo_original>
// kernel: basic_transformer_block_forward.7
$region0: #{basic_transformer_block_forward.7}
  #allocation0 [shape = 'u32[]', space=smem, size = 0x4, offset = 0x4, fixed_abs, tag = 'smem constant byte address 0x4 - core index']
  #allocation1 [shape = 'u32[144,128]{1,0:T(1,128)}', space=vmem, size = 0x12000, scoped, tag = 'internal scratch']
  #allocation2 [shape = 'f32[128,128]{1,0:T(8,128)}', space=vmem, size = 0x10000, scoped, tag = 'scratch operand']
  %s0 = inlined_call_operand.vmem [shape: f32[512,256], index: 0, kind: input, shape index: {}]
  %s1 = inlined_call_operand.vmem [shape: f32[256,128], index: 1, kind: input, shape index: {}]
  %s2 = inlined_call_operand.vmem [shape: f32[1,128], index: 2, kind: input, shape index: {}]
  %s3 = inlined_call_operand.vmem [shape: f32[512,128], index: 3, kind: input, shape index: {}]
  %s4 = inlined_call_operand.vmem [shape: f32[512,128], index: 4, kind: output, shape index: {}]
  %s5 = sld [smem:[#allocation0]]
  $region57: #{basic_transformer_block_forward.7} parent=0
    _
  %s7 = ssub.s32 1, %s5
  %s8 = scalar_select 0, %s7, %s5
  loop: start=0, step=1, limit=6
  $region2: #{basic_transformer_block_forward.7} parent=0 // loop_pre_header
    _
  $region3: #{basic_transformer_block_forward.7} parent=0 // loop_header
    %s10 = sphi 0, %s14
    %p11 = scmp.ge.s32.totalorder %s10, 6
    %s17 = sphi 0, %s36
    %s18 = sphi 0, %s32
    %s19 = sphi 0, %s28
    %s20 = sphi 0, %s17
    %s21 = sphi 0, %s18
    %s22 = sphi 0, %s19
    %s23 = sphi 0, %s20
    %s24 = sphi 0, %s21
    %s25 = sphi 0, %s22
    %s41 = sphi 0, %s43
    %s44 = sphi 0, %s41
    %s45 = sphi 0, %s44
    %s61 = sphi 0, %s45
    %s69 = sphi 0, %s71
    %s72 = sphi 0, %s69
    %s73 = sphi 0, %s72
    %s89 = sphi 0, %s73
    %s95 = sphi 0, %s97
    %s98 = sphi 0, %s95
    %s99 = sphi 0, %s98
    %s115 = sphi 0, %s99
    %s123 = sphi 0, %s125
    %s126 = sphi 0, %s123
    %s127 = sphi 0, %s126
    %s143 = sphi 0, %s127
    %s151 = sphi 0, %s153
    %s154 = sphi 0, %s151
    %s155 = sphi 0, %s154
    %s171 = sphi 0, %s155
  $region4: #{basic_transformer_block_forward.7} parent=0 // loop_header_branch
    %13 = sbr.rel (%p11) target = $region8
  $region5: #{basic_transformer_block_forward.7} parent=0 // loop_body
    %s15 = ssub.s32 %s10, 1
    %s16 = ssub.s32 %s10, 2
    %s26 = sadd.s32 1, %s19
    %p27 = scmp.ge.s32.totalorder %s26, 1
    %s28 = scalar_select %p27, 0, %s26
    %s29 = sadd.s32 1, %s18
    %s30 = scalar_select %p27, %s29, %s18
    %p31 = scmp.ge.s32.totalorder %s30, 1
    %s32 = scalar_select %p31, 0, %s30
    %s33 = sadd.s32 1, %s17
    %s34 = scalar_select %p31, %s33, %s17
    %p35 = scmp.ge.s32.totalorder %s34, 4
    %s36 = scalar_select %p35, 0, %s34
    %s37 = ssub.s32 %s17, %s36
    %s38 = ssub.s32 %s19, %s28
    %s39 = sor.u32 %s37, %s38
    %p40 = scmp.eq.s32.totalorder %s39, 0
    %s42 = sadd.s32 %s41, 1
    %s43 = scalar_select %p40, %s41, %s42
    %p46 = pneg %p40
    %p47 = scmp.eq.s32.totalorder %s10, 3
    %p48 = por %p46, %p47
    %p49 = scmp.ne.s32.totalorder %s41, %s44
    %p50 = scmp.eq.s32.totalorder %s10, 0
    %p51 = por %p49, %p50
    %p52 = scmp.ne.s32.totalorder %s41, %s44
    %p53 = scmp.eq.s32.totalorder %s15, 3
    %p54 = por %p52, %p53
    %p55 = scmp.ne.s32.totalorder %s44, %s45
    %p56 = scmp.eq.s32.totalorder %s15, 0
    %p57 = por %p55, %p56
    %p58 = scmp.ne.s32.totalorder %s44, %s45
    %p59 = scmp.eq.s32.totalorder %s16, 3
    %p60 = por %p58, %p59
    %p62 = scmp.ne.s32.totalorder %s45, %s61
    %p63 = scmp.eq.s32.totalorder %s16, 0
    %p64 = por %p62, %p63
    %s65 = ssub.s32 %s19, %s28
    %s66 = ssub.s32 %s18, %s32
    %s67 = sor.u32 %s65, %s66
    %p68 = scmp.eq.s32.totalorder %s67, 0
    %s70 = sadd.s32 %s69, 1
    %s71 = scalar_select %p68, %s69, %s70
    %p74 = pneg %p68
    %p75 = scmp.eq.s32.totalorder %s10, 3
    %p76 = por %p74, %p75
    %p77 = scmp.ne.s32.totalorder %s69, %s72
    %p78 = scmp.eq.s32.totalorder %s10, 0
    %p79 = por %p77, %p78
    %p80 = scmp.ne.s32.totalorder %s69, %s72
    %p81 = scmp.eq.s32.totalorder %s15, 3
    %p82 = por %p80, %p81
    %p83 = scmp.ne.s32.totalorder %s72, %s73
    %p84 = scmp.eq.s32.totalorder %s15, 0
    %p85 = por %p83, %p84
    %p86 = scmp.ne.s32.totalorder %s72, %s73
    %p87 = scmp.eq.s32.totalorder %s16, 3
    %p88 = por %p86, %p87
    %p90 = scmp.ne.s32.totalorder %s73, %s89
    %p91 = scmp.eq.s32.totalorder %s16, 0
    %p92 = por %p90, %p91
    %s93 = ssub.s32 %s18, %s32
    %p94 = scmp.eq.s32.totalorder %s93, 0
    %s96 = sadd.s32 %s95, 1
    %s97 = scalar_select %p94, %s95, %s96
    %p100 = pneg %p94
    %p101 = scmp.eq.s32.totalorder %s10, 3
    %p102 = por %p100, %p101
    %p103 = scmp.ne.s32.totalorder %s95, %s98
    %p104 = scmp.eq.s32.totalorder %s10, 0
    %p105 = por %p103, %p104
    %p106 = scmp.ne.s32.totalorder %s95, %s98
    %p107 = scmp.eq.s32.totalorder %s15, 3
    %p108 = por %p106, %p107
    %p109 = scmp.ne.s32.totalorder %s98, %s99
    %p110 = scmp.eq.s32.totalorder %s15, 0
    %p111 = por %p109, %p110
    %p112 = scmp.ne.s32.totalorder %s98, %s99
    %p113 = scmp.eq.s32.totalorder %s16, 3
    %p114 = por %p112, %p113
    %p116 = scmp.ne.s32.totalorder %s99, %s115
    %p117 = scmp.eq.s32.totalorder %s16, 0
    %p118 = por %p116, %p117
    %s119 = ssub.s32 %s17, %s36
    %s120 = ssub.s32 %s18, %s32
    %s121 = sor.u32 %s119, %s120
    %p122 = scmp.eq.s32.totalorder %s121, 0
    %s124 = sadd.s32 %s123, 1
    %s125 = scalar_select %p122, %s123, %s124
    %p128 = pneg %p122
    %p129 = scmp.eq.s32.totalorder %s10, 3
    %p130 = por %p128, %p129
    %p131 = scmp.ne.s32.totalorder %s123, %s126
    %p132 = scmp.eq.s32.totalorder %s10, 0
    %p133 = por %p131, %p132
    %p134 = scmp.ne.s32.totalorder %s123, %s126
    %p135 = scmp.eq.s32.totalorder %s15, 3
    %p136 = por %p134, %p135
    %p137 = scmp.ne.s32.totalorder %s126, %s127
    %p138 = scmp.eq.s32.totalorder %s15, 0
    %p139 = por %p137, %p138
    %p140 = scmp.ne.s32.totalorder %s126, %s127
    %p141 = scmp.eq.s32.totalorder %s16, 3
    %p142 = por %p140, %p141
    %p144 = scmp.ne.s32.totalorder %s127, %s143
    %p145 = scmp.eq.s32.totalorder %s16, 0
    %p146 = por %p144, %p145
    %s147 = ssub.s32 %s17, %s36
    %s148 = ssub.s32 %s18, %s32
    %s149 = sor.u32 %s147, %s148
    %p150 = scmp.eq.s32.totalorder %s149, 0
    %s152 = sadd.s32 %s151, 1
    %s153 = scalar_select %p150, %s151, %s152
    %p156 = pneg %p150
    %p157 = scmp.eq.s32.totalorder %s10, 3
    %p158 = por %p156, %p157
    %p159 = scmp.ne.s32.totalorder %s151, %s154
    %p160 = scmp.eq.s32.totalorder %s10, 0
    %p161 = por %p159, %p160
    %p162 = scmp.ne.s32.totalorder %s151, %s154
    %p163 = scmp.eq.s32.totalorder %s15, 3
    %p164 = por %p162, %p163
    %p165 = scmp.ne.s32.totalorder %s154, %s155
    %p166 = scmp.eq.s32.totalorder %s15, 0
    %p167 = por %p165, %p166
    %p168 = scmp.ne.s32.totalorder %s154, %s155
    %p169 = scmp.eq.s32.totalorder %s16, 3
    %p170 = por %p168, %p169
    %p172 = scmp.ne.s32.totalorder %s155, %s171
    %p173 = scmp.eq.s32.totalorder %s16, 0
    %p174 = por %p172, %p173
    %p175 = scmp.le.s32.totalorder 1, %s10
    %p176 = scmp.lt.s32.totalorder %s10, 5
    %p177 = pnand %p175, %p176
    %p178 = pneg %p177
    // Predicated region
    $region9: #{basic_transformer_block_forward.7} parent=5 // pred_check
      _
    $region10: #{basic_transformer_block_forward.7} parent=5 // pred_check_branch
      %180 = sbr.rel (%p177) target = $region12
    $region11: #{basic_transformer_block_forward.7} parent=5 // pred_region
      %s181 = ssub.s32 %s10, 1
      // Predicated region
      $region13: #{basic_transformer_block_forward.7} parent=11 // pred_check
        %p182 = pneg %p85
      $region14: #{basic_transformer_block_forward.7} parent=11 // pred_check_branch
        %184 = sbr.rel (%p182) target = $region16
      $region15: #{basic_transformer_block_forward.7} parent=11 // pred_region
        %s185 = smul.u32 32, %s22
        %p186 = scmp.lt.s32.totalorder %s185, 31
        %s187 = scalar_select %p186, %s185, 31
        %p188 = scmp.lt.s32.totalorder %s21, 0
        %s189 = scalar_select %p188, %s21, 0
        %s190 = sadd.s32 %s189, %s187
        %s191 = smul.addr %s190, 8
        %s192 = scalar_lea.vmem %s1, %s191
        %s193 = smul.u32 32, %s22
      $region16: #{basic_transformer_block_forward.7} parent=11 // pred_fallthru
        _
      // Predicated region
      $region17: #{basic_transformer_block_forward.7} parent=11 // pred_check
        %p194 = pneg %p111
      $region18: #{basic_transformer_block_forward.7} parent=11 // pred_check_branch
        %196 = sbr.rel (%p194) target = $region20
      $region19: #{basic_transformer_block_forward.7} parent=11 // pred_region
        %p197 = scmp.lt.s32.totalorder %s21, 0
        %s198 = scalar_select %p197, %s21, 0
        %s199 = scalar_lea.vmem %s2, %s198
      $region20: #{basic_transformer_block_forward.7} parent=11 // pred_fallthru
        _
    $region12: #{basic_transformer_block_forward.7} parent=5 // pred_fallthru
      _
    %p200 = scmp.lt.s32.totalorder %s10, 4
    // Predicated region
    $region21: #{basic_transformer_block_forward.7} parent=5 // pred_check
      %p201 = pneg %p200
    $region22: #{basic_transformer_block_forward.7} parent=5 // pred_check_branch
      %203 = sbr.rel (%p201) target = $region24
    $region23: #{basic_transformer_block_forward.7} parent=5 // pred_region
      // Predicated region
      $region25: #{basic_transformer_block_forward.7} parent=23 // pred_check
        %p204 = pneg %p51
      $region26: #{basic_transformer_block_forward.7} parent=23 // pred_check_branch
        %206 = sbr.rel (%p204) target = $region28
      $region27: #{basic_transformer_block_forward.7} parent=23 // pred_region
        %s207 = smul.u32 16, %s17
        %s208 = smul.u32 2, %s19
        %p209 = scmp.lt.s32.totalorder %s207, 63
        %s210 = scalar_select %p209, %s207, 63
        %p211 = scmp.lt.s32.totalorder %s208, 1
        %s212 = scalar_select %p211, %s208, 1
        %s213 = smul.addr %s210, 2
        %s214 = sadd.s32 %s212, %s213
        %s215 = smul.addr %s214, 8
        %s216 = scalar_lea.vmem %s0, %s215
        %s217 = smul.u32 16, %s17
        %s218 = smul.u32 2, %s19
      $region28: #{basic_transformer_block_forward.7} parent=23 // pred_fallthru
        _
      // Predicated region
      $region29: #{basic_transformer_block_forward.7} parent=23 // pred_check
        %p219 = pneg %p133
      $region30: #{basic_transformer_block_forward.7} parent=23 // pred_check_branch
        %221 = sbr.rel (%p219) target = $region32
      $region31: #{basic_transformer_block_forward.7} parent=23 // pred_region
        %s222 = smul.u32 16, %s17
        %p223 = scmp.lt.s32.totalorder %s222, 63
        %s224 = scalar_select %p223, %s222, 63
        %p225 = scmp.lt.s32.totalorder %s18, 0
        %s226 = scalar_select %p225, %s18, 0
        %s227 = sadd.s32 %s226, %s224
        %s228 = smul.addr %s227, 8
        %s229 = scalar_lea.vmem %s3, %s228
        %s230 = smul.u32 16, %s17
      $region32: #{basic_transformer_block_forward.7} parent=23 // pred_fallthru
        _
    $region24: #{basic_transformer_block_forward.7} parent=5 // pred_fallthru
      _
    %p231 = scmp.le.s32.totalorder 1, %s10
    %p232 = scmp.lt.s32.totalorder %s10, 5
    %p233 = pnand %p231, %p232
    %p234 = pneg %p233
    // Predicated region
    $region33: #{basic_transformer_block_forward.7} parent=5 // pred_check
      _
    $region34: #{basic_transformer_block_forward.7} parent=5 // pred_check_branch
      %236 = sbr.rel (%p233) target = $region36
    $region35: #{basic_transformer_block_forward.7} parent=5 // pred_region
      %s237 = ssub.s32 %s10, 1
      %s238 = smul.u32 16, %s20
      %s239 = smul.u32 2, %s22
      %p240 = scmp.lt.s32.totalorder %s238, 63
      %s241 = scalar_select %p240, %s238, 63
      %p242 = scmp.lt.s32.totalorder %s239, 1
      %s243 = scalar_select %p242, %s239, 1
      %s244 = smul.addr %s241, 2
      %s245 = sadd.s32 %s243, %s244
      %s246 = smul.addr %s245, 8
      %s247 = scalar_lea.vmem %s0, %s246
      %p248 = pneg %p57
      %p249 = pneg %p54
      %s250 = smul.u32 32, %s22
      %p251 = scmp.lt.s32.totalorder %s250, 31
      %s252 = scalar_select %p251, %s250, 31
      %p253 = scmp.lt.s32.totalorder %s21, 0
      %s254 = scalar_select %p253, %s21, 0
      %s255 = sadd.s32 %s254, %s252
      %s256 = smul.addr %s255, 8
      %s257 = scalar_lea.vmem %s1, %s256
      %p258 = pneg %p85
      %p259 = pneg %p82
      %p260 = scmp.lt.s32.totalorder %s21, 0
      %s261 = scalar_select %p260, %s21, 0
      %s262 = scalar_lea.vmem %s2, %s261
      %p263 = pneg %p111
      %p264 = pneg %p108
      %s265 = smul.u32 16, %s20
      %p266 = scmp.lt.s32.totalorder %s265, 63
      %s267 = scalar_select %p266, %s265, 63
      %p268 = scmp.lt.s32.totalorder %s21, 0
      %s269 = scalar_select %p268, %s21, 0
      %s270 = sadd.s32 %s269, %s267
      %s271 = smul.addr %s270, 8
      %s272 = scalar_lea.vmem %s3, %s271
      %p273 = pneg %p139
      %p274 = pneg %p136
      %p275 = pneg %p167
      %p276 = pneg %p164
      %s277 = smul.u32 16, %s20
      %p278 = scmp.lt.s32.totalorder %s277, 63
      %s279 = scalar_select %p278, %s277, 63
      %p280 = scmp.lt.s32.totalorder %s21, 0
      %s281 = scalar_select %p280, %s21, 0
      %s282 = sadd.s32 %s281, %s279
      %s283 = smul.addr %s282, 8
      %s284 = scalar_lea.vmem %s4, %s283
      %s285 = smul.u32 16, %s20
      %s286 = smul.u32 2, %s22
      %p287 = scmp.lt.s32.totalorder %s285, 63
      %s288 = scalar_select %p287, %s285, 63
      %p289 = scmp.lt.s32.totalorder %s286, 1
      %s290 = scalar_select %p289, %s286, 1
      %s291 = smul.addr %s288, 2
      %s292 = sadd.s32 %s290, %s291
      %s293 = smul.addr %s292, 8
      %s294 = scalar_lea.vmem %s0, %s293
      %s295 = smul.u32 16, %s20
      %s296 = smul.u32 2, %s22
      %s297 = smul.u32 32, %s22
      %p298 = scmp.lt.s32.totalorder %s297, 31
      %s299 = scalar_select %p298, %s297, 31
      %p300 = scmp.lt.s32.totalorder %s21, 0
      %s301 = scalar_select %p300, %s21, 0
      %s302 = sadd.s32 %s301, %s299
      %s303 = smul.addr %s302, 8
      %s304 = scalar_lea.vmem %s1, %s303
      %s305 = smul.u32 32, %s22
      %p306 = scmp.lt.s32.totalorder %s21, 0
      %s307 = scalar_select %p306, %s21, 0
      %s308 = scalar_lea.vmem %s2, %s307
      %s309 = smul.u32 16, %s20
      %p310 = scmp.lt.s32.totalorder %s309, 63
      %s311 = scalar_select %p310, %s309, 63
      %p312 = scmp.lt.s32.totalorder %s21, 0
      %s313 = scalar_select %p312, %s21, 0
      %s314 = sadd.s32 %s313, %s311
      %s315 = smul.addr %s314, 8
      %s316 = scalar_lea.vmem %s3, %s315
      %s317 = smul.u32 16, %s20
      %s318 = smul.u32 16, %s20
      %p319 = scmp.lt.s32.totalorder %s318, 63
      %s320 = scalar_select %p319, %s318, 63
      %p321 = scmp.lt.s32.totalorder %s21, 0
      %s322 = scalar_select %p321, %s21, 0
      %s323 = sadd.s32 %s322, %s320
      %s324 = smul.addr %s323, 8
      %s325 = scalar_lea.vmem %s4, %s324
      %s326 = smul.u32 16, %s20
      %p327 = scmp.eq.s32.totalorder %s22, 0
      // Predicated region
      $region37: #{basic_transformer_block_forward.7} parent=35 // pred_check
        %p328 = pneg %p327
      $region38: #{basic_transformer_block_forward.7} parent=35 // pred_check_branch
        %330 = sbr.rel (%p328) target = $region40
      $region39: #{basic_transformer_block_forward.7} parent=35 // pred_region
        %331 = vst [vmem:[#allocation2] sm:$0xff] 0.0
        %332 = vst [vmem:[#allocation2 + $0x8] sm:$0xff] 0.0
        %333 = vst [vmem:[#allocation2 + $0x10] sm:$0xff] 0.0
        %334 = vst [vmem:[#allocation2 + $0x18] sm:$0xff] 0.0
        %335 = vst [vmem:[#allocation2 + $0x20] sm:$0xff] 0.0
        %336 = vst [vmem:[#allocation2 + $0x28] sm:$0xff] 0.0
        %337 = vst [vmem:[#allocation2 + $0x30] sm:$0xff] 0.0
        %338 = vst [vmem:[#allocation2 + $0x38] sm:$0xff] 0.0
        %339 = vst [vmem:[#allocation2 + $0x40] sm:$0xff] 0.0
        %340 = vst [vmem:[#allocation2 + $0x48] sm:$0xff] 0.0
        %341 = vst [vmem:[#allocation2 + $0x50] sm:$0xff] 0.0
        %342 = vst [vmem:[#allocation2 + $0x58] sm:$0xff] 0.0
        %343 = vst [vmem:[#allocation2 + $0x60] sm:$0xff] 0.0
        %344 = vst [vmem:[#allocation2 + $0x68] sm:$0xff] 0.0
        %345 = vst [vmem:[#allocation2 + $0x70] sm:$0xff] 0.0
        %346 = vst [vmem:[#allocation2 + $0x78] sm:$0xff] 0.0
      $region40: #{basic_transformer_block_forward.7} parent=35 // pred_fallthru
        _
      %v347 = vld [vmem:[#allocation2] sm:$0xff]
      %v348 = vld [vmem:[#allocation2 + $0x8] sm:$0xff]
      %v349 = vld [vmem:[#allocation2 + $0x10] sm:$0xff]
      %v350 = vld [vmem:[#allocation2 + $0x18] sm:$0xff]
      %v351 = vld [vmem:[#allocation2 + $0x20] sm:$0xff]
      %v352 = vld [vmem:[#allocation2 + $0x28] sm:$0xff]
      %v353 = vld [vmem:[#allocation2 + $0x30] sm:$0xff]
      %v354 = vld [vmem:[#allocation2 + $0x38] sm:$0xff]
      %v355 = vld [vmem:[#allocation2 + $0x40] sm:$0xff]
      %v356 = vld [vmem:[#allocation2 + $0x48] sm:$0xff]
      %v357 = vld [vmem:[#allocation2 + $0x50] sm:$0xff]
      %v358 = vld [vmem:[#allocation2 + $0x58] sm:$0xff]
      %v359 = vld [vmem:[#allocation2 + $0x60] sm:$0xff]
      %v360 = vld [vmem:[#allocation2 + $0x68] sm:$0xff]
      %v361 = vld [vmem:[#allocation2 + $0x70] sm:$0xff]
      %v362 = vld [vmem:[#allocation2 + $0x78] sm:$0xff]
      %v363 = vld [vmem:[%s294] sm:$0xff]
      %v364 = vld [vmem:[%s294 + $0x8] sm:$0xff]
      %v365 = vld [vmem:[%s294 + $0x10] sm:$0xff]
      %v366 = vld [vmem:[%s294 + $0x18] sm:$0xff]
      %v367 = vld [vmem:[%s294 + $0x20] sm:$0xff]
      %v368 = vld [vmem:[%s294 + $0x28] sm:$0xff]
      %v369 = vld [vmem:[%s294 + $0x30] sm:$0xff]
      %v370 = vld [vmem:[%s294 + $0x38] sm:$0xff]
      %v371 = vld [vmem:[%s294 + $0x40] sm:$0xff]
      %v372 = vld [vmem:[%s294 + $0x48] sm:$0xff]
      %v373 = vld [vmem:[%s294 + $0x50] sm:$0xff]
      %v374 = vld [vmem:[%s294 + $0x58] sm:$0xff]
      %v375 = vld [vmem:[%s294 + $0x60] sm:$0xff]
      %v376 = vld [vmem:[%s294 + $0x68] sm:$0xff]
      %v377 = vld [vmem:[%s294 + $0x70] sm:$0xff]
      %v378 = vld [vmem:[%s294 + $0x78] sm:$0xff]
      %v379 = vld [vmem:[%s294 + $0x80] sm:$0xff]
      %v380 = vld [vmem:[%s294 + $0x88] sm:$0xff]
      %v381 = vld [vmem:[%s294 + $0x90] sm:$0xff]
      %v382 = vld [vmem:[%s294 + $0x98] sm:$0xff]
      %v383 = vld [vmem:[%s294 + $0xa0] sm:$0xff]
      %v384 = vld [vmem:[%s294 + $0xa8] sm:$0xff]
      %v385 = vld [vmem:[%s294 + $0xb0] sm:$0xff]
      %v386 = vld [vmem:[%s294 + $0xb8] sm:$0xff]
      %v387 = vld [vmem:[%s294 + $0xc0] sm:$0xff]
      %v388 = vld [vmem:[%s294 + $0xc8] sm:$0xff]
      %v389 = vld [vmem:[%s294 + $0xd0] sm:$0xff]
      %v390 = vld [vmem:[%s294 + $0xd8] sm:$0xff]
      %v391 = vld [vmem:[%s294 + $0xe0] sm:$0xff]
      %v392 = vld [vmem:[%s294 + $0xe8] sm:$0xff]
      %v393 = vld [vmem:[%s294 + $0xf0] sm:$0xff]
      %v394 = vld [vmem:[%s294 + $0xf8] sm:$0xff]
      %v395 = vld [vmem:[%s304] sm:$0xff]
      %v396 = vld [vmem:[%s304 + $0x8] sm:$0xff]
      %v397 = vld [vmem:[%s304 + $0x10] sm:$0xff]
      %v398 = vld [vmem:[%s304 + $0x18] sm:$0xff]
      %v399 = vld [vmem:[%s304 + $0x20] sm:$0xff]
      %v400 = vld [vmem:[%s304 + $0x28] sm:$0xff]
      %v401 = vld [vmem:[%s304 + $0x30] sm:$0xff]
      %v402 = vld [vmem:[%s304 + $0x38] sm:$0xff]
      %v403 = vld [vmem:[%s304 + $0x40] sm:$0xff]
      %v404 = vld [vmem:[%s304 + $0x48] sm:$0xff]
      %v405 = vld [vmem:[%s304 + $0x50] sm:$0xff]
      %v406 = vld [vmem:[%s304 + $0x58] sm:$0xff]
      %v407 = vld [vmem:[%s304 + $0x60] sm:$0xff]
      %v408 = vld [vmem:[%s304 + $0x68] sm:$0xff]
      %v409 = vld [vmem:[%s304 + $0x70] sm:$0xff]
      %v410 = vld [vmem:[%s304 + $0x78] sm:$0xff]
      %v411 = vld [vmem:[%s304 + $0x80] sm:$0xff]
      %v412 = vld [vmem:[%s304 + $0x88] sm:$0xff]
      %v413 = vld [vmem:[%s304 + $0x90] sm:$0xff]
      %v414 = vld [vmem:[%s304 + $0x98] sm:$0xff]
      %v415 = vld [vmem:[%s304 + $0xa0] sm:$0xff]
      %v416 = vld [vmem:[%s304 + $0xa8] sm:$0xff]
      %v417 = vld [vmem:[%s304 + $0xb0] sm:$0xff]
      %v418 = vld [vmem:[%s304 + $0xb8] sm:$0xff]
      %v419 = vld [vmem:[%s304 + $0xc0] sm:$0xff]
      %v420 = vld [vmem:[%s304 + $0xc8] sm:$0xff]
      %v421 = vld [vmem:[%s304 + $0xd0] sm:$0xff]
      %v422 = vld [vmem:[%s304 + $0xd8] sm:$0xff]
      %v423 = vld [vmem:[%s304 + $0xe0] sm:$0xff]
      %v424 = vld [vmem:[%s304 + $0xe8] sm:$0xff]
      %v425 = vld [vmem:[%s304 + $0xf0] sm:$0xff]
      %v426 = vld [vmem:[%s304 + $0xf8] sm:$0xff]
      %427 = vmatprep.subr.mxu0 0.0
      %428 = vmatpush1.msra.mxu0 %v395
      %429 = vmatprep.subr.mxu0 0.0
      %430 = vmatpush1.msra.mxu0 %v396
      %431 = vmatprep.subr.mxu0 0.0
      %432 = vmatpush1.msra.mxu0 %v397
      %433 = vmatprep.subr.mxu0 0.0
      %434 = vmatpush1.msra.mxu0 %v398
      %435 = vmatprep.subr.mxu0 0.0
      %436 = vmatpush1.msra.mxu0 %v399
      %437 = vmatprep.subr.mxu0 0.0
      %438 = vmatpush1.msra.mxu0 %v400
      %439 = vmatprep.subr.mxu0 0.0
      %440 = vmatpush1.msra.mxu0 %v401
      %441 = vmatprep.subr.mxu0 0.0
      %442 = vmatpush1.msra.mxu0 %v402
      %443 = vmatprep.subr.mxu0 0.0
      %444 = vmatpush1.msra.mxu0 %v403
      %445 = vmatprep.subr.mxu0 0.0
      %446 = vmatpush1.msra.mxu0 %v404
      %447 = vmatprep.subr.mxu0 0.0
      %448 = vmatpush1.msra.mxu0 %v405
      %449 = vmatprep.subr.mxu0 0.0
      %450 = vmatpush1.msra.mxu0 %v406
      %451 = vmatprep.subr.mxu0 0.0
      %452 = vmatpush1.msra.mxu0 %v407
      %453 = vmatprep.subr.mxu0 0.0
      %454 = vmatpush1.msra.mxu0 %v408
      %455 = vmatprep.subr.mxu0 0.0
      %456 = vmatpush1.msra.mxu0 %v409
      %457 = vmatprep.subr.mxu0 0.0
      %458 = vmatpush1.msra.mxu0 %v410
      %459 = vmatprep.subr.mxu0 0.0
      %460 = vmatpush1.msra.mxu0 %v411
      %461 = vmatprep.subr.mxu0 0.0
      %462 = vmatpush1.msra.mxu0 %v412
      %463 = vmatprep.subr.mxu0 0.0
      %464 = vmatpush1.msra.mxu0 %v413
      %465 = vmatprep.subr.mxu0 0.0
      %466 = vmatpush1.msra.mxu0 %v414
      %467 = vmatprep.subr.mxu0 0.0
      %468 = vmatpush1.msra.mxu0 %v415
      %469 = vmatprep.subr.mxu0 0.0
      %470 = vmatpush1.msra.mxu0 %v416
      %471 = vmatprep.subr.mxu0 0.0
      %472 = vmatpush1.msra.mxu0 %v417
      %473 = vmatprep.subr.mxu0 0.0
      %474 = vmatpush1.msra.mxu0 %v418
      %475 = vmatprep.subr.mxu0 0.0
      %476 = vmatpush1.msra.mxu0 %v419
      %477 = vmatprep.subr.mxu0 0.0
      %478 = vmatpush1.msra.mxu0 %v420
      %479 = vmatprep.subr.mxu0 0.0
      %480 = vmatpush1.msra.mxu0 %v421
      %481 = vmatprep.subr.mxu0 0.0
      %482 = vmatpush1.msra.mxu0 %v422
      %483 = vmatprep.subr.mxu0 0.0
      %484 = vmatpush1.msra.mxu0 %v423
      %485 = vmatprep.subr.mxu0 0.0
      %486 = vmatpush1.msra.mxu0 %v424
      %487 = vmatprep.subr.mxu0 0.0
      %488 = vmatpush1.msra.mxu0 %v425
      %489 = vmatprep.subr.mxu0 0.0
      %490 = vmatpush1.msra.mxu0 %v426
      %491 = vmatprep.mubr.f32.mxu0 %v364
      %492 = vmatmul.mubr.f32.gmra.mrb[0].mxu0 %v363
      %v493 = vpop.f32.mrb[0].mxu0
      %v494 = vadd.f32 0.0, %v493
      %v495 = vpop.f32.mrb[0].mxu0
      %496 = vmatprep.mubr.f32.mxu0 %v366
      %497 = vmatmul.mubr.f32.gmra.mrb[0].mxu0 %v365
      %v498 = vpop.f32.mrb[0].mxu0
      %v499 = vadd.f32 0.0, %v498
      %v500 = vpop.f32.mrb[0].mxu0
      %501 = vmatprep.mubr.f32.mxu0 %v368
      %502 = vmatmul.mubr.f32.gmra.mrb[0].mxu0 %v367
      %v503 = vpop.f32.mrb[0].mxu0
      %v504 = vadd.f32 0.0, %v503
      %v505 = vpop.f32.mrb[0].mxu0
      %506 = vmatprep.mubr.f32.mxu0 %v370
      %507 = vmatmul.mubr.f32.gmra.mrb[0].mxu0 %v369
      %v508 = vpop.f32.mrb[0].mxu0
      %v509 = vadd.f32 0.0, %v508
      %v510 = vpop.f32.mrb[0].mxu0
      %511 = vmatprep.mubr.f32.mxu0 %v372
      %512 = vmatmul.mubr.f32.gmra.mrb[0].mxu0 %v371
      %v513 = vpop.f32.mrb[0].mxu0
      %v514 = vadd.f32 0.0, %v513
      %v515 = vpop.f32.mrb[0].mxu0
      %516 = vmatprep.mubr.f32.mxu0 %v374
      %517 = vmatmul.mubr.f32.gmra.mrb[0].mxu0 %v373
      %v518 = vpop.f32.mrb[0].mxu0
      %v519 = vadd.f32 0.0, %v518
      %v520 = vpop.f32.mrb[0].mxu0
      %521 = vmatprep.mubr.f32.mxu0 %v376
      %522 = vmatmul.mubr.f32.gmra.mrb[0].mxu0 %v375
      %v523 = vpop.f32.mrb[0].mxu0
      %v524 = vadd.f32 0.0, %v523
      %v525 = vpop.f32.mrb[0].mxu0
      %526 = vmatprep.mubr.f32.mxu0 %v378
      %527 = vmatmul.mubr.f32.gmra.mrb[0].mxu0 %v377
      %v528 = vpop.f32.mrb[0].mxu0
      %v529 = vadd.f32 0.0, %v528
      %v530 = vpop.f32.mrb[0].mxu0
      %531 = vmatprep.mubr.f32.mxu0 %v380
      %532 = vmatmul.mubr.f32.gmra.mrb[0].mxu0 %v379
      %v533 = vpop.f32.mrb[0].mxu0
      %v534 = vadd.f32 0.0, %v533
      %v535 = vpop.f32.mrb[0].mxu0
      %536 = vmatprep.mubr.f32.mxu0 %v382
      %537 = vmatmul.mubr.f32.gmra.mrb[0].mxu0 %v381
      %v538 = vpop.f32.mrb[0].mxu0
      %v539 = vadd.f32 0.0, %v538
      %v540 = vpop.f32.mrb[0].mxu0
      %541 = vmatprep.mubr.f32.mxu0 %v384
      %542 = vmatmul.mubr.f32.gmra.mrb[0].mxu0 %v383
      %v543 = vpop.f32.mrb[0].mxu0
      %v544 = vadd.f32 0.0, %v543
      %v545 = vpop.f32.mrb[0].mxu0
      %546 = vmatprep.mubr.f32.mxu0 %v386
      %547 = vmatmul.mubr.f32.gmra.mrb[0].mxu0 %v385
      %v548 = vpop.f32.mrb[0].mxu0
      %v549 = vadd.f32 0.0, %v548
      %v550 = vpop.f32.mrb[0].mxu0
      %551 = vmatprep.mubr.f32.mxu0 %v388
      %552 = vmatmul.mubr.f32.gmra.mrb[0].mxu0 %v387
      %v553 = vpop.f32.mrb[0].mxu0
      %v554 = vadd.f32 0.0, %v553
      %v555 = vpop.f32.mrb[0].mxu0
      %556 = vmatprep.mubr.f32.mxu0 %v390
      %557 = vmatmul.mubr.f32.gmra.mrb[0].mxu0 %v389
      %v558 = vpop.f32.mrb[0].mxu0
      %v559 = vadd.f32 0.0, %v558
      %v560 = vpop.f32.mrb[0].mxu0
      %561 = vmatprep.mubr.f32.mxu0 %v392
      %562 = vmatmul.mubr.f32.gmra.mrb[0].mxu0 %v391
      %v563 = vpop.f32.mrb[0].mxu0
      %v564 = vadd.f32 0.0, %v563
      %v565 = vpop.f32.mrb[0].mxu0
      %566 = vmatprep.mubr.f32.mxu0 %v394
      %567 = vmatmul.mubr.f32.gmra.mrb[0].mxu0 %v393
      %v568 = vpop.f32.mrb[0].mxu0
      %v569 = vadd.f32 0.0, %v568
      %v570 = vpop.f32.mrb[0].mxu0
      %571 = vdwg.mxu0
      %v572 = vadd.f32 %v347, %v494
      %v573 = vadd.f32 %v348, %v499
      %v574 = vadd.f32 %v349, %v504
      %v575 = vadd.f32 %v350, %v509
      %v576 = vadd.f32 %v351, %v514
      %v577 = vadd.f32 %v352, %v519
      %v578 = vadd.f32 %v353, %v524
      %v579 = vadd.f32 %v354, %v529
      %v580 = vadd.f32 %v355, %v534
      %v581 = vadd.f32 %v356, %v539
      %v582 = vadd.f32 %v357, %v544
      %v583 = vadd.f32 %v358, %v549
      %v584 = vadd.f32 %v359, %v554
      %v585 = vadd.f32 %v360, %v559
      %v586 = vadd.f32 %v361, %v564
      %v587 = vadd.f32 %v362, %v569
      %588 = vst [vmem:[#allocation2] sm:$0xff] %v572
      %589 = vst [vmem:[#allocation2 + $0x8] sm:$0xff] %v573
      %590 = vst [vmem:[#allocation2 + $0x10] sm:$0xff] %v574
      %591 = vst [vmem:[#allocation2 + $0x18] sm:$0xff] %v575
      %592 = vst [vmem:[#allocation2 + $0x20] sm:$0xff] %v576
      %593 = vst [vmem:[#allocation2 + $0x28] sm:$0xff] %v577
      %594 = vst [vmem:[#allocation2 + $0x30] sm:$0xff] %v578
      %595 = vst [vmem:[#allocation2 + $0x38] sm:$0xff] %v579
      %596 = vst [vmem:[#allocation2 + $0x40] sm:$0xff] %v580
      %597 = vst [vmem:[#allocation2 + $0x48] sm:$0xff] %v581
      %598 = vst [vmem:[#allocation2 + $0x50] sm:$0xff] %v582
      %599 = vst [vmem:[#allocation2 + $0x58] sm:$0xff] %v583
      %600 = vst [vmem:[#allocation2 + $0x60] sm:$0xff] %v584
      %601 = vst [vmem:[#allocation2 + $0x68] sm:$0xff] %v585
      %602 = vst [vmem:[#allocation2 + $0x70] sm:$0xff] %v586
      %603 = vst [vmem:[#allocation2 + $0x78] sm:$0xff] %v587
      // Predicated region
      $region41: #{basic_transformer_block_forward.7} parent=35 // pred_check
        %p604 = pneg %p327
      $region42: #{basic_transformer_block_forward.7} parent=35 // pred_check_branch
        %606 = sbr.rel (%p604) target = $region44
      $region43: #{basic_transformer_block_forward.7} parent=35 // pred_region
        %v607 = vld [vmem:[#allocation2] sm:$0xff]
        %v608 = vld [vmem:[#allocation2 + $0x8] sm:$0xff]
        %v609 = vld [vmem:[#allocation2 + $0x10] sm:$0xff]
        %v610 = vld [vmem:[#allocation2 + $0x18] sm:$0xff]
        %v611 = vld [vmem:[#allocation2 + $0x20] sm:$0xff]
        %v612 = vld [vmem:[#allocation2 + $0x28] sm:$0xff]
        %v613 = vld [vmem:[#allocation2 + $0x30] sm:$0xff]
        %v614 = vld [vmem:[#allocation2 + $0x38] sm:$0xff]
        %v615 = vld [vmem:[#allocation2 + $0x40] sm:$0xff]
        %v616 = vld [vmem:[#allocation2 + $0x48] sm:$0xff]
        %v617 = vld [vmem:[#allocation2 + $0x50] sm:$0xff]
        %v618 = vld [vmem:[#allocation2 + $0x58] sm:$0xff]
        %v619 = vld [vmem:[#allocation2 + $0x60] sm:$0xff]
        %v620 = vld [vmem:[#allocation2 + $0x68] sm:$0xff]
        %v621 = vld [vmem:[#allocation2 + $0x70] sm:$0xff]
        %v622 = vld [vmem:[#allocation2 + $0x78] sm:$0xff]
        %v623 = vld [vmem:[%s308] sm:$0x1]
        %v625 = vlaneseq
        %v626 = vshrl.u32 %v625, 7
        %v627 = vsub.s32 0, %v626
        %v628 = vrot.slane %v623, %v627
        %v630 = vadd.f32 %v607, %v628
        %v631 = vadd.f32 %v608, %v628
        %v632 = vadd.f32 %v609, %v628
        %v633 = vadd.f32 %v610, %v628
        %v634 = vadd.f32 %v611, %v628
        %v635 = vadd.f32 %v612, %v628
        %v636 = vadd.f32 %v613, %v628
        %v637 = vadd.f32 %v614, %v628
        %v638 = vadd.f32 %v615, %v628
        %v639 = vadd.f32 %v616, %v628
        %v640 = vadd.f32 %v617, %v628
        %v641 = vadd.f32 %v618, %v628
        %v642 = vadd.f32 %v619, %v628
        %v643 = vadd.f32 %v620, %v628
        %v644 = vadd.f32 %v621, %v628
        %v645 = vadd.f32 %v622, %v628
        %v646 = vld [vmem:[%s316] sm:$0xff]
        %v647 = vld [vmem:[%s316 + $0x8] sm:$0xff]
        %v648 = vld [vmem:[%s316 + $0x10] sm:$0xff]
        %v649 = vld [vmem:[%s316 + $0x18] sm:$0xff]
        %v650 = vld [vmem:[%s316 + $0x20] sm:$0xff]
        %v651 = vld [vmem:[%s316 + $0x28] sm:$0xff]
        %v652 = vld [vmem:[%s316 + $0x30] sm:$0xff]
        %v653 = vld [vmem:[%s316 + $0x38] sm:$0xff]
        %v654 = vld [vmem:[%s316 + $0x40] sm:$0xff]
        %v655 = vld [vmem:[%s316 + $0x48] sm:$0xff]
        %v656 = vld [vmem:[%s316 + $0x50] sm:$0xff]
        %v657 = vld [vmem:[%s316 + $0x58] sm:$0xff]
        %v658 = vld [vmem:[%s316 + $0x60] sm:$0xff]
        %v659 = vld [vmem:[%s316 + $0x68] sm:$0xff]
        %v660 = vld [vmem:[%s316 + $0x70] sm:$0xff]
        %v661 = vld [vmem:[%s316 + $0x78] sm:$0xff]
        %v662 = vadd.f32 %v630, %v646
        %v663 = vadd.f32 %v631, %v647
        %v664 = vadd.f32 %v632, %v648
        %v665 = vadd.f32 %v633, %v649
        %v666 = vadd.f32 %v634, %v650
        %v667 = vadd.f32 %v635, %v651
        %v668 = vadd.f32 %v636, %v652
        %v669 = vadd.f32 %v637, %v653
        %v670 = vadd.f32 %v638, %v654
        %v671 = vadd.f32 %v639, %v655
        %v672 = vadd.f32 %v640, %v656
        %v673 = vadd.f32 %v641, %v657
        %v674 = vadd.f32 %v642, %v658
        %v675 = vadd.f32 %v643, %v659
        %v676 = vadd.f32 %v644, %v660
        %v677 = vadd.f32 %v645, %v661
        %678 = vst [vmem:[%s325] sm:$0xff] %v662
        %679 = vst [vmem:[%s325 + $0x8] sm:$0xff] %v663
        %680 = vst [vmem:[%s325 + $0x10] sm:$0xff] %v664
        %681 = vst [vmem:[%s325 + $0x18] sm:$0xff] %v665
        %682 = vst [vmem:[%s325 + $0x20] sm:$0xff] %v666
        %683 = vst [vmem:[%s325 + $0x28] sm:$0xff] %v667
        %684 = vst [vmem:[%s325 + $0x30] sm:$0xff] %v668
        %685 = vst [vmem:[%s325 + $0x38] sm:$0xff] %v669
        %686 = vst [vmem:[%s325 + $0x40] sm:$0xff] %v670
        %687 = vst [vmem:[%s325 + $0x48] sm:$0xff] %v671
        %688 = vst [vmem:[%s325 + $0x50] sm:$0xff] %v672
        %689 = vst [vmem:[%s325 + $0x58] sm:$0xff] %v673
        %690 = vst [vmem:[%s325 + $0x60] sm:$0xff] %v674
        %691 = vst [vmem:[%s325 + $0x68] sm:$0xff] %v675
        %692 = vst [vmem:[%s325 + $0x70] sm:$0xff] %v676
        %693 = vst [vmem:[%s325 + $0x78] sm:$0xff] %v677
      $region44: #{basic_transformer_block_forward.7} parent=35 // pred_fallthru
        _
      %s694 = smul.u32 16, %s20
      %p695 = scmp.lt.s32.totalorder %s694, 63
      %s696 = scalar_select %p695, %s694, 63
      %p697 = scmp.lt.s32.totalorder %s21, 0
      %s698 = scalar_select %p697, %s21, 0
      %s699 = sadd.s32 %s698, %s696
      %s700 = smul.addr %s699, 8
      %s701 = scalar_lea.vmem %s4, %s700
      // Predicated region
      $region45: #{basic_transformer_block_forward.7} parent=35 // pred_check
        %p702 = pneg %p164
      $region46: #{basic_transformer_block_forward.7} parent=35 // pred_check_branch
        %704 = sbr.rel (%p702) target = $region48
      $region47: #{basic_transformer_block_forward.7} parent=35 // pred_region
        %s705 = smul.u32 16, %s20
      $region48: #{basic_transformer_block_forward.7} parent=35 // pred_fallthru
        _
    $region36: #{basic_transformer_block_forward.7} parent=5 // pred_fallthru
      _
    %p706 = scmp.le.s32.totalorder 2, %s10
    // Predicated region
    $region49: #{basic_transformer_block_forward.7} parent=5 // pred_check
      %p707 = pneg %p706
    $region50: #{basic_transformer_block_forward.7} parent=5 // pred_check_branch
      %709 = sbr.rel (%p707) target = $region52
    $region51: #{basic_transformer_block_forward.7} parent=5 // pred_region
      %s710 = ssub.s32 %s10, 2
      // Predicated region
      $region53: #{basic_transformer_block_forward.7} parent=51 // pred_check
        %p711 = pneg %p170
      $region54: #{basic_transformer_block_forward.7} parent=51 // pred_check_branch
        %713 = sbr.rel (%p711) target = $region56
      $region55: #{basic_transformer_block_forward.7} parent=51 // pred_region
        %s714 = smul.u32 16, %s23
        %p715 = scmp.lt.s32.totalorder %s714, 63
        %s716 = scalar_select %p715, %s714, 63
        %p717 = scmp.lt.s32.totalorder %s24, 0
        %s718 = scalar_select %p717, %s24, 0
        %s719 = sadd.s32 %s718, %s716
        %s720 = smul.addr %s719, 8
        %s721 = scalar_lea.vmem %s4, %s720
      $region56: #{basic_transformer_block_forward.7} parent=51 // pred_fallthru
        _
    $region52: #{basic_transformer_block_forward.7} parent=5 // pred_fallthru
      _
  $region6: #{basic_transformer_block_forward.7} parent=0 // loop_footer
    %s14 = sadd.s32 1, %s10
  $region7: #{basic_transformer_block_forward.7} parent=0 // loop_footer_branch
    %9 = sbr.rel target = $region3
  $region8: #{basic_transformer_block_forward.7} parent=0 // loop_exit
    _

// kernel: basic_transformer_block_forward.5
$region0: #{basic_transformer_block_forward.5}
  #allocation0 [shape = 'u32[]', space=smem, size = 0x4, offset = 0x4, fixed_abs, tag = 'smem constant byte address 0x4 - core index']
  #allocation1 [shape = 'u32[144,128]{1,0:T(1,128)}', space=vmem, size = 0x12000, scoped, tag = 'internal scratch']
  #allocation2 [shape = 'f32[128,128]{1,0:T(8,128)}', space=vmem, size = 0x10000, scoped, tag = 'scratch operand']
  %s0 = inlined_call_operand.hbm [shape: f32[512,128], index: 0, kind: input, shape index: {}]
  %s1 = inlined_call_operand.hbm [shape: f32[1,128], index: 1, kind: input, shape index: {}]
  %s2 = inlined_call_operand.hbm [shape: f32[1,128], index: 2, kind: input, shape index: {}]
  %s3 = inlined_call_operand.hbm [shape: f32[128,768], index: 3, kind: input, shape index: {}]
  %s4 = inlined_call_operand.vmem [shape: f32[512,768], index: 4, kind: output, shape index: {}]
  %s5 = sld [smem:[#allocation0]]
  $region88: #{basic_transformer_block_forward.5} parent=0
    _
  %s7 = ssub.s32 1, %s5
  %s8 = scalar_select 0, %s7, %s5
  $region1: #{basic_transformer_block_forward.5} parent=0
    #allocation3 [shape = 'u8[131072]{0}', space=vmem, size = 0x20000, scoped, tag = 'input window, operand 0']
    #allocation4 [shape = 's32[2]{0}', space=sflag, size = 0x8, scoped, tag = 'scoped memory for basic_transformer_block_forward.5']
    #allocation5 [shape = 'u8[512]{0}', space=vmem, size = 0x400, scoped, tag = 'input window, operand 1, single buffered']
    #allocation6 [shape = 's32[1]{0}', space=sflag, size = 0x4, scoped, tag = 'scoped memory for basic_transformer_block_forward.5']
    #allocation7 [shape = 'u8[512]{0}', space=vmem, size = 0x400, scoped, tag = 'input window, operand 2, single buffered']
    #allocation8 [shape = 'u8[393216]{0}', space=vmem, size = 0x60000, scoped, tag = 'input window, operand 3']
    #allocation9 [shape = 's32[2]{0}', space=sflag, size = 0x8, scoped, tag = 'scoped memory for basic_transformer_block_forward.5']
    #allocation10 [shape = 'u8[393216]{0}', space=vmem, size = 0x60000, scoped, tag = 'output window, operand 0']
    %9 = vsyncpa [#allocation4], 0
    %s10 = scalar_lea.sflag [#allocation4], 1
    %11 = vsyncpa %s10, 0
    %12 = vsyncpa [#allocation6], 0
    %13 = vsyncpa [#allocation9], 0
    %s14 = scalar_lea.sflag [#allocation9], 1
    %15 = vsyncpa %s14, 0
    loop: start=0, step=1, limit=10
    $region2: #{basic_transformer_block_forward.5} parent=1 // loop_pre_header
      _
    $region3: #{basic_transformer_block_forward.5} parent=1 // loop_header
      %s17 = sphi 0, %s21
      %p18 = scmp.ge.s32.totalorder %s17, 10
      %s24 = sphi 0, %s36
      %s25 = sphi 0, %s32
      %s26 = sphi 0, %s24
      %s27 = sphi 0, %s25
      %s28 = sphi 0, %s26
      %s29 = sphi 0, %s27
      %s39 = sphi 0, %s41
      %s42 = sphi 0, %s39
      %s43 = sphi 0, %s42
      %s59 = sphi 0, %s43
      %s63 = sphi 0, %s63
      %s65 = sphi 0, %s63
      %s66 = sphi 0, %s65
      %s80 = sphi 0, %s66
      %s84 = sphi 0, %s84
      %s86 = sphi 0, %s84
      %s87 = sphi 0, %s86
      %s101 = sphi 0, %s87
      %s107 = sphi 0, %s109
      %s110 = sphi 0, %s107
      %s111 = sphi 0, %s110
      %s127 = sphi 0, %s111
      %s135 = sphi 0, %s137
      %s138 = sphi 0, %s135
      %s139 = sphi 0, %s138
      %s155 = sphi 0, %s139
    $region4: #{basic_transformer_block_forward.5} parent=1 // loop_header_branch
      %20 = sbr.rel (%p18) target = $region8
    $region5: #{basic_transformer_block_forward.5} parent=1 // loop_body
      %s22 = ssub.s32 %s17, 1
      %s23 = ssub.s32 %s17, 2
      %s30 = sadd.s32 1, %s25
      %p31 = scmp.ge.s32.totalorder %s30, 2
      %s32 = scalar_select %p31, 0, %s30
      %s33 = sadd.s32 1, %s24
      %s34 = scalar_select %p31, %s33, %s24
      %p35 = scmp.ge.s32.totalorder %s34, 4
      %s36 = scalar_select %p35, 0, %s34
      %s37 = ssub.s32 %s24, %s36
      %p38 = scmp.eq.s32.totalorder %s37, 0
      %s40 = sadd.s32 %s39, 1
      %s41 = scalar_select %p38, %s39, %s40
      %p44 = pneg %p38
      %p45 = scmp.eq.s32.totalorder %s17, 7
      %p46 = por %p44, %p45
      %p47 = scmp.ne.s32.totalorder %s39, %s42
      %p48 = scmp.eq.s32.totalorder %s17, 0
      %p49 = por %p47, %p48
      %p50 = scmp.ne.s32.totalorder %s39, %s42
      %p51 = scmp.eq.s32.totalorder %s22, 7
      %p52 = por %p50, %p51
      %p53 = scmp.ne.s32.totalorder %s42, %s43
      %p54 = scmp.eq.s32.totalorder %s22, 0
      %p55 = por %p53, %p54
      %p56 = scmp.ne.s32.totalorder %s42, %s43
      %p57 = scmp.eq.s32.totalorder %s23, 7
      %p58 = por %p56, %p57
      %p60 = scmp.ne.s32.totalorder %s43, %s59
      %p61 = scmp.eq.s32.totalorder %s23, 0
      %p62 = por %p60, %p61
      %s64 = sadd.s32 %s63, 1
      %p67 = scmp.eq.s32.totalorder %s17, 7
      %p68 = scmp.ne.s32.totalorder %s63, %s65
      %p69 = scmp.eq.s32.totalorder %s17, 0
      %p70 = por %p68, %p69
      %p71 = scmp.ne.s32.totalorder %s63, %s65
      %p72 = scmp.eq.s32.totalorder %s22, 7
      %p73 = por %p71, %p72
      %p74 = scmp.ne.s32.totalorder %s65, %s66
      %p75 = scmp.eq.s32.totalorder %s22, 0
      %p76 = por %p74, %p75
      %p77 = scmp.ne.s32.totalorder %s65, %s66
      %p78 = scmp.eq.s32.totalorder %s23, 7
      %p79 = por %p77, %p78
      %p81 = scmp.ne.s32.totalorder %s66, %s80
      %p82 = scmp.eq.s32.totalorder %s23, 0
      %p83 = por %p81, %p82
      %s85 = sadd.s32 %s84, 1
      %p88 = scmp.eq.s32.totalorder %s17, 7
      %p89 = scmp.ne.s32.totalorder %s84, %s86
      %p90 = scmp.eq.s32.totalorder %s17, 0
      %p91 = por %p89, %p90
      %p92 = scmp.ne.s32.totalorder %s84, %s86
      %p93 = scmp.eq.s32.totalorder %s22, 7
      %p94 = por %p92, %p93
      %p95 = scmp.ne.s32.totalorder %s86, %s87
      %p96 = scmp.eq.s32.totalorder %s22, 0
      %p97 = por %p95, %p96
      %p98 = scmp.ne.s32.totalorder %s86, %s87
      %p99 = scmp.eq.s32.totalorder %s23, 7
      %p100 = por %p98, %p99
      %p102 = scmp.ne.s32.totalorder %s87, %s101
      %p103 = scmp.eq.s32.totalorder %s23, 0
      %p104 = por %p102, %p103
      %s105 = ssub.s32 %s25, %s32
      %p106 = scmp.eq.s32.totalorder %s105, 0
      %s108 = sadd.s32 %s107, 1
      %s109 = scalar_select %p106, %s107, %s108
      %p112 = pneg %p106
      %p113 = scmp.eq.s32.totalorder %s17, 7
      %p114 = por %p112, %p113
      %p115 = scmp.ne.s32.totalorder %s107, %s110
      %p116 = scmp.eq.s32.totalorder %s17, 0
      %p117 = por %p115, %p116
      %p118 = scmp.ne.s32.totalorder %s107, %s110
      %p119 = scmp.eq.s32.totalorder %s22, 7
      %p120 = por %p118, %p119
      %p121 = scmp.ne.s32.totalorder %s110, %s111
      %p122 = scmp.eq.s32.totalorder %s22, 0
      %p123 = por %p121, %p122
      %p124 = scmp.ne.s32.totalorder %s110, %s111
      %p125 = scmp.eq.s32.totalorder %s23, 7
      %p126 = por %p124, %p125
      %p128 = scmp.ne.s32.totalorder %s111, %s127
      %p129 = scmp.eq.s32.totalorder %s23, 0
      %p130 = por %p128, %p129
      %s131 = ssub.s32 %s24, %s36
      %s132 = ssub.s32 %s25, %s32
      %s133 = sor.u32 %s131, %s132
      %p134 = scmp.eq.s32.totalorder %s133, 0
      %s136 = sadd.s32 %s135, 1
      %s137 = scalar_select %p134, %s135, %s136
      %p140 = pneg %p134
      %p141 = scmp.eq.s32.totalorder %s17, 7
      %p142 = por %p140, %p141
      %p143 = scmp.ne.s32.totalorder %s135, %s138
      %p144 = scmp.eq.s32.totalorder %s17, 0
      %p145 = por %p143, %p144
      %p146 = scmp.ne.s32.totalorder %s135, %s138
      %p147 = scmp.eq.s32.totalorder %s22, 7
      %p148 = por %p146, %p147
      %p149 = scmp.ne.s32.totalorder %s138, %s139
      %p150 = scmp.eq.s32.totalorder %s22, 0
      %p151 = por %p149, %p150
      %p152 = scmp.ne.s32.totalorder %s138, %s139
      %p153 = scmp.eq.s32.totalorder %s23, 7
      %p154 = por %p152, %p153
      %p156 = scmp.ne.s32.totalorder %s139, %s155
      %p157 = scmp.eq.s32.totalorder %s23, 0
      %p158 = por %p156, %p157
      %p159 = scmp.le.s32.totalorder 1, %s17
      %p160 = scmp.lt.s32.totalorder %s17, 9
      %p161 = pnand %p159, %p160
      %p162 = pneg %p161
      // Predicated region
      $region9: #{basic_transformer_block_forward.5} parent=5 // pred_check
        _
      $region10: #{basic_transformer_block_forward.5} parent=5 // pred_check_branch
        %164 = sbr.rel (%p161) target = $region12
      $region11: #{basic_transformer_block_forward.5} parent=5 // pred_region
        %s165 = ssub.s32 %s17, 1
        // Predicated region
        $region13: #{basic_transformer_block_forward.5} parent=11 // pred_check
          %p166 = pneg %p76
        $region14: #{basic_transformer_block_forward.5} parent=11 // pred_check_branch
          %168 = sbr.rel (%p166) target = $region16
        $region15: #{basic_transformer_block_forward.5} parent=11 // pred_region
          %s170 = ssub.s32 16, 16
          %171 = vsyncadd [#allocation6], %s170
          %s173 = sshll.u32 [#allocation5], 4
          %s174 = int_to_ptr.vmem [resolvable:$true] %s173
          %176 = dma.hbm_to_vmem [thread:$0]  %s1, 16, %s174, [#allocation6]
        $region16: #{basic_transformer_block_forward.5} parent=11 // pred_fallthru
          _
        // Predicated region
        $region17: #{basic_transformer_block_forward.5} parent=11 // pred_check
          %p177 = pneg %p97
        $region18: #{basic_transformer_block_forward.5} parent=11 // pred_check_branch
          %179 = sbr.rel (%p177) target = $region20
        $region19: #{basic_transformer_block_forward.5} parent=11 // pred_region
          %s181 = ssub.s32 16, 16
          %182 = vsyncadd [#allocation6], %s181
          %s184 = sshll.u32 [#allocation7], 4
          %s185 = int_to_ptr.vmem [resolvable:$true] %s184
          %187 = dma.hbm_to_vmem [thread:$0]  %s2, 16, %s185, [#allocation6]
        $region20: #{basic_transformer_block_forward.5} parent=11 // pred_fallthru
          _
      $region12: #{basic_transformer_block_forward.5} parent=5 // pred_fallthru
        _
      %p188 = scmp.lt.s32.totalorder %s17, 8
      // Predicated region
      $region21: #{basic_transformer_block_forward.5} parent=5 // pred_check
        %p189 = pneg %p188
      $region22: #{basic_transformer_block_forward.5} parent=5 // pred_check_branch
        %191 = sbr.rel (%p189) target = $region24
      $region23: #{basic_transformer_block_forward.5} parent=5 // pred_region
        // Predicated region
        $region25: #{basic_transformer_block_forward.5} parent=23 // pred_check
          %p192 = pneg %p49
        $region26: #{basic_transformer_block_forward.5} parent=23 // pred_check_branch
          %194 = sbr.rel (%p192) target = $region28
        $region27: #{basic_transformer_block_forward.5} parent=23 // pred_region
          %s195 = sand.u32 %s39, 1
          %s196 = scalar_lea.sflag [#allocation4], %s195
          %s197 = sand.u32 %s39, 1
          %s198 = smul.addr %s197, 128
          %s199 = scalar_lea.vmem [#allocation3], %s198
          %s200 = smul.u32 16, %s24
          %s202 = ssub.s32 2048, 2048
          %203 = vsyncadd %s196, %s202
          %s204 = smul.addr %s200, 128
          %s205 = scalar_lea.hbm %s0, %s204
          %s206 = sshll.u32 %s199, 4
          %s207 = int_to_ptr.vmem [resolvable:$true] %s206
          %212 = dma.hbm_to_vmem [thread:$0]  %s205, 2048, %s207, %s196, 128, 128, 8
        $region28: #{basic_transformer_block_forward.5} parent=23 // pred_fallthru
          _
        // Predicated region
        $region29: #{basic_transformer_block_forward.5} parent=23 // pred_check
          %p213 = pneg %p117
        $region30: #{basic_transformer_block_forward.5} parent=23 // pred_check_branch
          %215 = sbr.rel (%p213) target = $region32
        $region31: #{basic_transformer_block_forward.5} parent=23 // pred_region
          %s216 = sand.u32 %s107, 1
          %s217 = scalar_lea.sflag [#allocation9], %s216
          %s218 = sand.u32 %s107, 1
          %s219 = smul.addr %s218, 384
          %s220 = scalar_lea.vmem [#allocation8], %s219
          %s221 = smul.u32 3, %s25
          %s223 = ssub.s32 6144, 6144
          %224 = vsyncadd %s217, %s223
          %s225 = smul.addr %s221, 128
          %s226 = scalar_lea.hbm %s3, %s225
          %s227 = sshll.u32 %s220, 4
          %s228 = int_to_ptr.vmem [resolvable:$true] %s227
          %233 = dma.hbm_to_vmem [thread:$0]  %s226, 6144, %s228, %s217, 768, 384, 24
        $region32: #{basic_transformer_block_forward.5} parent=23 // pred_fallthru
          _
      $region24: #{basic_transformer_block_forward.5} parent=5 // pred_fallthru
        _
      %p234 = scmp.le.s32.totalorder 1, %s17
      %p235 = scmp.lt.s32.totalorder %s17, 9
      %p236 = pnand %p234, %p235
      %p237 = pneg %p236
      // Predicated region
      $region33: #{basic_transformer_block_forward.5} parent=5 // pred_check
        _
      $region34: #{basic_transformer_block_forward.5} parent=5 // pred_check_branch
        %239 = sbr.rel (%p236) target = $region36
      $region35: #{basic_transformer_block_forward.5} parent=5 // pred_region
        %s240 = ssub.s32 %s17, 1
        %s241 = sand.u32 %s42, 1
        %s242 = scalar_lea.sflag [#allocation4], %s241
        %s243 = sand.u32 %s42, 1
        %s244 = smul.addr %s243, 128
        %s245 = scalar_lea.vmem [#allocation3], %s244
        // Predicated region
        $region37: #{basic_transformer_block_forward.5} parent=35 // pred_check
          %p246 = pneg %p55
        $region38: #{basic_transformer_block_forward.5} parent=35 // pred_check_branch
          %248 = sbr.rel (%p246) target = $region40
        $region39: #{basic_transformer_block_forward.5} parent=35 // pred_region
          %249 = dma.done %s242, 2048
        $region40: #{basic_transformer_block_forward.5} parent=35 // pred_fallthru
          _
        // Predicated region
        $region41: #{basic_transformer_block_forward.5} parent=35 // pred_check
          %p250 = pneg %p76
        $region42: #{basic_transformer_block_forward.5} parent=35 // pred_check_branch
          %252 = sbr.rel (%p250) target = $region44
        $region43: #{basic_transformer_block_forward.5} parent=35 // pred_region
          %253 = dma.done [#allocation6], 16
        $region44: #{basic_transformer_block_forward.5} parent=35 // pred_fallthru
          _
        // Predicated region
        $region45: #{basic_transformer_block_forward.5} parent=35 // pred_check
          %p254 = pneg %p97
        $region46: #{basic_transformer_block_forward.5} parent=35 // pred_check_branch
          %256 = sbr.rel (%p254) target = $region48
        $region47: #{basic_transformer_block_forward.5} parent=35 // pred_region
          %257 = dma.done [#allocation6], 16
        $region48: #{basic_transformer_block_forward.5} parent=35 // pred_fallthru
          _
        %s258 = sand.u32 %s110, 1
        %s259 = scalar_lea.sflag [#allocation9], %s258
        %s260 = sand.u32 %s110, 1
        %s261 = smul.addr %s260, 384
        %s262 = scalar_lea.vmem [#allocation8], %s261
        // Predicated region
        $region49: #{basic_transformer_block_forward.5} parent=35 // pred_check
          %p263 = pneg %p123
        $region50: #{basic_transformer_block_forward.5} parent=35 // pred_check_branch
          %265 = sbr.rel (%p263) target = $region52
        $region51: #{basic_transformer_block_forward.5} parent=35 // pred_region
          %266 = dma.done %s259, 6144
        $region52: #{basic_transformer_block_forward.5} parent=35 // pred_fallthru
          _
        %s267 = sand.u32 %s42, 1
        %s268 = scalar_lea.sflag [#allocation4], %s267
        %s269 = sand.u32 %s42, 1
        %s270 = smul.addr %s269, 128
        %s271 = scalar_lea.vmem [#allocation3], %s270
        %p272 = pneg %p55
        %p273 = pneg %p52
        %p274 = pneg %p76
        %p275 = pneg %p73
        %p276 = pneg %p97
        %p277 = pneg %p94
        %s278 = sand.u32 %s110, 1
        %s279 = scalar_lea.sflag [#allocation9], %s278
        %s280 = sand.u32 %s110, 1
        %s281 = smul.addr %s280, 384
        %s282 = scalar_lea.vmem [#allocation8], %s281
        %p283 = pneg %p123
        %p284 = pneg %p120
        %p285 = pneg %p151
        %p286 = pneg %p148
        %s287 = sand.u32 %s138, 1
        %s288 = sand.u32 %s138, 1
        %s289 = smul.addr %s288, 384
        %s290 = scalar_lea.vmem [#allocation10], %s289
        %s291 = smul.u32 16, %s26
        %s292 = smul.u32 3, %s27
        %s293 = smul.u32 16, %s26
        %s294 = smul.u32 3, %s27
        %p295 = scmp.eq.s32.totalorder %s27, 0
        // Predicated region
        $region53: #{basic_transformer_block_forward.5} parent=35 // pred_check
          %p296 = pneg %p295
        $region54: #{basic_transformer_block_forward.5} parent=35 // pred_check_branch
          %298 = sbr.rel (%p296) target = $region56
        $region55: #{basic_transformer_block_forward.5} parent=35 // pred_region
          %v299 = vld [vmem:[%s245] sm:$0xff]
          %v300 = vld [vmem:[%s245 + $0x8] sm:$0xff]
          %v301 = vld [vmem:[%s245 + $0x10] sm:$0xff]
          %v302 = vld [vmem:[%s245 + $0x18] sm:$0xff]
          %v303 = vld [vmem:[%s245 + $0x20] sm:$0xff]
          %v304 = vld [vmem:[%s245 + $0x28] sm:$0xff]
          %v305 = vld [vmem:[%s245 + $0x30] sm:$0xff]
          %v306 = vld [vmem:[%s245 + $0x38] sm:$0xff]
          %v307 = vld [vmem:[%s245 + $0x40] sm:$0xff]
          %v308 = vld [vmem:[%s245 + $0x48] sm:$0xff]
          %v309 = vld [vmem:[%s245 + $0x50] sm:$0xff]
          %v310 = vld [vmem:[%s245 + $0x58] sm:$0xff]
          %v311 = vld [vmem:[%s245 + $0x60] sm:$0xff]
          %v312 = vld [vmem:[%s245 + $0x68] sm:$0xff]
          %v313 = vld [vmem:[%s245 + $0x70] sm:$0xff]
          %v314 = vld [vmem:[%s245 + $0x78] sm:$0xff]
          %315 = vadd.xlane.f32.xlu0 %v299
          %v316 = vpop.xlane.xlu0 %315
          %317 = vadd.xlane.f32.xlu0 %v300
          %v318 = vpop.xlane.xlu0 %317
          %319 = vadd.xlane.f32.xlu0 %v301
          %v320 = vpop.xlane.xlu0 %319
          %321 = vadd.xlane.f32.xlu0 %v302
          %v322 = vpop.xlane.xlu0 %321
          %323 = vadd.xlane.f32.xlu0 %v303
          %v324 = vpop.xlane.xlu0 %323
          %325 = vadd.xlane.f32.xlu0 %v304
          %v326 = vpop.xlane.xlu0 %325
          %327 = vadd.xlane.f32.xlu0 %v305
          %v328 = vpop.xlane.xlu0 %327
          %329 = vadd.xlane.f32.xlu0 %v306
          %v330 = vpop.xlane.xlu0 %329
          %331 = vadd.xlane.f32.xlu0 %v307
          %v332 = vpop.xlane.xlu0 %331
          %333 = vadd.xlane.f32.xlu0 %v308
          %v334 = vpop.xlane.xlu0 %333
          %335 = vadd.xlane.f32.xlu0 %v309
          %v336 = vpop.xlane.xlu0 %335
          %337 = vadd.xlane.f32.xlu0 %v310
          %v338 = vpop.xlane.xlu0 %337
          %339 = vadd.xlane.f32.xlu0 %v311
          %v340 = vpop.xlane.xlu0 %339
          %341 = vadd.xlane.f32.xlu0 %v312
          %v342 = vpop.xlane.xlu0 %341
          %343 = vadd.xlane.f32.xlu0 %v313
          %v344 = vpop.xlane.xlu0 %343
          %345 = vadd.xlane.f32.xlu0 %v314
          %v346 = vpop.xlane.xlu0 %345
          %v347 = vrcp.pop 128.0
          %v348 = vmul.f32 %v316, %v347
          %v349 = vmul.f32 %v318, %v347
          %v350 = vmul.f32 %v320, %v347
          %v351 = vmul.f32 %v322, %v347
          %v352 = vmul.f32 %v324, %v347
          %v353 = vmul.f32 %v326, %v347
          %v354 = vmul.f32 %v328, %v347
          %v355 = vmul.f32 %v330, %v347
          %v356 = vmul.f32 %v332, %v347
          %v357 = vmul.f32 %v334, %v347
          %v358 = vmul.f32 %v336, %v347
          %v359 = vmul.f32 %v338, %v347
          %v360 = vmul.f32 %v340, %v347
          %v361 = vmul.f32 %v342, %v347
          %v362 = vmul.f32 %v344, %v347
          %v363 = vmul.f32 %v346, %v347
          %v364 = vsub.f32 %v299, %v348
          %v365 = vsub.f32 %v300, %v349
          %v366 = vsub.f32 %v301, %v350
          %v367 = vsub.f32 %v302, %v351
          %v368 = vsub.f32 %v303, %v352
          %v369 = vsub.f32 %v304, %v353
          %v370 = vsub.f32 %v305, %v354
          %v371 = vsub.f32 %v306, %v355
          %v372 = vsub.f32 %v307, %v356
          %v373 = vsub.f32 %v308, %v357
          %v374 = vsub.f32 %v309, %v358
          %v375 = vsub.f32 %v310, %v359
          %v376 = vsub.f32 %v311, %v360
          %v377 = vsub.f32 %v312, %v361
          %v378 = vsub.f32 %v313, %v362
          %v379 = vsub.f32 %v314, %v363
          %v380 = vmul.f32 %v364, %v364
          %v381 = vmul.f32 %v365, %v365
          %v382 = vmul.f32 %v366, %v366
          %v383 = vmul.f32 %v367, %v367
          %v384 = vmul.f32 %v368, %v368
          %v385 = vmul.f32 %v369, %v369
          %v386 = vmul.f32 %v370, %v370
          %v387 = vmul.f32 %v371, %v371
          %v388 = vmul.f32 %v372, %v372
          %v389 = vmul.f32 %v373, %v373
          %v390 = vmul.f32 %v374, %v374
          %v391 = vmul.f32 %v375, %v375
          %v392 = vmul.f32 %v376, %v376
          %v393 = vmul.f32 %v377, %v377
          %v394 = vmul.f32 %v378, %v378
          %v395 = vmul.f32 %v379, %v379
          %396 = vadd.xlane.f32.xlu0 %v380
          %v397 = vpop.xlane.xlu0 %396
          %398 = vadd.xlane.f32.xlu0 %v381
          %v399 = vpop.xlane.xlu0 %398
          %400 = vadd.xlane.f32.xlu0 %v382
          %v401 = vpop.xlane.xlu0 %400
          %402 = vadd.xlane.f32.xlu0 %v383
          %v403 = vpop.xlane.xlu0 %402
          %404 = vadd.xlane.f32.xlu0 %v384
          %v405 = vpop.xlane.xlu0 %404
          %406 = vadd.xlane.f32.xlu0 %v385
          %v407 = vpop.xlane.xlu0 %406
          %408 = vadd.xlane.f32.xlu0 %v386
          %v409 = vpop.xlane.xlu0 %408
          %410 = vadd.xlane.f32.xlu0 %v387
          %v411 = vpop.xlane.xlu0 %410
          %412 = vadd.xlane.f32.xlu0 %v388
          %v413 = vpop.xlane.xlu0 %412
          %414 = vadd.xlane.f32.xlu0 %v389
          %v415 = vpop.xlane.xlu0 %414
          %416 = vadd.xlane.f32.xlu0 %v390
          %v417 = vpop.xlane.xlu0 %416
          %418 = vadd.xlane.f32.xlu0 %v391
          %v419 = vpop.xlane.xlu0 %418
          %420 = vadd.xlane.f32.xlu0 %v392
          %v421 = vpop.xlane.xlu0 %420
          %422 = vadd.xlane.f32.xlu0 %v393
          %v423 = vpop.xlane.xlu0 %422
          %424 = vadd.xlane.f32.xlu0 %v394
          %v425 = vpop.xlane.xlu0 %424
          %426 = vadd.xlane.f32.xlu0 %v395
          %v427 = vpop.xlane.xlu0 %426
          %v428 = vmul.f32 %v397, %v347
          %v429 = vmul.f32 %v399, %v347
          %v430 = vmul.f32 %v401, %v347
          %v431 = vmul.f32 %v403, %v347
          %v432 = vmul.f32 %v405, %v347
          %v433 = vmul.f32 %v407, %v347
          %v434 = vmul.f32 %v409, %v347
          %v435 = vmul.f32 %v411, %v347
          %v436 = vmul.f32 %v413, %v347
          %v437 = vmul.f32 %v415, %v347
          %v438 = vmul.f32 %v417, %v347
          %v439 = vmul.f32 %v419, %v347
          %v440 = vmul.f32 %v421, %v347
          %v441 = vmul.f32 %v423, %v347
          %v442 = vmul.f32 %v425, %v347
          %v443 = vmul.f32 %v427, %v347
          %v444 = vadd.f32 %v428, 1e-05
          %v445 = vadd.f32 %v429, 1e-05
          %v446 = vadd.f32 %v430, 1e-05
          %v447 = vadd.f32 %v431, 1e-05
          %v448 = vadd.f32 %v432, 1e-05
          %v449 = vadd.f32 %v433, 1e-05
          %v450 = vadd.f32 %v434, 1e-05
          %v451 = vadd.f32 %v435, 1e-05
          %v452 = vadd.f32 %v436, 1e-05
          %v453 = vadd.f32 %v437, 1e-05
          %v454 = vadd.f32 %v438, 1e-05
          %v455 = vadd.f32 %v439, 1e-05
          %v456 = vadd.f32 %v440, 1e-05
          %v457 = vadd.f32 %v441, 1e-05
          %v458 = vadd.f32 %v442, 1e-05
          %v459 = vadd.f32 %v443, 1e-05
          %v460 = vrsqrt.pop %v444
          %v461 = vrsqrt.pop %v445
          %v462 = vrsqrt.pop %v446
          %v463 = vrsqrt.pop %v447
          %v464 = vrsqrt.pop %v448
          %v465 = vrsqrt.pop %v449
          %v466 = vrsqrt.pop %v450
          %v467 = vrsqrt.pop %v451
          %v468 = vrsqrt.pop %v452
          %v469 = vrsqrt.pop %v453
          %v470 = vrsqrt.pop %v454
          %v471 = vrsqrt.pop %v455
          %v472 = vrsqrt.pop %v456
          %v473 = vrsqrt.pop %v457
          %v474 = vrsqrt.pop %v458
          %v475 = vrsqrt.pop %v459
          %v476 = vmul.f32 %v364, %v460
          %v477 = vmul.f32 %v365, %v461
          %v478 = vmul.f32 %v366, %v462
          %v479 = vmul.f32 %v367, %v463
          %v480 = vmul.f32 %v368, %v464
          %v481 = vmul.f32 %v369, %v465
          %v482 = vmul.f32 %v370, %v466
          %v483 = vmul.f32 %v371, %v467
          %v484 = vmul.f32 %v372, %v468
          %v485 = vmul.f32 %v373, %v469
          %v486 = vmul.f32 %v374, %v470
          %v487 = vmul.f32 %v375, %v471
          %v488 = vmul.f32 %v376, %v472
          %v489 = vmul.f32 %v377, %v473
          %v490 = vmul.f32 %v378, %v474
          %v491 = vmul.f32 %v379, %v475
          %v492 = vld [vmem:[#allocation5] sm:$0x1]
          %v494 = vlaneseq
          %v495 = vshrl.u32 %v494, 7
          %v496 = vsub.s32 0, %v495
          %v497 = vrot.slane %v492, %v496
          %v499 = vmul.f32 %v476, %v497
          %v500 = vmul.f32 %v477, %v497
          %v501 = vmul.f32 %v478, %v497
          %v502 = vmul.f32 %v479, %v497
          %v503 = vmul.f32 %v480, %v497
          %v504 = vmul.f32 %v481, %v497
          %v505 = vmul.f32 %v482, %v497
          %v506 = vmul.f32 %v483, %v497
          %v507 = vmul.f32 %v484, %v497
          %v508 = vmul.f32 %v485, %v497
          %v509 = vmul.f32 %v486, %v497
          %v510 = vmul.f32 %v487, %v497
          %v511 = vmul.f32 %v488, %v497
          %v512 = vmul.f32 %v489, %v497
          %v513 = vmul.f32 %v490, %v497
          %v514 = vmul.f32 %v491, %v497
          %v515 = vld [vmem:[#allocation7] sm:$0x1]
          %v517 = vlaneseq
          %v518 = vshrl.u32 %v517, 7
          %v519 = vsub.s32 0, %v518
          %v520 = vrot.slane %v515, %v519
          %v522 = vadd.f32 %v499, %v520
          %v523 = vadd.f32 %v500, %v520
          %v524 = vadd.f32 %v501, %v520
          %v525 = vadd.f32 %v502, %v520
          %v526 = vadd.f32 %v503, %v520
          %v527 = vadd.f32 %v504, %v520
          %v528 = vadd.f32 %v505, %v520
          %v529 = vadd.f32 %v506, %v520
          %v530 = vadd.f32 %v507, %v520
          %v531 = vadd.f32 %v508, %v520
          %v532 = vadd.f32 %v509, %v520
          %v533 = vadd.f32 %v510, %v520
          %v534 = vadd.f32 %v511, %v520
          %v535 = vadd.f32 %v512, %v520
          %v536 = vadd.f32 %v513, %v520
          %v537 = vadd.f32 %v514, %v520
          %538 = vst [vmem:[#allocation2] sm:$0xff] %v522
          %539 = vst [vmem:[#allocation2 + $0x8] sm:$0xff] %v523
          %540 = vst [vmem:[#allocation2 + $0x10] sm:$0xff] %v524
          %541 = vst [vmem:[#allocation2 + $0x18] sm:$0xff] %v525
          %542 = vst [vmem:[#allocation2 + $0x20] sm:$0xff] %v526
          %543 = vst [vmem:[#allocation2 + $0x28] sm:$0xff] %v527
          %544 = vst [vmem:[#allocation2 + $0x30] sm:$0xff] %v528
          %545 = vst [vmem:[#allocation2 + $0x38] sm:$0xff] %v529
          %546 = vst [vmem:[#allocation2 + $0x40] sm:$0xff] %v530
          %547 = vst [vmem:[#allocation2 + $0x48] sm:$0xff] %v531
          %548 = vst [vmem:[#allocation2 + $0x50] sm:$0xff] %v532
          %549 = vst [vmem:[#allocation2 + $0x58] sm:$0xff] %v533
          %550 = vst [vmem:[#allocation2 + $0x60] sm:$0xff] %v534
          %551 = vst [vmem:[#allocation2 + $0x68] sm:$0xff] %v535
          %552 = vst [vmem:[#allocation2 + $0x70] sm:$0xff] %v536
          %553 = vst [vmem:[#allocation2 + $0x78] sm:$0xff] %v537
        $region56: #{basic_transformer_block_forward.5} parent=35 // pred_fallthru
          _
        %v554 = vld [vmem:[#allocation2] sm:$0xff]
        %v555 = vld [vmem:[#allocation2 + $0x8] sm:$0xff]
        %v556 = vld [vmem:[#allocation2 + $0x10] sm:$0xff]
        %v557 = vld [vmem:[#allocation2 + $0x18] sm:$0xff]
        %v558 = vld [vmem:[#allocation2 + $0x20] sm:$0xff]
        %v559 = vld [vmem:[#allocation2 + $0x28] sm:$0xff]
        %v560 = vld [vmem:[#allocation2 + $0x30] sm:$0xff]
        %v561 = vld [vmem:[#allocation2 + $0x38] sm:$0xff]
        %v562 = vld [vmem:[#allocation2 + $0x40] sm:$0xff]
        %v563 = vld [vmem:[#allocation2 + $0x48] sm:$0xff]
        %v564 = vld [vmem:[#allocation2 + $0x50] sm:$0xff]
        %v565 = vld [vmem:[#allocation2 + $0x58] sm:$0xff]
        %v566 = vld [vmem:[#allocation2 + $0x60] sm:$0xff]
        %v567 = vld [vmem:[#allocation2 + $0x68] sm:$0xff]
        %v568 = vld [vmem:[#allocation2 + $0x70] sm:$0xff]
        %v569 = vld [vmem:[#allocation2 + $0x78] sm:$0xff]
        %v570 = vld [vmem:[%s262] sm:$0xff]
        %v571 = vld [vmem:[%s262 + $0x8] sm:$0xff]
        %v572 = vld [vmem:[%s262 + $0x10] sm:$0xff]
        %v573 = vld [vmem:[%s262 + $0x18] sm:$0xff]
        %v574 = vld [vmem:[%s262 + $0x20] sm:$0xff]
        %v575 = vld [vmem:[%s262 + $0x28] sm:$0xff]
        %v576 = vld [vmem:[%s262 + $0x30] sm:$0xff]
        %v577 = vld [vmem:[%s262 + $0x38] sm:$0xff]
        %v578 = vld [vmem:[%s262 + $0x40] sm:$0xff]
        %v579 = vld [vmem:[%s262 + $0x48] sm:$0xff]
        %v580 = vld [vmem:[%s262 + $0x50] sm:$0xff]
        %v581 = vld [vmem:[%s262 + $0x58] sm:$0xff]
        %v582 = vld [vmem:[%s262 + $0x60] sm:$0xff]
        %v583 = vld [vmem:[%s262 + $0x68] sm:$0xff]
        %v584 = vld [vmem:[%s262 + $0x70] sm:$0xff]
        %v585 = vld [vmem:[%s262 + $0x78] sm:$0xff]
        %v586 = vld [vmem:[%s262 + $0x80] sm:$0xff]
        %v587 = vld [vmem:[%s262 + $0x88] sm:$0xff]
        %v588 = vld [vmem:[%s262 + $0x90] sm:$0xff]
        %v589 = vld [vmem:[%s262 + $0x98] sm:$0xff]
        %v590 = vld [vmem:[%s262 + $0xa0] sm:$0xff]
        %v591 = vld [vmem:[%s262 + $0xa8] sm:$0xff]
        %v592 = vld [vmem:[%s262 + $0xb0] sm:$0xff]
        %v593 = vld [vmem:[%s262 + $0xb8] sm:$0xff]
        %v594 = vld [vmem:[%s262 + $0xc0] sm:$0xff]
        %v595 = vld [vmem:[%s262 + $0xc8] sm:$0xff]
        %v596 = vld [vmem:[%s262 + $0xd0] sm:$0xff]
        %v597 = vld [vmem:[%s262 + $0xd8] sm:$0xff]
        %v598 = vld [vmem:[%s262 + $0xe0] sm:$0xff]
        %v599 = vld [vmem:[%s262 + $0xe8] sm:$0xff]
        %v600 = vld [vmem:[%s262 + $0xf0] sm:$0xff]
        %v601 = vld [vmem:[%s262 + $0xf8] sm:$0xff]
        %v602 = vld [vmem:[%s262 + $0x100] sm:$0xff]
        %v603 = vld [vmem:[%s262 + $0x108] sm:$0xff]
        %v604 = vld [vmem:[%s262 + $0x110] sm:$0xff]
        %v605 = vld [vmem:[%s262 + $0x118] sm:$0xff]
        %v606 = vld [vmem:[%s262 + $0x120] sm:$0xff]
        %v607 = vld [vmem:[%s262 + $0x128] sm:$0xff]
        %v608 = vld [vmem:[%s262 + $0x130] sm:$0xff]
        %v609 = vld [vmem:[%s262 + $0x138] sm:$0xff]
        %v610 = vld [vmem:[%s262 + $0x140] sm:$0xff]
        %v611 = vld [vmem:[%s262 + $0x148] sm:$0xff]
        %v612 = vld [vmem:[%s262 + $0x150] sm:$0xff]
        %v613 = vld [vmem:[%s262 + $0x158] sm:$0xff]
        %v614 = vld [vmem:[%s262 + $0x160] sm:$0xff]
        %v615 = vld [vmem:[%s262 + $0x168] sm:$0xff]
        %v616 = vld [vmem:[%s262 + $0x170] sm:$0xff]
        %v617 = vld [vmem:[%s262 + $0x178] sm:$0xff]
        %618 = vmatprep.subr.mxu0 %v571
        %619 = vmatpush1.msra.mxu0 %v570
        %620 = vmatprep.subr.mxu0 %v574
        %621 = vmatpush1.msra.mxu0 %v573
        %622 = vmatprep.subr.mxu0 %v577
        %623 = vmatpush1.msra.mxu0 %v576
        %624 = vmatprep.subr.mxu0 %v580
        %625 = vmatpush1.msra.mxu0 %v579
        %626 = vmatprep.subr.mxu0 %v583
        %627 = vmatpush1.msra.mxu0 %v582
        %628 = vmatprep.subr.mxu0 %v586
        %629 = vmatpush1.msra.mxu0 %v585
        %630 = vmatprep.subr.mxu0 %v589
        %631 = vmatpush1.msra.mxu0 %v588
        %632 = vmatprep.subr.mxu0 %v592
        %633 = vmatpush1.msra.mxu0 %v591
        %634 = vmatprep.subr.mxu0 %v595
        %635 = vmatpush1.msra.mxu0 %v594
        %636 = vmatprep.subr.mxu0 %v598
        %637 = vmatpush1.msra.mxu0 %v597
        %638 = vmatprep.subr.mxu0 %v601
        %639 = vmatpush1.msra.mxu0 %v600
        %640 = vmatprep.subr.mxu0 %v604
        %641 = vmatpush1.msra.mxu0 %v603
        %642 = vmatprep.subr.mxu0 %v607
        %643 = vmatpush1.msra.mxu0 %v606
        %644 = vmatprep.subr.mxu0 %v610
        %645 = vmatpush1.msra.mxu0 %v609
        %646 = vmatprep.subr.mxu0 %v613
        %647 = vmatpush1.msra.mxu0 %v612
        %648 = vmatprep.subr.mxu0 %v616
        %649 = vmatpush1.msra.mxu0 %v615
        %650 = vmatprep.subr.mxu0 0.0
        %651 = vmatpush1.msra.mxu0 0.0
        %652 = vmatprep.subr.mxu0 0.0
        %653 = vmatpush1.msra.mxu0 0.0
        %654 = vmatprep.subr.mxu0 0.0
        %655 = vmatpush1.msra.mxu0 0.0
        %656 = vmatprep.subr.mxu0 0.0
        %657 = vmatpush1.msra.mxu0 0.0
        %658 = vmatprep.subr.mxu0 0.0
        %659 = vmatpush1.msra.mxu0 0.0
        %660 = vmatprep.subr.mxu0 0.0
        %661 = vmatpush1.msra.mxu0 0.0
        %662 = vmatprep.subr.mxu0 0.0
        %663 = vmatpush1.msra.mxu0 0.0
        %664 = vmatprep.subr.mxu0 0.0
        %665 = vmatpush1.msra.mxu0 0.0
        %666 = vmatprep.subr.mxu0 0.0
        %667 = vmatpush1.msra.mxu0 0.0
        %668 = vmatprep.subr.mxu0 0.0
        %669 = vmatpush1.msra.mxu0 0.0
        %670 = vmatprep.subr.mxu0 0.0
        %671 = vmatpush1.msra.mxu0 0.0
        %672 = vmatprep.subr.mxu0 0.0
        %673 = vmatpush1.msra.mxu0 0.0
        %674 = vmatprep.subr.mxu0 0.0
        %675 = vmatpush1.msra.mxu0 0.0
        %676 = vmatprep.subr.mxu0 0.0
        %677 = vmatpush1.msra.mxu0 0.0
        %678 = vmatprep.subr.mxu0 0.0
        %679 = vmatpush1.msra.mxu0 0.0
        %680 = vmatprep.subr.mxu0 0.0
        %681 = vmatpush1.msra.mxu0 0.0
        %682 = vmatprep.mubr.f32.mxu0 0.0
        %683 = vmatmul.mubr.f32.gmra.mrb[0].mxu0 %v554
        %v684 = vpop.f32.mrb[0].mxu0
        %v685 = vadd.f32 0.0, %v684
        %v686 = vpop.f32.mrb[0].mxu0
        %v687 = vadd.f32 0.0, %v686
        %688 = vmatprep.mubr.f32.mxu0 0.0
        %689 = vmatmul.mubr.f32.gmra.mrb[0].mxu0 %v555
        %v690 = vpop.f32.mrb[0].mxu0
        %v691 = vadd.f32 0.0, %v690
        %v692 = vpop.f32.mrb[0].mxu0
        %v693 = vadd.f32 0.0, %v692
        %694 = vmatprep.mubr.f32.mxu0 0.0
        %695 = vmatmul.mubr.f32.gmra.mrb[0].mxu0 %v556
        %v696 = vpop.f32.mrb[0].mxu0
        %v697 = vadd.f32 0.0, %v696
        %v698 = vpop.f32.mrb[0].mxu0
        %v699 = vadd.f32 0.0, %v698
        %700 = vmatprep.mubr.f32.mxu0 0.0
        %701 = vmatmul.mubr.f32.gmra.mrb[0].mxu0 %v557
        %v702 = vpop.f32.mrb[0].mxu0
        %v703 = vadd.f32 0.0, %v702
        %v704 = vpop.f32.mrb[0].mxu0
        %v705 = vadd.f32 0.0, %v704
        %706 = vmatprep.mubr.f32.mxu0 0.0
        %707 = vmatmul.mubr.f32.gmra.mrb[0].mxu0 %v558
        %v708 = vpop.f32.mrb[0].mxu0
        %v709 = vadd.f32 0.0, %v708
        %v710 = vpop.f32.mrb[0].mxu0
        %v711 = vadd.f32 0.0, %v710
        %712 = vmatprep.mubr.f32.mxu0 0.0
        %713 = vmatmul.mubr.f32.gmra.mrb[0].mxu0 %v559
        %v714 = vpop.f32.mrb[0].mxu0
        %v715 = vadd.f32 0.0, %v714
        %v716 = vpop.f32.mrb[0].mxu0
        %v717 = vadd.f32 0.0, %v716
        %718 = vmatprep.mubr.f32.mxu0 0.0
        %719 = vmatmul.mubr.f32.gmra.mrb[0].mxu0 %v560
        %v720 = vpop.f32.mrb[0].mxu0
        %v721 = vadd.f32 0.0, %v720
        %v722 = vpop.f32.mrb[0].mxu0
        %v723 = vadd.f32 0.0, %v722
        %724 = vmatprep.mubr.f32.mxu0 0.0
        %725 = vmatmul.mubr.f32.gmra.mrb[0].mxu0 %v561
        %v726 = vpop.f32.mrb[0].mxu0
        %v727 = vadd.f32 0.0, %v726
        %v728 = vpop.f32.mrb[0].mxu0
        %v729 = vadd.f32 0.0, %v728
        %730 = vmatprep.mubr.f32.mxu0 0.0
        %731 = vmatmul.mubr.f32.gmra.mrb[0].mxu0 %v562
        %v732 = vpop.f32.mrb[0].mxu0
        %v733 = vadd.f32 0.0, %v732
        %v734 = vpop.f32.mrb[0].mxu0
        %v735 = vadd.f32 0.0, %v734
        %736 = vmatprep.mubr.f32.mxu0 0.0
        %737 = vmatmul.mubr.f32.gmra.mrb[0].mxu0 %v563
        %v738 = vpop.f32.mrb[0].mxu0
        %v739 = vadd.f32 0.0, %v738
        %v740 = vpop.f32.mrb[0].mxu0
        %v741 = vadd.f32 0.0, %v740
        %742 = vmatprep.mubr.f32.mxu0 0.0
        %743 = vmatmul.mubr.f32.gmra.mrb[0].mxu0 %v564
        %v744 = vpop.f32.mrb[0].mxu0
        %v745 = vadd.f32 0.0, %v744
        %v746 = vpop.f32.mrb[0].mxu0
        %v747 = vadd.f32 0.0, %v746
        %748 = vmatprep.mubr.f32.mxu0 0.0
        %749 = vmatmul.mubr.f32.gmra.mrb[0].mxu0 %v565
        %v750 = vpop.f32.mrb[0].mxu0
        %v751 = vadd.f32 0.0, %v750
        %v752 = vpop.f32.mrb[0].mxu0
        %v753 = vadd.f32 0.0, %v752
        %754 = vmatprep.mubr.f32.mxu0 0.0
        %755 = vmatmul.mubr.f32.gmra.mrb[0].mxu0 %v566
        %v756 = vpop.f32.mrb[0].mxu0
        %v757 = vadd.f32 0.0, %v756
        %v758 = vpop.f32.mrb[0].mxu0
        %v759 = vadd.f32 0.0, %v758
        %760 = vmatprep.mubr.f32.mxu0 0.0
        %761 = vmatmul.mubr.f32.gmra.mrb[0].mxu0 %v567
        %v762 = vpop.f32.mrb[0].mxu0
        %v763 = vadd.f32 0.0, %v762
        %v764 = vpop.f32.mrb[0].mxu0
        %v765 = vadd.f32 0.0, %v764
        %766 = vmatprep.mubr.f32.mxu0 0.0
        %767 = vmatmul.mubr.f32.gmra.mrb[0].mxu0 %v568
        %v768 = vpop.f32.mrb[0].mxu0
        %v769 = vadd.f32 0.0, %v768
        %v770 = vpop.f32.mrb[0].mxu0
        %v771 = vadd.f32 0.0, %v770
        %772 = vmatprep.mubr.f32.mxu0 0.0
        %773 = vmatmul.mubr.f32.gmra.mrb[0].mxu0 %v569
        %v774 = vpop.f32.mrb[0].mxu0
        %v775 = vadd.f32 0.0, %v774
        %v776 = vpop.f32.mrb[0].mxu0
        %v777 = vadd.f32 0.0, %v776
        %778 = vdwg.mxu0
        %779 = vmatprep.subr.mxu0 0.0
        %780 = vmatpush1.msra.mxu0 %v572
        %781 = vmatprep.subr.mxu0 0.0
        %782 = vmatpush1.msra.mxu0 %v575
        %783 = vmatprep.subr.mxu0 0.0
        %784 = vmatpush1.msra.mxu0 %v578
        %785 = vmatprep.subr.mxu0 0.0
        %786 = vmatpush1.msra.mxu0 %v581
        %787 = vmatprep.subr.mxu0 0.0
        %788 = vmatpush1.msra.mxu0 %v584
        %789 = vmatprep.subr.mxu0 0.0
        %790 = vmatpush1.msra.mxu0 %v587
        %791 = vmatprep.subr.mxu0 0.0
        %792 = vmatpush1.msra.mxu0 %v590
        %793 = vmatprep.subr.mxu0 0.0
        %794 = vmatpush1.msra.mxu0 %v593
        %795 = vmatprep.subr.mxu0 0.0
        %796 = vmatpush1.msra.mxu0 %v596
        %797 = vmatprep.subr.mxu0 0.0
        %798 = vmatpush1.msra.mxu0 %v599
        %799 = vmatprep.subr.mxu0 0.0
        %800 = vmatpush1.msra.mxu0 %v602
        %801 = vmatprep.subr.mxu0 0.0
        %802 = vmatpush1.msra.mxu0 %v605
        %803 = vmatprep.subr.mxu0 0.0
        %804 = vmatpush1.msra.mxu0 %v608
        %805 = vmatprep.subr.mxu0 0.0
        %806 = vmatpush1.msra.mxu0 %v611
        %807 = vmatprep.subr.mxu0 0.0
        %808 = vmatpush1.msra.mxu0 %v614
        %809 = vmatprep.subr.mxu0 0.0
        %810 = vmatpush1.msra.mxu0 %v617
        %811 = vmatprep.subr.mxu0 0.0
        %812 = vmatpush1.msra.mxu0 0.0
        %813 = vmatprep.subr.mxu0 0.0
        %814 = vmatpush1.msra.mxu0 0.0
        %815 = vmatprep.subr.mxu0 0.0
        %816 = vmatpush1.msra.mxu0 0.0
        %817 = vmatprep.subr.mxu0 0.0
        %818 = vmatpush1.msra.mxu0 0.0
        %819 = vmatprep.subr.mxu0 0.0
        %820 = vmatpush1.msra.mxu0 0.0
        %821 = vmatprep.subr.mxu0 0.0
        %822 = vmatpush1.msra.mxu0 0.0
        %823 = vmatprep.subr.mxu0 0.0
        %824 = vmatpush1.msra.mxu0 0.0
        %825 = vmatprep.subr.mxu0 0.0
        %826 = vmatpush1.msra.mxu0 0.0
        %827 = vmatprep.subr.mxu0 0.0
        %828 = vmatpush1.msra.mxu0 0.0
        %829 = vmatprep.subr.mxu0 0.0
        %830 = vmatpush1.msra.mxu0 0.0
        %831 = vmatprep.subr.mxu0 0.0
        %832 = vmatpush1.msra.mxu0 0.0
        %833 = vmatprep.subr.mxu0 0.0
        %834 = vmatpush1.msra.mxu0 0.0
        %835 = vmatprep.subr.mxu0 0.0
        %836 = vmatpush1.msra.mxu0 0.0
        %837 = vmatprep.subr.mxu0 0.0
        %838 = vmatpush1.msra.mxu0 0.0
        %839 = vmatprep.subr.mxu0 0.0
        %840 = vmatpush1.msra.mxu0 0.0
        %841 = vmatprep.subr.mxu0 0.0
        %842 = vmatpush1.msra.mxu0 0.0
        %843 = vmatprep.mubr.f32.mxu0 0.0
        %844 = vmatmul.mubr.f32.gmra.mrb[0].mxu0 %v554
        %v845 = vpop.f32.mrb[0].mxu0
        %v846 = vadd.f32 0.0, %v845
        %v847 = vpop.f32.mrb[0].mxu0
        %848 = vmatprep.mubr.f32.mxu0 0.0
        %849 = vmatmul.mubr.f32.gmra.mrb[0].mxu0 %v555
        %v850 = vpop.f32.mrb[0].mxu0
        %v851 = vadd.f32 0.0, %v850
        %v852 = vpop.f32.mrb[0].mxu0
        %853 = vmatprep.mubr.f32.mxu0 0.0
        %854 = vmatmul.mubr.f32.gmra.mrb[0].mxu0 %v556
        %v855 = vpop.f32.mrb[0].mxu0
        %v856 = vadd.f32 0.0, %v855
        %v857 = vpop.f32.mrb[0].mxu0
        %858 = vmatprep.mubr.f32.mxu0 0.0
        %859 = vmatmul.mubr.f32.gmra.mrb[0].mxu0 %v557
        %v860 = vpop.f32.mrb[0].mxu0
        %v861 = vadd.f32 0.0, %v860
        %v862 = vpop.f32.mrb[0].mxu0
        %863 = vmatprep.mubr.f32.mxu0 0.0
        %864 = vmatmul.mubr.f32.gmra.mrb[0].mxu0 %v558
        %v865 = vpop.f32.mrb[0].mxu0
        %v866 = vadd.f32 0.0, %v865
        %v867 = vpop.f32.mrb[0].mxu0
        %868 = vmatprep.mubr.f32.mxu0 0.0
        %869 = vmatmul.mubr.f32.gmra.mrb[0].mxu0 %v559
        %v870 = vpop.f32.mrb[0].mxu0
        %v871 = vadd.f32 0.0, %v870
        %v872 = vpop.f32.mrb[0].mxu0
        %873 = vmatprep.mubr.f32.mxu0 0.0
        %874 = vmatmul.mubr.f32.gmra.mrb[0].mxu0 %v560
        %v875 = vpop.f32.mrb[0].mxu0
        %v876 = vadd.f32 0.0, %v875
        %v877 = vpop.f32.mrb[0].mxu0
        %878 = vmatprep.mubr.f32.mxu0 0.0
        %879 = vmatmul.mubr.f32.gmra.mrb[0].mxu0 %v561
        %v880 = vpop.f32.mrb[0].mxu0
        %v881 = vadd.f32 0.0, %v880
        %v882 = vpop.f32.mrb[0].mxu0
        %883 = vmatprep.mubr.f32.mxu0 0.0
        %884 = vmatmul.mubr.f32.gmra.mrb[0].mxu0 %v562
        %v885 = vpop.f32.mrb[0].mxu0
        %v886 = vadd.f32 0.0, %v885
        %v887 = vpop.f32.mrb[0].mxu0
        %888 = vmatprep.mubr.f32.mxu0 0.0
        %889 = vmatmul.mubr.f32.gmra.mrb[0].mxu0 %v563
        %v890 = vpop.f32.mrb[0].mxu0
        %v891 = vadd.f32 0.0, %v890
        %v892 = vpop.f32.mrb[0].mxu0
        %893 = vmatprep.mubr.f32.mxu0 0.0
        %894 = vmatmul.mubr.f32.gmra.mrb[0].mxu0 %v564
        %v895 = vpop.f32.mrb[0].mxu0
        %v896 = vadd.f32 0.0, %v895
        %v897 = vpop.f32.mrb[0].mxu0
        %898 = vmatprep.mubr.f32.mxu0 0.0
        %899 = vmatmul.mubr.f32.gmra.mrb[0].mxu0 %v565
        %v900 = vpop.f32.mrb[0].mxu0
        %v901 = vadd.f32 0.0, %v900
        %v902 = vpop.f32.mrb[0].mxu0
        %903 = vmatprep.mubr.f32.mxu0 0.0
        %904 = vmatmul.mubr.f32.gmra.mrb[0].mxu0 %v566
        %v905 = vpop.f32.mrb[0].mxu0
        %v906 = vadd.f32 0.0, %v905
        %v907 = vpop.f32.mrb[0].mxu0
        %908 = vmatprep.mubr.f32.mxu0 0.0
        %909 = vmatmul.mubr.f32.gmra.mrb[0].mxu0 %v567
        %v910 = vpop.f32.mrb[0].mxu0
        %v911 = vadd.f32 0.0, %v910
        %v912 = vpop.f32.mrb[0].mxu0
        %913 = vmatprep.mubr.f32.mxu0 0.0
        %914 = vmatmul.mubr.f32.gmra.mrb[0].mxu0 %v568
        %v915 = vpop.f32.mrb[0].mxu0
        %v916 = vadd.f32 0.0, %v915
        %v917 = vpop.f32.mrb[0].mxu0
        %918 = vmatprep.mubr.f32.mxu0 0.0
        %919 = vmatmul.mubr.f32.gmra.mrb[0].mxu0 %v569
        %v920 = vpop.f32.mrb[0].mxu0
        %v921 = vadd.f32 0.0, %v920
        %v922 = vpop.f32.mrb[0].mxu0
        %923 = vdwg.mxu0
        %924 = vst [vmem:[%s290] sm:$0xff] %v685
        %925 = vst [vmem:[%s290 + $0x8] sm:$0xff] %v687
        %926 = vst [vmem:[%s290 + $0x10] sm:$0xff] %v846
        %927 = vst [vmem:[%s290 + $0x18] sm:$0xff] %v691
        %928 = vst [vmem:[%s290 + $0x20] sm:$0xff] %v693
        %929 = vst [vmem:[%s290 + $0x28] sm:$0xff] %v851
        %930 = vst [vmem:[%s290 + $0x30] sm:$0xff] %v697
        %931 = vst [vmem:[%s290 + $0x38] sm:$0xff] %v699
        %932 = vst [vmem:[%s290 + $0x40] sm:$0xff] %v856
        %933 = vst [vmem:[%s290 + $0x48] sm:$0xff] %v703
        %934 = vst [vmem:[%s290 + $0x50] sm:$0xff] %v705
        %935 = vst [vmem:[%s290 + $0x58] sm:$0xff] %v861
        %936 = vst [vmem:[%s290 + $0x60] sm:$0xff] %v709
        %937 = vst [vmem:[%s290 + $0x68] sm:$0xff] %v711
        %938 = vst [vmem:[%s290 + $0x70] sm:$0xff] %v866
        %939 = vst [vmem:[%s290 + $0x78] sm:$0xff] %v715
        %940 = vst [vmem:[%s290 + $0x80] sm:$0xff] %v717
        %941 = vst [vmem:[%s290 + $0x88] sm:$0xff] %v871
        %942 = vst [vmem:[%s290 + $0x90] sm:$0xff] %v721
        %943 = vst [vmem:[%s290 + $0x98] sm:$0xff] %v723
        %944 = vst [vmem:[%s290 + $0xa0] sm:$0xff] %v876
        %945 = vst [vmem:[%s290 + $0xa8] sm:$0xff] %v727
        %946 = vst [vmem:[%s290 + $0xb0] sm:$0xff] %v729
        %947 = vst [vmem:[%s290 + $0xb8] sm:$0xff] %v881
        %948 = vst [vmem:[%s290 + $0xc0] sm:$0xff] %v733
        %949 = vst [vmem:[%s290 + $0xc8] sm:$0xff] %v735
        %950 = vst [vmem:[%s290 + $0xd0] sm:$0xff] %v886
        %951 = vst [vmem:[%s290 + $0xd8] sm:$0xff] %v739
        %952 = vst [vmem:[%s290 + $0xe0] sm:$0xff] %v741
        %953 = vst [vmem:[%s290 + $0xe8] sm:$0xff] %v891
        %954 = vst [vmem:[%s290 + $0xf0] sm:$0xff] %v745
        %955 = vst [vmem:[%s290 + $0xf8] sm:$0xff] %v747
        %956 = vst [vmem:[%s290 + $0x100] sm:$0xff] %v896
        %957 = vst [vmem:[%s290 + $0x108] sm:$0xff] %v751
        %958 = vst [vmem:[%s290 + $0x110] sm:$0xff] %v753
        %959 = vst [vmem:[%s290 + $0x118] sm:$0xff] %v901
        %960 = vst [vmem:[%s290 + $0x120] sm:$0xff] %v757
        %961 = vst [vmem:[%s290 + $0x128] sm:$0xff] %v759
        %962 = vst [vmem:[%s290 + $0x130] sm:$0xff] %v906
        %963 = vst [vmem:[%s290 + $0x138] sm:$0xff] %v763
        %964 = vst [vmem:[%s290 + $0x140] sm:$0xff] %v765
        %965 = vst [vmem:[%s290 + $0x148] sm:$0xff] %v911
        %966 = vst [vmem:[%s290 + $0x150] sm:$0xff] %v769
        %967 = vst [vmem:[%s290 + $0x158] sm:$0xff] %v771
        %968 = vst [vmem:[%s290 + $0x160] sm:$0xff] %v916
        %969 = vst [vmem:[%s290 + $0x168] sm:$0xff] %v775
        %970 = vst [vmem:[%s290 + $0x170] sm:$0xff] %v777
        %971 = vst [vmem:[%s290 + $0x178] sm:$0xff] %v921
        %s972 = sand.u32 %s138, 1
        %s973 = sand.u32 %s138, 1
        %s974 = smul.addr %s973, 384
        %s975 = scalar_lea.vmem [#allocation10], %s974
        // Predicated region
        $region57: #{basic_transformer_block_forward.5} parent=35 // pred_check
          %p976 = pneg %p148
        $region58: #{basic_transformer_block_forward.5} parent=35 // pred_check_branch
          %978 = sbr.rel (%p976) target = $region60
        $region59: #{basic_transformer_block_forward.5} parent=35 // pred_region
          %s979 = smul.u32 16, %s26
          %s980 = smul.u32 3, %s27
          %s981 = smul.addr %s979, 6
          %s982 = sadd.s32 %s980, %s981
          %s983 = smul.addr %s982, 8
          %s984 = scalar_lea.vmem %s4, %s983
          // Predicated region
          $region61: #{basic_transformer_block_forward.5} parent=59 // pred_check
            _
          $region62: #{basic_transformer_block_forward.5} parent=59 // pred_check_branch
            %986 = sbr.rel (0) target = $region64
          $region63: #{basic_transformer_block_forward.5} parent=59 // pred_region
            // Predicated region
            $region65: #{basic_transformer_block_forward.5} parent=63 // pred_check
              _
            $region66: #{basic_transformer_block_forward.5} parent=63 // pred_check_branch
              %988 = sbr.rel (0) target = $region68
            $region67: #{basic_transformer_block_forward.5} parent=63 // pred_region
              loop: start=0, step=1, limit=1
              $region69: #{basic_transformer_block_forward.5} parent=67 // loop_pre_header
                _
              $region70: #{basic_transformer_block_forward.5} parent=67 // loop_header
                %s990 = sphi 0, %s994
                %p991 = scmp.ge.s32.totalorder %s990, 1
                %s995 = sphi %s975, %s975
                %s996 = sphi %s984, %s984
              $region71: #{basic_transformer_block_forward.5} parent=67 // loop_header_branch
                %993 = sbr.rel (%p991) target = $region75
              $region72: #{basic_transformer_block_forward.5} parent=67 // loop_body
                %v997 = vld [vmem:[%s995] sm:$0xff]
                %998 = vst [vmem:[%s996] sm:$0xff] %v997
                %v999 = vld [vmem:[%s995 + $0x8] sm:$0xff]
                %1000 = vst [vmem:[%s996 + $0x8] sm:$0xff] %v999
                %v1001 = vld [vmem:[%s995 + $0x10] sm:$0xff]
                %1002 = vst [vmem:[%s996 + $0x10] sm:$0xff] %v1001
                %v1003 = vld [vmem:[%s995 + $0x18] sm:$0xff]
                %1004 = vst [vmem:[%s996 + $0x30] sm:$0xff] %v1003
                %v1005 = vld [vmem:[%s995 + $0x20] sm:$0xff]
                %1006 = vst [vmem:[%s996 + $0x38] sm:$0xff] %v1005
                %v1007 = vld [vmem:[%s995 + $0x28] sm:$0xff]
                %1008 = vst [vmem:[%s996 + $0x40] sm:$0xff] %v1007
                %v1009 = vld [vmem:[%s995 + $0x30] sm:$0xff]
                %1010 = vst [vmem:[%s996 + $0x60] sm:$0xff] %v1009
                %v1011 = vld [vmem:[%s995 + $0x38] sm:$0xff]
                %1012 = vst [vmem:[%s996 + $0x68] sm:$0xff] %v1011
                %v1013 = vld [vmem:[%s995 + $0x40] sm:$0xff]
                %1014 = vst [vmem:[%s996 + $0x70] sm:$0xff] %v1013
                %v1015 = vld [vmem:[%s995 + $0x48] sm:$0xff]
                %1016 = vst [vmem:[%s996 + $0x90] sm:$0xff] %v1015
                %v1017 = vld [vmem:[%s995 + $0x50] sm:$0xff]
                %1018 = vst [vmem:[%s996 + $0x98] sm:$0xff] %v1017
                %v1019 = vld [vmem:[%s995 + $0x58] sm:$0xff]
                %1020 = vst [vmem:[%s996 + $0xa0] sm:$0xff] %v1019
                %v1021 = vld [vmem:[%s995 + $0x60] sm:$0xff]
                %1022 = vst [vmem:[%s996 + $0xc0] sm:$0xff] %v1021
                %v1023 = vld [vmem:[%s995 + $0x68] sm:$0xff]
                %1024 = vst [vmem:[%s996 + $0xc8] sm:$0xff] %v1023
                %v1025 = vld [vmem:[%s995 + $0x70] sm:$0xff]
                %1026 = vst [vmem:[%s996 + $0xd0] sm:$0xff] %v1025
                %v1027 = vld [vmem:[%s995 + $0x78] sm:$0xff]
                %1028 = vst [vmem:[%s996 + $0xf0] sm:$0xff] %v1027
                %v1029 = vld [vmem:[%s995 + $0x80] sm:$0xff]
                %1030 = vst [vmem:[%s996 + $0xf8] sm:$0xff] %v1029
                %v1031 = vld [vmem:[%s995 + $0x88] sm:$0xff]
                %1032 = vst [vmem:[%s996 + $0x100] sm:$0xff] %v1031
                %v1033 = vld [vmem:[%s995 + $0x90] sm:$0xff]
                %1034 = vst [vmem:[%s996 + $0x120] sm:$0xff] %v1033
                %v1035 = vld [vmem:[%s995 + $0x98] sm:$0xff]
                %1036 = vst [vmem:[%s996 + $0x128] sm:$0xff] %v1035
                %v1037 = vld [vmem:[%s995 + $0xa0] sm:$0xff]
                %1038 = vst [vmem:[%s996 + $0x130] sm:$0xff] %v1037
                %v1039 = vld [vmem:[%s995 + $0xa8] sm:$0xff]
                %1040 = vst [vmem:[%s996 + $0x150] sm:$0xff] %v1039
                %v1041 = vld [vmem:[%s995 + $0xb0] sm:$0xff]
                %1042 = vst [vmem:[%s996 + $0x158] sm:$0xff] %v1041
                %v1043 = vld [vmem:[%s995 + $0xb8] sm:$0xff]
                %1044 = vst [vmem:[%s996 + $0x160] sm:$0xff] %v1043
                %v1045 = vld [vmem:[%s995 + $0xc0] sm:$0xff]
                %1046 = vst [vmem:[%s996 + $0x180] sm:$0xff] %v1045
                %v1047 = vld [vmem:[%s995 + $0xc8] sm:$0xff]
                %1048 = vst [vmem:[%s996 + $0x188] sm:$0xff] %v1047
                %v1049 = vld [vmem:[%s995 + $0xd0] sm:$0xff]
                %1050 = vst [vmem:[%s996 + $0x190] sm:$0xff] %v1049
                %v1051 = vld [vmem:[%s995 + $0xd8] sm:$0xff]
                %1052 = vst [vmem:[%s996 + $0x1b0] sm:$0xff] %v1051
                %v1053 = vld [vmem:[%s995 + $0xe0] sm:$0xff]
                %1054 = vst [vmem:[%s996 + $0x1b8] sm:$0xff] %v1053
                %v1055 = vld [vmem:[%s995 + $0xe8] sm:$0xff]
                %1056 = vst [vmem:[%s996 + $0x1c0] sm:$0xff] %v1055
                %v1057 = vld [vmem:[%s995 + $0xf0] sm:$0xff]
                %1058 = vst [vmem:[%s996 + $0x1e0] sm:$0xff] %v1057
                %v1059 = vld [vmem:[%s995 + $0xf8] sm:$0xff]
                %1060 = vst [vmem:[%s996 + $0x1e8] sm:$0xff] %v1059
                %v1061 = vld [vmem:[%s995 + $0x100] sm:$0xff]
                %1062 = vst [vmem:[%s996 + $0x1f0] sm:$0xff] %v1061
                %v1063 = vld [vmem:[%s995 + $0x108] sm:$0xff]
                %1064 = vst [vmem:[%s996 + $0x210] sm:$0xff] %v1063
                %v1065 = vld [vmem:[%s995 + $0x110] sm:$0xff]
                %1066 = vst [vmem:[%s996 + $0x218] sm:$0xff] %v1065
                %v1067 = vld [vmem:[%s995 + $0x118] sm:$0xff]
                %1068 = vst [vmem:[%s996 + $0x220] sm:$0xff] %v1067
                %v1069 = vld [vmem:[%s995 + $0x120] sm:$0xff]
                %1070 = vst [vmem:[%s996 + $0x240] sm:$0xff] %v1069
                %v1071 = vld [vmem:[%s995 + $0x128] sm:$0xff]
                %1072 = vst [vmem:[%s996 + $0x248] sm:$0xff] %v1071
                %v1073 = vld [vmem:[%s995 + $0x130] sm:$0xff]
                %1074 = vst [vmem:[%s996 + $0x250] sm:$0xff] %v1073
                %v1075 = vld [vmem:[%s995 + $0x138] sm:$0xff]
                %1076 = vst [vmem:[%s996 + $0x270] sm:$0xff] %v1075
                %v1077 = vld [vmem:[%s995 + $0x140] sm:$0xff]
                %1078 = vst [vmem:[%s996 + $0x278] sm:$0xff] %v1077
                %v1079 = vld [vmem:[%s995 + $0x148] sm:$0xff]
                %1080 = vst [vmem:[%s996 + $0x280] sm:$0xff] %v1079
                %v1081 = vld [vmem:[%s995 + $0x150] sm:$0xff]
                %1082 = vst [vmem:[%s996 + $0x2a0] sm:$0xff] %v1081
                %v1083 = vld [vmem:[%s995 + $0x158] sm:$0xff]
                %1084 = vst [vmem:[%s996 + $0x2a8] sm:$0xff] %v1083
                %v1085 = vld [vmem:[%s995 + $0x160] sm:$0xff]
                %1086 = vst [vmem:[%s996 + $0x2b0] sm:$0xff] %v1085
                %v1087 = vld [vmem:[%s995 + $0x168] sm:$0xff]
                %1088 = vst [vmem:[%s996 + $0x2d0] sm:$0xff] %v1087
                %v1089 = vld [vmem:[%s995 + $0x170] sm:$0xff]
                %1090 = vst [vmem:[%s996 + $0x2d8] sm:$0xff] %v1089
                %v1091 = vld [vmem:[%s995 + $0x178] sm:$0xff]
                %1092 = vst [vmem:[%s996 + $0x2e0] sm:$0xff] %v1091
              $region73: #{basic_transformer_block_forward.5} parent=67 // loop_footer
                %s994 = sadd.s32 1, %s990
              $region74: #{basic_transformer_block_forward.5} parent=67 // loop_footer_branch
                %989 = sbr.rel target = $region70
              $region75: #{basic_transformer_block_forward.5} parent=67 // loop_exit
                _
            $region68: #{basic_transformer_block_forward.5} parent=63 // pred_fallthru
              _
            // Predicated region
            $region76: #{basic_transformer_block_forward.5} parent=63 // pred_check
              _
            $region77: #{basic_transformer_block_forward.5} parent=63 // pred_check_branch
              %1094 = sbr.rel target = $region79
            $region78: #{basic_transformer_block_forward.5} parent=63 // pred_region
              _
            $region79: #{basic_transformer_block_forward.5} parent=63 // pred_fallthru
              _
          $region64: #{basic_transformer_block_forward.5} parent=59 // pred_fallthru
            _
          %1095 = vnop
        $region60: #{basic_transformer_block_forward.5} parent=35 // pred_fallthru
          _
      $region36: #{basic_transformer_block_forward.5} parent=5 // pred_fallthru
        _
      %p1096 = scmp.le.s32.totalorder 2, %s17
      // Predicated region
      $region80: #{basic_transformer_block_forward.5} parent=5 // pred_check
        %p1097 = pneg %p1096
      $region81: #{basic_transformer_block_forward.5} parent=5 // pred_check_branch
        %1099 = sbr.rel (%p1097) target = $region83
      $region82: #{basic_transformer_block_forward.5} parent=5 // pred_region
        %s1100 = ssub.s32 %s17, 2
        // Predicated region
        $region84: #{basic_transformer_block_forward.5} parent=82 // pred_check
          %p1101 = pneg %p154
        $region85: #{basic_transformer_block_forward.5} parent=82 // pred_check_branch
          %1103 = sbr.rel (%p1101) target = $region87
        $region86: #{basic_transformer_block_forward.5} parent=82 // pred_region
          %s1104 = sand.u32 %s139, 1
          %s1105 = sand.u32 %s139, 1
          %s1106 = smul.addr %s1105, 384
          %s1107 = scalar_lea.vmem [#allocation10], %s1106
        $region87: #{basic_transformer_block_forward.5} parent=82 // pred_fallthru
          _
      $region83: #{basic_transformer_block_forward.5} parent=5 // pred_fallthru
        _
    $region6: #{basic_transformer_block_forward.5} parent=1 // loop_footer
      %s21 = sadd.s32 1, %s17
    $region7: #{basic_transformer_block_forward.5} parent=1 // loop_footer_branch
      %16 = sbr.rel target = $region3
    $region8: #{basic_transformer_block_forward.5} parent=1 // loop_exit
      _
    %1108 = vsyncpa [#allocation4], 1
    %s1109 = scalar_lea.sflag [#allocation4], 1
    %1110 = vsyncpa %s1109, 1
    %1111 = vsyncpa [#allocation6], 1
    %1112 = vsyncpa [#allocation9], 1
    %s1113 = scalar_lea.sflag [#allocation9], 1
    %1114 = vsyncpa %s1113, 1

// kernel: basic_transformer_block_forward.6
$region0: #{basic_transformer_block_forward.6}
  #allocation0 [shape = 'u32[]', space=smem, size = 0x4, offset = 0x4, fixed_abs, tag = 'smem constant byte address 0x4 - core index']
  #allocation1 [shape = 'u32[144,128]{1,0:T(1,128)}', space=vmem, size = 0x12000, scoped, tag = 'internal scratch']
  #allocation2 [shape = 'f32[128,1]{1,0:T(8,128)}', space=vmem, size = 0x10000, scoped, tag = 'scratch operand']
  #allocation3 [shape = 'f32[128,1]{1,0:T(8,128)}', space=vmem, size = 0x10000, scoped, tag = 'scratch operand']
  #allocation4 [shape = 'f32[128,128]{1,0:T(8,128)}', space=vmem, size = 0x10000, scoped, tag = 'scratch operand']
  %s0 = inlined_call_operand.vmem [shape: f32[2,256,768], index: 0, kind: input, shape index: {}, may-alias: {0,1,2}]
  %s1 = inlined_call_operand.vmem [shape: f32[2,256,768], index: 1, kind: input, shape index: {}, may-alias: {0,1,2}]
  %s2 = inlined_call_operand.vmem [shape: f32[2,256,768], index: 2, kind: input, shape index: {}, may-alias: {0,1,2}]
  %s3 = inlined_call_operand.vmem [shape: f32[2,256,256], index: 3, kind: output, shape index: {}]
  %s4 = sld [smem:[#allocation0]]
  $region201: #{basic_transformer_block_forward.6} parent=0
    _
  %s6 = ssub.s32 1, %s4
  %s7 = scalar_select 0, %s6, %s4
  $region1: #{basic_transformer_block_forward.6} parent=0
    #allocation5 [shape = 'u8[131072]{0}', space=vmem, size = 0x20000, scoped, tag = 'input window, operand 0']
    #allocation6 [shape = 'u8[131072]{0}', space=vmem, size = 0x20000, scoped, tag = 'input window, operand 1']
    #allocation7 [shape = 'u8[131072]{0}', space=vmem, size = 0x20000, scoped, tag = 'input window, operand 2']
    #allocation8 [shape = 'u8[131072]{0}', space=vmem, size = 0x20000, scoped, tag = 'output window, operand 0']
    loop: start=0, step=1, limit=18
    $region2: #{basic_transformer_block_forward.6} parent=1 // loop_pre_header
      _
    $region3: #{basic_transformer_block_forward.6} parent=1 // loop_header
      %s9 = sphi 0, %s13
      %p10 = scmp.ge.s32.totalorder %s9, 18
      %s16 = sphi 0, %s42
      %s17 = sphi 0, %s38
      %s18 = sphi 0, %s34
      %s19 = sphi 0, %s30
      %s20 = sphi 0, %s16
      %s21 = sphi 0, %s17
      %s22 = sphi 0, %s18
      %s23 = sphi 0, %s19
      %s24 = sphi 0, %s20
      %s25 = sphi 0, %s21
      %s26 = sphi 0, %s22
      %s27 = sphi 0, %s23
      %s49 = sphi 0, %s51
      %s52 = sphi 0, %s49
      %s53 = sphi 0, %s52
      %s69 = sphi 0, %s53
      %s81 = sphi 0, %s83
      %s84 = sphi 0, %s81
      %s85 = sphi 0, %s84
      %s101 = sphi 0, %s85
      %s113 = sphi 0, %s115
      %s116 = sphi 0, %s113
      %s117 = sphi 0, %s116
      %s133 = sphi 0, %s117
      %s143 = sphi 0, %s145
      %s146 = sphi 0, %s143
      %s147 = sphi 0, %s146
      %s163 = sphi 0, %s147
    $region4: #{basic_transformer_block_forward.6} parent=1 // loop_header_branch
      %12 = sbr.rel (%p10) target = $region8
    $region5: #{basic_transformer_block_forward.6} parent=1 // loop_body
      %s14 = ssub.s32 %s9, 1
      %s15 = ssub.s32 %s9, 2
      %s28 = sadd.s32 1, %s19
      %p29 = scmp.ge.s32.totalorder %s28, 2
      %s30 = scalar_select %p29, 0, %s28
      %s31 = sadd.s32 1, %s18
      %s32 = scalar_select %p29, %s31, %s18
      %p33 = scmp.ge.s32.totalorder %s32, 2
      %s34 = scalar_select %p33, 0, %s32
      %s35 = sadd.s32 1, %s17
      %s36 = scalar_select %p33, %s35, %s17
      %p37 = scmp.ge.s32.totalorder %s36, 2
      %s38 = scalar_select %p37, 0, %s36
      %s39 = sadd.s32 1, %s16
      %s40 = scalar_select %p37, %s39, %s16
      %p41 = scmp.ge.s32.totalorder %s40, 2
      %s42 = scalar_select %p41, 0, %s40
      %s43 = ssub.s32 %s16, %s42
      %s44 = ssub.s32 %s18, %s34
      %s45 = sor.u32 %s43, %s44
      %s46 = ssub.s32 %s17, %s38
      %s47 = sor.u32 %s45, %s46
      %p48 = scmp.eq.s32.totalorder %s47, 0
      %s50 = sadd.s32 %s49, 1
      %s51 = scalar_select %p48, %s49, %s50
      %p54 = pneg %p48
      %p55 = scmp.eq.s32.totalorder %s9, 15
      %p56 = por %p54, %p55
      %p57 = scmp.ne.s32.totalorder %s49, %s52
      %p58 = scmp.eq.s32.totalorder %s9, 0
      %p59 = por %p57, %p58
      %p60 = scmp.ne.s32.totalorder %s49, %s52
      %p61 = scmp.eq.s32.totalorder %s14, 15
      %p62 = por %p60, %p61
      %p63 = scmp.ne.s32.totalorder %s52, %s53
      %p64 = scmp.eq.s32.totalorder %s14, 0
      %p65 = por %p63, %p64
      %p66 = scmp.ne.s32.totalorder %s52, %s53
      %p67 = scmp.eq.s32.totalorder %s15, 15
      %p68 = por %p66, %p67
      %p70 = scmp.ne.s32.totalorder %s53, %s69
      %p71 = scmp.eq.s32.totalorder %s15, 0
      %p72 = por %p70, %p71
      %s73 = sadd.s32 %s17, 2
      %s74 = sadd.s32 %s38, 2
      %s75 = ssub.s32 %s16, %s42
      %s76 = ssub.s32 %s19, %s30
      %s77 = sor.u32 %s75, %s76
      %s78 = ssub.s32 %s73, %s74
      %s79 = sor.u32 %s77, %s78
      %p80 = scmp.eq.s32.totalorder %s79, 0
      %s82 = sadd.s32 %s81, 1
      %s83 = scalar_select %p80, %s81, %s82
      %p86 = pneg %p80
      %p87 = scmp.eq.s32.totalorder %s9, 15
      %p88 = por %p86, %p87
      %p89 = scmp.ne.s32.totalorder %s81, %s84
      %p90 = scmp.eq.s32.totalorder %s9, 0
      %p91 = por %p89, %p90
      %p92 = scmp.ne.s32.totalorder %s81, %s84
      %p93 = scmp.eq.s32.totalorder %s14, 15
      %p94 = por %p92, %p93
      %p95 = scmp.ne.s32.totalorder %s84, %s85
      %p96 = scmp.eq.s32.totalorder %s14, 0
      %p97 = por %p95, %p96
      %p98 = scmp.ne.s32.totalorder %s84, %s85
      %p99 = scmp.eq.s32.totalorder %s15, 15
      %p100 = por %p98, %p99
      %p102 = scmp.ne.s32.totalorder %s85, %s101
      %p103 = scmp.eq.s32.totalorder %s15, 0
      %p104 = por %p102, %p103
      %s105 = sadd.s32 %s17, 4
      %s106 = sadd.s32 %s38, 4
      %s107 = ssub.s32 %s16, %s42
      %s108 = ssub.s32 %s19, %s30
      %s109 = sor.u32 %s107, %s108
      %s110 = ssub.s32 %s105, %s106
      %s111 = sor.u32 %s109, %s110
      %p112 = scmp.eq.s32.totalorder %s111, 0
      %s114 = sadd.s32 %s113, 1
      %s115 = scalar_select %p112, %s113, %s114
      %p118 = pneg %p112
      %p119 = scmp.eq.s32.totalorder %s9, 15
      %p120 = por %p118, %p119
      %p121 = scmp.ne.s32.totalorder %s113, %s116
      %p122 = scmp.eq.s32.totalorder %s9, 0
      %p123 = por %p121, %p122
      %p124 = scmp.ne.s32.totalorder %s113, %s116
      %p125 = scmp.eq.s32.totalorder %s14, 15
      %p126 = por %p124, %p125
      %p127 = scmp.ne.s32.totalorder %s116, %s117
      %p128 = scmp.eq.s32.totalorder %s14, 0
      %p129 = por %p127, %p128
      %p130 = scmp.ne.s32.totalorder %s116, %s117
      %p131 = scmp.eq.s32.totalorder %s15, 15
      %p132 = por %p130, %p131
      %p134 = scmp.ne.s32.totalorder %s117, %s133
      %p135 = scmp.eq.s32.totalorder %s15, 0
      %p136 = por %p134, %p135
      %s137 = ssub.s32 %s16, %s42
      %s138 = ssub.s32 %s18, %s34
      %s139 = sor.u32 %s137, %s138
      %s140 = ssub.s32 %s17, %s38
      %s141 = sor.u32 %s139, %s140
      %p142 = scmp.eq.s32.totalorder %s141, 0
      %s144 = sadd.s32 %s143, 1
      %s145 = scalar_select %p142, %s143, %s144
      %p148 = pneg %p142
      %p149 = scmp.eq.s32.totalorder %s9, 15
      %p150 = por %p148, %p149
      %p151 = scmp.ne.s32.totalorder %s143, %s146
      %p152 = scmp.eq.s32.totalorder %s9, 0
      %p153 = por %p151, %p152
      %p154 = scmp.ne.s32.totalorder %s143, %s146
      %p155 = scmp.eq.s32.totalorder %s14, 15
      %p156 = por %p154, %p155
      %p157 = scmp.ne.s32.totalorder %s146, %s147
      %p158 = scmp.eq.s32.totalorder %s14, 0
      %p159 = por %p157, %p158
      %p160 = scmp.ne.s32.totalorder %s146, %s147
      %p161 = scmp.eq.s32.totalorder %s15, 15
      %p162 = por %p160, %p161
      %p164 = scmp.ne.s32.totalorder %s147, %s163
      %p165 = scmp.eq.s32.totalorder %s15, 0
      %p166 = por %p164, %p165
      %p167 = scmp.le.s32.totalorder 1, %s9
      %p168 = scmp.lt.s32.totalorder %s9, 17
      %p169 = pnand %p167, %p168
      %p170 = pneg %p169
      // Predicated region
      $region9: #{basic_transformer_block_forward.6} parent=5 // pred_check
        _
      $region10: #{basic_transformer_block_forward.6} parent=5 // pred_check_branch
        %172 = sbr.rel (%p169) target = $region12
      $region11: #{basic_transformer_block_forward.6} parent=5 // pred_region
        %s173 = ssub.s32 %s9, 1
      $region12: #{basic_transformer_block_forward.6} parent=5 // pred_fallthru
        _
      %p174 = scmp.lt.s32.totalorder %s9, 16
      // Predicated region
      $region13: #{basic_transformer_block_forward.6} parent=5 // pred_check
        %p175 = pneg %p174
      $region14: #{basic_transformer_block_forward.6} parent=5 // pred_check_branch
        %177 = sbr.rel (%p175) target = $region16
      $region15: #{basic_transformer_block_forward.6} parent=5 // pred_region
        // Predicated region
        $region17: #{basic_transformer_block_forward.6} parent=15 // pred_check
          %p178 = pneg %p59
        $region18: #{basic_transformer_block_forward.6} parent=15 // pred_check_branch
          %180 = sbr.rel (%p178) target = $region20
        $region19: #{basic_transformer_block_forward.6} parent=15 // pred_region
          %s181 = sand.u32 %s49, 1
          %s182 = sand.u32 %s49, 1
          %s183 = smul.addr %s182, 128
          %s184 = scalar_lea.vmem [#allocation5], %s183
          %s185 = smul.u32 16, %s18
          %s186 = smul.addr %s185, 6
          %s187 = sadd.s32 %s17, %s186
          %s188 = smul.addr %s16, 192
          %s189 = sadd.s32 %s187, %s188
          %s190 = smul.addr %s189, 8
          %s191 = scalar_lea.vmem %s0, %s190
          // Predicated region
          $region21: #{basic_transformer_block_forward.6} parent=19 // pred_check
            _
          $region22: #{basic_transformer_block_forward.6} parent=19 // pred_check_branch
            %193 = sbr.rel (0) target = $region24
          $region23: #{basic_transformer_block_forward.6} parent=19 // pred_region
            // Predicated region
            $region25: #{basic_transformer_block_forward.6} parent=23 // pred_check
              _
            $region26: #{basic_transformer_block_forward.6} parent=23 // pred_check_branch
              %195 = sbr.rel (0) target = $region28
            $region27: #{basic_transformer_block_forward.6} parent=23 // pred_region
              // Predicated region
              $region40: #{basic_transformer_block_forward.6} parent=27 // pred_check
                _
              $region41: #{basic_transformer_block_forward.6} parent=27 // pred_check_branch
                %240 = sbr.rel (0) target = $region43
              $region42: #{basic_transformer_block_forward.6} parent=27 // pred_region
                loop: start=0, step=1, limit=1
                $region44: #{basic_transformer_block_forward.6} parent=42 // loop_pre_header
                  _
                $region45: #{basic_transformer_block_forward.6} parent=42 // loop_header
                  %s242 = sphi 0, %s246
                  %p243 = scmp.ge.s32.totalorder %s242, 1
                  %s247 = sphi %s191, %s191
                  %s248 = sphi %s184, %s184
                $region46: #{basic_transformer_block_forward.6} parent=42 // loop_header_branch
                  %245 = sbr.rel (%p243) target = $region50
                $region47: #{basic_transformer_block_forward.6} parent=42 // loop_body
                  %v249 = vld [vmem:[%s247] sm:$0xff]
                  %250 = vst [vmem:[%s248] sm:$0xff] %v249
                  %v251 = vld [vmem:[%s247 + $0x30] sm:$0xff]
                  %252 = vst [vmem:[%s248 + $0x8] sm:$0xff] %v251
                  %v253 = vld [vmem:[%s247 + $0x60] sm:$0xff]
                  %254 = vst [vmem:[%s248 + $0x10] sm:$0xff] %v253
                  %v255 = vld [vmem:[%s247 + $0x90] sm:$0xff]
                  %256 = vst [vmem:[%s248 + $0x18] sm:$0xff] %v255
                  %v257 = vld [vmem:[%s247 + $0xc0] sm:$0xff]
                  %258 = vst [vmem:[%s248 + $0x20] sm:$0xff] %v257
                  %v259 = vld [vmem:[%s247 + $0xf0] sm:$0xff]
                  %260 = vst [vmem:[%s248 + $0x28] sm:$0xff] %v259
                  %v261 = vld [vmem:[%s247 + $0x120] sm:$0xff]
                  %262 = vst [vmem:[%s248 + $0x30] sm:$0xff] %v261
                  %v263 = vld [vmem:[%s247 + $0x150] sm:$0xff]
                  %264 = vst [vmem:[%s248 + $0x38] sm:$0xff] %v263
                  %v265 = vld [vmem:[%s247 + $0x180] sm:$0xff]
                  %266 = vst [vmem:[%s248 + $0x40] sm:$0xff] %v265
                  %v267 = vld [vmem:[%s247 + $0x1b0] sm:$0xff]
                  %268 = vst [vmem:[%s248 + $0x48] sm:$0xff] %v267
                  %v269 = vld [vmem:[%s247 + $0x1e0] sm:$0xff]
                  %270 = vst [vmem:[%s248 + $0x50] sm:$0xff] %v269
                  %v271 = vld [vmem:[%s247 + $0x210] sm:$0xff]
                  %272 = vst [vmem:[%s248 + $0x58] sm:$0xff] %v271
                  %v273 = vld [vmem:[%s247 + $0x240] sm:$0xff]
                  %274 = vst [vmem:[%s248 + $0x60] sm:$0xff] %v273
                  %v275 = vld [vmem:[%s247 + $0x270] sm:$0xff]
                  %276 = vst [vmem:[%s248 + $0x68] sm:$0xff] %v275
                  %v277 = vld [vmem:[%s247 + $0x2a0] sm:$0xff]
                  %278 = vst [vmem:[%s248 + $0x70] sm:$0xff] %v277
                  %v279 = vld [vmem:[%s247 + $0x2d0] sm:$0xff]
                  %280 = vst [vmem:[%s248 + $0x78] sm:$0xff] %v279
                $region48: #{basic_transformer_block_forward.6} parent=42 // loop_footer
                  %s246 = sadd.s32 1, %s242
                $region49: #{basic_transformer_block_forward.6} parent=42 // loop_footer_branch
                  %241 = sbr.rel target = $region45
                $region50: #{basic_transformer_block_forward.6} parent=42 // loop_exit
                  _
              $region43: #{basic_transformer_block_forward.6} parent=27 // pred_fallthru
                _
              // Predicated region
              $region51: #{basic_transformer_block_forward.6} parent=27 // pred_check
                _
              $region52: #{basic_transformer_block_forward.6} parent=27 // pred_check_branch
                %282 = sbr.rel target = $region54
              $region53: #{basic_transformer_block_forward.6} parent=27 // pred_region
                _
              $region54: #{basic_transformer_block_forward.6} parent=27 // pred_fallthru
                _
            $region28: #{basic_transformer_block_forward.6} parent=23 // pred_fallthru
              _
            // Predicated region
            $region29: #{basic_transformer_block_forward.6} parent=23 // pred_check
              _
            $region30: #{basic_transformer_block_forward.6} parent=23 // pred_check_branch
              %197 = sbr.rel target = $region32
            $region31: #{basic_transformer_block_forward.6} parent=23 // pred_region
              loop: start=0, step=1, limit=1
              $region33: #{basic_transformer_block_forward.6} parent=31 // loop_pre_header
                _
              $region34: #{basic_transformer_block_forward.6} parent=31 // loop_header
                %s200 = sphi 0, %s204
                %p201 = scmp.ge.s32.totalorder %s200, 1
                %s205 = sphi %s191, %s191
                %s206 = sphi %s184, %s184
              $region35: #{basic_transformer_block_forward.6} parent=31 // loop_header_branch
                %203 = sbr.rel (%p201) target = $region39
              $region36: #{basic_transformer_block_forward.6} parent=31 // loop_body
                %v207 = vld [vmem:[%s205] sm:$0xff]
                %208 = vst [vmem:[%s206] sm:$0xff] %v207
                %v209 = vld [vmem:[%s205 + $0x30] sm:$0xff]
                %210 = vst [vmem:[%s206 + $0x8] sm:$0xff] %v209
                %v211 = vld [vmem:[%s205 + $0x60] sm:$0xff]
                %212 = vst [vmem:[%s206 + $0x10] sm:$0xff] %v211
                %v213 = vld [vmem:[%s205 + $0x90] sm:$0xff]
                %214 = vst [vmem:[%s206 + $0x18] sm:$0xff] %v213
                %v215 = vld [vmem:[%s205 + $0xc0] sm:$0xff]
                %216 = vst [vmem:[%s206 + $0x20] sm:$0xff] %v215
                %v217 = vld [vmem:[%s205 + $0xf0] sm:$0xff]
                %218 = vst [vmem:[%s206 + $0x28] sm:$0xff] %v217
                %v219 = vld [vmem:[%s205 + $0x120] sm:$0xff]
                %220 = vst [vmem:[%s206 + $0x30] sm:$0xff] %v219
                %v221 = vld [vmem:[%s205 + $0x150] sm:$0xff]
                %222 = vst [vmem:[%s206 + $0x38] sm:$0xff] %v221
                %v223 = vld [vmem:[%s205 + $0x180] sm:$0xff]
                %224 = vst [vmem:[%s206 + $0x40] sm:$0xff] %v223
                %v225 = vld [vmem:[%s205 + $0x1b0] sm:$0xff]
                %226 = vst [vmem:[%s206 + $0x48] sm:$0xff] %v225
                %v227 = vld [vmem:[%s205 + $0x1e0] sm:$0xff]
                %228 = vst [vmem:[%s206 + $0x50] sm:$0xff] %v227
                %v229 = vld [vmem:[%s205 + $0x210] sm:$0xff]
                %230 = vst [vmem:[%s206 + $0x58] sm:$0xff] %v229
                %v231 = vld [vmem:[%s205 + $0x240] sm:$0xff]
                %232 = vst [vmem:[%s206 + $0x60] sm:$0xff] %v231
                %v233 = vld [vmem:[%s205 + $0x270] sm:$0xff]
                %234 = vst [vmem:[%s206 + $0x68] sm:$0xff] %v233
                %v235 = vld [vmem:[%s205 + $0x2a0] sm:$0xff]
                %236 = vst [vmem:[%s206 + $0x70] sm:$0xff] %v235
                %v237 = vld [vmem:[%s205 + $0x2d0] sm:$0xff]
                %238 = vst [vmem:[%s206 + $0x78] sm:$0xff] %v237
              $region37: #{basic_transformer_block_forward.6} parent=31 // loop_footer
                %s204 = sadd.s32 1, %s200
              $region38: #{basic_transformer_block_forward.6} parent=31 // loop_footer_branch
                %199 = sbr.rel target = $region34
              $region39: #{basic_transformer_block_forward.6} parent=31 // loop_exit
                _
            $region32: #{basic_transformer_block_forward.6} parent=23 // pred_fallthru
              _
          $region24: #{basic_transformer_block_forward.6} parent=19 // pred_fallthru
            _
          %283 = vnop
        $region20: #{basic_transformer_block_forward.6} parent=15 // pred_fallthru
          _
        // Predicated region
        $region55: #{basic_transformer_block_forward.6} parent=15 // pred_check
          %p284 = pneg %p91
        $region56: #{basic_transformer_block_forward.6} parent=15 // pred_check_branch
          %286 = sbr.rel (%p284) target = $region58
        $region57: #{basic_transformer_block_forward.6} parent=15 // pred_region
          %s287 = sand.u32 %s81, 1
          %s288 = sand.u32 %s81, 1
          %s289 = smul.addr %s288, 128
          %s290 = scalar_lea.vmem [#allocation6], %s289
          %s291 = sadd.s32 %s17, 2
          %s292 = smul.u32 16, %s19
          %s293 = smul.addr %s292, 6
          %s294 = sadd.s32 %s291, %s293
          %s295 = smul.addr %s16, 192
          %s296 = sadd.s32 %s294, %s295
          %s297 = smul.addr %s296, 8
          %s298 = scalar_lea.vmem %s1, %s297
          // Predicated region
          $region59: #{basic_transformer_block_forward.6} parent=57 // pred_check
            _
          $region60: #{basic_transformer_block_forward.6} parent=57 // pred_check_branch
            %300 = sbr.rel (0) target = $region62
          $region61: #{basic_transformer_block_forward.6} parent=57 // pred_region
            // Predicated region
            $region63: #{basic_transformer_block_forward.6} parent=61 // pred_check
              _
            $region64: #{basic_transformer_block_forward.6} parent=61 // pred_check_branch
              %302 = sbr.rel (0) target = $region66
            $region65: #{basic_transformer_block_forward.6} parent=61 // pred_region
              // Predicated region
              $region78: #{basic_transformer_block_forward.6} parent=65 // pred_check
                _
              $region79: #{basic_transformer_block_forward.6} parent=65 // pred_check_branch
                %347 = sbr.rel (0) target = $region81
              $region80: #{basic_transformer_block_forward.6} parent=65 // pred_region
                loop: start=0, step=1, limit=1
                $region82: #{basic_transformer_block_forward.6} parent=80 // loop_pre_header
                  _
                $region83: #{basic_transformer_block_forward.6} parent=80 // loop_header
                  %s349 = sphi 0, %s353
                  %p350 = scmp.ge.s32.totalorder %s349, 1
                  %s354 = sphi %s298, %s298
                  %s355 = sphi %s290, %s290
                $region84: #{basic_transformer_block_forward.6} parent=80 // loop_header_branch
                  %352 = sbr.rel (%p350) target = $region88
                $region85: #{basic_transformer_block_forward.6} parent=80 // loop_body
                  %v356 = vld [vmem:[%s354] sm:$0xff]
                  %357 = vst [vmem:[%s355] sm:$0xff] %v356
                  %v358 = vld [vmem:[%s354 + $0x30] sm:$0xff]
                  %359 = vst [vmem:[%s355 + $0x8] sm:$0xff] %v358
                  %v360 = vld [vmem:[%s354 + $0x60] sm:$0xff]
                  %361 = vst [vmem:[%s355 + $0x10] sm:$0xff] %v360
                  %v362 = vld [vmem:[%s354 + $0x90] sm:$0xff]
                  %363 = vst [vmem:[%s355 + $0x18] sm:$0xff] %v362
                  %v364 = vld [vmem:[%s354 + $0xc0] sm:$0xff]
                  %365 = vst [vmem:[%s355 + $0x20] sm:$0xff] %v364
                  %v366 = vld [vmem:[%s354 + $0xf0] sm:$0xff]
                  %367 = vst [vmem:[%s355 + $0x28] sm:$0xff] %v366
                  %v368 = vld [vmem:[%s354 + $0x120] sm:$0xff]
                  %369 = vst [vmem:[%s355 + $0x30] sm:$0xff] %v368
                  %v370 = vld [vmem:[%s354 + $0x150] sm:$0xff]
                  %371 = vst [vmem:[%s355 + $0x38] sm:$0xff] %v370
                  %v372 = vld [vmem:[%s354 + $0x180] sm:$0xff]
                  %373 = vst [vmem:[%s355 + $0x40] sm:$0xff] %v372
                  %v374 = vld [vmem:[%s354 + $0x1b0] sm:$0xff]
                  %375 = vst [vmem:[%s355 + $0x48] sm:$0xff] %v374
                  %v376 = vld [vmem:[%s354 + $0x1e0] sm:$0xff]
                  %377 = vst [vmem:[%s355 + $0x50] sm:$0xff] %v376
                  %v378 = vld [vmem:[%s354 + $0x210] sm:$0xff]
                  %379 = vst [vmem:[%s355 + $0x58] sm:$0xff] %v378
                  %v380 = vld [vmem:[%s354 + $0x240] sm:$0xff]
                  %381 = vst [vmem:[%s355 + $0x60] sm:$0xff] %v380
                  %v382 = vld [vmem:[%s354 + $0x270] sm:$0xff]
                  %383 = vst [vmem:[%s355 + $0x68] sm:$0xff] %v382
                  %v384 = vld [vmem:[%s354 + $0x2a0] sm:$0xff]
                  %385 = vst [vmem:[%s355 + $0x70] sm:$0xff] %v384
                  %v386 = vld [vmem:[%s354 + $0x2d0] sm:$0xff]
                  %387 = vst [vmem:[%s355 + $0x78] sm:$0xff] %v386
                $region86: #{basic_transformer_block_forward.6} parent=80 // loop_footer
                  %s353 = sadd.s32 1, %s349
                $region87: #{basic_transformer_block_forward.6} parent=80 // loop_footer_branch
                  %348 = sbr.rel target = $region83
                $region88: #{basic_transformer_block_forward.6} parent=80 // loop_exit
                  _
              $region81: #{basic_transformer_block_forward.6} parent=65 // pred_fallthru
                _
              // Predicated region
              $region89: #{basic_transformer_block_forward.6} parent=65 // pred_check
                _
              $region90: #{basic_transformer_block_forward.6} parent=65 // pred_check_branch
                %389 = sbr.rel target = $region92
              $region91: #{basic_transformer_block_forward.6} parent=65 // pred_region
                _
              $region92: #{basic_transformer_block_forward.6} parent=65 // pred_fallthru
                _
            $region66: #{basic_transformer_block_forward.6} parent=61 // pred_fallthru
              _
            // Predicated region
            $region67: #{basic_transformer_block_forward.6} parent=61 // pred_check
              _
            $region68: #{basic_transformer_block_forward.6} parent=61 // pred_check_branch
              %304 = sbr.rel target = $region70
            $region69: #{basic_transformer_block_forward.6} parent=61 // pred_region
              loop: start=0, step=1, limit=1
              $region71: #{basic_transformer_block_forward.6} parent=69 // loop_pre_header
                _
              $region72: #{basic_transformer_block_forward.6} parent=69 // loop_header
                %s307 = sphi 0, %s311
                %p308 = scmp.ge.s32.totalorder %s307, 1
                %s312 = sphi %s298, %s298
                %s313 = sphi %s290, %s290
              $region73: #{basic_transformer_block_forward.6} parent=69 // loop_header_branch
                %310 = sbr.rel (%p308) target = $region77
              $region74: #{basic_transformer_block_forward.6} parent=69 // loop_body
                %v314 = vld [vmem:[%s312] sm:$0xff]
                %315 = vst [vmem:[%s313] sm:$0xff] %v314
                %v316 = vld [vmem:[%s312 + $0x30] sm:$0xff]
                %317 = vst [vmem:[%s313 + $0x8] sm:$0xff] %v316
                %v318 = vld [vmem:[%s312 + $0x60] sm:$0xff]
                %319 = vst [vmem:[%s313 + $0x10] sm:$0xff] %v318
                %v320 = vld [vmem:[%s312 + $0x90] sm:$0xff]
                %321 = vst [vmem:[%s313 + $0x18] sm:$0xff] %v320
                %v322 = vld [vmem:[%s312 + $0xc0] sm:$0xff]
                %323 = vst [vmem:[%s313 + $0x20] sm:$0xff] %v322
                %v324 = vld [vmem:[%s312 + $0xf0] sm:$0xff]
                %325 = vst [vmem:[%s313 + $0x28] sm:$0xff] %v324
                %v326 = vld [vmem:[%s312 + $0x120] sm:$0xff]
                %327 = vst [vmem:[%s313 + $0x30] sm:$0xff] %v326
                %v328 = vld [vmem:[%s312 + $0x150] sm:$0xff]
                %329 = vst [vmem:[%s313 + $0x38] sm:$0xff] %v328
                %v330 = vld [vmem:[%s312 + $0x180] sm:$0xff]
                %331 = vst [vmem:[%s313 + $0x40] sm:$0xff] %v330
                %v332 = vld [vmem:[%s312 + $0x1b0] sm:$0xff]
                %333 = vst [vmem:[%s313 + $0x48] sm:$0xff] %v332
                %v334 = vld [vmem:[%s312 + $0x1e0] sm:$0xff]
                %335 = vst [vmem:[%s313 + $0x50] sm:$0xff] %v334
                %v336 = vld [vmem:[%s312 + $0x210] sm:$0xff]
                %337 = vst [vmem:[%s313 + $0x58] sm:$0xff] %v336
                %v338 = vld [vmem:[%s312 + $0x240] sm:$0xff]
                %339 = vst [vmem:[%s313 + $0x60] sm:$0xff] %v338
                %v340 = vld [vmem:[%s312 + $0x270] sm:$0xff]
                %341 = vst [vmem:[%s313 + $0x68] sm:$0xff] %v340
                %v342 = vld [vmem:[%s312 + $0x2a0] sm:$0xff]
                %343 = vst [vmem:[%s313 + $0x70] sm:$0xff] %v342
                %v344 = vld [vmem:[%s312 + $0x2d0] sm:$0xff]
                %345 = vst [vmem:[%s313 + $0x78] sm:$0xff] %v344
              $region75: #{basic_transformer_block_forward.6} parent=69 // loop_footer
                %s311 = sadd.s32 1, %s307
              $region76: #{basic_transformer_block_forward.6} parent=69 // loop_footer_branch
                %306 = sbr.rel target = $region72
              $region77: #{basic_transformer_block_forward.6} parent=69 // loop_exit
                _
            $region70: #{basic_transformer_block_forward.6} parent=61 // pred_fallthru
              _
          $region62: #{basic_transformer_block_forward.6} parent=57 // pred_fallthru
            _
          %390 = vnop
        $region58: #{basic_transformer_block_forward.6} parent=15 // pred_fallthru
          _
        // Predicated region
        $region93: #{basic_transformer_block_forward.6} parent=15 // pred_check
          %p391 = pneg %p123
        $region94: #{basic_transformer_block_forward.6} parent=15 // pred_check_branch
          %393 = sbr.rel (%p391) target = $region96
        $region95: #{basic_transformer_block_forward.6} parent=15 // pred_region
          %s394 = sand.u32 %s113, 1
          %s395 = sand.u32 %s113, 1
          %s396 = smul.addr %s395, 128
          %s397 = scalar_lea.vmem [#allocation7], %s396
          %s398 = sadd.s32 %s17, 4
          %s399 = smul.u32 16, %s19
          %s400 = smul.addr %s399, 6
          %s401 = sadd.s32 %s398, %s400
          %s402 = smul.addr %s16, 192
          %s403 = sadd.s32 %s401, %s402
          %s404 = smul.addr %s403, 8
          %s405 = scalar_lea.vmem %s2, %s404
          // Predicated region
          $region97: #{basic_transformer_block_forward.6} parent=95 // pred_check
            _
          $region98: #{basic_transformer_block_forward.6} parent=95 // pred_check_branch
            %407 = sbr.rel (0) target = $region100
          $region99: #{basic_transformer_block_forward.6} parent=95 // pred_region
            // Predicated region
            $region101: #{basic_transformer_block_forward.6} parent=99 // pred_check
              _
            $region102: #{basic_transformer_block_forward.6} parent=99 // pred_check_branch
              %409 = sbr.rel (0) target = $region104
            $region103: #{basic_transformer_block_forward.6} parent=99 // pred_region
              // Predicated region
              $region116: #{basic_transformer_block_forward.6} parent=103 // pred_check
                _
              $region117: #{basic_transformer_block_forward.6} parent=103 // pred_check_branch
                %454 = sbr.rel (0) target = $region119
              $region118: #{basic_transformer_block_forward.6} parent=103 // pred_region
                loop: start=0, step=1, limit=1
                $region120: #{basic_transformer_block_forward.6} parent=118 // loop_pre_header
                  _
                $region121: #{basic_transformer_block_forward.6} parent=118 // loop_header
                  %s456 = sphi 0, %s460
                  %p457 = scmp.ge.s32.totalorder %s456, 1
                  %s461 = sphi %s405, %s405
                  %s462 = sphi %s397, %s397
                $region122: #{basic_transformer_block_forward.6} parent=118 // loop_header_branch
                  %459 = sbr.rel (%p457) target = $region126
                $region123: #{basic_transformer_block_forward.6} parent=118 // loop_body
                  %v463 = vld [vmem:[%s461] sm:$0xff]
                  %464 = vst [vmem:[%s462] sm:$0xff] %v463
                  %v465 = vld [vmem:[%s461 + $0x30] sm:$0xff]
                  %466 = vst [vmem:[%s462 + $0x8] sm:$0xff] %v465
                  %v467 = vld [vmem:[%s461 + $0x60] sm:$0xff]
                  %468 = vst [vmem:[%s462 + $0x10] sm:$0xff] %v467
                  %v469 = vld [vmem:[%s461 + $0x90] sm:$0xff]
                  %470 = vst [vmem:[%s462 + $0x18] sm:$0xff] %v469
                  %v471 = vld [vmem:[%s461 + $0xc0] sm:$0xff]
                  %472 = vst [vmem:[%s462 + $0x20] sm:$0xff] %v471
                  %v473 = vld [vmem:[%s461 + $0xf0] sm:$0xff]
                  %474 = vst [vmem:[%s462 + $0x28] sm:$0xff] %v473
                  %v475 = vld [vmem:[%s461 + $0x120] sm:$0xff]
                  %476 = vst [vmem:[%s462 + $0x30] sm:$0xff] %v475
                  %v477 = vld [vmem:[%s461 + $0x150] sm:$0xff]
                  %478 = vst [vmem:[%s462 + $0x38] sm:$0xff] %v477
                  %v479 = vld [vmem:[%s461 + $0x180] sm:$0xff]
                  %480 = vst [vmem:[%s462 + $0x40] sm:$0xff] %v479
                  %v481 = vld [vmem:[%s461 + $0x1b0] sm:$0xff]
                  %482 = vst [vmem:[%s462 + $0x48] sm:$0xff] %v481
                  %v483 = vld [vmem:[%s461 + $0x1e0] sm:$0xff]
                  %484 = vst [vmem:[%s462 + $0x50] sm:$0xff] %v483
                  %v485 = vld [vmem:[%s461 + $0x210] sm:$0xff]
                  %486 = vst [vmem:[%s462 + $0x58] sm:$0xff] %v485
                  %v487 = vld [vmem:[%s461 + $0x240] sm:$0xff]
                  %488 = vst [vmem:[%s462 + $0x60] sm:$0xff] %v487
                  %v489 = vld [vmem:[%s461 + $0x270] sm:$0xff]
                  %490 = vst [vmem:[%s462 + $0x68] sm:$0xff] %v489
                  %v491 = vld [vmem:[%s461 + $0x2a0] sm:$0xff]
                  %492 = vst [vmem:[%s462 + $0x70] sm:$0xff] %v491
                  %v493 = vld [vmem:[%s461 + $0x2d0] sm:$0xff]
                  %494 = vst [vmem:[%s462 + $0x78] sm:$0xff] %v493
                $region124: #{basic_transformer_block_forward.6} parent=118 // loop_footer
                  %s460 = sadd.s32 1, %s456
                $region125: #{basic_transformer_block_forward.6} parent=118 // loop_footer_branch
                  %455 = sbr.rel target = $region121
                $region126: #{basic_transformer_block_forward.6} parent=118 // loop_exit
                  _
              $region119: #{basic_transformer_block_forward.6} parent=103 // pred_fallthru
                _
              // Predicated region
              $region127: #{basic_transformer_block_forward.6} parent=103 // pred_check
                _
              $region128: #{basic_transformer_block_forward.6} parent=103 // pred_check_branch
                %496 = sbr.rel target = $region130
              $region129: #{basic_transformer_block_forward.6} parent=103 // pred_region
                _
              $region130: #{basic_transformer_block_forward.6} parent=103 // pred_fallthru
                _
            $region104: #{basic_transformer_block_forward.6} parent=99 // pred_fallthru
              _
            // Predicated region
            $region105: #{basic_transformer_block_forward.6} parent=99 // pred_check
              _
            $region106: #{basic_transformer_block_forward.6} parent=99 // pred_check_branch
              %411 = sbr.rel target = $region108
            $region107: #{basic_transformer_block_forward.6} parent=99 // pred_region
              loop: start=0, step=1, limit=1
              $region109: #{basic_transformer_block_forward.6} parent=107 // loop_pre_header
                _
              $region110: #{basic_transformer_block_forward.6} parent=107 // loop_header
                %s414 = sphi 0, %s418
                %p415 = scmp.ge.s32.totalorder %s414, 1
                %s419 = sphi %s405, %s405
                %s420 = sphi %s397, %s397
              $region111: #{basic_transformer_block_forward.6} parent=107 // loop_header_branch
                %417 = sbr.rel (%p415) target = $region115
              $region112: #{basic_transformer_block_forward.6} parent=107 // loop_body
                %v421 = vld [vmem:[%s419] sm:$0xff]
                %422 = vst [vmem:[%s420] sm:$0xff] %v421
                %v423 = vld [vmem:[%s419 + $0x30] sm:$0xff]
                %424 = vst [vmem:[%s420 + $0x8] sm:$0xff] %v423
                %v425 = vld [vmem:[%s419 + $0x60] sm:$0xff]
                %426 = vst [vmem:[%s420 + $0x10] sm:$0xff] %v425
                %v427 = vld [vmem:[%s419 + $0x90] sm:$0xff]
                %428 = vst [vmem:[%s420 + $0x18] sm:$0xff] %v427
                %v429 = vld [vmem:[%s419 + $0xc0] sm:$0xff]
                %430 = vst [vmem:[%s420 + $0x20] sm:$0xff] %v429
                %v431 = vld [vmem:[%s419 + $0xf0] sm:$0xff]
                %432 = vst [vmem:[%s420 + $0x28] sm:$0xff] %v431
                %v433 = vld [vmem:[%s419 + $0x120] sm:$0xff]
                %434 = vst [vmem:[%s420 + $0x30] sm:$0xff] %v433
                %v435 = vld [vmem:[%s419 + $0x150] sm:$0xff]
                %436 = vst [vmem:[%s420 + $0x38] sm:$0xff] %v435
                %v437 = vld [vmem:[%s419 + $0x180] sm:$0xff]
                %438 = vst [vmem:[%s420 + $0x40] sm:$0xff] %v437
                %v439 = vld [vmem:[%s419 + $0x1b0] sm:$0xff]
                %440 = vst [vmem:[%s420 + $0x48] sm:$0xff] %v439
                %v441 = vld [vmem:[%s419 + $0x1e0] sm:$0xff]
                %442 = vst [vmem:[%s420 + $0x50] sm:$0xff] %v441
                %v443 = vld [vmem:[%s419 + $0x210] sm:$0xff]
                %444 = vst [vmem:[%s420 + $0x58] sm:$0xff] %v443
                %v445 = vld [vmem:[%s419 + $0x240] sm:$0xff]
                %446 = vst [vmem:[%s420 + $0x60] sm:$0xff] %v445
                %v447 = vld [vmem:[%s419 + $0x270] sm:$0xff]
                %448 = vst [vmem:[%s420 + $0x68] sm:$0xff] %v447
                %v449 = vld [vmem:[%s419 + $0x2a0] sm:$0xff]
                %450 = vst [vmem:[%s420 + $0x70] sm:$0xff] %v449
                %v451 = vld [vmem:[%s419 + $0x2d0] sm:$0xff]
                %452 = vst [vmem:[%s420 + $0x78] sm:$0xff] %v451
              $region113: #{basic_transformer_block_forward.6} parent=107 // loop_footer
                %s418 = sadd.s32 1, %s414
              $region114: #{basic_transformer_block_forward.6} parent=107 // loop_footer_branch
                %413 = sbr.rel target = $region110
              $region115: #{basic_transformer_block_forward.6} parent=107 // loop_exit
                _
            $region108: #{basic_transformer_block_forward.6} parent=99 // pred_fallthru
              _
          $region100: #{basic_transformer_block_forward.6} parent=95 // pred_fallthru
            _
          %497 = vnop
        $region96: #{basic_transformer_block_forward.6} parent=15 // pred_fallthru
          _
      $region16: #{basic_transformer_block_forward.6} parent=5 // pred_fallthru
        _
      %p498 = scmp.le.s32.totalorder 1, %s9
      %p499 = scmp.lt.s32.totalorder %s9, 17
      %p500 = pnand %p498, %p499
      %p501 = pneg %p500
      // Predicated region
      $region131: #{basic_transformer_block_forward.6} parent=5 // pred_check
        _
      $region132: #{basic_transformer_block_forward.6} parent=5 // pred_check_branch
        %503 = sbr.rel (%p500) target = $region134
      $region133: #{basic_transformer_block_forward.6} parent=5 // pred_region
        %s504 = ssub.s32 %s9, 1
        %s505 = sand.u32 %s52, 1
        %s506 = sand.u32 %s52, 1
        %s507 = smul.addr %s506, 128
        %s508 = scalar_lea.vmem [#allocation5], %s507
        // Predicated region
        $region135: #{basic_transformer_block_forward.6} parent=133 // pred_check
          %p509 = pneg %p65
        $region136: #{basic_transformer_block_forward.6} parent=133 // pred_check_branch
          %511 = sbr.rel (%p509) target = $region138
        $region137: #{basic_transformer_block_forward.6} parent=133 // pred_region
          _
        $region138: #{basic_transformer_block_forward.6} parent=133 // pred_fallthru
          _
        %s512 = sand.u32 %s84, 1
        %s513 = sand.u32 %s84, 1
        %s514 = smul.addr %s513, 128
        %s515 = scalar_lea.vmem [#allocation6], %s514
        // Predicated region
        $region139: #{basic_transformer_block_forward.6} parent=133 // pred_check
          %p516 = pneg %p97
        $region140: #{basic_transformer_block_forward.6} parent=133 // pred_check_branch
          %518 = sbr.rel (%p516) target = $region142
        $region141: #{basic_transformer_block_forward.6} parent=133 // pred_region
          _
        $region142: #{basic_transformer_block_forward.6} parent=133 // pred_fallthru
          _
        %s519 = sand.u32 %s116, 1
        %s520 = sand.u32 %s116, 1
        %s521 = smul.addr %s520, 128
        %s522 = scalar_lea.vmem [#allocation7], %s521
        // Predicated region
        $region143: #{basic_transformer_block_forward.6} parent=133 // pred_check
          %p523 = pneg %p129
        $region144: #{basic_transformer_block_forward.6} parent=133 // pred_check_branch
          %525 = sbr.rel (%p523) target = $region146
        $region145: #{basic_transformer_block_forward.6} parent=133 // pred_region
          _
        $region146: #{basic_transformer_block_forward.6} parent=133 // pred_fallthru
          _
        %s526 = sand.u32 %s52, 1
        %s527 = sand.u32 %s52, 1
        %s528 = smul.addr %s527, 128
        %s529 = scalar_lea.vmem [#allocation5], %s528
        %p530 = pneg %p65
        %p531 = pneg %p62
        %s532 = sand.u32 %s84, 1
        %s533 = sand.u32 %s84, 1
        %s534 = smul.addr %s533, 128
        %s535 = scalar_lea.vmem [#allocation6], %s534
        %p536 = pneg %p97
        %p537 = pneg %p94
        %s538 = sand.u32 %s116, 1
        %s539 = sand.u32 %s116, 1
        %s540 = smul.addr %s539, 128
        %s541 = scalar_lea.vmem [#allocation7], %s540
        %p542 = pneg %p129
        %p543 = pneg %p126
        %p544 = pneg %p159
        %p545 = pneg %p156
        %s546 = sand.u32 %s146, 1
        %s547 = sand.u32 %s146, 1
        %s548 = smul.addr %s547, 128
        %s549 = scalar_lea.vmem [#allocation8], %s548
        %s550 = smul.u32 16, %s22
        %s551 = sadd.s32 %s21, 2
        %s552 = smul.u32 16, %s23
        %s553 = sadd.s32 %s21, 4
        %s554 = smul.u32 16, %s23
        %s555 = smul.u32 16, %s22
        %p556 = scmp.eq.s32.totalorder %s23, 0
        // Predicated region
        $region147: #{basic_transformer_block_forward.6} parent=133 // pred_check
          %p557 = pneg %p556
        $region148: #{basic_transformer_block_forward.6} parent=133 // pred_check_branch
          %559 = sbr.rel (%p557) target = $region150
        $region149: #{basic_transformer_block_forward.6} parent=133 // pred_region
          %vm560 = vcmask 7168
          %561 = vst.msk [vmem:[#allocation2] sm:$0xff] %vm560, -inf
          %562 = vst.msk [vmem:[#allocation2 + $0x8] sm:$0xff] %vm560, -inf
          %563 = vst.msk [vmem:[#allocation2 + $0x10] sm:$0xff] %vm560, -inf
          %564 = vst.msk [vmem:[#allocation2 + $0x18] sm:$0xff] %vm560, -inf
          %565 = vst.msk [vmem:[#allocation2 + $0x20] sm:$0xff] %vm560, -inf
          %566 = vst.msk [vmem:[#allocation2 + $0x28] sm:$0xff] %vm560, -inf
          %567 = vst.msk [vmem:[#allocation2 + $0x30] sm:$0xff] %vm560, -inf
          %568 = vst.msk [vmem:[#allocation2 + $0x38] sm:$0xff] %vm560, -inf
          %569 = vst.msk [vmem:[#allocation2 + $0x40] sm:$0xff] %vm560, -inf
          %570 = vst.msk [vmem:[#allocation2 + $0x48] sm:$0xff] %vm560, -inf
          %571 = vst.msk [vmem:[#allocation2 + $0x50] sm:$0xff] %vm560, -inf
          %572 = vst.msk [vmem:[#allocation2 + $0x58] sm:$0xff] %vm560, -inf
          %573 = vst.msk [vmem:[#allocation2 + $0x60] sm:$0xff] %vm560, -inf
          %574 = vst.msk [vmem:[#allocation2 + $0x68] sm:$0xff] %vm560, -inf
          %575 = vst.msk [vmem:[#allocation2 + $0x70] sm:$0xff] %vm560, -inf
          %576 = vst.msk [vmem:[#allocation2 + $0x78] sm:$0xff] %vm560, -inf
          %577 = vst.msk [vmem:[#allocation3] sm:$0xff] %vm560, 0.0
          %578 = vst.msk [vmem:[#allocation3 + $0x8] sm:$0xff] %vm560, 0.0
          %579 = vst.msk [vmem:[#allocation3 + $0x10] sm:$0xff] %vm560, 0.0
          %580 = vst.msk [vmem:[#allocation3 + $0x18] sm:$0xff] %vm560, 0.0
          %581 = vst.msk [vmem:[#allocation3 + $0x20] sm:$0xff] %vm560, 0.0
          %582 = vst.msk [vmem:[#allocation3 + $0x28] sm:$0xff] %vm560, 0.0
          %583 = vst.msk [vmem:[#allocation3 + $0x30] sm:$0xff] %vm560, 0.0
          %584 = vst.msk [vmem:[#allocation3 + $0x38] sm:$0xff] %vm560, 0.0
          %585 = vst.msk [vmem:[#allocation3 + $0x40] sm:$0xff] %vm560, 0.0
          %586 = vst.msk [vmem:[#allocation3 + $0x48] sm:$0xff] %vm560, 0.0
          %587 = vst.msk [vmem:[#allocation3 + $0x50] sm:$0xff] %vm560, 0.0
          %588 = vst.msk [vmem:[#allocation3 + $0x58] sm:$0xff] %vm560, 0.0
          %589 = vst.msk [vmem:[#allocation3 + $0x60] sm:$0xff] %vm560, 0.0
          %590 = vst.msk [vmem:[#allocation3 + $0x68] sm:$0xff] %vm560, 0.0
          %591 = vst.msk [vmem:[#allocation3 + $0x70] sm:$0xff] %vm560, 0.0
          %592 = vst.msk [vmem:[#allocation3 + $0x78] sm:$0xff] %vm560, 0.0
          %593 = vst [vmem:[#allocation4] sm:$0xff] 0.0
          %594 = vst [vmem:[#allocation4 + $0x8] sm:$0xff] 0.0
          %595 = vst [vmem:[#allocation4 + $0x10] sm:$0xff] 0.0
          %596 = vst [vmem:[#allocation4 + $0x18] sm:$0xff] 0.0
          %597 = vst [vmem:[#allocation4 + $0x20] sm:$0xff] 0.0
          %598 = vst [vmem:[#allocation4 + $0x28] sm:$0xff] 0.0
          %599 = vst [vmem:[#allocation4 + $0x30] sm:$0xff] 0.0
          %600 = vst [vmem:[#allocation4 + $0x38] sm:$0xff] 0.0
          %601 = vst [vmem:[#allocation4 + $0x40] sm:$0xff] 0.0
          %602 = vst [vmem:[#allocation4 + $0x48] sm:$0xff] 0.0
          %603 = vst [vmem:[#allocation4 + $0x50] sm:$0xff] 0.0
          %604 = vst [vmem:[#allocation4 + $0x58] sm:$0xff] 0.0
          %605 = vst [vmem:[#allocation4 + $0x60] sm:$0xff] 0.0
          %606 = vst [vmem:[#allocation4 + $0x68] sm:$0xff] 0.0
          %607 = vst [vmem:[#allocation4 + $0x70] sm:$0xff] 0.0
          %608 = vst [vmem:[#allocation4 + $0x78] sm:$0xff] 0.0
        $region150: #{basic_transformer_block_forward.6} parent=133 // pred_fallthru
          _
        %v609 = vld [vmem:[%s508] sm:$0xff]
        %v610 = vld [vmem:[%s508 + $0x8] sm:$0xff]
        %v611 = vld [vmem:[%s508 + $0x10] sm:$0xff]
        %v612 = vld [vmem:[%s508 + $0x18] sm:$0xff]
        %v613 = vld [vmem:[%s508 + $0x20] sm:$0xff]
        %v614 = vld [vmem:[%s508 + $0x28] sm:$0xff]
        %v615 = vld [vmem:[%s508 + $0x30] sm:$0xff]
        %v616 = vld [vmem:[%s508 + $0x38] sm:$0xff]
        %v617 = vld [vmem:[%s508 + $0x40] sm:$0xff]
        %v618 = vld [vmem:[%s508 + $0x48] sm:$0xff]
        %v619 = vld [vmem:[%s508 + $0x50] sm:$0xff]
        %v620 = vld [vmem:[%s508 + $0x58] sm:$0xff]
        %v621 = vld [vmem:[%s508 + $0x60] sm:$0xff]
        %v622 = vld [vmem:[%s508 + $0x68] sm:$0xff]
        %v623 = vld [vmem:[%s508 + $0x70] sm:$0xff]
        %v624 = vld [vmem:[%s508 + $0x78] sm:$0xff]
        %v625 = vmul.f32 %v609, 0.088388346
        %v626 = vmul.f32 %v610, 0.088388346
        %v627 = vmul.f32 %v611, 0.088388346
        %v628 = vmul.f32 %v612, 0.088388346
        %v629 = vmul.f32 %v613, 0.088388346
        %v630 = vmul.f32 %v614, 0.088388346
        %v631 = vmul.f32 %v615, 0.088388346
        %v632 = vmul.f32 %v616, 0.088388346
        %v633 = vmul.f32 %v617, 0.088388346
        %v634 = vmul.f32 %v618, 0.088388346
        %v635 = vmul.f32 %v619, 0.088388346
        %v636 = vmul.f32 %v620, 0.088388346
        %v637 = vmul.f32 %v621, 0.088388346
        %v638 = vmul.f32 %v622, 0.088388346
        %v639 = vmul.f32 %v623, 0.088388346
        %v640 = vmul.f32 %v624, 0.088388346
        %v641 = vld [vmem:[%s515] sm:$0xff]
        %v642 = vld [vmem:[%s515 + $0x8] sm:$0xff]
        %v643 = vld [vmem:[%s515 + $0x10] sm:$0xff]
        %v644 = vld [vmem:[%s515 + $0x18] sm:$0xff]
        %v645 = vld [vmem:[%s515 + $0x20] sm:$0xff]
        %v646 = vld [vmem:[%s515 + $0x28] sm:$0xff]
        %v647 = vld [vmem:[%s515 + $0x30] sm:$0xff]
        %v648 = vld [vmem:[%s515 + $0x38] sm:$0xff]
        %v649 = vld [vmem:[%s515 + $0x40] sm:$0xff]
        %v650 = vld [vmem:[%s515 + $0x48] sm:$0xff]
        %v651 = vld [vmem:[%s515 + $0x50] sm:$0xff]
        %v652 = vld [vmem:[%s515 + $0x58] sm:$0xff]
        %v653 = vld [vmem:[%s515 + $0x60] sm:$0xff]
        %v654 = vld [vmem:[%s515 + $0x68] sm:$0xff]
        %v655 = vld [vmem:[%s515 + $0x70] sm:$0xff]
        %v656 = vld [vmem:[%s515 + $0x78] sm:$0xff]
        %657 = vmatprep.subr.mxu0 0.0
        %658 = vmatpush1.xpose.msra.mxu0 %v641
        %659 = vmatprep.subr.mxu0 0.0
        %660 = vmatpush1.xpose.msra.mxu0 %v642
        %661 = vmatprep.subr.mxu0 0.0
        %662 = vmatpush1.xpose.msra.mxu0 %v643
        %663 = vmatprep.subr.mxu0 0.0
        %664 = vmatpush1.xpose.msra.mxu0 %v644
        %665 = vmatprep.subr.mxu0 0.0
        %666 = vmatpush1.xpose.msra.mxu0 %v645
        %667 = vmatprep.subr.mxu0 0.0
        %668 = vmatpush1.xpose.msra.mxu0 %v646
        %669 = vmatprep.subr.mxu0 0.0
        %670 = vmatpush1.xpose.msra.mxu0 %v647
        %671 = vmatprep.subr.mxu0 0.0
        %672 = vmatpush1.xpose.msra.mxu0 %v648
        %673 = vmatprep.subr.mxu0 0.0
        %674 = vmatpush1.xpose.msra.mxu0 %v649
        %675 = vmatprep.subr.mxu0 0.0
        %676 = vmatpush1.xpose.msra.mxu0 %v650
        %677 = vmatprep.subr.mxu0 0.0
        %678 = vmatpush1.xpose.msra.mxu0 %v651
        %679 = vmatprep.subr.mxu0 0.0
        %680 = vmatpush1.xpose.msra.mxu0 %v652
        %681 = vmatprep.subr.mxu0 0.0
        %682 = vmatpush1.xpose.msra.mxu0 %v653
        %683 = vmatprep.subr.mxu0 0.0
        %684 = vmatpush1.xpose.msra.mxu0 %v654
        %685 = vmatprep.subr.mxu0 0.0
        %686 = vmatpush1.xpose.msra.mxu0 %v655
        %687 = vmatprep.subr.mxu0 0.0
        %688 = vmatpush1.xpose.msra.mxu0 %v656
        %689 = vmatprep.subr.mxu0 0.0
        %690 = vmatpush1.xpose.msra.mxu0 0.0
        %691 = vmatprep.subr.mxu0 0.0
        %692 = vmatpush1.xpose.msra.mxu0 0.0
        %693 = vmatprep.subr.mxu0 0.0
        %694 = vmatpush1.xpose.msra.mxu0 0.0
        %695 = vmatprep.subr.mxu0 0.0
        %696 = vmatpush1.xpose.msra.mxu0 0.0
        %697 = vmatprep.subr.mxu0 0.0
        %698 = vmatpush1.xpose.msra.mxu0 0.0
        %699 = vmatprep.subr.mxu0 0.0
        %700 = vmatpush1.xpose.msra.mxu0 0.0
        %701 = vmatprep.subr.mxu0 0.0
        %702 = vmatpush1.xpose.msra.mxu0 0.0
        %703 = vmatprep.subr.mxu0 0.0
        %704 = vmatpush1.xpose.msra.mxu0 0.0
        %705 = vmatprep.subr.mxu0 0.0
        %706 = vmatpush1.xpose.msra.mxu0 0.0
        %707 = vmatprep.subr.mxu0 0.0
        %708 = vmatpush1.xpose.msra.mxu0 0.0
        %709 = vmatprep.subr.mxu0 0.0
        %710 = vmatpush1.xpose.msra.mxu0 0.0
        %711 = vmatprep.subr.mxu0 0.0
        %712 = vmatpush1.xpose.msra.mxu0 0.0
        %713 = vmatprep.subr.mxu0 0.0
        %714 = vmatpush1.xpose.msra.mxu0 0.0
        %715 = vmatprep.subr.mxu0 0.0
        %716 = vmatpush1.xpose.msra.mxu0 0.0
        %717 = vmatprep.subr.mxu0 0.0
        %718 = vmatpush1.xpose.msra.mxu0 0.0
        %719 = vmatprep.subr.mxu0 0.0
        %720 = vmatpush1.xpose.msra.mxu0 0.0
        %721 = vmatprep.mubr.f32.mxu0 0.0
        %722 = vmatmul.mubr.f32.gmra.mrb[0].mxu0 %v625
        %v723 = vpop.f32.mrb[0].mxu0
        %v724 = vadd.f32 0.0, %v723
        %v725 = vpop.f32.mrb[0].mxu0
        %726 = vmatprep.mubr.f32.mxu0 0.0
        %727 = vmatmul.mubr.f32.gmra.mrb[0].mxu0 %v626
        %v728 = vpop.f32.mrb[0].mxu0
        %v729 = vadd.f32 0.0, %v728
        %v730 = vpop.f32.mrb[0].mxu0
        %731 = vmatprep.mubr.f32.mxu0 0.0
        %732 = vmatmul.mubr.f32.gmra.mrb[0].mxu0 %v627
        %v733 = vpop.f32.mrb[0].mxu0
        %v734 = vadd.f32 0.0, %v733
        %v735 = vpop.f32.mrb[0].mxu0
        %736 = vmatprep.mubr.f32.mxu0 0.0
        %737 = vmatmul.mubr.f32.gmra.mrb[0].mxu0 %v628
        %v738 = vpop.f32.mrb[0].mxu0
        %v739 = vadd.f32 0.0, %v738
        %v740 = vpop.f32.mrb[0].mxu0
        %741 = vmatprep.mubr.f32.mxu0 0.0
        %742 = vmatmul.mubr.f32.gmra.mrb[0].mxu0 %v629
        %v743 = vpop.f32.mrb[0].mxu0
        %v744 = vadd.f32 0.0, %v743
        %v745 = vpop.f32.mrb[0].mxu0
        %746 = vmatprep.mubr.f32.mxu0 0.0
        %747 = vmatmul.mubr.f32.gmra.mrb[0].mxu0 %v630
        %v748 = vpop.f32.mrb[0].mxu0
        %v749 = vadd.f32 0.0, %v748
        %v750 = vpop.f32.mrb[0].mxu0
        %751 = vmatprep.mubr.f32.mxu0 0.0
        %752 = vmatmul.mubr.f32.gmra.mrb[0].mxu0 %v631
        %v753 = vpop.f32.mrb[0].mxu0
        %v754 = vadd.f32 0.0, %v753
        %v755 = vpop.f32.mrb[0].mxu0
        %756 = vmatprep.mubr.f32.mxu0 0.0
        %757 = vmatmul.mubr.f32.gmra.mrb[0].mxu0 %v632
        %v758 = vpop.f32.mrb[0].mxu0
        %v759 = vadd.f32 0.0, %v758
        %v760 = vpop.f32.mrb[0].mxu0
        %761 = vmatprep.mubr.f32.mxu0 0.0
        %762 = vmatmul.mubr.f32.gmra.mrb[0].mxu0 %v633
        %v763 = vpop.f32.mrb[0].mxu0
        %v764 = vadd.f32 0.0, %v763
        %v765 = vpop.f32.mrb[0].mxu0
        %766 = vmatprep.mubr.f32.mxu0 0.0
        %767 = vmatmul.mubr.f32.gmra.mrb[0].mxu0 %v634
        %v768 = vpop.f32.mrb[0].mxu0
        %v769 = vadd.f32 0.0, %v768
        %v770 = vpop.f32.mrb[0].mxu0
        %771 = vmatprep.mubr.f32.mxu0 0.0
        %772 = vmatmul.mubr.f32.gmra.mrb[0].mxu0 %v635
        %v773 = vpop.f32.mrb[0].mxu0
        %v774 = vadd.f32 0.0, %v773
        %v775 = vpop.f32.mrb[0].mxu0
        %776 = vmatprep.mubr.f32.mxu0 0.0
        %777 = vmatmul.mubr.f32.gmra.mrb[0].mxu0 %v636
        %v778 = vpop.f32.mrb[0].mxu0
        %v779 = vadd.f32 0.0, %v778
        %v780 = vpop.f32.mrb[0].mxu0
        %781 = vmatprep.mubr.f32.mxu0 0.0
        %782 = vmatmul.mubr.f32.gmra.mrb[0].mxu0 %v637
        %v783 = vpop.f32.mrb[0].mxu0
        %v784 = vadd.f32 0.0, %v783
        %v785 = vpop.f32.mrb[0].mxu0
        %786 = vmatprep.mubr.f32.mxu0 0.0
        %787 = vmatmul.mubr.f32.gmra.mrb[0].mxu0 %v638
        %v788 = vpop.f32.mrb[0].mxu0
        %v789 = vadd.f32 0.0, %v788
        %v790 = vpop.f32.mrb[0].mxu0
        %791 = vmatprep.mubr.f32.mxu0 0.0
        %792 = vmatmul.mubr.f32.gmra.mrb[0].mxu0 %v639
        %v793 = vpop.f32.mrb[0].mxu0
        %v794 = vadd.f32 0.0, %v793
        %v795 = vpop.f32.mrb[0].mxu0
        %796 = vmatprep.mubr.f32.mxu0 0.0
        %797 = vmatmul.mubr.f32.gmra.mrb[0].mxu0 %v640
        %v798 = vpop.f32.mrb[0].mxu0
        %v799 = vadd.f32 0.0, %v798
        %v800 = vpop.f32.mrb[0].mxu0
        %801 = vdwg.mxu0
        %v802 = vld [vmem:[#allocation2] sm:$0xff]
        %v803 = vld [vmem:[#allocation2 + $0x8] sm:$0xff]
        %v804 = vld [vmem:[#allocation2 + $0x10] sm:$0xff]
        %v805 = vld [vmem:[#allocation2 + $0x18] sm:$0xff]
        %v806 = vld [vmem:[#allocation2 + $0x20] sm:$0xff]
        %v807 = vld [vmem:[#allocation2 + $0x28] sm:$0xff]
        %v808 = vld [vmem:[#allocation2 + $0x30] sm:$0xff]
        %v809 = vld [vmem:[#allocation2 + $0x38] sm:$0xff]
        %v810 = vld [vmem:[#allocation2 + $0x40] sm:$0xff]
        %v811 = vld [vmem:[#allocation2 + $0x48] sm:$0xff]
        %v812 = vld [vmem:[#allocation2 + $0x50] sm:$0xff]
        %v813 = vld [vmem:[#allocation2 + $0x58] sm:$0xff]
        %v814 = vld [vmem:[#allocation2 + $0x60] sm:$0xff]
        %v815 = vld [vmem:[#allocation2 + $0x68] sm:$0xff]
        %v816 = vld [vmem:[#allocation2 + $0x70] sm:$0xff]
        %v817 = vld [vmem:[#allocation2 + $0x78] sm:$0xff]
        %818 = vmax.xlane.f32.xlu0 %v724
        %v819 = vpop.xlane.xlu0 %818
        %820 = vmax.xlane.f32.xlu0 %v729
        %v821 = vpop.xlane.xlu0 %820
        %822 = vmax.xlane.f32.xlu0 %v734
        %v823 = vpop.xlane.xlu0 %822
        %824 = vmax.xlane.f32.xlu0 %v739
        %v825 = vpop.xlane.xlu0 %824
        %826 = vmax.xlane.f32.xlu0 %v744
        %v827 = vpop.xlane.xlu0 %826
        %828 = vmax.xlane.f32.xlu0 %v749
        %v829 = vpop.xlane.xlu0 %828
        %830 = vmax.xlane.f32.xlu0 %v754
        %v831 = vpop.xlane.xlu0 %830
        %832 = vmax.xlane.f32.xlu0 %v759
        %v833 = vpop.xlane.xlu0 %832
        %834 = vmax.xlane.f32.xlu0 %v764
        %v835 = vpop.xlane.xlu0 %834
        %836 = vmax.xlane.f32.xlu0 %v769
        %v837 = vpop.xlane.xlu0 %836
        %838 = vmax.xlane.f32.xlu0 %v774
        %v839 = vpop.xlane.xlu0 %838
        %840 = vmax.xlane.f32.xlu0 %v779
        %v841 = vpop.xlane.xlu0 %840
        %842 = vmax.xlane.f32.xlu0 %v784
        %v843 = vpop.xlane.xlu0 %842
        %844 = vmax.xlane.f32.xlu0 %v789
        %v845 = vpop.xlane.xlu0 %844
        %846 = vmax.xlane.f32.xlu0 %v794
        %v847 = vpop.xlane.xlu0 %846
        %848 = vmax.xlane.f32.xlu0 %v799
        %v849 = vpop.xlane.xlu0 %848
        %v850 = vmax.f32 %v802, %v819
        %v851 = vmax.f32 %v803, %v821
        %v852 = vmax.f32 %v804, %v823
        %v853 = vmax.f32 %v805, %v825
        %v854 = vmax.f32 %v806, %v827
        %v855 = vmax.f32 %v807, %v829
        %v856 = vmax.f32 %v808, %v831
        %v857 = vmax.f32 %v809, %v833
        %v858 = vmax.f32 %v810, %v835
        %v859 = vmax.f32 %v811, %v837
        %v860 = vmax.f32 %v812, %v839
        %v861 = vmax.f32 %v813, %v841
        %v862 = vmax.f32 %v814, %v843
        %v863 = vmax.f32 %v815, %v845
        %v864 = vmax.f32 %v816, %v847
        %v865 = vmax.f32 %v817, %v849
        %v866 = vsub.f32 %v802, %v850
        %v867 = vsub.f32 %v803, %v851
        %v868 = vsub.f32 %v804, %v852
        %v869 = vsub.f32 %v805, %v853
        %v870 = vsub.f32 %v806, %v854
        %v871 = vsub.f32 %v807, %v855
        %v872 = vsub.f32 %v808, %v856
        %v873 = vsub.f32 %v809, %v857
        %v874 = vsub.f32 %v810, %v858
        %v875 = vsub.f32 %v811, %v859
        %v876 = vsub.f32 %v812, %v860
        %v877 = vsub.f32 %v813, %v861
        %v878 = vsub.f32 %v814, %v862
        %v879 = vsub.f32 %v815, %v863
        %v880 = vsub.f32 %v816, %v864
        %v881 = vsub.f32 %v817, %v865
        %v882 = vmul.f32 %v866, 1.442695
        %v883 = vpow.pop %v882
        %v884 = vmul.f32 %v867, 1.442695
        %v885 = vpow.pop %v884
        %v886 = vmul.f32 %v868, 1.442695
        %v887 = vpow.pop %v886
        %v888 = vmul.f32 %v869, 1.442695
        %v889 = vpow.pop %v888
        %v890 = vmul.f32 %v870, 1.442695
        %v891 = vpow.pop %v890
        %v892 = vmul.f32 %v871, 1.442695
        %v893 = vpow.pop %v892
        %v894 = vmul.f32 %v872, 1.442695
        %v895 = vpow.pop %v894
        %v896 = vmul.f32 %v873, 1.442695
        %v897 = vpow.pop %v896
        %v898 = vmul.f32 %v874, 1.442695
        %v899 = vpow.pop %v898
        %v900 = vmul.f32 %v875, 1.442695
        %v901 = vpow.pop %v900
        %v902 = vmul.f32 %v876, 1.442695
        %v903 = vpow.pop %v902
        %v904 = vmul.f32 %v877, 1.442695
        %v905 = vpow.pop %v904
        %v906 = vmul.f32 %v878, 1.442695
        %v907 = vpow.pop %v906
        %v908 = vmul.f32 %v879, 1.442695
        %v909 = vpow.pop %v908
        %v910 = vmul.f32 %v880, 1.442695
        %v911 = vpow.pop %v910
        %v912 = vmul.f32 %v881, 1.442695
        %v913 = vpow.pop %v912
        %915 = vset.pattern.permute.xlu0 0
        %916 = vperm.xlu0 %915, %v850
        %v917 = vpop.permute.xlu0 %916
        %920 = vset.pattern.permute.xlu0 0
        %921 = vperm.xlu0 %920, %v851
        %v922 = vpop.permute.xlu0 %921
        %925 = vset.pattern.permute.xlu0 0
        %926 = vperm.xlu0 %925, %v852
        %v927 = vpop.permute.xlu0 %926
        %930 = vset.pattern.permute.xlu0 0
        %931 = vperm.xlu0 %930, %v853
        %v932 = vpop.permute.xlu0 %931
        %935 = vset.pattern.permute.xlu0 0
        %936 = vperm.xlu0 %935, %v854
        %v937 = vpop.permute.xlu0 %936
        %940 = vset.pattern.permute.xlu0 0
        %941 = vperm.xlu0 %940, %v855
        %v942 = vpop.permute.xlu0 %941
        %945 = vset.pattern.permute.xlu0 0
        %946 = vperm.xlu0 %945, %v856
        %v947 = vpop.permute.xlu0 %946
        %950 = vset.pattern.permute.xlu0 0
        %951 = vperm.xlu0 %950, %v857
        %v952 = vpop.permute.xlu0 %951
        %955 = vset.pattern.permute.xlu0 0
        %956 = vperm.xlu0 %955, %v858
        %v957 = vpop.permute.xlu0 %956
        %960 = vset.pattern.permute.xlu0 0
        %961 = vperm.xlu0 %960, %v859
        %v962 = vpop.permute.xlu0 %961
        %965 = vset.pattern.permute.xlu0 0
        %966 = vperm.xlu0 %965, %v860
        %v967 = vpop.permute.xlu0 %966
        %970 = vset.pattern.permute.xlu0 0
        %971 = vperm.xlu0 %970, %v861
        %v972 = vpop.permute.xlu0 %971
        %975 = vset.pattern.permute.xlu0 0
        %976 = vperm.xlu0 %975, %v862
        %v977 = vpop.permute.xlu0 %976
        %980 = vset.pattern.permute.xlu0 0
        %981 = vperm.xlu0 %980, %v863
        %v982 = vpop.permute.xlu0 %981
        %985 = vset.pattern.permute.xlu0 0
        %986 = vperm.xlu0 %985, %v864
        %v987 = vpop.permute.xlu0 %986
        %990 = vset.pattern.permute.xlu0 0
        %991 = vperm.xlu0 %990, %v865
        %v992 = vpop.permute.xlu0 %991
        %v994 = vsub.f32 %v724, %v917
        %v995 = vsub.f32 %v729, %v922
        %v996 = vsub.f32 %v734, %v927
        %v997 = vsub.f32 %v739, %v932
        %v998 = vsub.f32 %v744, %v937
        %v999 = vsub.f32 %v749, %v942
        %v1000 = vsub.f32 %v754, %v947
        %v1001 = vsub.f32 %v759, %v952
        %v1002 = vsub.f32 %v764, %v957
        %v1003 = vsub.f32 %v769, %v962
        %v1004 = vsub.f32 %v774, %v967
        %v1005 = vsub.f32 %v779, %v972
        %v1006 = vsub.f32 %v784, %v977
        %v1007 = vsub.f32 %v789, %v982
        %v1008 = vsub.f32 %v794, %v987
        %v1009 = vsub.f32 %v799, %v992
        %v1010 = vmul.f32 %v994, 1.442695
        %v1011 = vpow.pop %v1010
        %v1012 = vmul.f32 %v995, 1.442695
        %v1013 = vpow.pop %v1012
        %v1014 = vmul.f32 %v996, 1.442695
        %v1015 = vpow.pop %v1014
        %v1016 = vmul.f32 %v997, 1.442695
        %v1017 = vpow.pop %v1016
        %v1018 = vmul.f32 %v998, 1.442695
        %v1019 = vpow.pop %v1018
        %v1020 = vmul.f32 %v999, 1.442695
        %v1021 = vpow.pop %v1020
        %v1022 = vmul.f32 %v1000, 1.442695
        %v1023 = vpow.pop %v1022
        %v1024 = vmul.f32 %v1001, 1.442695
        %v1025 = vpow.pop %v1024
        %v1026 = vmul.f32 %v1002, 1.442695
        %v1027 = vpow.pop %v1026
        %v1028 = vmul.f32 %v1003, 1.442695
        %v1029 = vpow.pop %v1028
        %v1030 = vmul.f32 %v1004, 1.442695
        %v1031 = vpow.pop %v1030
        %v1032 = vmul.f32 %v1005, 1.442695
        %v1033 = vpow.pop %v1032
        %v1034 = vmul.f32 %v1006, 1.442695
        %v1035 = vpow.pop %v1034
        %v1036 = vmul.f32 %v1007, 1.442695
        %v1037 = vpow.pop %v1036
        %v1038 = vmul.f32 %v1008, 1.442695
        %v1039 = vpow.pop %v1038
        %v1040 = vmul.f32 %v1009, 1.442695
        %v1041 = vpow.pop %v1040
        %v1042 = vld [vmem:[#allocation3] sm:$0xff]
        %v1043 = vld [vmem:[#allocation3 + $0x8] sm:$0xff]
        %v1044 = vld [vmem:[#allocation3 + $0x10] sm:$0xff]
        %v1045 = vld [vmem:[#allocation3 + $0x18] sm:$0xff]
        %v1046 = vld [vmem:[#allocation3 + $0x20] sm:$0xff]
        %v1047 = vld [vmem:[#allocation3 + $0x28] sm:$0xff]
        %v1048 = vld [vmem:[#allocation3 + $0x30] sm:$0xff]
        %v1049 = vld [vmem:[#allocation3 + $0x38] sm:$0xff]
        %v1050 = vld [vmem:[#allocation3 + $0x40] sm:$0xff]
        %v1051 = vld [vmem:[#allocation3 + $0x48] sm:$0xff]
        %v1052 = vld [vmem:[#allocation3 + $0x50] sm:$0xff]
        %v1053 = vld [vmem:[#allocation3 + $0x58] sm:$0xff]
        %v1054 = vld [vmem:[#allocation3 + $0x60] sm:$0xff]
        %v1055 = vld [vmem:[#allocation3 + $0x68] sm:$0xff]
        %v1056 = vld [vmem:[#allocation3 + $0x70] sm:$0xff]
        %v1057 = vld [vmem:[#allocation3 + $0x78] sm:$0xff]
        %v1058 = vmul.f32 %v883, %v1042
        %v1059 = vmul.f32 %v885, %v1043
        %v1060 = vmul.f32 %v887, %v1044
        %v1061 = vmul.f32 %v889, %v1045
        %v1062 = vmul.f32 %v891, %v1046
        %v1063 = vmul.f32 %v893, %v1047
        %v1064 = vmul.f32 %v895, %v1048
        %v1065 = vmul.f32 %v897, %v1049
        %v1066 = vmul.f32 %v899, %v1050
        %v1067 = vmul.f32 %v901, %v1051
        %v1068 = vmul.f32 %v903, %v1052
        %v1069 = vmul.f32 %v905, %v1053
        %v1070 = vmul.f32 %v907, %v1054
        %v1071 = vmul.f32 %v909, %v1055
        %v1072 = vmul.f32 %v911, %v1056
        %v1073 = vmul.f32 %v913, %v1057
        %1074 = vadd.xlane.f32.xlu0 %v1011
        %v1075 = vpop.xlane.xlu0 %1074
        %1076 = vadd.xlane.f32.xlu0 %v1013
        %v1077 = vpop.xlane.xlu0 %1076
        %1078 = vadd.xlane.f32.xlu0 %v1015
        %v1079 = vpop.xlane.xlu0 %1078
        %1080 = vadd.xlane.f32.xlu0 %v1017
        %v1081 = vpop.xlane.xlu0 %1080
        %1082 = vadd.xlane.f32.xlu0 %v1019
        %v1083 = vpop.xlane.xlu0 %1082
        %1084 = vadd.xlane.f32.xlu0 %v1021
        %v1085 = vpop.xlane.xlu0 %1084
        %1086 = vadd.xlane.f32.xlu0 %v1023
        %v1087 = vpop.xlane.xlu0 %1086
        %1088 = vadd.xlane.f32.xlu0 %v1025
        %v1089 = vpop.xlane.xlu0 %1088
        %1090 = vadd.xlane.f32.xlu0 %v1027
        %v1091 = vpop.xlane.xlu0 %1090
        %1092 = vadd.xlane.f32.xlu0 %v1029
        %v1093 = vpop.xlane.xlu0 %1092
        %1094 = vadd.xlane.f32.xlu0 %v1031
        %v1095 = vpop.xlane.xlu0 %1094
        %1096 = vadd.xlane.f32.xlu0 %v1033
        %v1097 = vpop.xlane.xlu0 %1096
        %1098 = vadd.xlane.f32.xlu0 %v1035
        %v1099 = vpop.xlane.xlu0 %1098
        %1100 = vadd.xlane.f32.xlu0 %v1037
        %v1101 = vpop.xlane.xlu0 %1100
        %1102 = vadd.xlane.f32.xlu0 %v1039
        %v1103 = vpop.xlane.xlu0 %1102
        %1104 = vadd.xlane.f32.xlu0 %v1041
        %v1105 = vpop.xlane.xlu0 %1104
        %v1106 = vadd.f32 %v1058, %v1075
        %v1107 = vadd.f32 %v1059, %v1077
        %v1108 = vadd.f32 %v1060, %v1079
        %v1109 = vadd.f32 %v1061, %v1081
        %v1110 = vadd.f32 %v1062, %v1083
        %v1111 = vadd.f32 %v1063, %v1085
        %v1112 = vadd.f32 %v1064, %v1087
        %v1113 = vadd.f32 %v1065, %v1089
        %v1114 = vadd.f32 %v1066, %v1091
        %v1115 = vadd.f32 %v1067, %v1093
        %v1116 = vadd.f32 %v1068, %v1095
        %v1117 = vadd.f32 %v1069, %v1097
        %v1118 = vadd.f32 %v1070, %v1099
        %v1119 = vadd.f32 %v1071, %v1101
        %v1120 = vadd.f32 %v1072, %v1103
        %v1121 = vadd.f32 %v1073, %v1105
        %vm1122 = vcmask 7168
        %1123 = vst.msk [vmem:[#allocation3] sm:$0xff] %vm1122, %v1106
        %1124 = vst.msk [vmem:[#allocation3 + $0x8] sm:$0xff] %vm1122, %v1107
        %1125 = vst.msk [vmem:[#allocation3 + $0x10] sm:$0xff] %vm1122, %v1108
        %1126 = vst.msk [vmem:[#allocation3 + $0x18] sm:$0xff] %vm1122, %v1109
        %1127 = vst.msk [vmem:[#allocation3 + $0x20] sm:$0xff] %vm1122, %v1110
        %1128 = vst.msk [vmem:[#allocation3 + $0x28] sm:$0xff] %vm1122, %v1111
        %1129 = vst.msk [vmem:[#allocation3 + $0x30] sm:$0xff] %vm1122, %v1112
        %1130 = vst.msk [vmem:[#allocation3 + $0x38] sm:$0xff] %vm1122, %v1113
        %1131 = vst.msk [vmem:[#allocation3 + $0x40] sm:$0xff] %vm1122, %v1114
        %1132 = vst.msk [vmem:[#allocation3 + $0x48] sm:$0xff] %vm1122, %v1115
        %1133 = vst.msk [vmem:[#allocation3 + $0x50] sm:$0xff] %vm1122, %v1116
        %1134 = vst.msk [vmem:[#allocation3 + $0x58] sm:$0xff] %vm1122, %v1117
        %1135 = vst.msk [vmem:[#allocation3 + $0x60] sm:$0xff] %vm1122, %v1118
        %1136 = vst.msk [vmem:[#allocation3 + $0x68] sm:$0xff] %vm1122, %v1119
        %1137 = vst.msk [vmem:[#allocation3 + $0x70] sm:$0xff] %vm1122, %v1120
        %1138 = vst.msk [vmem:[#allocation3 + $0x78] sm:$0xff] %vm1122, %v1121
        %v1139 = vld [vmem:[#allocation4] sm:$0xff]
        %v1140 = vld [vmem:[#allocation4 + $0x8] sm:$0xff]
        %v1141 = vld [vmem:[#allocation4 + $0x10] sm:$0xff]
        %v1142 = vld [vmem:[#allocation4 + $0x18] sm:$0xff]
        %v1143 = vld [vmem:[#allocation4 + $0x20] sm:$0xff]
        %v1144 = vld [vmem:[#allocation4 + $0x28] sm:$0xff]
        %v1145 = vld [vmem:[#allocation4 + $0x30] sm:$0xff]
        %v1146 = vld [vmem:[#allocation4 + $0x38] sm:$0xff]
        %v1147 = vld [vmem:[#allocation4 + $0x40] sm:$0xff]
        %v1148 = vld [vmem:[#allocation4 + $0x48] sm:$0xff]
        %v1149 = vld [vmem:[#allocation4 + $0x50] sm:$0xff]
        %v1150 = vld [vmem:[#allocation4 + $0x58] sm:$0xff]
        %v1151 = vld [vmem:[#allocation4 + $0x60] sm:$0xff]
        %v1152 = vld [vmem:[#allocation4 + $0x68] sm:$0xff]
        %v1153 = vld [vmem:[#allocation4 + $0x70] sm:$0xff]
        %v1154 = vld [vmem:[#allocation4 + $0x78] sm:$0xff]
        %1156 = vset.pattern.permute.xlu0 0
        %1157 = vperm.xlu0 %1156, %v883
        %v1158 = vpop.permute.xlu0 %1157
        %1161 = vset.pattern.permute.xlu0 0
        %1162 = vperm.xlu0 %1161, %v885
        %v1163 = vpop.permute.xlu0 %1162
        %1166 = vset.pattern.permute.xlu0 0
        %1167 = vperm.xlu0 %1166, %v887
        %v1168 = vpop.permute.xlu0 %1167
        %1171 = vset.pattern.permute.xlu0 0
        %1172 = vperm.xlu0 %1171, %v889
        %v1173 = vpop.permute.xlu0 %1172
        %1176 = vset.pattern.permute.xlu0 0
        %1177 = vperm.xlu0 %1176, %v891
        %v1178 = vpop.permute.xlu0 %1177
        %1181 = vset.pattern.permute.xlu0 0
        %1182 = vperm.xlu0 %1181, %v893
        %v1183 = vpop.permute.xlu0 %1182
        %1186 = vset.pattern.permute.xlu0 0
        %1187 = vperm.xlu0 %1186, %v895
        %v1188 = vpop.permute.xlu0 %1187
        %1191 = vset.pattern.permute.xlu0 0
        %1192 = vperm.xlu0 %1191, %v897
        %v1193 = vpop.permute.xlu0 %1192
        %1196 = vset.pattern.permute.xlu0 0
        %1197 = vperm.xlu0 %1196, %v899
        %v1198 = vpop.permute.xlu0 %1197
        %1201 = vset.pattern.permute.xlu0 0
        %1202 = vperm.xlu0 %1201, %v901
        %v1203 = vpop.permute.xlu0 %1202
        %1206 = vset.pattern.permute.xlu0 0
        %1207 = vperm.xlu0 %1206, %v903
        %v1208 = vpop.permute.xlu0 %1207
        %1211 = vset.pattern.permute.xlu0 0
        %1212 = vperm.xlu0 %1211, %v905
        %v1213 = vpop.permute.xlu0 %1212
        %1216 = vset.pattern.permute.xlu0 0
        %1217 = vperm.xlu0 %1216, %v907
        %v1218 = vpop.permute.xlu0 %1217
        %1221 = vset.pattern.permute.xlu0 0
        %1222 = vperm.xlu0 %1221, %v909
        %v1223 = vpop.permute.xlu0 %1222
        %1226 = vset.pattern.permute.xlu0 0
        %1227 = vperm.xlu0 %1226, %v911
        %v1228 = vpop.permute.xlu0 %1227
        %1231 = vset.pattern.permute.xlu0 0
        %1232 = vperm.xlu0 %1231, %v913
        %v1233 = vpop.permute.xlu0 %1232
        %v1235 = vmul.f32 %v1158, %v1139
        %v1236 = vmul.f32 %v1163, %v1140
        %v1237 = vmul.f32 %v1168, %v1141
        %v1238 = vmul.f32 %v1173, %v1142
        %v1239 = vmul.f32 %v1178, %v1143
        %v1240 = vmul.f32 %v1183, %v1144
        %v1241 = vmul.f32 %v1188, %v1145
        %v1242 = vmul.f32 %v1193, %v1146
        %v1243 = vmul.f32 %v1198, %v1147
        %v1244 = vmul.f32 %v1203, %v1148
        %v1245 = vmul.f32 %v1208, %v1149
        %v1246 = vmul.f32 %v1213, %v1150
        %v1247 = vmul.f32 %v1218, %v1151
        %v1248 = vmul.f32 %v1223, %v1152
        %v1249 = vmul.f32 %v1228, %v1153
        %v1250 = vmul.f32 %v1233, %v1154
        %v1251 = vld [vmem:[%s522] sm:$0xff]
        %v1252 = vld [vmem:[%s522 + $0x8] sm:$0xff]
        %v1253 = vld [vmem:[%s522 + $0x10] sm:$0xff]
        %v1254 = vld [vmem:[%s522 + $0x18] sm:$0xff]
        %v1255 = vld [vmem:[%s522 + $0x20] sm:$0xff]
        %v1256 = vld [vmem:[%s522 + $0x28] sm:$0xff]
        %v1257 = vld [vmem:[%s522 + $0x30] sm:$0xff]
        %v1258 = vld [vmem:[%s522 + $0x38] sm:$0xff]
        %v1259 = vld [vmem:[%s522 + $0x40] sm:$0xff]
        %v1260 = vld [vmem:[%s522 + $0x48] sm:$0xff]
        %v1261 = vld [vmem:[%s522 + $0x50] sm:$0xff]
        %v1262 = vld [vmem:[%s522 + $0x58] sm:$0xff]
        %v1263 = vld [vmem:[%s522 + $0x60] sm:$0xff]
        %v1264 = vld [vmem:[%s522 + $0x68] sm:$0xff]
        %v1265 = vld [vmem:[%s522 + $0x70] sm:$0xff]
        %v1266 = vld [vmem:[%s522 + $0x78] sm:$0xff]
        %1267 = vmatprep.subr.mxu0 0.0
        %1268 = vmatpush1.msra.mxu0 %v1251
        %1269 = vmatprep.subr.mxu0 0.0
        %1270 = vmatpush1.msra.mxu0 %v1252
        %1271 = vmatprep.subr.mxu0 0.0
        %1272 = vmatpush1.msra.mxu0 %v1253
        %1273 = vmatprep.subr.mxu0 0.0
        %1274 = vmatpush1.msra.mxu0 %v1254
        %1275 = vmatprep.subr.mxu0 0.0
        %1276 = vmatpush1.msra.mxu0 %v1255
        %1277 = vmatprep.subr.mxu0 0.0
        %1278 = vmatpush1.msra.mxu0 %v1256
        %1279 = vmatprep.subr.mxu0 0.0
        %1280 = vmatpush1.msra.mxu0 %v1257
        %1281 = vmatprep.subr.mxu0 0.0
        %1282 = vmatpush1.msra.mxu0 %v1258
        %1283 = vmatprep.subr.mxu0 0.0
        %1284 = vmatpush1.msra.mxu0 %v1259
        %1285 = vmatprep.subr.mxu0 0.0
        %1286 = vmatpush1.msra.mxu0 %v1260
        %1287 = vmatprep.subr.mxu0 0.0
        %1288 = vmatpush1.msra.mxu0 %v1261
        %1289 = vmatprep.subr.mxu0 0.0
        %1290 = vmatpush1.msra.mxu0 %v1262
        %1291 = vmatprep.subr.mxu0 0.0
        %1292 = vmatpush1.msra.mxu0 %v1263
        %1293 = vmatprep.subr.mxu0 0.0
        %1294 = vmatpush1.msra.mxu0 %v1264
        %1295 = vmatprep.subr.mxu0 0.0
        %1296 = vmatpush1.msra.mxu0 %v1265
        %1297 = vmatprep.subr.mxu0 0.0
        %1298 = vmatpush1.msra.mxu0 %v1266
        %1299 = vmatprep.subr.mxu0 0.0
        %1300 = vmatpush1.msra.mxu0 0.0
        %1301 = vmatprep.subr.mxu0 0.0
        %1302 = vmatpush1.msra.mxu0 0.0
        %1303 = vmatprep.subr.mxu0 0.0
        %1304 = vmatpush1.msra.mxu0 0.0
        %1305 = vmatprep.subr.mxu0 0.0
        %1306 = vmatpush1.msra.mxu0 0.0
        %1307 = vmatprep.subr.mxu0 0.0
        %1308 = vmatpush1.msra.mxu0 0.0
        %1309 = vmatprep.subr.mxu0 0.0
        %1310 = vmatpush1.msra.mxu0 0.0
        %1311 = vmatprep.subr.mxu0 0.0
        %1312 = vmatpush1.msra.mxu0 0.0
        %1313 = vmatprep.subr.mxu0 0.0
        %1314 = vmatpush1.msra.mxu0 0.0
        %1315 = vmatprep.subr.mxu0 0.0
        %1316 = vmatpush1.msra.mxu0 0.0
        %1317 = vmatprep.subr.mxu0 0.0
        %1318 = vmatpush1.msra.mxu0 0.0
        %1319 = vmatprep.subr.mxu0 0.0
        %1320 = vmatpush1.msra.mxu0 0.0
        %1321 = vmatprep.subr.mxu0 0.0
        %1322 = vmatpush1.msra.mxu0 0.0
        %1323 = vmatprep.subr.mxu0 0.0
        %1324 = vmatpush1.msra.mxu0 0.0
        %1325 = vmatprep.subr.mxu0 0.0
        %1326 = vmatpush1.msra.mxu0 0.0
        %1327 = vmatprep.subr.mxu0 0.0
        %1328 = vmatpush1.msra.mxu0 0.0
        %1329 = vmatprep.subr.mxu0 0.0
        %1330 = vmatpush1.msra.mxu0 0.0
        %1331 = vmatprep.mubr.f32.mxu0 0.0
        %1332 = vmatmul.mubr.f32.gmra.mrb[0].mxu0 %v1011
        %v1333 = vpop.f32.mrb[0].mxu0
        %v1334 = vadd.f32 0.0, %v1333
        %v1335 = vpop.f32.mrb[0].mxu0
        %1336 = vmatprep.mubr.f32.mxu0 0.0
        %1337 = vmatmul.mubr.f32.gmra.mrb[0].mxu0 %v1013
        %v1338 = vpop.f32.mrb[0].mxu0
        %v1339 = vadd.f32 0.0, %v1338
        %v1340 = vpop.f32.mrb[0].mxu0
        %1341 = vmatprep.mubr.f32.mxu0 0.0
        %1342 = vmatmul.mubr.f32.gmra.mrb[0].mxu0 %v1015
        %v1343 = vpop.f32.mrb[0].mxu0
        %v1344 = vadd.f32 0.0, %v1343
        %v1345 = vpop.f32.mrb[0].mxu0
        %1346 = vmatprep.mubr.f32.mxu0 0.0
        %1347 = vmatmul.mubr.f32.gmra.mrb[0].mxu0 %v1017
        %v1348 = vpop.f32.mrb[0].mxu0
        %v1349 = vadd.f32 0.0, %v1348
        %v1350 = vpop.f32.mrb[0].mxu0
        %1351 = vmatprep.mubr.f32.mxu0 0.0
        %1352 = vmatmul.mubr.f32.gmra.mrb[0].mxu0 %v1019
        %v1353 = vpop.f32.mrb[0].mxu0
        %v1354 = vadd.f32 0.0, %v1353
        %v1355 = vpop.f32.mrb[0].mxu0
        %1356 = vmatprep.mubr.f32.mxu0 0.0
        %1357 = vmatmul.mubr.f32.gmra.mrb[0].mxu0 %v1021
        %v1358 = vpop.f32.mrb[0].mxu0
        %v1359 = vadd.f32 0.0, %v1358
        %v1360 = vpop.f32.mrb[0].mxu0
        %1361 = vmatprep.mubr.f32.mxu0 0.0
        %1362 = vmatmul.mubr.f32.gmra.mrb[0].mxu0 %v1023
        %v1363 = vpop.f32.mrb[0].mxu0
        %v1364 = vadd.f32 0.0, %v1363
        %v1365 = vpop.f32.mrb[0].mxu0
        %1366 = vmatprep.mubr.f32.mxu0 0.0
        %1367 = vmatmul.mubr.f32.gmra.mrb[0].mxu0 %v1025
        %v1368 = vpop.f32.mrb[0].mxu0
        %v1369 = vadd.f32 0.0, %v1368
        %v1370 = vpop.f32.mrb[0].mxu0
        %1371 = vmatprep.mubr.f32.mxu0 0.0
        %1372 = vmatmul.mubr.f32.gmra.mrb[0].mxu0 %v1027
        %v1373 = vpop.f32.mrb[0].mxu0
        %v1374 = vadd.f32 0.0, %v1373
        %v1375 = vpop.f32.mrb[0].mxu0
        %1376 = vmatprep.mubr.f32.mxu0 0.0
        %1377 = vmatmul.mubr.f32.gmra.mrb[0].mxu0 %v1029
        %v1378 = vpop.f32.mrb[0].mxu0
        %v1379 = vadd.f32 0.0, %v1378
        %v1380 = vpop.f32.mrb[0].mxu0
        %1381 = vmatprep.mubr.f32.mxu0 0.0
        %1382 = vmatmul.mubr.f32.gmra.mrb[0].mxu0 %v1031
        %v1383 = vpop.f32.mrb[0].mxu0
        %v1384 = vadd.f32 0.0, %v1383
        %v1385 = vpop.f32.mrb[0].mxu0
        %1386 = vmatprep.mubr.f32.mxu0 0.0
        %1387 = vmatmul.mubr.f32.gmra.mrb[0].mxu0 %v1033
        %v1388 = vpop.f32.mrb[0].mxu0
        %v1389 = vadd.f32 0.0, %v1388
        %v1390 = vpop.f32.mrb[0].mxu0
        %1391 = vmatprep.mubr.f32.mxu0 0.0
        %1392 = vmatmul.mubr.f32.gmra.mrb[0].mxu0 %v1035
        %v1393 = vpop.f32.mrb[0].mxu0
        %v1394 = vadd.f32 0.0, %v1393
        %v1395 = vpop.f32.mrb[0].mxu0
        %1396 = vmatprep.mubr.f32.mxu0 0.0
        %1397 = vmatmul.mubr.f32.gmra.mrb[0].mxu0 %v1037
        %v1398 = vpop.f32.mrb[0].mxu0
        %v1399 = vadd.f32 0.0, %v1398
        %v1400 = vpop.f32.mrb[0].mxu0
        %1401 = vmatprep.mubr.f32.mxu0 0.0
        %1402 = vmatmul.mubr.f32.gmra.mrb[0].mxu0 %v1039
        %v1403 = vpop.f32.mrb[0].mxu0
        %v1404 = vadd.f32 0.0, %v1403
        %v1405 = vpop.f32.mrb[0].mxu0
        %1406 = vmatprep.mubr.f32.mxu0 0.0
        %1407 = vmatmul.mubr.f32.gmra.mrb[0].mxu0 %v1041
        %v1408 = vpop.f32.mrb[0].mxu0
        %v1409 = vadd.f32 0.0, %v1408
        %v1410 = vpop.f32.mrb[0].mxu0
        %1411 = vdwg.mxu0
        %v1412 = vadd.f32 %v1235, %v1334
        %v1413 = vadd.f32 %v1236, %v1339
        %v1414 = vadd.f32 %v1237, %v1344
        %v1415 = vadd.f32 %v1238, %v1349
        %v1416 = vadd.f32 %v1239, %v1354
        %v1417 = vadd.f32 %v1240, %v1359
        %v1418 = vadd.f32 %v1241, %v1364
        %v1419 = vadd.f32 %v1242, %v1369
        %v1420 = vadd.f32 %v1243, %v1374
        %v1421 = vadd.f32 %v1244, %v1379
        %v1422 = vadd.f32 %v1245, %v1384
        %v1423 = vadd.f32 %v1246, %v1389
        %v1424 = vadd.f32 %v1247, %v1394
        %v1425 = vadd.f32 %v1248, %v1399
        %v1426 = vadd.f32 %v1249, %v1404
        %v1427 = vadd.f32 %v1250, %v1409
        %1428 = vst [vmem:[#allocation4] sm:$0xff] %v1412
        %1429 = vst [vmem:[#allocation4 + $0x8] sm:$0xff] %v1413
        %1430 = vst [vmem:[#allocation4 + $0x10] sm:$0xff] %v1414
        %1431 = vst [vmem:[#allocation4 + $0x18] sm:$0xff] %v1415
        %1432 = vst [vmem:[#allocation4 + $0x20] sm:$0xff] %v1416
        %1433 = vst [vmem:[#allocation4 + $0x28] sm:$0xff] %v1417
        %1434 = vst [vmem:[#allocation4 + $0x30] sm:$0xff] %v1418
        %1435 = vst [vmem:[#allocation4 + $0x38] sm:$0xff] %v1419
        %1436 = vst [vmem:[#allocation4 + $0x40] sm:$0xff] %v1420
        %1437 = vst [vmem:[#allocation4 + $0x48] sm:$0xff] %v1421
        %1438 = vst [vmem:[#allocation4 + $0x50] sm:$0xff] %v1422
        %1439 = vst [vmem:[#allocation4 + $0x58] sm:$0xff] %v1423
        %1440 = vst [vmem:[#allocation4 + $0x60] sm:$0xff] %v1424
        %1441 = vst [vmem:[#allocation4 + $0x68] sm:$0xff] %v1425
        %1442 = vst [vmem:[#allocation4 + $0x70] sm:$0xff] %v1426
        %1443 = vst [vmem:[#allocation4 + $0x78] sm:$0xff] %v1427
        %1444 = vst.msk [vmem:[#allocation2] sm:$0xff] %vm1122, %v850
        %1445 = vst.msk [vmem:[#allocation2 + $0x8] sm:$0xff] %vm1122, %v851
        %1446 = vst.msk [vmem:[#allocation2 + $0x10] sm:$0xff] %vm1122, %v852
        %1447 = vst.msk [vmem:[#allocation2 + $0x18] sm:$0xff] %vm1122, %v853
        %1448 = vst.msk [vmem:[#allocation2 + $0x20] sm:$0xff] %vm1122, %v854
        %1449 = vst.msk [vmem:[#allocation2 + $0x28] sm:$0xff] %vm1122, %v855
        %1450 = vst.msk [vmem:[#allocation2 + $0x30] sm:$0xff] %vm1122, %v856
        %1451 = vst.msk [vmem:[#allocation2 + $0x38] sm:$0xff] %vm1122, %v857
        %1452 = vst.msk [vmem:[#allocation2 + $0x40] sm:$0xff] %vm1122, %v858
        %1453 = vst.msk [vmem:[#allocation2 + $0x48] sm:$0xff] %vm1122, %v859
        %1454 = vst.msk [vmem:[#allocation2 + $0x50] sm:$0xff] %vm1122, %v860
        %1455 = vst.msk [vmem:[#allocation2 + $0x58] sm:$0xff] %vm1122, %v861
        %1456 = vst.msk [vmem:[#allocation2 + $0x60] sm:$0xff] %vm1122, %v862
        %1457 = vst.msk [vmem:[#allocation2 + $0x68] sm:$0xff] %vm1122, %v863
        %1458 = vst.msk [vmem:[#allocation2 + $0x70] sm:$0xff] %vm1122, %v864
        %1459 = vst.msk [vmem:[#allocation2 + $0x78] sm:$0xff] %vm1122, %v865
        %p1460 = scmp.eq.s32.totalorder %s23, 1
        // Predicated region
        $region151: #{basic_transformer_block_forward.6} parent=133 // pred_check
          %p1461 = pneg %p1460
        $region152: #{basic_transformer_block_forward.6} parent=133 // pred_check_branch
          %1463 = sbr.rel (%p1461) target = $region154
        $region153: #{basic_transformer_block_forward.6} parent=133 // pred_region
          %v1464 = vld [vmem:[#allocation4] sm:$0xff]
          %v1465 = vld [vmem:[#allocation4 + $0x8] sm:$0xff]
          %v1466 = vld [vmem:[#allocation4 + $0x10] sm:$0xff]
          %v1467 = vld [vmem:[#allocation4 + $0x18] sm:$0xff]
          %v1468 = vld [vmem:[#allocation4 + $0x20] sm:$0xff]
          %v1469 = vld [vmem:[#allocation4 + $0x28] sm:$0xff]
          %v1470 = vld [vmem:[#allocation4 + $0x30] sm:$0xff]
          %v1471 = vld [vmem:[#allocation4 + $0x38] sm:$0xff]
          %v1472 = vld [vmem:[#allocation4 + $0x40] sm:$0xff]
          %v1473 = vld [vmem:[#allocation4 + $0x48] sm:$0xff]
          %v1474 = vld [vmem:[#allocation4 + $0x50] sm:$0xff]
          %v1475 = vld [vmem:[#allocation4 + $0x58] sm:$0xff]
          %v1476 = vld [vmem:[#allocation4 + $0x60] sm:$0xff]
          %v1477 = vld [vmem:[#allocation4 + $0x68] sm:$0xff]
          %v1478 = vld [vmem:[#allocation4 + $0x70] sm:$0xff]
          %v1479 = vld [vmem:[#allocation4 + $0x78] sm:$0xff]
          %v1480 = vld [vmem:[#allocation3] sm:$0xff]
          %v1481 = vld [vmem:[#allocation3 + $0x8] sm:$0xff]
          %v1482 = vld [vmem:[#allocation3 + $0x10] sm:$0xff]
          %v1483 = vld [vmem:[#allocation3 + $0x18] sm:$0xff]
          %v1484 = vld [vmem:[#allocation3 + $0x20] sm:$0xff]
          %v1485 = vld [vmem:[#allocation3 + $0x28] sm:$0xff]
          %v1486 = vld [vmem:[#allocation3 + $0x30] sm:$0xff]
          %v1487 = vld [vmem:[#allocation3 + $0x38] sm:$0xff]
          %v1488 = vld [vmem:[#allocation3 + $0x40] sm:$0xff]
          %v1489 = vld [vmem:[#allocation3 + $0x48] sm:$0xff]
          %v1490 = vld [vmem:[#allocation3 + $0x50] sm:$0xff]
          %v1491 = vld [vmem:[#allocation3 + $0x58] sm:$0xff]
          %v1492 = vld [vmem:[#allocation3 + $0x60] sm:$0xff]
          %v1493 = vld [vmem:[#allocation3 + $0x68] sm:$0xff]
          %v1494 = vld [vmem:[#allocation3 + $0x70] sm:$0xff]
          %v1495 = vld [vmem:[#allocation3 + $0x78] sm:$0xff]
          %v1496 = vrcp.pop %v1480
          %v1497 = vrcp.pop %v1481
          %v1498 = vrcp.pop %v1482
          %v1499 = vrcp.pop %v1483
          %v1500 = vrcp.pop %v1484
          %v1501 = vrcp.pop %v1485
          %v1502 = vrcp.pop %v1486
          %v1503 = vrcp.pop %v1487
          %v1504 = vrcp.pop %v1488
          %v1505 = vrcp.pop %v1489
          %v1506 = vrcp.pop %v1490
          %v1507 = vrcp.pop %v1491
          %v1508 = vrcp.pop %v1492
          %v1509 = vrcp.pop %v1493
          %v1510 = vrcp.pop %v1494
          %v1511 = vrcp.pop %v1495
          %1513 = vset.pattern.permute.xlu0 0
          %1514 = vperm.xlu0 %1513, %v1496
          %v1515 = vpop.permute.xlu0 %1514
          %1518 = vset.pattern.permute.xlu0 0
          %1519 = vperm.xlu0 %1518, %v1497
          %v1520 = vpop.permute.xlu0 %1519
          %1523 = vset.pattern.permute.xlu0 0
          %1524 = vperm.xlu0 %1523, %v1498
          %v1525 = vpop.permute.xlu0 %1524
          %1528 = vset.pattern.permute.xlu0 0
          %1529 = vperm.xlu0 %1528, %v1499
          %v1530 = vpop.permute.xlu0 %1529
          %1533 = vset.pattern.permute.xlu0 0
          %1534 = vperm.xlu0 %1533, %v1500
          %v1535 = vpop.permute.xlu0 %1534
          %1538 = vset.pattern.permute.xlu0 0
          %1539 = vperm.xlu0 %1538, %v1501
          %v1540 = vpop.permute.xlu0 %1539
          %1543 = vset.pattern.permute.xlu0 0
          %1544 = vperm.xlu0 %1543, %v1502
          %v1545 = vpop.permute.xlu0 %1544
          %1548 = vset.pattern.permute.xlu0 0
          %1549 = vperm.xlu0 %1548, %v1503
          %v1550 = vpop.permute.xlu0 %1549
          %1553 = vset.pattern.permute.xlu0 0
          %1554 = vperm.xlu0 %1553, %v1504
          %v1555 = vpop.permute.xlu0 %1554
          %1558 = vset.pattern.permute.xlu0 0
          %1559 = vperm.xlu0 %1558, %v1505
          %v1560 = vpop.permute.xlu0 %1559
          %1563 = vset.pattern.permute.xlu0 0
          %1564 = vperm.xlu0 %1563, %v1506
          %v1565 = vpop.permute.xlu0 %1564
          %1568 = vset.pattern.permute.xlu0 0
          %1569 = vperm.xlu0 %1568, %v1507
          %v1570 = vpop.permute.xlu0 %1569
          %1573 = vset.pattern.permute.xlu0 0
          %1574 = vperm.xlu0 %1573, %v1508
          %v1575 = vpop.permute.xlu0 %1574
          %1578 = vset.pattern.permute.xlu0 0
          %1579 = vperm.xlu0 %1578, %v1509
          %v1580 = vpop.permute.xlu0 %1579
          %1583 = vset.pattern.permute.xlu0 0
          %1584 = vperm.xlu0 %1583, %v1510
          %v1585 = vpop.permute.xlu0 %1584
          %1588 = vset.pattern.permute.xlu0 0
          %1589 = vperm.xlu0 %1588, %v1511
          %v1590 = vpop.permute.xlu0 %1589
          %v1592 = vmul.f32 %v1464, %v1515
          %v1593 = vmul.f32 %v1465, %v1520
          %v1594 = vmul.f32 %v1466, %v1525
          %v1595 = vmul.f32 %v1467, %v1530
          %v1596 = vmul.f32 %v1468, %v1535
          %v1597 = vmul.f32 %v1469, %v1540
          %v1598 = vmul.f32 %v1470, %v1545
          %v1599 = vmul.f32 %v1471, %v1550
          %v1600 = vmul.f32 %v1472, %v1555
          %v1601 = vmul.f32 %v1473, %v1560
          %v1602 = vmul.f32 %v1474, %v1565
          %v1603 = vmul.f32 %v1475, %v1570
          %v1604 = vmul.f32 %v1476, %v1575
          %v1605 = vmul.f32 %v1477, %v1580
          %v1606 = vmul.f32 %v1478, %v1585
          %v1607 = vmul.f32 %v1479, %v1590
          %1608 = vst [vmem:[%s549] sm:$0xff] %v1592
          %1609 = vst [vmem:[%s549 + $0x8] sm:$0xff] %v1593
          %1610 = vst [vmem:[%s549 + $0x10] sm:$0xff] %v1594
          %1611 = vst [vmem:[%s549 + $0x18] sm:$0xff] %v1595
          %1612 = vst [vmem:[%s549 + $0x20] sm:$0xff] %v1596
          %1613 = vst [vmem:[%s549 + $0x28] sm:$0xff] %v1597
          %1614 = vst [vmem:[%s549 + $0x30] sm:$0xff] %v1598
          %1615 = vst [vmem:[%s549 + $0x38] sm:$0xff] %v1599
          %1616 = vst [vmem:[%s549 + $0x40] sm:$0xff] %v1600
          %1617 = vst [vmem:[%s549 + $0x48] sm:$0xff] %v1601
          %1618 = vst [vmem:[%s549 + $0x50] sm:$0xff] %v1602
          %1619 = vst [vmem:[%s549 + $0x58] sm:$0xff] %v1603
          %1620 = vst [vmem:[%s549 + $0x60] sm:$0xff] %v1604
          %1621 = vst [vmem:[%s549 + $0x68] sm:$0xff] %v1605
          %1622 = vst [vmem:[%s549 + $0x70] sm:$0xff] %v1606
          %1623 = vst [vmem:[%s549 + $0x78] sm:$0xff] %v1607
        $region154: #{basic_transformer_block_forward.6} parent=133 // pred_fallthru
          _
        %s1624 = sand.u32 %s146, 1
        %s1625 = sand.u32 %s146, 1
        %s1626 = smul.addr %s1625, 128
        %s1627 = scalar_lea.vmem [#allocation8], %s1626
        // Predicated region
        $region155: #{basic_transformer_block_forward.6} parent=133 // pred_check
          %p1628 = pneg %p156
        $region156: #{basic_transformer_block_forward.6} parent=133 // pred_check_branch
          %1630 = sbr.rel (%p1628) target = $region158
        $region157: #{basic_transformer_block_forward.6} parent=133 // pred_region
          %s1631 = smul.u32 16, %s22
          %s1632 = smul.addr %s1631, 2
          %s1633 = sadd.s32 %s21, %s1632
          %s1634 = smul.addr %s20, 64
          %s1635 = sadd.s32 %s1633, %s1634
          %s1636 = smul.addr %s1635, 8
          %s1637 = scalar_lea.vmem %s3, %s1636
          // Predicated region
          $region159: #{basic_transformer_block_forward.6} parent=157 // pred_check
            _
          $region160: #{basic_transformer_block_forward.6} parent=157 // pred_check_branch
            %1639 = sbr.rel (0) target = $region162
          $region161: #{basic_transformer_block_forward.6} parent=157 // pred_region
            // Predicated region
            $region163: #{basic_transformer_block_forward.6} parent=161 // pred_check
              _
            $region164: #{basic_transformer_block_forward.6} parent=161 // pred_check_branch
              %1641 = sbr.rel (0) target = $region166
            $region165: #{basic_transformer_block_forward.6} parent=161 // pred_region
              // Predicated region
              $region178: #{basic_transformer_block_forward.6} parent=165 // pred_check
                _
              $region179: #{basic_transformer_block_forward.6} parent=165 // pred_check_branch
                %1686 = sbr.rel (0) target = $region181
              $region180: #{basic_transformer_block_forward.6} parent=165 // pred_region
                loop: start=0, step=1, limit=1
                $region182: #{basic_transformer_block_forward.6} parent=180 // loop_pre_header
                  _
                $region183: #{basic_transformer_block_forward.6} parent=180 // loop_header
                  %s1688 = sphi 0, %s1692
                  %p1689 = scmp.ge.s32.totalorder %s1688, 1
                  %s1693 = sphi %s1627, %s1627
                  %s1694 = sphi %s1637, %s1637
                $region184: #{basic_transformer_block_forward.6} parent=180 // loop_header_branch
                  %1691 = sbr.rel (%p1689) target = $region188
                $region185: #{basic_transformer_block_forward.6} parent=180 // loop_body
                  %v1695 = vld [vmem:[%s1693] sm:$0xff]
                  %1696 = vst [vmem:[%s1694] sm:$0xff] %v1695
                  %v1697 = vld [vmem:[%s1693 + $0x8] sm:$0xff]
                  %1698 = vst [vmem:[%s1694 + $0x10] sm:$0xff] %v1697
                  %v1699 = vld [vmem:[%s1693 + $0x10] sm:$0xff]
                  %1700 = vst [vmem:[%s1694 + $0x20] sm:$0xff] %v1699
                  %v1701 = vld [vmem:[%s1693 + $0x18] sm:$0xff]
                  %1702 = vst [vmem:[%s1694 + $0x30] sm:$0xff] %v1701
                  %v1703 = vld [vmem:[%s1693 + $0x20] sm:$0xff]
                  %1704 = vst [vmem:[%s1694 + $0x40] sm:$0xff] %v1703
                  %v1705 = vld [vmem:[%s1693 + $0x28] sm:$0xff]
                  %1706 = vst [vmem:[%s1694 + $0x50] sm:$0xff] %v1705
                  %v1707 = vld [vmem:[%s1693 + $0x30] sm:$0xff]
                  %1708 = vst [vmem:[%s1694 + $0x60] sm:$0xff] %v1707
                  %v1709 = vld [vmem:[%s1693 + $0x38] sm:$0xff]
                  %1710 = vst [vmem:[%s1694 + $0x70] sm:$0xff] %v1709
                  %v1711 = vld [vmem:[%s1693 + $0x40] sm:$0xff]
                  %1712 = vst [vmem:[%s1694 + $0x80] sm:$0xff] %v1711
                  %v1713 = vld [vmem:[%s1693 + $0x48] sm:$0xff]
                  %1714 = vst [vmem:[%s1694 + $0x90] sm:$0xff] %v1713
                  %v1715 = vld [vmem:[%s1693 + $0x50] sm:$0xff]
                  %1716 = vst [vmem:[%s1694 + $0xa0] sm:$0xff] %v1715
                  %v1717 = vld [vmem:[%s1693 + $0x58] sm:$0xff]
                  %1718 = vst [vmem:[%s1694 + $0xb0] sm:$0xff] %v1717
                  %v1719 = vld [vmem:[%s1693 + $0x60] sm:$0xff]
                  %1720 = vst [vmem:[%s1694 + $0xc0] sm:$0xff] %v1719
                  %v1721 = vld [vmem:[%s1693 + $0x68] sm:$0xff]
                  %1722 = vst [vmem:[%s1694 + $0xd0] sm:$0xff] %v1721
                  %v1723 = vld [vmem:[%s1693 + $0x70] sm:$0xff]
                  %1724 = vst [vmem:[%s1694 + $0xe0] sm:$0xff] %v1723
                  %v1725 = vld [vmem:[%s1693 + $0x78] sm:$0xff]
                  %1726 = vst [vmem:[%s1694 + $0xf0] sm:$0xff] %v1725
                $region186: #{basic_transformer_block_forward.6} parent=180 // loop_footer
                  %s1692 = sadd.s32 1, %s1688
                $region187: #{basic_transformer_block_forward.6} parent=180 // loop_footer_branch
                  %1687 = sbr.rel target = $region183
                $region188: #{basic_transformer_block_forward.6} parent=180 // loop_exit
                  _
              $region181: #{basic_transformer_block_forward.6} parent=165 // pred_fallthru
                _
              // Predicated region
              $region189: #{basic_transformer_block_forward.6} parent=165 // pred_check
                _
              $region190: #{basic_transformer_block_forward.6} parent=165 // pred_check_branch
                %1728 = sbr.rel target = $region192
              $region191: #{basic_transformer_block_forward.6} parent=165 // pred_region
                _
              $region192: #{basic_transformer_block_forward.6} parent=165 // pred_fallthru
                _
            $region166: #{basic_transformer_block_forward.6} parent=161 // pred_fallthru
              _
            // Predicated region
            $region167: #{basic_transformer_block_forward.6} parent=161 // pred_check
              _
            $region168: #{basic_transformer_block_forward.6} parent=161 // pred_check_branch
              %1643 = sbr.rel target = $region170
            $region169: #{basic_transformer_block_forward.6} parent=161 // pred_region
              loop: start=0, step=1, limit=1
              $region171: #{basic_transformer_block_forward.6} parent=169 // loop_pre_header
                _
              $region172: #{basic_transformer_block_forward.6} parent=169 // loop_header
                %s1646 = sphi 0, %s1650
                %p1647 = scmp.ge.s32.totalorder %s1646, 1
                %s1651 = sphi %s1627, %s1627
                %s1652 = sphi %s1637, %s1637
              $region173: #{basic_transformer_block_forward.6} parent=169 // loop_header_branch
                %1649 = sbr.rel (%p1647) target = $region177
              $region174: #{basic_transformer_block_forward.6} parent=169 // loop_body
                %v1653 = vld [vmem:[%s1651] sm:$0xff]
                %1654 = vst [vmem:[%s1652] sm:$0xff] %v1653
                %v1655 = vld [vmem:[%s1651 + $0x8] sm:$0xff]
                %1656 = vst [vmem:[%s1652 + $0x10] sm:$0xff] %v1655
                %v1657 = vld [vmem:[%s1651 + $0x10] sm:$0xff]
                %1658 = vst [vmem:[%s1652 + $0x20] sm:$0xff] %v1657
                %v1659 = vld [vmem:[%s1651 + $0x18] sm:$0xff]
                %1660 = vst [vmem:[%s1652 + $0x30] sm:$0xff] %v1659
                %v1661 = vld [vmem:[%s1651 + $0x20] sm:$0xff]
                %1662 = vst [vmem:[%s1652 + $0x40] sm:$0xff] %v1661
                %v1663 = vld [vmem:[%s1651 + $0x28] sm:$0xff]
                %1664 = vst [vmem:[%s1652 + $0x50] sm:$0xff] %v1663
                %v1665 = vld [vmem:[%s1651 + $0x30] sm:$0xff]
                %1666 = vst [vmem:[%s1652 + $0x60] sm:$0xff] %v1665
                %v1667 = vld [vmem:[%s1651 + $0x38] sm:$0xff]
                %1668 = vst [vmem:[%s1652 + $0x70] sm:$0xff] %v1667
                %v1669 = vld [vmem:[%s1651 + $0x40] sm:$0xff]
                %1670 = vst [vmem:[%s1652 + $0x80] sm:$0xff] %v1669
                %v1671 = vld [vmem:[%s1651 + $0x48] sm:$0xff]
                %1672 = vst [vmem:[%s1652 + $0x90] sm:$0xff] %v1671
                %v1673 = vld [vmem:[%s1651 + $0x50] sm:$0xff]
                %1674 = vst [vmem:[%s1652 + $0xa0] sm:$0xff] %v1673
                %v1675 = vld [vmem:[%s1651 + $0x58] sm:$0xff]
                %1676 = vst [vmem:[%s1652 + $0xb0] sm:$0xff] %v1675
                %v1677 = vld [vmem:[%s1651 + $0x60] sm:$0xff]
                %1678 = vst [vmem:[%s1652 + $0xc0] sm:$0xff] %v1677
                %v1679 = vld [vmem:[%s1651 + $0x68] sm:$0xff]
                %1680 = vst [vmem:[%s1652 + $0xd0] sm:$0xff] %v1679
                %v1681 = vld [vmem:[%s1651 + $0x70] sm:$0xff]
                %1682 = vst [vmem:[%s1652 + $0xe0] sm:$0xff] %v1681
                %v1683 = vld [vmem:[%s1651 + $0x78] sm:$0xff]
                %1684 = vst [vmem:[%s1652 + $0xf0] sm:$0xff] %v1683
              $region175: #{basic_transformer_block_forward.6} parent=169 // loop_footer
                %s1650 = sadd.s32 1, %s1646
              $region176: #{basic_transformer_block_forward.6} parent=169 // loop_footer_branch
                %1645 = sbr.rel target = $region172
              $region177: #{basic_transformer_block_forward.6} parent=169 // loop_exit
                _
            $region170: #{basic_transformer_block_forward.6} parent=161 // pred_fallthru
              _
          $region162: #{basic_transformer_block_forward.6} parent=157 // pred_fallthru
            _
          %1729 = vnop
        $region158: #{basic_transformer_block_forward.6} parent=133 // pred_fallthru
          _
      $region134: #{basic_transformer_block_forward.6} parent=5 // pred_fallthru
        _
      %p1730 = scmp.le.s32.totalorder 2, %s9
      // Predicated region
      $region193: #{basic_transformer_block_forward.6} parent=5 // pred_check
        %p1731 = pneg %p1730
      $region194: #{basic_transformer_block_forward.6} parent=5 // pred_check_branch
        %1733 = sbr.rel (%p1731) target = $region196
      $region195: #{basic_transformer_block_forward.6} parent=5 // pred_region
        %s1734 = ssub.s32 %s9, 2
        // Predicated region
        $region197: #{basic_transformer_block_forward.6} parent=195 // pred_check
          %p1735 = pneg %p162
        $region198: #{basic_transformer_block_forward.6} parent=195 // pred_check_branch
          %1737 = sbr.rel (%p1735) target = $region200
        $region199: #{basic_transformer_block_forward.6} parent=195 // pred_region
          %s1738 = sand.u32 %s147, 1
          %s1739 = sand.u32 %s147, 1
          %s1740 = smul.addr %s1739, 128
          %s1741 = scalar_lea.vmem [#allocation8], %s1740
        $region200: #{basic_transformer_block_forward.6} parent=195 // pred_fallthru
          _
      $region196: #{basic_transformer_block_forward.6} parent=5 // pred_fallthru
        _
    $region6: #{basic_transformer_block_forward.6} parent=1 // loop_footer
      %s13 = sadd.s32 1, %s9
    $region7: #{basic_transformer_block_forward.6} parent=1 // loop_footer_branch
      %8 = sbr.rel target = $region3
    $region8: #{basic_transformer_block_forward.6} parent=1 // loop_exit
      _

// kernel: basic_transformer_block_forward.8
$region0: #{basic_transformer_block_forward.8}
  #allocation0 [shape = 'u32[]', space=smem, size = 0x4, offset = 0x4, fixed_abs, tag = 'smem constant byte address 0x4 - core index']
  #allocation1 [shape = 'u32[144,128]{1,0:T(1,128)}', space=vmem, size = 0x12000, scoped, tag = 'internal scratch']
  #allocation2 [shape = 'f32[128,128]{1,0:T(8,128)}', space=vmem, size = 0x10000, scoped, tag = 'scratch operand']
  %s0 = inlined_call_operand.vmem [shape: f32[512,128], index: 0, kind: input, shape index: {}]
  %s1 = inlined_call_operand.vmem [shape: f32[1,128], index: 1, kind: input, shape index: {}]
  %s2 = inlined_call_operand.vmem [shape: f32[1,128], index: 2, kind: input, shape index: {}]
  %s3 = inlined_call_operand.vmem [shape: f32[128,512], index: 3, kind: input, shape index: {}]
  %s4 = inlined_call_operand.vmem [shape: f32[128,512], index: 4, kind: input, shape index: {}]
  %s5 = inlined_call_operand.vmem [shape: f32[1,512], index: 5, kind: input, shape index: {}]
  %s6 = inlined_call_operand.vmem [shape: f32[1,512], index: 6, kind: input, shape index: {}]
  %s7 = inlined_call_operand.vmem [shape: f32[512,512], index: 7, kind: output, shape index: {}]
  %s8 = sld [smem:[#allocation0]]
  $region65: #{basic_transformer_block_forward.8} parent=0
    _
  %s10 = ssub.s32 1, %s8
  %s11 = scalar_select 0, %s10, %s8
  loop: start=0, step=1, limit=6
  $region2: #{basic_transformer_block_forward.8} parent=0 // loop_pre_header
    _
  $region3: #{basic_transformer_block_forward.8} parent=0 // loop_header
    %s13 = sphi 0, %s17
    %p14 = scmp.ge.s32.totalorder %s13, 6
    %s20 = sphi 0, %s32
    %s21 = sphi 0, %s28
    %s22 = sphi 0, %s20
    %s23 = sphi 0, %s21
    %s24 = sphi 0, %s22
    %s25 = sphi 0, %s23
    %s35 = sphi 0, %s37
    %s38 = sphi 0, %s35
    %s39 = sphi 0, %s38
    %s55 = sphi 0, %s39
    %s59 = sphi 0, %s59
    %s61 = sphi 0, %s59
    %s62 = sphi 0, %s61
    %s76 = sphi 0, %s62
    %s80 = sphi 0, %s80
    %s82 = sphi 0, %s80
    %s83 = sphi 0, %s82
    %s97 = sphi 0, %s83
    %s103 = sphi 0, %s105
    %s106 = sphi 0, %s103
    %s107 = sphi 0, %s106
    %s123 = sphi 0, %s107
    %s129 = sphi 0, %s131
    %s132 = sphi 0, %s129
    %s133 = sphi 0, %s132
    %s149 = sphi 0, %s133
    %s155 = sphi 0, %s157
    %s158 = sphi 0, %s155
    %s159 = sphi 0, %s158
    %s175 = sphi 0, %s159
    %s181 = sphi 0, %s183
    %s184 = sphi 0, %s181
    %s185 = sphi 0, %s184
    %s201 = sphi 0, %s185
    %s209 = sphi 0, %s211
    %s212 = sphi 0, %s209
    %s213 = sphi 0, %s212
    %s229 = sphi 0, %s213
  $region4: #{basic_transformer_block_forward.8} parent=0 // loop_header_branch
    %16 = sbr.rel (%p14) target = $region8
  $region5: #{basic_transformer_block_forward.8} parent=0 // loop_body
    %s18 = ssub.s32 %s13, 1
    %s19 = ssub.s32 %s13, 2
    %s26 = sadd.s32 1, %s21
    %p27 = scmp.ge.s32.totalorder %s26, 1
    %s28 = scalar_select %p27, 0, %s26
    %s29 = sadd.s32 1, %s20
    %s30 = scalar_select %p27, %s29, %s20
    %p31 = scmp.ge.s32.totalorder %s30, 4
    %s32 = scalar_select %p31, 0, %s30
    %s33 = ssub.s32 %s20, %s32
    %p34 = scmp.eq.s32.totalorder %s33, 0
    %s36 = sadd.s32 %s35, 1
    %s37 = scalar_select %p34, %s35, %s36
    %p40 = pneg %p34
    %p41 = scmp.eq.s32.totalorder %s13, 3
    %p42 = por %p40, %p41
    %p43 = scmp.ne.s32.totalorder %s35, %s38
    %p44 = scmp.eq.s32.totalorder %s13, 0
    %p45 = por %p43, %p44
    %p46 = scmp.ne.s32.totalorder %s35, %s38
    %p47 = scmp.eq.s32.totalorder %s18, 3
    %p48 = por %p46, %p47
    %p49 = scmp.ne.s32.totalorder %s38, %s39
    %p50 = scmp.eq.s32.totalorder %s18, 0
    %p51 = por %p49, %p50
    %p52 = scmp.ne.s32.totalorder %s38, %s39
    %p53 = scmp.eq.s32.totalorder %s19, 3
    %p54 = por %p52, %p53
    %p56 = scmp.ne.s32.totalorder %s39, %s55
    %p57 = scmp.eq.s32.totalorder %s19, 0
    %p58 = por %p56, %p57
    %s60 = sadd.s32 %s59, 1
    %p63 = scmp.eq.s32.totalorder %s13, 3
    %p64 = scmp.ne.s32.totalorder %s59, %s61
    %p65 = scmp.eq.s32.totalorder %s13, 0
    %p66 = por %p64, %p65
    %p67 = scmp.ne.s32.totalorder %s59, %s61
    %p68 = scmp.eq.s32.totalorder %s18, 3
    %p69 = por %p67, %p68
    %p70 = scmp.ne.s32.totalorder %s61, %s62
    %p71 = scmp.eq.s32.totalorder %s18, 0
    %p72 = por %p70, %p71
    %p73 = scmp.ne.s32.totalorder %s61, %s62
    %p74 = scmp.eq.s32.totalorder %s19, 3
    %p75 = por %p73, %p74
    %p77 = scmp.ne.s32.totalorder %s62, %s76
    %p78 = scmp.eq.s32.totalorder %s19, 0
    %p79 = por %p77, %p78
    %s81 = sadd.s32 %s80, 1
    %p84 = scmp.eq.s32.totalorder %s13, 3
    %p85 = scmp.ne.s32.totalorder %s80, %s82
    %p86 = scmp.eq.s32.totalorder %s13, 0
    %p87 = por %p85, %p86
    %p88 = scmp.ne.s32.totalorder %s80, %s82
    %p89 = scmp.eq.s32.totalorder %s18, 3
    %p90 = por %p88, %p89
    %p91 = scmp.ne.s32.totalorder %s82, %s83
    %p92 = scmp.eq.s32.totalorder %s18, 0
    %p93 = por %p91, %p92
    %p94 = scmp.ne.s32.totalorder %s82, %s83
    %p95 = scmp.eq.s32.totalorder %s19, 3
    %p96 = por %p94, %p95
    %p98 = scmp.ne.s32.totalorder %s83, %s97
    %p99 = scmp.eq.s32.totalorder %s19, 0
    %p100 = por %p98, %p99
    %s101 = ssub.s32 %s21, %s28
    %p102 = scmp.eq.s32.totalorder %s101, 0
    %s104 = sadd.s32 %s103, 1
    %s105 = scalar_select %p102, %s103, %s104
    %p108 = pneg %p102
    %p109 = scmp.eq.s32.totalorder %s13, 3
    %p110 = por %p108, %p109
    %p111 = scmp.ne.s32.totalorder %s103, %s106
    %p112 = scmp.eq.s32.totalorder %s13, 0
    %p113 = por %p111, %p112
    %p114 = scmp.ne.s32.totalorder %s103, %s106
    %p115 = scmp.eq.s32.totalorder %s18, 3
    %p116 = por %p114, %p115
    %p117 = scmp.ne.s32.totalorder %s106, %s107
    %p118 = scmp.eq.s32.totalorder %s18, 0
    %p119 = por %p117, %p118
    %p120 = scmp.ne.s32.totalorder %s106, %s107
    %p121 = scmp.eq.s32.totalorder %s19, 3
    %p122 = por %p120, %p121
    %p124 = scmp.ne.s32.totalorder %s107, %s123
    %p125 = scmp.eq.s32.totalorder %s19, 0
    %p126 = por %p124, %p125
    %s127 = ssub.s32 %s21, %s28
    %p128 = scmp.eq.s32.totalorder %s127, 0
    %s130 = sadd.s32 %s129, 1
    %s131 = scalar_select %p128, %s129, %s130
    %p134 = pneg %p128
    %p135 = scmp.eq.s32.totalorder %s13, 3
    %p136 = por %p134, %p135
    %p137 = scmp.ne.s32.totalorder %s129, %s132
    %p138 = scmp.eq.s32.totalorder %s13, 0
    %p139 = por %p137, %p138
    %p140 = scmp.ne.s32.totalorder %s129, %s132
    %p141 = scmp.eq.s32.totalorder %s18, 3
    %p142 = por %p140, %p141
    %p143 = scmp.ne.s32.totalorder %s132, %s133
    %p144 = scmp.eq.s32.totalorder %s18, 0
    %p145 = por %p143, %p144
    %p146 = scmp.ne.s32.totalorder %s132, %s133
    %p147 = scmp.eq.s32.totalorder %s19, 3
    %p148 = por %p146, %p147
    %p150 = scmp.ne.s32.totalorder %s133, %s149
    %p151 = scmp.eq.s32.totalorder %s19, 0
    %p152 = por %p150, %p151
    %s153 = ssub.s32 %s21, %s28
    %p154 = scmp.eq.s32.totalorder %s153, 0
    %s156 = sadd.s32 %s155, 1
    %s157 = scalar_select %p154, %s155, %s156
    %p160 = pneg %p154
    %p161 = scmp.eq.s32.totalorder %s13, 3
    %p162 = por %p160, %p161
    %p163 = scmp.ne.s32.totalorder %s155, %s158
    %p164 = scmp.eq.s32.totalorder %s13, 0
    %p165 = por %p163, %p164
    %p166 = scmp.ne.s32.totalorder %s155, %s158
    %p167 = scmp.eq.s32.totalorder %s18, 3
    %p168 = por %p166, %p167
    %p169 = scmp.ne.s32.totalorder %s158, %s159
    %p170 = scmp.eq.s32.totalorder %s18, 0
    %p171 = por %p169, %p170
    %p172 = scmp.ne.s32.totalorder %s158, %s159
    %p173 = scmp.eq.s32.totalorder %s19, 3
    %p174 = por %p172, %p173
    %p176 = scmp.ne.s32.totalorder %s159, %s175
    %p177 = scmp.eq.s32.totalorder %s19, 0
    %p178 = por %p176, %p177
    %s179 = ssub.s32 %s21, %s28
    %p180 = scmp.eq.s32.totalorder %s179, 0
    %s182 = sadd.s32 %s181, 1
    %s183 = scalar_select %p180, %s181, %s182
    %p186 = pneg %p180
    %p187 = scmp.eq.s32.totalorder %s13, 3
    %p188 = por %p186, %p187
    %p189 = scmp.ne.s32.totalorder %s181, %s184
    %p190 = scmp.eq.s32.totalorder %s13, 0
    %p191 = por %p189, %p190
    %p192 = scmp.ne.s32.totalorder %s181, %s184
    %p193 = scmp.eq.s32.totalorder %s18, 3
    %p194 = por %p192, %p193
    %p195 = scmp.ne.s32.totalorder %s184, %s185
    %p196 = scmp.eq.s32.totalorder %s18, 0
    %p197 = por %p195, %p196
    %p198 = scmp.ne.s32.totalorder %s184, %s185
    %p199 = scmp.eq.s32.totalorder %s19, 3
    %p200 = por %p198, %p199
    %p202 = scmp.ne.s32.totalorder %s185, %s201
    %p203 = scmp.eq.s32.totalorder %s19, 0
    %p204 = por %p202, %p203
    %s205 = ssub.s32 %s20, %s32
    %s206 = ssub.s32 %s21, %s28
    %s207 = sor.u32 %s205, %s206
    %p208 = scmp.eq.s32.totalorder %s207, 0
    %s210 = sadd.s32 %s209, 1
    %s211 = scalar_select %p208, %s209, %s210
    %p214 = pneg %p208
    %p215 = scmp.eq.s32.totalorder %s13, 3
    %p216 = por %p214, %p215
    %p217 = scmp.ne.s32.totalorder %s209, %s212
    %p218 = scmp.eq.s32.totalorder %s13, 0
    %p219 = por %p217, %p218
    %p220 = scmp.ne.s32.totalorder %s209, %s212
    %p221 = scmp.eq.s32.totalorder %s18, 3
    %p222 = por %p220, %p221
    %p223 = scmp.ne.s32.totalorder %s212, %s213
    %p224 = scmp.eq.s32.totalorder %s18, 0
    %p225 = por %p223, %p224
    %p226 = scmp.ne.s32.totalorder %s212, %s213
    %p227 = scmp.eq.s32.totalorder %s19, 3
    %p228 = por %p226, %p227
    %p230 = scmp.ne.s32.totalorder %s213, %s229
    %p231 = scmp.eq.s32.totalorder %s19, 0
    %p232 = por %p230, %p231
    %p233 = scmp.le.s32.totalorder 1, %s13
    %p234 = scmp.lt.s32.totalorder %s13, 5
    %p235 = pnand %p233, %p234
    %p236 = pneg %p235
    // Predicated region
    $region9: #{basic_transformer_block_forward.8} parent=5 // pred_check
      _
    $region10: #{basic_transformer_block_forward.8} parent=5 // pred_check_branch
      %238 = sbr.rel (%p235) target = $region12
    $region11: #{basic_transformer_block_forward.8} parent=5 // pred_region
      %s239 = ssub.s32 %s13, 1
      // Predicated region
      $region13: #{basic_transformer_block_forward.8} parent=11 // pred_check
        %p240 = pneg %p72
      $region14: #{basic_transformer_block_forward.8} parent=11 // pred_check_branch
        %242 = sbr.rel (%p240) target = $region16
      $region15: #{basic_transformer_block_forward.8} parent=11 // pred_region
        _
      $region16: #{basic_transformer_block_forward.8} parent=11 // pred_fallthru
        _
      // Predicated region
      $region17: #{basic_transformer_block_forward.8} parent=11 // pred_check
        %p243 = pneg %p93
      $region18: #{basic_transformer_block_forward.8} parent=11 // pred_check_branch
        %245 = sbr.rel (%p243) target = $region20
      $region19: #{basic_transformer_block_forward.8} parent=11 // pred_region
        _
      $region20: #{basic_transformer_block_forward.8} parent=11 // pred_fallthru
        _
      // Predicated region
      $region21: #{basic_transformer_block_forward.8} parent=11 // pred_check
        %p246 = pneg %p119
      $region22: #{basic_transformer_block_forward.8} parent=11 // pred_check_branch
        %248 = sbr.rel (%p246) target = $region24
      $region23: #{basic_transformer_block_forward.8} parent=11 // pred_region
        %s249 = smul.u32 4, %s23
        %p250 = scmp.lt.s32.totalorder %s249, 3
        %s251 = scalar_select %p250, %s249, 3
        %s252 = smul.addr %s251, 8
        %s253 = scalar_lea.vmem %s3, %s252
        %s254 = smul.u32 4, %s23
      $region24: #{basic_transformer_block_forward.8} parent=11 // pred_fallthru
        _
      // Predicated region
      $region25: #{basic_transformer_block_forward.8} parent=11 // pred_check
        %p255 = pneg %p145
      $region26: #{basic_transformer_block_forward.8} parent=11 // pred_check_branch
        %257 = sbr.rel (%p255) target = $region28
      $region27: #{basic_transformer_block_forward.8} parent=11 // pred_region
        %s258 = smul.u32 4, %s23
        %p259 = scmp.lt.s32.totalorder %s258, 3
        %s260 = scalar_select %p259, %s258, 3
        %s261 = smul.addr %s260, 8
        %s262 = scalar_lea.vmem %s4, %s261
        %s263 = smul.u32 4, %s23
      $region28: #{basic_transformer_block_forward.8} parent=11 // pred_fallthru
        _
      // Predicated region
      $region29: #{basic_transformer_block_forward.8} parent=11 // pred_check
        %p264 = pneg %p171
      $region30: #{basic_transformer_block_forward.8} parent=11 // pred_check_branch
        %266 = sbr.rel (%p264) target = $region32
      $region31: #{basic_transformer_block_forward.8} parent=11 // pred_region
        %s267 = smul.u32 4, %s23
        %p268 = scmp.lt.s32.totalorder %s267, 3
        %s269 = scalar_select %p268, %s267, 3
        %s270 = scalar_lea.vmem %s5, %s269
        %s271 = smul.u32 4, %s23
      $region32: #{basic_transformer_block_forward.8} parent=11 // pred_fallthru
        _
      // Predicated region
      $region33: #{basic_transformer_block_forward.8} parent=11 // pred_check
        %p272 = pneg %p197
      $region34: #{basic_transformer_block_forward.8} parent=11 // pred_check_branch
        %274 = sbr.rel (%p272) target = $region36
      $region35: #{basic_transformer_block_forward.8} parent=11 // pred_region
        %s275 = smul.u32 4, %s23
        %p276 = scmp.lt.s32.totalorder %s275, 3
        %s277 = scalar_select %p276, %s275, 3
        %s278 = scalar_lea.vmem %s6, %s277
        %s279 = smul.u32 4, %s23
      $region36: #{basic_transformer_block_forward.8} parent=11 // pred_fallthru
        _
    $region12: #{basic_transformer_block_forward.8} parent=5 // pred_fallthru
      _
    %p280 = scmp.lt.s32.totalorder %s13, 4
    // Predicated region
    $region37: #{basic_transformer_block_forward.8} parent=5 // pred_check
      %p281 = pneg %p280
    $region38: #{basic_transformer_block_forward.8} parent=5 // pred_check_branch
      %283 = sbr.rel (%p281) target = $region40
    $region39: #{basic_transformer_block_forward.8} parent=5 // pred_region
      // Predicated region
      $region41: #{basic_transformer_block_forward.8} parent=39 // pred_check
        %p284 = pneg %p45
      $region42: #{basic_transformer_block_forward.8} parent=39 // pred_check_branch
        %286 = sbr.rel (%p284) target = $region44
      $region43: #{basic_transformer_block_forward.8} parent=39 // pred_region
        %s287 = smul.u32 16, %s20
        %p288 = scmp.lt.s32.totalorder %s287, 63
        %s289 = scalar_select %p288, %s287, 63
        %s290 = smul.addr %s289, 8
        %s291 = scalar_lea.vmem %s0, %s290
        %s292 = smul.u32 16, %s20
      $region44: #{basic_transformer_block_forward.8} parent=39 // pred_fallthru
        _
    $region40: #{basic_transformer_block_forward.8} parent=5 // pred_fallthru
      _
    %p293 = scmp.le.s32.totalorder 1, %s13
    %p294 = scmp.lt.s32.totalorder %s13, 5
    %p295 = pnand %p293, %p294
    %p296 = pneg %p295
    // Predicated region
    $region45: #{basic_transformer_block_forward.8} parent=5 // pred_check
      _
    $region46: #{basic_transformer_block_forward.8} parent=5 // pred_check_branch
      %298 = sbr.rel (%p295) target = $region48
    $region47: #{basic_transformer_block_forward.8} parent=5 // pred_region
      %s299 = ssub.s32 %s13, 1
      %s300 = smul.u32 16, %s22
      %p301 = scmp.lt.s32.totalorder %s300, 63
      %s302 = scalar_select %p301, %s300, 63
      %s303 = smul.addr %s302, 8
      %s304 = scalar_lea.vmem %s0, %s303
      %p305 = pneg %p51
      %p306 = pneg %p48
      %p307 = pneg %p72
      %p308 = pneg %p69
      %p309 = pneg %p93
      %p310 = pneg %p90
      %s311 = smul.u32 4, %s23
      %p312 = scmp.lt.s32.totalorder %s311, 3
      %s313 = scalar_select %p312, %s311, 3
      %s314 = smul.addr %s313, 8
      %s315 = scalar_lea.vmem %s3, %s314
      %p316 = pneg %p119
      %p317 = pneg %p116
      %s318 = smul.u32 4, %s23
      %p319 = scmp.lt.s32.totalorder %s318, 3
      %s320 = scalar_select %p319, %s318, 3
      %s321 = smul.addr %s320, 8
      %s322 = scalar_lea.vmem %s4, %s321
      %p323 = pneg %p145
      %p324 = pneg %p142
      %s325 = smul.u32 4, %s23
      %p326 = scmp.lt.s32.totalorder %s325, 3
      %s327 = scalar_select %p326, %s325, 3
      %s328 = scalar_lea.vmem %s5, %s327
      %p329 = pneg %p171
      %p330 = pneg %p168
      %s331 = smul.u32 4, %s23
      %p332 = scmp.lt.s32.totalorder %s331, 3
      %s333 = scalar_select %p332, %s331, 3
      %s334 = scalar_lea.vmem %s6, %s333
      %p335 = pneg %p197
      %p336 = pneg %p194
      %p337 = pneg %p225
      %p338 = pneg %p222
      %s339 = smul.u32 16, %s22
      %s340 = smul.u32 4, %s23
      %p341 = scmp.lt.s32.totalorder %s339, 63
      %s342 = scalar_select %p341, %s339, 63
      %p343 = scmp.lt.s32.totalorder %s340, 3
      %s344 = scalar_select %p343, %s340, 3
      %s345 = smul.addr %s342, 4
      %s346 = sadd.s32 %s344, %s345
      %s347 = smul.addr %s346, 8
      %s348 = scalar_lea.vmem %s7, %s347
      %s349 = smul.u32 16, %s22
      %p350 = scmp.lt.s32.totalorder %s349, 63
      %s351 = scalar_select %p350, %s349, 63
      %s352 = smul.addr %s351, 8
      %s353 = scalar_lea.vmem %s0, %s352
      %s354 = smul.u32 16, %s22
      %s355 = smul.u32 4, %s23
      %p356 = scmp.lt.s32.totalorder %s355, 3
      %s357 = scalar_select %p356, %s355, 3
      %s358 = smul.addr %s357, 8
      %s359 = scalar_lea.vmem %s3, %s358
      %s360 = smul.u32 4, %s23
      %s361 = smul.u32 4, %s23
      %p362 = scmp.lt.s32.totalorder %s361, 3
      %s363 = scalar_select %p362, %s361, 3
      %s364 = smul.addr %s363, 8
      %s365 = scalar_lea.vmem %s4, %s364
      %s366 = smul.u32 4, %s23
      %s367 = smul.u32 4, %s23
      %p368 = scmp.lt.s32.totalorder %s367, 3
      %s369 = scalar_select %p368, %s367, 3
      %s370 = scalar_lea.vmem %s5, %s369
      %s371 = smul.u32 4, %s23
      %s372 = smul.u32 4, %s23
      %p373 = scmp.lt.s32.totalorder %s372, 3
      %s374 = scalar_select %p373, %s372, 3
      %s375 = scalar_lea.vmem %s6, %s374
      %s376 = smul.u32 4, %s23
      %s377 = smul.u32 16, %s22
      %s378 = smul.u32 4, %s23
      %p379 = scmp.lt.s32.totalorder %s377, 63
      %s380 = scalar_select %p379, %s377, 63
      %p381 = scmp.lt.s32.totalorder %s378, 3
      %s382 = scalar_select %p381, %s378, 3
      %s383 = smul.addr %s380, 4
      %s384 = sadd.s32 %s382, %s383
      %s385 = smul.addr %s384, 8
      %s386 = scalar_lea.vmem %s7, %s385
      %s387 = smul.u32 16, %s22
      %s388 = smul.u32 4, %s23
      %p389 = scmp.eq.s32.totalorder %s23, 0
      // Predicated region
      $region49: #{basic_transformer_block_forward.8} parent=47 // pred_check
        %p390 = pneg %p389
      $region50: #{basic_transformer_block_forward.8} parent=47 // pred_check_branch
        %392 = sbr.rel (%p390) target = $region52
      $region51: #{basic_transformer_block_forward.8} parent=47 // pred_region
        %v393 = vld [vmem:[%s353] sm:$0xff]
        %v394 = vld [vmem:[%s353 + $0x8] sm:$0xff]
        %v395 = vld [vmem:[%s353 + $0x10] sm:$0xff]
        %v396 = vld [vmem:[%s353 + $0x18] sm:$0xff]
        %v397 = vld [vmem:[%s353 + $0x20] sm:$0xff]
        %v398 = vld [vmem:[%s353 + $0x28] sm:$0xff]
        %v399 = vld [vmem:[%s353 + $0x30] sm:$0xff]
        %v400 = vld [vmem:[%s353 + $0x38] sm:$0xff]
        %v401 = vld [vmem:[%s353 + $0x40] sm:$0xff]
        %v402 = vld [vmem:[%s353 + $0x48] sm:$0xff]
        %v403 = vld [vmem:[%s353 + $0x50] sm:$0xff]
        %v404 = vld [vmem:[%s353 + $0x58] sm:$0xff]
        %v405 = vld [vmem:[%s353 + $0x60] sm:$0xff]
        %v406 = vld [vmem:[%s353 + $0x68] sm:$0xff]
        %v407 = vld [vmem:[%s353 + $0x70] sm:$0xff]
        %v408 = vld [vmem:[%s353 + $0x78] sm:$0xff]
        %409 = vadd.xlane.f32.xlu0 %v393
        %v410 = vpop.xlane.xlu0 %409
        %411 = vadd.xlane.f32.xlu0 %v394
        %v412 = vpop.xlane.xlu0 %411
        %413 = vadd.xlane.f32.xlu0 %v395
        %v414 = vpop.xlane.xlu0 %413
        %415 = vadd.xlane.f32.xlu0 %v396
        %v416 = vpop.xlane.xlu0 %415
        %417 = vadd.xlane.f32.xlu0 %v397
        %v418 = vpop.xlane.xlu0 %417
        %419 = vadd.xlane.f32.xlu0 %v398
        %v420 = vpop.xlane.xlu0 %419
        %421 = vadd.xlane.f32.xlu0 %v399
        %v422 = vpop.xlane.xlu0 %421
        %423 = vadd.xlane.f32.xlu0 %v400
        %v424 = vpop.xlane.xlu0 %423
        %425 = vadd.xlane.f32.xlu0 %v401
        %v426 = vpop.xlane.xlu0 %425
        %427 = vadd.xlane.f32.xlu0 %v402
        %v428 = vpop.xlane.xlu0 %427
        %429 = vadd.xlane.f32.xlu0 %v403
        %v430 = vpop.xlane.xlu0 %429
        %431 = vadd.xlane.f32.xlu0 %v404
        %v432 = vpop.xlane.xlu0 %431
        %433 = vadd.xlane.f32.xlu0 %v405
        %v434 = vpop.xlane.xlu0 %433
        %435 = vadd.xlane.f32.xlu0 %v406
        %v436 = vpop.xlane.xlu0 %435
        %437 = vadd.xlane.f32.xlu0 %v407
        %v438 = vpop.xlane.xlu0 %437
        %439 = vadd.xlane.f32.xlu0 %v408
        %v440 = vpop.xlane.xlu0 %439
        %v441 = vrcp.pop 128.0
        %v442 = vmul.f32 %v410, %v441
        %v443 = vmul.f32 %v412, %v441
        %v444 = vmul.f32 %v414, %v441
        %v445 = vmul.f32 %v416, %v441
        %v446 = vmul.f32 %v418, %v441
        %v447 = vmul.f32 %v420, %v441
        %v448 = vmul.f32 %v422, %v441
        %v449 = vmul.f32 %v424, %v441
        %v450 = vmul.f32 %v426, %v441
        %v451 = vmul.f32 %v428, %v441
        %v452 = vmul.f32 %v430, %v441
        %v453 = vmul.f32 %v432, %v441
        %v454 = vmul.f32 %v434, %v441
        %v455 = vmul.f32 %v436, %v441
        %v456 = vmul.f32 %v438, %v441
        %v457 = vmul.f32 %v440, %v441
        %v458 = vsub.f32 %v393, %v442
        %v459 = vsub.f32 %v394, %v443
        %v460 = vsub.f32 %v395, %v444
        %v461 = vsub.f32 %v396, %v445
        %v462 = vsub.f32 %v397, %v446
        %v463 = vsub.f32 %v398, %v447
        %v464 = vsub.f32 %v399, %v448
        %v465 = vsub.f32 %v400, %v449
        %v466 = vsub.f32 %v401, %v450
        %v467 = vsub.f32 %v402, %v451
        %v468 = vsub.f32 %v403, %v452
        %v469 = vsub.f32 %v404, %v453
        %v470 = vsub.f32 %v405, %v454
        %v471 = vsub.f32 %v406, %v455
        %v472 = vsub.f32 %v407, %v456
        %v473 = vsub.f32 %v408, %v457
        %v474 = vmul.f32 %v458, %v458
        %v475 = vmul.f32 %v459, %v459
        %v476 = vmul.f32 %v460, %v460
        %v477 = vmul.f32 %v461, %v461
        %v478 = vmul.f32 %v462, %v462
        %v479 = vmul.f32 %v463, %v463
        %v480 = vmul.f32 %v464, %v464
        %v481 = vmul.f32 %v465, %v465
        %v482 = vmul.f32 %v466, %v466
        %v483 = vmul.f32 %v467, %v467
        %v484 = vmul.f32 %v468, %v468
        %v485 = vmul.f32 %v469, %v469
        %v486 = vmul.f32 %v470, %v470
        %v487 = vmul.f32 %v471, %v471
        %v488 = vmul.f32 %v472, %v472
        %v489 = vmul.f32 %v473, %v473
        %490 = vadd.xlane.f32.xlu0 %v474
        %v491 = vpop.xlane.xlu0 %490
        %492 = vadd.xlane.f32.xlu0 %v475
        %v493 = vpop.xlane.xlu0 %492
        %494 = vadd.xlane.f32.xlu0 %v476
        %v495 = vpop.xlane.xlu0 %494
        %496 = vadd.xlane.f32.xlu0 %v477
        %v497 = vpop.xlane.xlu0 %496
        %498 = vadd.xlane.f32.xlu0 %v478
        %v499 = vpop.xlane.xlu0 %498
        %500 = vadd.xlane.f32.xlu0 %v479
        %v501 = vpop.xlane.xlu0 %500
        %502 = vadd.xlane.f32.xlu0 %v480
        %v503 = vpop.xlane.xlu0 %502
        %504 = vadd.xlane.f32.xlu0 %v481
        %v505 = vpop.xlane.xlu0 %504
        %506 = vadd.xlane.f32.xlu0 %v482
        %v507 = vpop.xlane.xlu0 %506
        %508 = vadd.xlane.f32.xlu0 %v483
        %v509 = vpop.xlane.xlu0 %508
        %510 = vadd.xlane.f32.xlu0 %v484
        %v511 = vpop.xlane.xlu0 %510
        %512 = vadd.xlane.f32.xlu0 %v485
        %v513 = vpop.xlane.xlu0 %512
        %514 = vadd.xlane.f32.xlu0 %v486
        %v515 = vpop.xlane.xlu0 %514
        %516 = vadd.xlane.f32.xlu0 %v487
        %v517 = vpop.xlane.xlu0 %516
        %518 = vadd.xlane.f32.xlu0 %v488
        %v519 = vpop.xlane.xlu0 %518
        %520 = vadd.xlane.f32.xlu0 %v489
        %v521 = vpop.xlane.xlu0 %520
        %v522 = vmul.f32 %v491, %v441
        %v523 = vmul.f32 %v493, %v441
        %v524 = vmul.f32 %v495, %v441
        %v525 = vmul.f32 %v497, %v441
        %v526 = vmul.f32 %v499, %v441
        %v527 = vmul.f32 %v501, %v441
        %v528 = vmul.f32 %v503, %v441
        %v529 = vmul.f32 %v505, %v441
        %v530 = vmul.f32 %v507, %v441
        %v531 = vmul.f32 %v509, %v441
        %v532 = vmul.f32 %v511, %v441
        %v533 = vmul.f32 %v513, %v441
        %v534 = vmul.f32 %v515, %v441
        %v535 = vmul.f32 %v517, %v441
        %v536 = vmul.f32 %v519, %v441
        %v537 = vmul.f32 %v521, %v441
        %v538 = vadd.f32 %v522, 1e-05
        %v539 = vadd.f32 %v523, 1e-05
        %v540 = vadd.f32 %v524, 1e-05
        %v541 = vadd.f32 %v525, 1e-05
        %v542 = vadd.f32 %v526, 1e-05
        %v543 = vadd.f32 %v527, 1e-05
        %v544 = vadd.f32 %v528, 1e-05
        %v545 = vadd.f32 %v529, 1e-05
        %v546 = vadd.f32 %v530, 1e-05
        %v547 = vadd.f32 %v531, 1e-05
        %v548 = vadd.f32 %v532, 1e-05
        %v549 = vadd.f32 %v533, 1e-05
        %v550 = vadd.f32 %v534, 1e-05
        %v551 = vadd.f32 %v535, 1e-05
        %v552 = vadd.f32 %v536, 1e-05
        %v553 = vadd.f32 %v537, 1e-05
        %v554 = vrsqrt.pop %v538
        %v555 = vrsqrt.pop %v539
        %v556 = vrsqrt.pop %v540
        %v557 = vrsqrt.pop %v541
        %v558 = vrsqrt.pop %v542
        %v559 = vrsqrt.pop %v543
        %v560 = vrsqrt.pop %v544
        %v561 = vrsqrt.pop %v545
        %v562 = vrsqrt.pop %v546
        %v563 = vrsqrt.pop %v547
        %v564 = vrsqrt.pop %v548
        %v565 = vrsqrt.pop %v549
        %v566 = vrsqrt.pop %v550
        %v567 = vrsqrt.pop %v551
        %v568 = vrsqrt.pop %v552
        %v569 = vrsqrt.pop %v553
        %v570 = vmul.f32 %v458, %v554
        %v571 = vmul.f32 %v459, %v555
        %v572 = vmul.f32 %v460, %v556
        %v573 = vmul.f32 %v461, %v557
        %v574 = vmul.f32 %v462, %v558
        %v575 = vmul.f32 %v463, %v559
        %v576 = vmul.f32 %v464, %v560
        %v577 = vmul.f32 %v465, %v561
        %v578 = vmul.f32 %v466, %v562
        %v579 = vmul.f32 %v467, %v563
        %v580 = vmul.f32 %v468, %v564
        %v581 = vmul.f32 %v469, %v565
        %v582 = vmul.f32 %v470, %v566
        %v583 = vmul.f32 %v471, %v567
        %v584 = vmul.f32 %v472, %v568
        %v585 = vmul.f32 %v473, %v569
        %v586 = vld [vmem:[%s1] sm:$0x1]
        %v588 = vlaneseq
        %v589 = vshrl.u32 %v588, 7
        %v590 = vsub.s32 0, %v589
        %v591 = vrot.slane %v586, %v590
        %v593 = vmul.f32 %v570, %v591
        %v594 = vmul.f32 %v571, %v591
        %v595 = vmul.f32 %v572, %v591
        %v596 = vmul.f32 %v573, %v591
        %v597 = vmul.f32 %v574, %v591
        %v598 = vmul.f32 %v575, %v591
        %v599 = vmul.f32 %v576, %v591
        %v600 = vmul.f32 %v577, %v591
        %v601 = vmul.f32 %v578, %v591
        %v602 = vmul.f32 %v579, %v591
        %v603 = vmul.f32 %v580, %v591
        %v604 = vmul.f32 %v581, %v591
        %v605 = vmul.f32 %v582, %v591
        %v606 = vmul.f32 %v583, %v591
        %v607 = vmul.f32 %v584, %v591
        %v608 = vmul.f32 %v585, %v591
        %v609 = vld [vmem:[%s2] sm:$0x1]
        %v611 = vlaneseq
        %v612 = vshrl.u32 %v611, 7
        %v613 = vsub.s32 0, %v612
        %v614 = vrot.slane %v609, %v613
        %v616 = vadd.f32 %v593, %v614
        %v617 = vadd.f32 %v594, %v614
        %v618 = vadd.f32 %v595, %v614
        %v619 = vadd.f32 %v596, %v614
        %v620 = vadd.f32 %v597, %v614
        %v621 = vadd.f32 %v598, %v614
        %v622 = vadd.f32 %v599, %v614
        %v623 = vadd.f32 %v600, %v614
        %v624 = vadd.f32 %v601, %v614
        %v625 = vadd.f32 %v602, %v614
        %v626 = vadd.f32 %v603, %v614
        %v627 = vadd.f32 %v604, %v614
        %v628 = vadd.f32 %v605, %v614
        %v629 = vadd.f32 %v606, %v614
        %v630 = vadd.f32 %v607, %v614
        %v631 = vadd.f32 %v608, %v614
        %632 = vst [vmem:[#allocation2] sm:$0xff] %v616
        %633 = vst [vmem:[#allocation2 + $0x8] sm:$0xff] %v617
        %634 = vst [vmem:[#allocation2 + $0x10] sm:$0xff] %v618
        %635 = vst [vmem:[#allocation2 + $0x18] sm:$0xff] %v619
        %636 = vst [vmem:[#allocation2 + $0x20] sm:$0xff] %v620
        %637 = vst [vmem:[#allocation2 + $0x28] sm:$0xff] %v621
        %638 = vst [vmem:[#allocation2 + $0x30] sm:$0xff] %v622
        %639 = vst [vmem:[#allocation2 + $0x38] sm:$0xff] %v623
        %640 = vst [vmem:[#allocation2 + $0x40] sm:$0xff] %v624
        %641 = vst [vmem:[#allocation2 + $0x48] sm:$0xff] %v625
        %642 = vst [vmem:[#allocation2 + $0x50] sm:$0xff] %v626
        %643 = vst [vmem:[#allocation2 + $0x58] sm:$0xff] %v627
        %644 = vst [vmem:[#allocation2 + $0x60] sm:$0xff] %v628
        %645 = vst [vmem:[#allocation2 + $0x68] sm:$0xff] %v629
        %646 = vst [vmem:[#allocation2 + $0x70] sm:$0xff] %v630
        %647 = vst [vmem:[#allocation2 + $0x78] sm:$0xff] %v631
      $region52: #{basic_transformer_block_forward.8} parent=47 // pred_fallthru
        _
      %v648 = vld [vmem:[#allocation2] sm:$0xff]
      %v649 = vld [vmem:[#allocation2 + $0x8] sm:$0xff]
      %v650 = vld [vmem:[#allocation2 + $0x10] sm:$0xff]
      %v651 = vld [vmem:[#allocation2 + $0x18] sm:$0xff]
      %v652 = vld [vmem:[#allocation2 + $0x20] sm:$0xff]
      %v653 = vld [vmem:[#allocation2 + $0x28] sm:$0xff]
      %v654 = vld [vmem:[#allocation2 + $0x30] sm:$0xff]
      %v655 = vld [vmem:[#allocation2 + $0x38] sm:$0xff]
      %v656 = vld [vmem:[#allocation2 + $0x40] sm:$0xff]
      %v657 = vld [vmem:[#allocation2 + $0x48] sm:$0xff]
      %v658 = vld [vmem:[#allocation2 + $0x50] sm:$0xff]
      %v659 = vld [vmem:[#allocation2 + $0x58] sm:$0xff]
      %v660 = vld [vmem:[#allocation2 + $0x60] sm:$0xff]
      %v661 = vld [vmem:[#allocation2 + $0x68] sm:$0xff]
      %v662 = vld [vmem:[#allocation2 + $0x70] sm:$0xff]
      %v663 = vld [vmem:[#allocation2 + $0x78] sm:$0xff]
      %v664 = vld [vmem:[%s359] sm:$0xff]
      %v665 = vld [vmem:[%s359 + $0x8] sm:$0xff]
      %v666 = vld [vmem:[%s359 + $0x10] sm:$0xff]
      %v667 = vld [vmem:[%s359 + $0x18] sm:$0xff]
      %v668 = vld [vmem:[%s359 + $0x20] sm:$0xff]
      %v669 = vld [vmem:[%s359 + $0x28] sm:$0xff]
      %v670 = vld [vmem:[%s359 + $0x30] sm:$0xff]
      %v671 = vld [vmem:[%s359 + $0x38] sm:$0xff]
      %v672 = vld [vmem:[%s359 + $0x40] sm:$0xff]
      %v673 = vld [vmem:[%s359 + $0x48] sm:$0xff]
      %v674 = vld [vmem:[%s359 + $0x50] sm:$0xff]
      %v675 = vld [vmem:[%s359 + $0x58] sm:$0xff]
      %v676 = vld [vmem:[%s359 + $0x60] sm:$0xff]
      %v677 = vld [vmem:[%s359 + $0x68] sm:$0xff]
      %v678 = vld [vmem:[%s359 + $0x70] sm:$0xff]
      %v679 = vld [vmem:[%s359 + $0x78] sm:$0xff]
      %v680 = vld [vmem:[%s359 + $0x80] sm:$0xff]
      %v681 = vld [vmem:[%s359 + $0x88] sm:$0xff]
      %v682 = vld [vmem:[%s359 + $0x90] sm:$0xff]
      %v683 = vld [vmem:[%s359 + $0x98] sm:$0xff]
      %v684 = vld [vmem:[%s359 + $0xa0] sm:$0xff]
      %v685 = vld [vmem:[%s359 + $0xa8] sm:$0xff]
      %v686 = vld [vmem:[%s359 + $0xb0] sm:$0xff]
      %v687 = vld [vmem:[%s359 + $0xb8] sm:$0xff]
      %v688 = vld [vmem:[%s359 + $0xc0] sm:$0xff]
      %v689 = vld [vmem:[%s359 + $0xc8] sm:$0xff]
      %v690 = vld [vmem:[%s359 + $0xd0] sm:$0xff]
      %v691 = vld [vmem:[%s359 + $0xd8] sm:$0xff]
      %v692 = vld [vmem:[%s359 + $0xe0] sm:$0xff]
      %v693 = vld [vmem:[%s359 + $0xe8] sm:$0xff]
      %v694 = vld [vmem:[%s359 + $0xf0] sm:$0xff]
      %v695 = vld [vmem:[%s359 + $0xf8] sm:$0xff]
      %v696 = vld [vmem:[%s359 + $0x100] sm:$0xff]
      %v697 = vld [vmem:[%s359 + $0x108] sm:$0xff]
      %v698 = vld [vmem:[%s359 + $0x110] sm:$0xff]
      %v699 = vld [vmem:[%s359 + $0x118] sm:$0xff]
      %v700 = vld [vmem:[%s359 + $0x120] sm:$0xff]
      %v701 = vld [vmem:[%s359 + $0x128] sm:$0xff]
      %v702 = vld [vmem:[%s359 + $0x130] sm:$0xff]
      %v703 = vld [vmem:[%s359 + $0x138] sm:$0xff]
      %v704 = vld [vmem:[%s359 + $0x140] sm:$0xff]
      %v705 = vld [vmem:[%s359 + $0x148] sm:$0xff]
      %v706 = vld [vmem:[%s359 + $0x150] sm:$0xff]
      %v707 = vld [vmem:[%s359 + $0x158] sm:$0xff]
      %v708 = vld [vmem:[%s359 + $0x160] sm:$0xff]
      %v709 = vld [vmem:[%s359 + $0x168] sm:$0xff]
      %v710 = vld [vmem:[%s359 + $0x170] sm:$0xff]
      %v711 = vld [vmem:[%s359 + $0x178] sm:$0xff]
      %v712 = vld [vmem:[%s359 + $0x180] sm:$0xff]
      %v713 = vld [vmem:[%s359 + $0x188] sm:$0xff]
      %v714 = vld [vmem:[%s359 + $0x190] sm:$0xff]
      %v715 = vld [vmem:[%s359 + $0x198] sm:$0xff]
      %v716 = vld [vmem:[%s359 + $0x1a0] sm:$0xff]
      %v717 = vld [vmem:[%s359 + $0x1a8] sm:$0xff]
      %v718 = vld [vmem:[%s359 + $0x1b0] sm:$0xff]
      %v719 = vld [vmem:[%s359 + $0x1b8] sm:$0xff]
      %v720 = vld [vmem:[%s359 + $0x1c0] sm:$0xff]
      %v721 = vld [vmem:[%s359 + $0x1c8] sm:$0xff]
      %v722 = vld [vmem:[%s359 + $0x1d0] sm:$0xff]
      %v723 = vld [vmem:[%s359 + $0x1d8] sm:$0xff]
      %v724 = vld [vmem:[%s359 + $0x1e0] sm:$0xff]
      %v725 = vld [vmem:[%s359 + $0x1e8] sm:$0xff]
      %v726 = vld [vmem:[%s359 + $0x1f0] sm:$0xff]
      %v727 = vld [vmem:[%s359 + $0x1f8] sm:$0xff]
      %v728 = vld [vmem:[%s370] sm:$0xf]
      %v730 = vlaneseq
      %v731 = vshrl.u32 %v730, 7
      %v732 = vsub.s32 0, %v731
      %v733 = vrot.slane %v728, %v732
      %v734 = vlaneseq
      %v735 = vshrl.u32 %v734, 7
      %v736 = vsub.s32 1, %v735
      %v737 = vrot.slane %v728, %v736
      %v738 = vlaneseq
      %v739 = vshrl.u32 %v738, 7
      %v740 = vsub.s32 2, %v739
      %v741 = vrot.slane %v728, %v740
      %v742 = vlaneseq
      %v743 = vshrl.u32 %v742, 7
      %v744 = vsub.s32 3, %v743
      %v745 = vrot.slane %v728, %v744
      %750 = vmatprep.subr.mxu0 %v665
      %751 = vmatpush1.msra.mxu0 %v664
      %752 = vmatprep.subr.mxu0 %v669
      %753 = vmatpush1.msra.mxu0 %v668
      %754 = vmatprep.subr.mxu0 %v673
      %755 = vmatpush1.msra.mxu0 %v672
      %756 = vmatprep.subr.mxu0 %v677
      %757 = vmatpush1.msra.mxu0 %v676
      %758 = vmatprep.subr.mxu0 %v681
      %759 = vmatpush1.msra.mxu0 %v680
      %760 = vmatprep.subr.mxu0 %v685
      %761 = vmatpush1.msra.mxu0 %v684
      %762 = vmatprep.subr.mxu0 %v689
      %763 = vmatpush1.msra.mxu0 %v688
      %764 = vmatprep.subr.mxu0 %v693
      %765 = vmatpush1.msra.mxu0 %v692
      %766 = vmatprep.subr.mxu0 %v697
      %767 = vmatpush1.msra.mxu0 %v696
      %768 = vmatprep.subr.mxu0 %v701
      %769 = vmatpush1.msra.mxu0 %v700
      %770 = vmatprep.subr.mxu0 %v705
      %771 = vmatpush1.msra.mxu0 %v704
      %772 = vmatprep.subr.mxu0 %v709
      %773 = vmatpush1.msra.mxu0 %v708
      %774 = vmatprep.subr.mxu0 %v713
      %775 = vmatpush1.msra.mxu0 %v712
      %776 = vmatprep.subr.mxu0 %v717
      %777 = vmatpush1.msra.mxu0 %v716
      %778 = vmatprep.subr.mxu0 %v721
      %779 = vmatpush1.msra.mxu0 %v720
      %780 = vmatprep.subr.mxu0 %v725
      %781 = vmatpush1.msra.mxu0 %v724
      %782 = vmatprep.subr.mxu0 0.0
      %783 = vmatpush1.msra.mxu0 0.0
      %784 = vmatprep.subr.mxu0 0.0
      %785 = vmatpush1.msra.mxu0 0.0
      %786 = vmatprep.subr.mxu0 0.0
      %787 = vmatpush1.msra.mxu0 0.0
      %788 = vmatprep.subr.mxu0 0.0
      %789 = vmatpush1.msra.mxu0 0.0
      %790 = vmatprep.subr.mxu0 0.0
      %791 = vmatpush1.msra.mxu0 0.0
      %792 = vmatprep.subr.mxu0 0.0
      %793 = vmatpush1.msra.mxu0 0.0
      %794 = vmatprep.subr.mxu0 0.0
      %795 = vmatpush1.msra.mxu0 0.0
      %796 = vmatprep.subr.mxu0 0.0
      %797 = vmatpush1.msra.mxu0 0.0
      %798 = vmatprep.subr.mxu0 0.0
      %799 = vmatpush1.msra.mxu0 0.0
      %800 = vmatprep.subr.mxu0 0.0
      %801 = vmatpush1.msra.mxu0 0.0
      %802 = vmatprep.subr.mxu0 0.0
      %803 = vmatpush1.msra.mxu0 0.0
      %804 = vmatprep.subr.mxu0 0.0
      %805 = vmatpush1.msra.mxu0 0.0
      %806 = vmatprep.subr.mxu0 0.0
      %807 = vmatpush1.msra.mxu0 0.0
      %808 = vmatprep.subr.mxu0 0.0
      %809 = vmatpush1.msra.mxu0 0.0
      %810 = vmatprep.subr.mxu0 0.0
      %811 = vmatpush1.msra.mxu0 0.0
      %812 = vmatprep.subr.mxu0 0.0
      %813 = vmatpush1.msra.mxu0 0.0
      %814 = vmatprep.mubr.f32.mxu0 0.0
      %815 = vmatmul.mubr.f32.gmra.mrb[0].mxu0 %v648
      %v816 = vpop.f32.mrb[0].mxu0
      %v817 = vadd.f32 %v733, %v816
      %v818 = vpop.f32.mrb[0].mxu0
      %v819 = vadd.f32 %v737, %v818
      %820 = vmatprep.mubr.f32.mxu0 0.0
      %821 = vmatmul.mubr.f32.gmra.mrb[0].mxu0 %v649
      %v822 = vpop.f32.mrb[0].mxu0
      %v823 = vadd.f32 %v733, %v822
      %v824 = vpop.f32.mrb[0].mxu0
      %v825 = vadd.f32 %v737, %v824
      %826 = vmatprep.mubr.f32.mxu0 0.0
      %827 = vmatmul.mubr.f32.gmra.mrb[0].mxu0 %v650
      %v828 = vpop.f32.mrb[0].mxu0
      %v829 = vadd.f32 %v733, %v828
      %v830 = vpop.f32.mrb[0].mxu0
      %v831 = vadd.f32 %v737, %v830
      %832 = vmatprep.mubr.f32.mxu0 0.0
      %833 = vmatmul.mubr.f32.gmra.mrb[0].mxu0 %v651
      %v834 = vpop.f32.mrb[0].mxu0
      %v835 = vadd.f32 %v733, %v834
      %v836 = vpop.f32.mrb[0].mxu0
      %v837 = vadd.f32 %v737, %v836
      %838 = vmatprep.mubr.f32.mxu0 0.0
      %839 = vmatmul.mubr.f32.gmra.mrb[0].mxu0 %v652
      %v840 = vpop.f32.mrb[0].mxu0
      %v841 = vadd.f32 %v733, %v840
      %v842 = vpop.f32.mrb[0].mxu0
      %v843 = vadd.f32 %v737, %v842
      %844 = vmatprep.mubr.f32.mxu0 0.0
      %845 = vmatmul.mubr.f32.gmra.mrb[0].mxu0 %v653
      %v846 = vpop.f32.mrb[0].mxu0
      %v847 = vadd.f32 %v733, %v846
      %v848 = vpop.f32.mrb[0].mxu0
      %v849 = vadd.f32 %v737, %v848
      %850 = vmatprep.mubr.f32.mxu0 0.0
      %851 = vmatmul.mubr.f32.gmra.mrb[0].mxu0 %v654
      %v852 = vpop.f32.mrb[0].mxu0
      %v853 = vadd.f32 %v733, %v852
      %v854 = vpop.f32.mrb[0].mxu0
      %v855 = vadd.f32 %v737, %v854
      %856 = vmatprep.mubr.f32.mxu0 0.0
      %857 = vmatmul.mubr.f32.gmra.mrb[0].mxu0 %v655
      %v858 = vpop.f32.mrb[0].mxu0
      %v859 = vadd.f32 %v733, %v858
      %v860 = vpop.f32.mrb[0].mxu0
      %v861 = vadd.f32 %v737, %v860
      %862 = vmatprep.mubr.f32.mxu0 0.0
      %863 = vmatmul.mubr.f32.gmra.mrb[0].mxu0 %v656
      %v864 = vpop.f32.mrb[0].mxu0
      %v865 = vadd.f32 %v733, %v864
      %v866 = vpop.f32.mrb[0].mxu0
      %v867 = vadd.f32 %v737, %v866
      %868 = vmatprep.mubr.f32.mxu0 0.0
      %869 = vmatmul.mubr.f32.gmra.mrb[0].mxu0 %v657
      %v870 = vpop.f32.mrb[0].mxu0
      %v871 = vadd.f32 %v733, %v870
      %v872 = vpop.f32.mrb[0].mxu0
      %v873 = vadd.f32 %v737, %v872
      %874 = vmatprep.mubr.f32.mxu0 0.0
      %875 = vmatmul.mubr.f32.gmra.mrb[0].mxu0 %v658
      %v876 = vpop.f32.mrb[0].mxu0
      %v877 = vadd.f32 %v733, %v876
      %v878 = vpop.f32.mrb[0].mxu0
      %v879 = vadd.f32 %v737, %v878
      %880 = vmatprep.mubr.f32.mxu0 0.0
      %881 = vmatmul.mubr.f32.gmra.mrb[0].mxu0 %v659
      %v882 = vpop.f32.mrb[0].mxu0
      %v883 = vadd.f32 %v733, %v882
      %v884 = vpop.f32.mrb[0].mxu0
      %v885 = vadd.f32 %v737, %v884
      %886 = vmatprep.mubr.f32.mxu0 0.0
      %887 = vmatmul.mubr.f32.gmra.mrb[0].mxu0 %v660
      %v888 = vpop.f32.mrb[0].mxu0
      %v889 = vadd.f32 %v733, %v888
      %v890 = vpop.f32.mrb[0].mxu0
      %v891 = vadd.f32 %v737, %v890
      %892 = vmatprep.mubr.f32.mxu0 0.0
      %893 = vmatmul.mubr.f32.gmra.mrb[0].mxu0 %v661
      %v894 = vpop.f32.mrb[0].mxu0
      %v895 = vadd.f32 %v733, %v894
      %v896 = vpop.f32.mrb[0].mxu0
      %v897 = vadd.f32 %v737, %v896
      %898 = vmatprep.mubr.f32.mxu0 0.0
      %899 = vmatmul.mubr.f32.gmra.mrb[0].mxu0 %v662
      %v900 = vpop.f32.mrb[0].mxu0
      %v901 = vadd.f32 %v733, %v900
      %v902 = vpop.f32.mrb[0].mxu0
      %v903 = vadd.f32 %v737, %v902
      %904 = vmatprep.mubr.f32.mxu0 0.0
      %905 = vmatmul.mubr.f32.gmra.mrb[0].mxu0 %v663
      %v906 = vpop.f32.mrb[0].mxu0
      %v907 = vadd.f32 %v733, %v906
      %v908 = vpop.f32.mrb[0].mxu0
      %v909 = vadd.f32 %v737, %v908
      %910 = vdwg.mxu0
      %911 = vmatprep.subr.mxu0 %v667
      %912 = vmatpush1.msra.mxu0 %v666
      %913 = vmatprep.subr.mxu0 %v671
      %914 = vmatpush1.msra.mxu0 %v670
      %915 = vmatprep.subr.mxu0 %v675
      %916 = vmatpush1.msra.mxu0 %v674
      %917 = vmatprep.subr.mxu0 %v679
      %918 = vmatpush1.msra.mxu0 %v678
      %919 = vmatprep.subr.mxu0 %v683
      %920 = vmatpush1.msra.mxu0 %v682
      %921 = vmatprep.subr.mxu0 %v687
      %922 = vmatpush1.msra.mxu0 %v686
      %923 = vmatprep.subr.mxu0 %v691
      %924 = vmatpush1.msra.mxu0 %v690
      %925 = vmatprep.subr.mxu0 %v695
      %926 = vmatpush1.msra.mxu0 %v694
      %927 = vmatprep.subr.mxu0 %v699
      %928 = vmatpush1.msra.mxu0 %v698
      %929 = vmatprep.subr.mxu0 %v703
      %930 = vmatpush1.msra.mxu0 %v702
      %931 = vmatprep.subr.mxu0 %v707
      %932 = vmatpush1.msra.mxu0 %v706
      %933 = vmatprep.subr.mxu0 %v711
      %934 = vmatpush1.msra.mxu0 %v710
      %935 = vmatprep.subr.mxu0 %v715
      %936 = vmatpush1.msra.mxu0 %v714
      %937 = vmatprep.subr.mxu0 %v719
      %938 = vmatpush1.msra.mxu0 %v718
      %939 = vmatprep.subr.mxu0 %v723
      %940 = vmatpush1.msra.mxu0 %v722
      %941 = vmatprep.subr.mxu0 %v727
      %942 = vmatpush1.msra.mxu0 %v726
      %943 = vmatprep.subr.mxu0 0.0
      %944 = vmatpush1.msra.mxu0 0.0
      %945 = vmatprep.subr.mxu0 0.0
      %946 = vmatpush1.msra.mxu0 0.0
      %947 = vmatprep.subr.mxu0 0.0
      %948 = vmatpush1.msra.mxu0 0.0
      %949 = vmatprep.subr.mxu0 0.0
      %950 = vmatpush1.msra.mxu0 0.0
      %951 = vmatprep.subr.mxu0 0.0
      %952 = vmatpush1.msra.mxu0 0.0
      %953 = vmatprep.subr.mxu0 0.0
      %954 = vmatpush1.msra.mxu0 0.0
      %955 = vmatprep.subr.mxu0 0.0
      %956 = vmatpush1.msra.mxu0 0.0
      %957 = vmatprep.subr.mxu0 0.0
      %958 = vmatpush1.msra.mxu0 0.0
      %959 = vmatprep.subr.mxu0 0.0
      %960 = vmatpush1.msra.mxu0 0.0
      %961 = vmatprep.subr.mxu0 0.0
      %962 = vmatpush1.msra.mxu0 0.0
      %963 = vmatprep.subr.mxu0 0.0
      %964 = vmatpush1.msra.mxu0 0.0
      %965 = vmatprep.subr.mxu0 0.0
      %966 = vmatpush1.msra.mxu0 0.0
      %967 = vmatprep.subr.mxu0 0.0
      %968 = vmatpush1.msra.mxu0 0.0
      %969 = vmatprep.subr.mxu0 0.0
      %970 = vmatpush1.msra.mxu0 0.0
      %971 = vmatprep.subr.mxu0 0.0
      %972 = vmatpush1.msra.mxu0 0.0
      %973 = vmatprep.subr.mxu0 0.0
      %974 = vmatpush1.msra.mxu0 0.0
      %975 = vmatprep.mubr.f32.mxu0 0.0
      %976 = vmatmul.mubr.f32.gmra.mrb[0].mxu0 %v648
      %v977 = vpop.f32.mrb[0].mxu0
      %v978 = vadd.f32 %v741, %v977
      %v979 = vpop.f32.mrb[0].mxu0
      %v980 = vadd.f32 %v745, %v979
      %981 = vmatprep.mubr.f32.mxu0 0.0
      %982 = vmatmul.mubr.f32.gmra.mrb[0].mxu0 %v649
      %v983 = vpop.f32.mrb[0].mxu0
      %v984 = vadd.f32 %v741, %v983
      %v985 = vpop.f32.mrb[0].mxu0
      %v986 = vadd.f32 %v745, %v985
      %987 = vmatprep.mubr.f32.mxu0 0.0
      %988 = vmatmul.mubr.f32.gmra.mrb[0].mxu0 %v650
      %v989 = vpop.f32.mrb[0].mxu0
      %v990 = vadd.f32 %v741, %v989
      %v991 = vpop.f32.mrb[0].mxu0
      %v992 = vadd.f32 %v745, %v991
      %993 = vmatprep.mubr.f32.mxu0 0.0
      %994 = vmatmul.mubr.f32.gmra.mrb[0].mxu0 %v651
      %v995 = vpop.f32.mrb[0].mxu0
      %v996 = vadd.f32 %v741, %v995
      %v997 = vpop.f32.mrb[0].mxu0
      %v998 = vadd.f32 %v745, %v997
      %999 = vmatprep.mubr.f32.mxu0 0.0
      %1000 = vmatmul.mubr.f32.gmra.mrb[0].mxu0 %v652
      %v1001 = vpop.f32.mrb[0].mxu0
      %v1002 = vadd.f32 %v741, %v1001
      %v1003 = vpop.f32.mrb[0].mxu0
      %v1004 = vadd.f32 %v745, %v1003
      %1005 = vmatprep.mubr.f32.mxu0 0.0
      %1006 = vmatmul.mubr.f32.gmra.mrb[0].mxu0 %v653
      %v1007 = vpop.f32.mrb[0].mxu0
      %v1008 = vadd.f32 %v741, %v1007
      %v1009 = vpop.f32.mrb[0].mxu0
      %v1010 = vadd.f32 %v745, %v1009
      %1011 = vmatprep.mubr.f32.mxu0 0.0
      %1012 = vmatmul.mubr.f32.gmra.mrb[0].mxu0 %v654
      %v1013 = vpop.f32.mrb[0].mxu0
      %v1014 = vadd.f32 %v741, %v1013
      %v1015 = vpop.f32.mrb[0].mxu0
      %v1016 = vadd.f32 %v745, %v1015
      %1017 = vmatprep.mubr.f32.mxu0 0.0
      %1018 = vmatmul.mubr.f32.gmra.mrb[0].mxu0 %v655
      %v1019 = vpop.f32.mrb[0].mxu0
      %v1020 = vadd.f32 %v741, %v1019
      %v1021 = vpop.f32.mrb[0].mxu0
      %v1022 = vadd.f32 %v745, %v1021
      %1023 = vmatprep.mubr.f32.mxu0 0.0
      %1024 = vmatmul.mubr.f32.gmra.mrb[0].mxu0 %v656
      %v1025 = vpop.f32.mrb[0].mxu0
      %v1026 = vadd.f32 %v741, %v1025
      %v1027 = vpop.f32.mrb[0].mxu0
      %v1028 = vadd.f32 %v745, %v1027
      %1029 = vmatprep.mubr.f32.mxu0 0.0
      %1030 = vmatmul.mubr.f32.gmra.mrb[0].mxu0 %v657
      %v1031 = vpop.f32.mrb[0].mxu0
      %v1032 = vadd.f32 %v741, %v1031
      %v1033 = vpop.f32.mrb[0].mxu0
      %v1034 = vadd.f32 %v745, %v1033
      %1035 = vmatprep.mubr.f32.mxu0 0.0
      %1036 = vmatmul.mubr.f32.gmra.mrb[0].mxu0 %v658
      %v1037 = vpop.f32.mrb[0].mxu0
      %v1038 = vadd.f32 %v741, %v1037
      %v1039 = vpop.f32.mrb[0].mxu0
      %v1040 = vadd.f32 %v745, %v1039
      %1041 = vmatprep.mubr.f32.mxu0 0.0
      %1042 = vmatmul.mubr.f32.gmra.mrb[0].mxu0 %v659
      %v1043 = vpop.f32.mrb[0].mxu0
      %v1044 = vadd.f32 %v741, %v1043
      %v1045 = vpop.f32.mrb[0].mxu0
      %v1046 = vadd.f32 %v745, %v1045
      %1047 = vmatprep.mubr.f32.mxu0 0.0
      %1048 = vmatmul.mubr.f32.gmra.mrb[0].mxu0 %v660
      %v1049 = vpop.f32.mrb[0].mxu0
      %v1050 = vadd.f32 %v741, %v1049
      %v1051 = vpop.f32.mrb[0].mxu0
      %v1052 = vadd.f32 %v745, %v1051
      %1053 = vmatprep.mubr.f32.mxu0 0.0
      %1054 = vmatmul.mubr.f32.gmra.mrb[0].mxu0 %v661
      %v1055 = vpop.f32.mrb[0].mxu0
      %v1056 = vadd.f32 %v741, %v1055
      %v1057 = vpop.f32.mrb[0].mxu0
      %v1058 = vadd.f32 %v745, %v1057
      %1059 = vmatprep.mubr.f32.mxu0 0.0
      %1060 = vmatmul.mubr.f32.gmra.mrb[0].mxu0 %v662
      %v1061 = vpop.f32.mrb[0].mxu0
      %v1062 = vadd.f32 %v741, %v1061
      %v1063 = vpop.f32.mrb[0].mxu0
      %v1064 = vadd.f32 %v745, %v1063
      %1065 = vmatprep.mubr.f32.mxu0 0.0
      %1066 = vmatmul.mubr.f32.gmra.mrb[0].mxu0 %v663
      %v1067 = vpop.f32.mrb[0].mxu0
      %v1068 = vadd.f32 %v741, %v1067
      %v1069 = vpop.f32.mrb[0].mxu0
      %v1070 = vadd.f32 %v745, %v1069
      %1071 = vdwg.mxu0
      %v1072 = vld [vmem:[%s365] sm:$0xff]
      %v1073 = vld [vmem:[%s365 + $0x8] sm:$0xff]
      %v1074 = vld [vmem:[%s365 + $0x10] sm:$0xff]
      %v1075 = vld [vmem:[%s365 + $0x18] sm:$0xff]
      %v1076 = vld [vmem:[%s365 + $0x20] sm:$0xff]
      %v1077 = vld [vmem:[%s365 + $0x28] sm:$0xff]
      %v1078 = vld [vmem:[%s365 + $0x30] sm:$0xff]
      %v1079 = vld [vmem:[%s365 + $0x38] sm:$0xff]
      %v1080 = vld [vmem:[%s365 + $0x40] sm:$0xff]
      %v1081 = vld [vmem:[%s365 + $0x48] sm:$0xff]
      %v1082 = vld [vmem:[%s365 + $0x50] sm:$0xff]
      %v1083 = vld [vmem:[%s365 + $0x58] sm:$0xff]
      %v1084 = vld [vmem:[%s365 + $0x60] sm:$0xff]
      %v1085 = vld [vmem:[%s365 + $0x68] sm:$0xff]
      %v1086 = vld [vmem:[%s365 + $0x70] sm:$0xff]
      %v1087 = vld [vmem:[%s365 + $0x78] sm:$0xff]
      %v1088 = vld [vmem:[%s365 + $0x80] sm:$0xff]
      %v1089 = vld [vmem:[%s365 + $0x88] sm:$0xff]
      %v1090 = vld [vmem:[%s365 + $0x90] sm:$0xff]
      %v1091 = vld [vmem:[%s365 + $0x98] sm:$0xff]
      %v1092 = vld [vmem:[%s365 + $0xa0] sm:$0xff]
      %v1093 = vld [vmem:[%s365 + $0xa8] sm:$0xff]
      %v1094 = vld [vmem:[%s365 + $0xb0] sm:$0xff]
      %v1095 = vld [vmem:[%s365 + $0xb8] sm:$0xff]
      %v1096 = vld [vmem:[%s365 + $0xc0] sm:$0xff]
      %v1097 = vld [vmem:[%s365 + $0xc8] sm:$0xff]
      %v1098 = vld [vmem:[%s365 + $0xd0] sm:$0xff]
      %v1099 = vld [vmem:[%s365 + $0xd8] sm:$0xff]
      %v1100 = vld [vmem:[%s365 + $0xe0] sm:$0xff]
      %v1101 = vld [vmem:[%s365 + $0xe8] sm:$0xff]
      %v1102 = vld [vmem:[%s365 + $0xf0] sm:$0xff]
      %v1103 = vld [vmem:[%s365 + $0xf8] sm:$0xff]
      %v1104 = vld [vmem:[%s365 + $0x100] sm:$0xff]
      %v1105 = vld [vmem:[%s365 + $0x108] sm:$0xff]
      %v1106 = vld [vmem:[%s365 + $0x110] sm:$0xff]
      %v1107 = vld [vmem:[%s365 + $0x118] sm:$0xff]
      %v1108 = vld [vmem:[%s365 + $0x120] sm:$0xff]
      %v1109 = vld [vmem:[%s365 + $0x128] sm:$0xff]
      %v1110 = vld [vmem:[%s365 + $0x130] sm:$0xff]
      %v1111 = vld [vmem:[%s365 + $0x138] sm:$0xff]
      %v1112 = vld [vmem:[%s365 + $0x140] sm:$0xff]
      %v1113 = vld [vmem:[%s365 + $0x148] sm:$0xff]
      %v1114 = vld [vmem:[%s365 + $0x150] sm:$0xff]
      %v1115 = vld [vmem:[%s365 + $0x158] sm:$0xff]
      %v1116 = vld [vmem:[%s365 + $0x160] sm:$0xff]
      %v1117 = vld [vmem:[%s365 + $0x168] sm:$0xff]
      %v1118 = vld [vmem:[%s365 + $0x170] sm:$0xff]
      %v1119 = vld [vmem:[%s365 + $0x178] sm:$0xff]
      %v1120 = vld [vmem:[%s365 + $0x180] sm:$0xff]
      %v1121 = vld [vmem:[%s365 + $0x188] sm:$0xff]
      %v1122 = vld [vmem:[%s365 + $0x190] sm:$0xff]
      %v1123 = vld [vmem:[%s365 + $0x198] sm:$0xff]
      %v1124 = vld [vmem:[%s365 + $0x1a0] sm:$0xff]
      %v1125 = vld [vmem:[%s365 + $0x1a8] sm:$0xff]
      %v1126 = vld [vmem:[%s365 + $0x1b0] sm:$0xff]
      %v1127 = vld [vmem:[%s365 + $0x1b8] sm:$0xff]
      %v1128 = vld [vmem:[%s365 + $0x1c0] sm:$0xff]
      %v1129 = vld [vmem:[%s365 + $0x1c8] sm:$0xff]
      %v1130 = vld [vmem:[%s365 + $0x1d0] sm:$0xff]
      %v1131 = vld [vmem:[%s365 + $0x1d8] sm:$0xff]
      %v1132 = vld [vmem:[%s365 + $0x1e0] sm:$0xff]
      %v1133 = vld [vmem:[%s365 + $0x1e8] sm:$0xff]
      %v1134 = vld [vmem:[%s365 + $0x1f0] sm:$0xff]
      %v1135 = vld [vmem:[%s365 + $0x1f8] sm:$0xff]
      %v1136 = vld [vmem:[%s375] sm:$0xf]
      %v1138 = vlaneseq
      %v1139 = vshrl.u32 %v1138, 7
      %v1140 = vsub.s32 0, %v1139
      %v1141 = vrot.slane %v1136, %v1140
      %v1142 = vlaneseq
      %v1143 = vshrl.u32 %v1142, 7
      %v1144 = vsub.s32 1, %v1143
      %v1145 = vrot.slane %v1136, %v1144
      %v1146 = vlaneseq
      %v1147 = vshrl.u32 %v1146, 7
      %v1148 = vsub.s32 2, %v1147
      %v1149 = vrot.slane %v1136, %v1148
      %v1150 = vlaneseq
      %v1151 = vshrl.u32 %v1150, 7
      %v1152 = vsub.s32 3, %v1151
      %v1153 = vrot.slane %v1136, %v1152
      %1158 = vmatprep.subr.mxu0 %v1073
      %1159 = vmatpush1.msra.mxu0 %v1072
      %1160 = vmatprep.subr.mxu0 %v1077
      %1161 = vmatpush1.msra.mxu0 %v1076
      %1162 = vmatprep.subr.mxu0 %v1081
      %1163 = vmatpush1.msra.mxu0 %v1080
      %1164 = vmatprep.subr.mxu0 %v1085
      %1165 = vmatpush1.msra.mxu0 %v1084
      %1166 = vmatprep.subr.mxu0 %v1089
      %1167 = vmatpush1.msra.mxu0 %v1088
      %1168 = vmatprep.subr.mxu0 %v1093
      %1169 = vmatpush1.msra.mxu0 %v1092
      %1170 = vmatprep.subr.mxu0 %v1097
      %1171 = vmatpush1.msra.mxu0 %v1096
      %1172 = vmatprep.subr.mxu0 %v1101
      %1173 = vmatpush1.msra.mxu0 %v1100
      %1174 = vmatprep.subr.mxu0 %v1105
      %1175 = vmatpush1.msra.mxu0 %v1104
      %1176 = vmatprep.subr.mxu0 %v1109
      %1177 = vmatpush1.msra.mxu0 %v1108
      %1178 = vmatprep.subr.mxu0 %v1113
      %1179 = vmatpush1.msra.mxu0 %v1112
      %1180 = vmatprep.subr.mxu0 %v1117
      %1181 = vmatpush1.msra.mxu0 %v1116
      %1182 = vmatprep.subr.mxu0 %v1121
      %1183 = vmatpush1.msra.mxu0 %v1120
      %1184 = vmatprep.subr.mxu0 %v1125
      %1185 = vmatpush1.msra.mxu0 %v1124
      %1186 = vmatprep.subr.mxu0 %v1129
      %1187 = vmatpush1.msra.mxu0 %v1128
      %1188 = vmatprep.subr.mxu0 %v1133
      %1189 = vmatpush1.msra.mxu0 %v1132
      %1190 = vmatprep.subr.mxu0 0.0
      %1191 = vmatpush1.msra.mxu0 0.0
      %1192 = vmatprep.subr.mxu0 0.0
      %1193 = vmatpush1.msra.mxu0 0.0
      %1194 = vmatprep.subr.mxu0 0.0
      %1195 = vmatpush1.msra.mxu0 0.0
      %1196 = vmatprep.subr.mxu0 0.0
      %1197 = vmatpush1.msra.mxu0 0.0
      %1198 = vmatprep.subr.mxu0 0.0
      %1199 = vmatpush1.msra.mxu0 0.0
      %1200 = vmatprep.subr.mxu0 0.0
      %1201 = vmatpush1.msra.mxu0 0.0
      %1202 = vmatprep.subr.mxu0 0.0
      %1203 = vmatpush1.msra.mxu0 0.0
      %1204 = vmatprep.subr.mxu0 0.0
      %1205 = vmatpush1.msra.mxu0 0.0
      %1206 = vmatprep.subr.mxu0 0.0
      %1207 = vmatpush1.msra.mxu0 0.0
      %1208 = vmatprep.subr.mxu0 0.0
      %1209 = vmatpush1.msra.mxu0 0.0
      %1210 = vmatprep.subr.mxu0 0.0
      %1211 = vmatpush1.msra.mxu0 0.0
      %1212 = vmatprep.subr.mxu0 0.0
      %1213 = vmatpush1.msra.mxu0 0.0
      %1214 = vmatprep.subr.mxu0 0.0
      %1215 = vmatpush1.msra.mxu0 0.0
      %1216 = vmatprep.subr.mxu0 0.0
      %1217 = vmatpush1.msra.mxu0 0.0
      %1218 = vmatprep.subr.mxu0 0.0
      %1219 = vmatpush1.msra.mxu0 0.0
      %1220 = vmatprep.subr.mxu0 0.0
      %1221 = vmatpush1.msra.mxu0 0.0
      %1222 = vmatprep.mubr.f32.mxu0 0.0
      %1223 = vmatmul.mubr.f32.gmra.mrb[0].mxu0 %v648
      %v1224 = vpop.f32.mrb[0].mxu0
      %v1225 = vadd.f32 %v1141, %v1224
      %v1226 = vpop.f32.mrb[0].mxu0
      %v1227 = vadd.f32 %v1145, %v1226
      %1228 = vmatprep.mubr.f32.mxu0 0.0
      %1229 = vmatmul.mubr.f32.gmra.mrb[0].mxu0 %v649
      %v1230 = vpop.f32.mrb[0].mxu0
      %v1231 = vadd.f32 %v1141, %v1230
      %v1232 = vpop.f32.mrb[0].mxu0
      %v1233 = vadd.f32 %v1145, %v1232
      %1234 = vmatprep.mubr.f32.mxu0 0.0
      %1235 = vmatmul.mubr.f32.gmra.mrb[0].mxu0 %v650
      %v1236 = vpop.f32.mrb[0].mxu0
      %v1237 = vadd.f32 %v1141, %v1236
      %v1238 = vpop.f32.mrb[0].mxu0
      %v1239 = vadd.f32 %v1145, %v1238
      %1240 = vmatprep.mubr.f32.mxu0 0.0
      %1241 = vmatmul.mubr.f32.gmra.mrb[0].mxu0 %v651
      %v1242 = vpop.f32.mrb[0].mxu0
      %v1243 = vadd.f32 %v1141, %v1242
      %v1244 = vpop.f32.mrb[0].mxu0
      %v1245 = vadd.f32 %v1145, %v1244
      %1246 = vmatprep.mubr.f32.mxu0 0.0
      %1247 = vmatmul.mubr.f32.gmra.mrb[0].mxu0 %v652
      %v1248 = vpop.f32.mrb[0].mxu0
      %v1249 = vadd.f32 %v1141, %v1248
      %v1250 = vpop.f32.mrb[0].mxu0
      %v1251 = vadd.f32 %v1145, %v1250
      %1252 = vmatprep.mubr.f32.mxu0 0.0
      %1253 = vmatmul.mubr.f32.gmra.mrb[0].mxu0 %v653
      %v1254 = vpop.f32.mrb[0].mxu0
      %v1255 = vadd.f32 %v1141, %v1254
      %v1256 = vpop.f32.mrb[0].mxu0
      %v1257 = vadd.f32 %v1145, %v1256
      %1258 = vmatprep.mubr.f32.mxu0 0.0
      %1259 = vmatmul.mubr.f32.gmra.mrb[0].mxu0 %v654
      %v1260 = vpop.f32.mrb[0].mxu0
      %v1261 = vadd.f32 %v1141, %v1260
      %v1262 = vpop.f32.mrb[0].mxu0
      %v1263 = vadd.f32 %v1145, %v1262
      %1264 = vmatprep.mubr.f32.mxu0 0.0
      %1265 = vmatmul.mubr.f32.gmra.mrb[0].mxu0 %v655
      %v1266 = vpop.f32.mrb[0].mxu0
      %v1267 = vadd.f32 %v1141, %v1266
      %v1268 = vpop.f32.mrb[0].mxu0
      %v1269 = vadd.f32 %v1145, %v1268
      %1270 = vmatprep.mubr.f32.mxu0 0.0
      %1271 = vmatmul.mubr.f32.gmra.mrb[0].mxu0 %v656
      %v1272 = vpop.f32.mrb[0].mxu0
      %v1273 = vadd.f32 %v1141, %v1272
      %v1274 = vpop.f32.mrb[0].mxu0
      %v1275 = vadd.f32 %v1145, %v1274
      %1276 = vmatprep.mubr.f32.mxu0 0.0
      %1277 = vmatmul.mubr.f32.gmra.mrb[0].mxu0 %v657
      %v1278 = vpop.f32.mrb[0].mxu0
      %v1279 = vadd.f32 %v1141, %v1278
      %v1280 = vpop.f32.mrb[0].mxu0
      %v1281 = vadd.f32 %v1145, %v1280
      %1282 = vmatprep.mubr.f32.mxu0 0.0
      %1283 = vmatmul.mubr.f32.gmra.mrb[0].mxu0 %v658
      %v1284 = vpop.f32.mrb[0].mxu0
      %v1285 = vadd.f32 %v1141, %v1284
      %v1286 = vpop.f32.mrb[0].mxu0
      %v1287 = vadd.f32 %v1145, %v1286
      %1288 = vmatprep.mubr.f32.mxu0 0.0
      %1289 = vmatmul.mubr.f32.gmra.mrb[0].mxu0 %v659
      %v1290 = vpop.f32.mrb[0].mxu0
      %v1291 = vadd.f32 %v1141, %v1290
      %v1292 = vpop.f32.mrb[0].mxu0
      %v1293 = vadd.f32 %v1145, %v1292
      %1294 = vmatprep.mubr.f32.mxu0 0.0
      %1295 = vmatmul.mubr.f32.gmra.mrb[0].mxu0 %v660
      %v1296 = vpop.f32.mrb[0].mxu0
      %v1297 = vadd.f32 %v1141, %v1296
      %v1298 = vpop.f32.mrb[0].mxu0
      %v1299 = vadd.f32 %v1145, %v1298
      %1300 = vmatprep.mubr.f32.mxu0 0.0
      %1301 = vmatmul.mubr.f32.gmra.mrb[0].mxu0 %v661
      %v1302 = vpop.f32.mrb[0].mxu0
      %v1303 = vadd.f32 %v1141, %v1302
      %v1304 = vpop.f32.mrb[0].mxu0
      %v1305 = vadd.f32 %v1145, %v1304
      %1306 = vmatprep.mubr.f32.mxu0 0.0
      %1307 = vmatmul.mubr.f32.gmra.mrb[0].mxu0 %v662
      %v1308 = vpop.f32.mrb[0].mxu0
      %v1309 = vadd.f32 %v1141, %v1308
      %v1310 = vpop.f32.mrb[0].mxu0
      %v1311 = vadd.f32 %v1145, %v1310
      %1312 = vmatprep.mubr.f32.mxu0 0.0
      %1313 = vmatmul.mubr.f32.gmra.mrb[0].mxu0 %v663
      %v1314 = vpop.f32.mrb[0].mxu0
      %v1315 = vadd.f32 %v1141, %v1314
      %v1316 = vpop.f32.mrb[0].mxu0
      %v1317 = vadd.f32 %v1145, %v1316
      %1318 = vdwg.mxu0
      %1319 = vmatprep.subr.mxu0 %v1075
      %1320 = vmatpush1.msra.mxu0 %v1074
      %1321 = vmatprep.subr.mxu0 %v1079
      %1322 = vmatpush1.msra.mxu0 %v1078
      %1323 = vmatprep.subr.mxu0 %v1083
      %1324 = vmatpush1.msra.mxu0 %v1082
      %1325 = vmatprep.subr.mxu0 %v1087
      %1326 = vmatpush1.msra.mxu0 %v1086
      %1327 = vmatprep.subr.mxu0 %v1091
      %1328 = vmatpush1.msra.mxu0 %v1090
      %1329 = vmatprep.subr.mxu0 %v1095
      %1330 = vmatpush1.msra.mxu0 %v1094
      %1331 = vmatprep.subr.mxu0 %v1099
      %1332 = vmatpush1.msra.mxu0 %v1098
      %1333 = vmatprep.subr.mxu0 %v1103
      %1334 = vmatpush1.msra.mxu0 %v1102
      %1335 = vmatprep.subr.mxu0 %v1107
      %1336 = vmatpush1.msra.mxu0 %v1106
      %1337 = vmatprep.subr.mxu0 %v1111
      %1338 = vmatpush1.msra.mxu0 %v1110
      %1339 = vmatprep.subr.mxu0 %v1115
      %1340 = vmatpush1.msra.mxu0 %v1114
      %1341 = vmatprep.subr.mxu0 %v1119
      %1342 = vmatpush1.msra.mxu0 %v1118
      %1343 = vmatprep.subr.mxu0 %v1123
      %1344 = vmatpush1.msra.mxu0 %v1122
      %1345 = vmatprep.subr.mxu0 %v1127
      %1346 = vmatpush1.msra.mxu0 %v1126
      %1347 = vmatprep.subr.mxu0 %v1131
      %1348 = vmatpush1.msra.mxu0 %v1130
      %1349 = vmatprep.subr.mxu0 %v1135
      %1350 = vmatpush1.msra.mxu0 %v1134
      %1351 = vmatprep.subr.mxu0 0.0
      %1352 = vmatpush1.msra.mxu0 0.0
      %1353 = vmatprep.subr.mxu0 0.0
      %1354 = vmatpush1.msra.mxu0 0.0
      %1355 = vmatprep.subr.mxu0 0.0
      %1356 = vmatpush1.msra.mxu0 0.0
      %1357 = vmatprep.subr.mxu0 0.0
      %1358 = vmatpush1.msra.mxu0 0.0
      %1359 = vmatprep.subr.mxu0 0.0
      %1360 = vmatpush1.msra.mxu0 0.0
      %1361 = vmatprep.subr.mxu0 0.0
      %1362 = vmatpush1.msra.mxu0 0.0
      %1363 = vmatprep.subr.mxu0 0.0
      %1364 = vmatpush1.msra.mxu0 0.0
      %1365 = vmatprep.subr.mxu0 0.0
      %1366 = vmatpush1.msra.mxu0 0.0
      %1367 = vmatprep.subr.mxu0 0.0
      %1368 = vmatpush1.msra.mxu0 0.0
      %1369 = vmatprep.subr.mxu0 0.0
      %1370 = vmatpush1.msra.mxu0 0.0
      %1371 = vmatprep.subr.mxu0 0.0
      %1372 = vmatpush1.msra.mxu0 0.0
      %1373 = vmatprep.subr.mxu0 0.0
      %1374 = vmatpush1.msra.mxu0 0.0
      %1375 = vmatprep.subr.mxu0 0.0
      %1376 = vmatpush1.msra.mxu0 0.0
      %1377 = vmatprep.subr.mxu0 0.0
      %1378 = vmatpush1.msra.mxu0 0.0
      %1379 = vmatprep.subr.mxu0 0.0
      %1380 = vmatpush1.msra.mxu0 0.0
      %1381 = vmatprep.subr.mxu0 0.0
      %1382 = vmatpush1.msra.mxu0 0.0
      %1383 = vmatprep.mubr.f32.mxu0 0.0
      %1384 = vmatmul.mubr.f32.gmra.mrb[0].mxu0 %v648
      %v1385 = vpop.f32.mrb[0].mxu0
      %v1386 = vadd.f32 %v1149, %v1385
      %v1387 = vpop.f32.mrb[0].mxu0
      %v1388 = vadd.f32 %v1153, %v1387
      %1389 = vmatprep.mubr.f32.mxu0 0.0
      %1390 = vmatmul.mubr.f32.gmra.mrb[0].mxu0 %v649
      %v1391 = vpop.f32.mrb[0].mxu0
      %v1392 = vadd.f32 %v1149, %v1391
      %v1393 = vpop.f32.mrb[0].mxu0
      %v1394 = vadd.f32 %v1153, %v1393
      %1395 = vmatprep.mubr.f32.mxu0 0.0
      %1396 = vmatmul.mubr.f32.gmra.mrb[0].mxu0 %v650
      %v1397 = vpop.f32.mrb[0].mxu0
      %v1398 = vadd.f32 %v1149, %v1397
      %v1399 = vpop.f32.mrb[0].mxu0
      %v1400 = vadd.f32 %v1153, %v1399
      %1401 = vmatprep.mubr.f32.mxu0 0.0
      %1402 = vmatmul.mubr.f32.gmra.mrb[0].mxu0 %v651
      %v1403 = vpop.f32.mrb[0].mxu0
      %v1404 = vadd.f32 %v1149, %v1403
      %v1405 = vpop.f32.mrb[0].mxu0
      %v1406 = vadd.f32 %v1153, %v1405
      %1407 = vmatprep.mubr.f32.mxu0 0.0
      %1408 = vmatmul.mubr.f32.gmra.mrb[0].mxu0 %v652
      %v1409 = vpop.f32.mrb[0].mxu0
      %v1410 = vadd.f32 %v1149, %v1409
      %v1411 = vpop.f32.mrb[0].mxu0
      %v1412 = vadd.f32 %v1153, %v1411
      %1413 = vmatprep.mubr.f32.mxu0 0.0
      %1414 = vmatmul.mubr.f32.gmra.mrb[0].mxu0 %v653
      %v1415 = vpop.f32.mrb[0].mxu0
      %v1416 = vadd.f32 %v1149, %v1415
      %v1417 = vpop.f32.mrb[0].mxu0
      %v1418 = vadd.f32 %v1153, %v1417
      %1419 = vmatprep.mubr.f32.mxu0 0.0
      %1420 = vmatmul.mubr.f32.gmra.mrb[0].mxu0 %v654
      %v1421 = vpop.f32.mrb[0].mxu0
      %v1422 = vadd.f32 %v1149, %v1421
      %v1423 = vpop.f32.mrb[0].mxu0
      %v1424 = vadd.f32 %v1153, %v1423
      %1425 = vmatprep.mubr.f32.mxu0 0.0
      %1426 = vmatmul.mubr.f32.gmra.mrb[0].mxu0 %v655
      %v1427 = vpop.f32.mrb[0].mxu0
      %v1428 = vadd.f32 %v1149, %v1427
      %v1429 = vpop.f32.mrb[0].mxu0
      %v1430 = vadd.f32 %v1153, %v1429
      %1431 = vmatprep.mubr.f32.mxu0 0.0
      %1432 = vmatmul.mubr.f32.gmra.mrb[0].mxu0 %v656
      %v1433 = vpop.f32.mrb[0].mxu0
      %v1434 = vadd.f32 %v1149, %v1433
      %v1435 = vpop.f32.mrb[0].mxu0
      %v1436 = vadd.f32 %v1153, %v1435
      %1437 = vmatprep.mubr.f32.mxu0 0.0
      %1438 = vmatmul.mubr.f32.gmra.mrb[0].mxu0 %v657
      %v1439 = vpop.f32.mrb[0].mxu0
      %v1440 = vadd.f32 %v1149, %v1439
      %v1441 = vpop.f32.mrb[0].mxu0
      %v1442 = vadd.f32 %v1153, %v1441
      %1443 = vmatprep.mubr.f32.mxu0 0.0
      %1444 = vmatmul.mubr.f32.gmra.mrb[0].mxu0 %v658
      %v1445 = vpop.f32.mrb[0].mxu0
      %v1446 = vadd.f32 %v1149, %v1445
      %v1447 = vpop.f32.mrb[0].mxu0
      %v1448 = vadd.f32 %v1153, %v1447
      %1449 = vmatprep.mubr.f32.mxu0 0.0
      %1450 = vmatmul.mubr.f32.gmra.mrb[0].mxu0 %v659
      %v1451 = vpop.f32.mrb[0].mxu0
      %v1452 = vadd.f32 %v1149, %v1451
      %v1453 = vpop.f32.mrb[0].mxu0
      %v1454 = vadd.f32 %v1153, %v1453
      %1455 = vmatprep.mubr.f32.mxu0 0.0
      %1456 = vmatmul.mubr.f32.gmra.mrb[0].mxu0 %v660
      %v1457 = vpop.f32.mrb[0].mxu0
      %v1458 = vadd.f32 %v1149, %v1457
      %v1459 = vpop.f32.mrb[0].mxu0
      %v1460 = vadd.f32 %v1153, %v1459
      %1461 = vmatprep.mubr.f32.mxu0 0.0
      %1462 = vmatmul.mubr.f32.gmra.mrb[0].mxu0 %v661
      %v1463 = vpop.f32.mrb[0].mxu0
      %v1464 = vadd.f32 %v1149, %v1463
      %v1465 = vpop.f32.mrb[0].mxu0
      %v1466 = vadd.f32 %v1153, %v1465
      %1467 = vmatprep.mubr.f32.mxu0 0.0
      %1468 = vmatmul.mubr.f32.gmra.mrb[0].mxu0 %v662
      %v1469 = vpop.f32.mrb[0].mxu0
      %v1470 = vadd.f32 %v1149, %v1469
      %v1471 = vpop.f32.mrb[0].mxu0
      %v1472 = vadd.f32 %v1153, %v1471
      %1473 = vmatprep.mubr.f32.mxu0 0.0
      %1474 = vmatmul.mubr.f32.gmra.mrb[0].mxu0 %v663
      %v1475 = vpop.f32.mrb[0].mxu0
      %v1476 = vadd.f32 %v1149, %v1475
      %v1477 = vpop.f32.mrb[0].mxu0
      %v1478 = vadd.f32 %v1153, %v1477
      %1479 = vdwg.mxu0
      %v1480 = vmul.f32 %v1225, 0.5
      %v1481 = vmul.f32 %v1227, 0.5
      %v1482 = vmul.f32 %v1386, 0.5
      %v1483 = vmul.f32 %v1388, 0.5
      %v1484 = vmul.f32 %v1231, 0.5
      %v1485 = vmul.f32 %v1233, 0.5
      %v1486 = vmul.f32 %v1392, 0.5
      %v1487 = vmul.f32 %v1394, 0.5
      %v1488 = vmul.f32 %v1237, 0.5
      %v1489 = vmul.f32 %v1239, 0.5
      %v1490 = vmul.f32 %v1398, 0.5
      %v1491 = vmul.f32 %v1400, 0.5
      %v1492 = vmul.f32 %v1243, 0.5
      %v1493 = vmul.f32 %v1245, 0.5
      %v1494 = vmul.f32 %v1404, 0.5
      %v1495 = vmul.f32 %v1406, 0.5
      %v1496 = vmul.f32 %v1249, 0.5
      %v1497 = vmul.f32 %v1251, 0.5
      %v1498 = vmul.f32 %v1410, 0.5
      %v1499 = vmul.f32 %v1412, 0.5
      %v1500 = vmul.f32 %v1255, 0.5
      %v1501 = vmul.f32 %v1257, 0.5
      %v1502 = vmul.f32 %v1416, 0.5
      %v1503 = vmul.f32 %v1418, 0.5
      %v1504 = vmul.f32 %v1261, 0.5
      %v1505 = vmul.f32 %v1263, 0.5
      %v1506 = vmul.f32 %v1422, 0.5
      %v1507 = vmul.f32 %v1424, 0.5
      %v1508 = vmul.f32 %v1267, 0.5
      %v1509 = vmul.f32 %v1269, 0.5
      %v1510 = vmul.f32 %v1428, 0.5
      %v1511 = vmul.f32 %v1430, 0.5
      %v1512 = vmul.f32 %v1273, 0.5
      %v1513 = vmul.f32 %v1275, 0.5
      %v1514 = vmul.f32 %v1434, 0.5
      %v1515 = vmul.f32 %v1436, 0.5
      %v1516 = vmul.f32 %v1279, 0.5
      %v1517 = vmul.f32 %v1281, 0.5
      %v1518 = vmul.f32 %v1440, 0.5
      %v1519 = vmul.f32 %v1442, 0.5
      %v1520 = vmul.f32 %v1285, 0.5
      %v1521 = vmul.f32 %v1287, 0.5
      %v1522 = vmul.f32 %v1446, 0.5
      %v1523 = vmul.f32 %v1448, 0.5
      %v1524 = vmul.f32 %v1291, 0.5
      %v1525 = vmul.f32 %v1293, 0.5
      %v1526 = vmul.f32 %v1452, 0.5
      %v1527 = vmul.f32 %v1454, 0.5
      %v1528 = vmul.f32 %v1297, 0.5
      %v1529 = vmul.f32 %v1299, 0.5
      %v1530 = vmul.f32 %v1458, 0.5
      %v1531 = vmul.f32 %v1460, 0.5
      %v1532 = vmul.f32 %v1303, 0.5
      %v1533 = vmul.f32 %v1305, 0.5
      %v1534 = vmul.f32 %v1464, 0.5
      %v1535 = vmul.f32 %v1466, 0.5
      %v1536 = vmul.f32 %v1309, 0.5
      %v1537 = vmul.f32 %v1311, 0.5
      %v1538 = vmul.f32 %v1470, 0.5
      %v1539 = vmul.f32 %v1472, 0.5
      %v1540 = vmul.f32 %v1315, 0.5
      %v1541 = vmul.f32 %v1317, 0.5
      %v1542 = vmul.f32 %v1476, 0.5
      %v1543 = vmul.f32 %v1478, 0.5
      %v1544 = vmul.f32 %v1225, 0.70710677
      %v1545 = vmul.f32 %v1227, 0.70710677
      %v1546 = vmul.f32 %v1386, 0.70710677
      %v1547 = vmul.f32 %v1388, 0.70710677
      %v1548 = vmul.f32 %v1231, 0.70710677
      %v1549 = vmul.f32 %v1233, 0.70710677
      %v1550 = vmul.f32 %v1392, 0.70710677
      %v1551 = vmul.f32 %v1394, 0.70710677
      %v1552 = vmul.f32 %v1237, 0.70710677
      %v1553 = vmul.f32 %v1239, 0.70710677
      %v1554 = vmul.f32 %v1398, 0.70710677
      %v1555 = vmul.f32 %v1400, 0.70710677
      %v1556 = vmul.f32 %v1243, 0.70710677
      %v1557 = vmul.f32 %v1245, 0.70710677
      %v1558 = vmul.f32 %v1404, 0.70710677
      %v1559 = vmul.f32 %v1406, 0.70710677
      %v1560 = vmul.f32 %v1249, 0.70710677
      %v1561 = vmul.f32 %v1251, 0.70710677
      %v1562 = vmul.f32 %v1410, 0.70710677
      %v1563 = vmul.f32 %v1412, 0.70710677
      %v1564 = vmul.f32 %v1255, 0.70710677
      %v1565 = vmul.f32 %v1257, 0.70710677
      %v1566 = vmul.f32 %v1416, 0.70710677
      %v1567 = vmul.f32 %v1418, 0.70710677
      %v1568 = vmul.f32 %v1261, 0.70710677
      %v1569 = vmul.f32 %v1263, 0.70710677
      %v1570 = vmul.f32 %v1422, 0.70710677
      %v1571 = vmul.f32 %v1424, 0.70710677
      %v1572 = vmul.f32 %v1267, 0.70710677
      %v1573 = vmul.f32 %v1269, 0.70710677
      %v1574 = vmul.f32 %v1428, 0.70710677
      %v1575 = vmul.f32 %v1430, 0.70710677
      %v1576 = vmul.f32 %v1273, 0.70710677
      %v1577 = vmul.f32 %v1275, 0.70710677
      %v1578 = vmul.f32 %v1434, 0.70710677
      %v1579 = vmul.f32 %v1436, 0.70710677
      %v1580 = vmul.f32 %v1279, 0.70710677
      %v1581 = vmul.f32 %v1281, 0.70710677
      %v1582 = vmul.f32 %v1440, 0.70710677
      %v1583 = vmul.f32 %v1442, 0.70710677
      %v1584 = vmul.f32 %v1285, 0.70710677
      %v1585 = vmul.f32 %v1287, 0.70710677
      %v1586 = vmul.f32 %v1446, 0.70710677
      %v1587 = vmul.f32 %v1448, 0.70710677
      %v1588 = vmul.f32 %v1291, 0.70710677
      %v1589 = vmul.f32 %v1293, 0.70710677
      %v1590 = vmul.f32 %v1452, 0.70710677
      %v1591 = vmul.f32 %v1454, 0.70710677
      %v1592 = vmul.f32 %v1297, 0.70710677
      %v1593 = vmul.f32 %v1299, 0.70710677
      %v1594 = vmul.f32 %v1458, 0.70710677
      %v1595 = vmul.f32 %v1460, 0.70710677
      %v1596 = vmul.f32 %v1303, 0.70710677
      %v1597 = vmul.f32 %v1305, 0.70710677
      %v1598 = vmul.f32 %v1464, 0.70710677
      %v1599 = vmul.f32 %v1466, 0.70710677
      %v1600 = vmul.f32 %v1309, 0.70710677
      %v1601 = vmul.f32 %v1311, 0.70710677
      %v1602 = vmul.f32 %v1470, 0.70710677
      %v1603 = vmul.f32 %v1472, 0.70710677
      %v1604 = vmul.f32 %v1315, 0.70710677
      %v1605 = vmul.f32 %v1317, 0.70710677
      %v1606 = vmul.f32 %v1476, 0.70710677
      %v1607 = vmul.f32 %v1478, 0.70710677
      %v1608 = verf.f32.pop %v1544
      %v1609 = verf.f32.pop %v1545
      %v1610 = verf.f32.pop %v1546
      %v1611 = verf.f32.pop %v1547
      %v1612 = verf.f32.pop %v1548
      %v1613 = verf.f32.pop %v1549
      %v1614 = verf.f32.pop %v1550
      %v1615 = verf.f32.pop %v1551
      %v1616 = verf.f32.pop %v1552
      %v1617 = verf.f32.pop %v1553
      %v1618 = verf.f32.pop %v1554
      %v1619 = verf.f32.pop %v1555
      %v1620 = verf.f32.pop %v1556
      %v1621 = verf.f32.pop %v1557
      %v1622 = verf.f32.pop %v1558
      %v1623 = verf.f32.pop %v1559
      %v1624 = verf.f32.pop %v1560
      %v1625 = verf.f32.pop %v1561
      %v1626 = verf.f32.pop %v1562
      %v1627 = verf.f32.pop %v1563
      %v1628 = verf.f32.pop %v1564
      %v1629 = verf.f32.pop %v1565
      %v1630 = verf.f32.pop %v1566
      %v1631 = verf.f32.pop %v1567
      %v1632 = verf.f32.pop %v1568
      %v1633 = verf.f32.pop %v1569
      %v1634 = verf.f32.pop %v1570
      %v1635 = verf.f32.pop %v1571
      %v1636 = verf.f32.pop %v1572
      %v1637 = verf.f32.pop %v1573
      %v1638 = verf.f32.pop %v1574
      %v1639 = verf.f32.pop %v1575
      %v1640 = verf.f32.pop %v1576
      %v1641 = verf.f32.pop %v1577
      %v1642 = verf.f32.pop %v1578
      %v1643 = verf.f32.pop %v1579
      %v1644 = verf.f32.pop %v1580
      %v1645 = verf.f32.pop %v1581
      %v1646 = verf.f32.pop %v1582
      %v1647 = verf.f32.pop %v1583
      %v1648 = verf.f32.pop %v1584
      %v1649 = verf.f32.pop %v1585
      %v1650 = verf.f32.pop %v1586
      %v1651 = verf.f32.pop %v1587
      %v1652 = verf.f32.pop %v1588
      %v1653 = verf.f32.pop %v1589
      %v1654 = verf.f32.pop %v1590
      %v1655 = verf.f32.pop %v1591
      %v1656 = verf.f32.pop %v1592
      %v1657 = verf.f32.pop %v1593
      %v1658 = verf.f32.pop %v1594
      %v1659 = verf.f32.pop %v1595
      %v1660 = verf.f32.pop %v1596
      %v1661 = verf.f32.pop %v1597
      %v1662 = verf.f32.pop %v1598
      %v1663 = verf.f32.pop %v1599
      %v1664 = verf.f32.pop %v1600
      %v1665 = verf.f32.pop %v1601
      %v1666 = verf.f32.pop %v1602
      %v1667 = verf.f32.pop %v1603
      %v1668 = verf.f32.pop %v1604
      %v1669 = verf.f32.pop %v1605
      %v1670 = verf.f32.pop %v1606
      %v1671 = verf.f32.pop %v1607
      %v1672 = vadd.f32 %v1608, 1.0
      %v1673 = vadd.f32 %v1609, 1.0
      %v1674 = vadd.f32 %v1610, 1.0
      %v1675 = vadd.f32 %v1611, 1.0
      %v1676 = vadd.f32 %v1612, 1.0
      %v1677 = vadd.f32 %v1613, 1.0
      %v1678 = vadd.f32 %v1614, 1.0
      %v1679 = vadd.f32 %v1615, 1.0
      %v1680 = vadd.f32 %v1616, 1.0
      %v1681 = vadd.f32 %v1617, 1.0
      %v1682 = vadd.f32 %v1618, 1.0
      %v1683 = vadd.f32 %v1619, 1.0
      %v1684 = vadd.f32 %v1620, 1.0
      %v1685 = vadd.f32 %v1621, 1.0
      %v1686 = vadd.f32 %v1622, 1.0
      %v1687 = vadd.f32 %v1623, 1.0
      %v1688 = vadd.f32 %v1624, 1.0
      %v1689 = vadd.f32 %v1625, 1.0
      %v1690 = vadd.f32 %v1626, 1.0
      %v1691 = vadd.f32 %v1627, 1.0
      %v1692 = vadd.f32 %v1628, 1.0
      %v1693 = vadd.f32 %v1629, 1.0
      %v1694 = vadd.f32 %v1630, 1.0
      %v1695 = vadd.f32 %v1631, 1.0
      %v1696 = vadd.f32 %v1632, 1.0
      %v1697 = vadd.f32 %v1633, 1.0
      %v1698 = vadd.f32 %v1634, 1.0
      %v1699 = vadd.f32 %v1635, 1.0
      %v1700 = vadd.f32 %v1636, 1.0
      %v1701 = vadd.f32 %v1637, 1.0
      %v1702 = vadd.f32 %v1638, 1.0
      %v1703 = vadd.f32 %v1639, 1.0
      %v1704 = vadd.f32 %v1640, 1.0
      %v1705 = vadd.f32 %v1641, 1.0
      %v1706 = vadd.f32 %v1642, 1.0
      %v1707 = vadd.f32 %v1643, 1.0
      %v1708 = vadd.f32 %v1644, 1.0
      %v1709 = vadd.f32 %v1645, 1.0
      %v1710 = vadd.f32 %v1646, 1.0
      %v1711 = vadd.f32 %v1647, 1.0
      %v1712 = vadd.f32 %v1648, 1.0
      %v1713 = vadd.f32 %v1649, 1.0
      %v1714 = vadd.f32 %v1650, 1.0
      %v1715 = vadd.f32 %v1651, 1.0
      %v1716 = vadd.f32 %v1652, 1.0
      %v1717 = vadd.f32 %v1653, 1.0
      %v1718 = vadd.f32 %v1654, 1.0
      %v1719 = vadd.f32 %v1655, 1.0
      %v1720 = vadd.f32 %v1656, 1.0
      %v1721 = vadd.f32 %v1657, 1.0
      %v1722 = vadd.f32 %v1658, 1.0
      %v1723 = vadd.f32 %v1659, 1.0
      %v1724 = vadd.f32 %v1660, 1.0
      %v1725 = vadd.f32 %v1661, 1.0
      %v1726 = vadd.f32 %v1662, 1.0
      %v1727 = vadd.f32 %v1663, 1.0
      %v1728 = vadd.f32 %v1664, 1.0
      %v1729 = vadd.f32 %v1665, 1.0
      %v1730 = vadd.f32 %v1666, 1.0
      %v1731 = vadd.f32 %v1667, 1.0
      %v1732 = vadd.f32 %v1668, 1.0
      %v1733 = vadd.f32 %v1669, 1.0
      %v1734 = vadd.f32 %v1670, 1.0
      %v1735 = vadd.f32 %v1671, 1.0
      %v1736 = vmul.f32 %v1480, %v1672
      %v1737 = vmul.f32 %v1481, %v1673
      %v1738 = vmul.f32 %v1482, %v1674
      %v1739 = vmul.f32 %v1483, %v1675
      %v1740 = vmul.f32 %v1484, %v1676
      %v1741 = vmul.f32 %v1485, %v1677
      %v1742 = vmul.f32 %v1486, %v1678
      %v1743 = vmul.f32 %v1487, %v1679
      %v1744 = vmul.f32 %v1488, %v1680
      %v1745 = vmul.f32 %v1489, %v1681
      %v1746 = vmul.f32 %v1490, %v1682
      %v1747 = vmul.f32 %v1491, %v1683
      %v1748 = vmul.f32 %v1492, %v1684
      %v1749 = vmul.f32 %v1493, %v1685
      %v1750 = vmul.f32 %v1494, %v1686
      %v1751 = vmul.f32 %v1495, %v1687
      %v1752 = vmul.f32 %v1496, %v1688
      %v1753 = vmul.f32 %v1497, %v1689
      %v1754 = vmul.f32 %v1498, %v1690
      %v1755 = vmul.f32 %v1499, %v1691
      %v1756 = vmul.f32 %v1500, %v1692
      %v1757 = vmul.f32 %v1501, %v1693
      %v1758 = vmul.f32 %v1502, %v1694
      %v1759 = vmul.f32 %v1503, %v1695
      %v1760 = vmul.f32 %v1504, %v1696
      %v1761 = vmul.f32 %v1505, %v1697
      %v1762 = vmul.f32 %v1506, %v1698
      %v1763 = vmul.f32 %v1507, %v1699
      %v1764 = vmul.f32 %v1508, %v1700
      %v1765 = vmul.f32 %v1509, %v1701
      %v1766 = vmul.f32 %v1510, %v1702
      %v1767 = vmul.f32 %v1511, %v1703
      %v1768 = vmul.f32 %v1512, %v1704
      %v1769 = vmul.f32 %v1513, %v1705
      %v1770 = vmul.f32 %v1514, %v1706
      %v1771 = vmul.f32 %v1515, %v1707
      %v1772 = vmul.f32 %v1516, %v1708
      %v1773 = vmul.f32 %v1517, %v1709
      %v1774 = vmul.f32 %v1518, %v1710
      %v1775 = vmul.f32 %v1519, %v1711
      %v1776 = vmul.f32 %v1520, %v1712
      %v1777 = vmul.f32 %v1521, %v1713
      %v1778 = vmul.f32 %v1522, %v1714
      %v1779 = vmul.f32 %v1523, %v1715
      %v1780 = vmul.f32 %v1524, %v1716
      %v1781 = vmul.f32 %v1525, %v1717
      %v1782 = vmul.f32 %v1526, %v1718
      %v1783 = vmul.f32 %v1527, %v1719
      %v1784 = vmul.f32 %v1528, %v1720
      %v1785 = vmul.f32 %v1529, %v1721
      %v1786 = vmul.f32 %v1530, %v1722
      %v1787 = vmul.f32 %v1531, %v1723
      %v1788 = vmul.f32 %v1532, %v1724
      %v1789 = vmul.f32 %v1533, %v1725
      %v1790 = vmul.f32 %v1534, %v1726
      %v1791 = vmul.f32 %v1535, %v1727
      %v1792 = vmul.f32 %v1536, %v1728
      %v1793 = vmul.f32 %v1537, %v1729
      %v1794 = vmul.f32 %v1538, %v1730
      %v1795 = vmul.f32 %v1539, %v1731
      %v1796 = vmul.f32 %v1540, %v1732
      %v1797 = vmul.f32 %v1541, %v1733
      %v1798 = vmul.f32 %v1542, %v1734
      %v1799 = vmul.f32 %v1543, %v1735
      %v1800 = vmul.f32 %v817, %v1736
      %v1801 = vmul.f32 %v819, %v1737
      %v1802 = vmul.f32 %v978, %v1738
      %v1803 = vmul.f32 %v980, %v1739
      %v1804 = vmul.f32 %v823, %v1740
      %v1805 = vmul.f32 %v825, %v1741
      %v1806 = vmul.f32 %v984, %v1742
      %v1807 = vmul.f32 %v986, %v1743
      %v1808 = vmul.f32 %v829, %v1744
      %v1809 = vmul.f32 %v831, %v1745
      %v1810 = vmul.f32 %v990, %v1746
      %v1811 = vmul.f32 %v992, %v1747
      %v1812 = vmul.f32 %v835, %v1748
      %v1813 = vmul.f32 %v837, %v1749
      %v1814 = vmul.f32 %v996, %v1750
      %v1815 = vmul.f32 %v998, %v1751
      %v1816 = vmul.f32 %v841, %v1752
      %v1817 = vmul.f32 %v843, %v1753
      %v1818 = vmul.f32 %v1002, %v1754
      %v1819 = vmul.f32 %v1004, %v1755
      %v1820 = vmul.f32 %v847, %v1756
      %v1821 = vmul.f32 %v849, %v1757
      %v1822 = vmul.f32 %v1008, %v1758
      %v1823 = vmul.f32 %v1010, %v1759
      %v1824 = vmul.f32 %v853, %v1760
      %v1825 = vmul.f32 %v855, %v1761
      %v1826 = vmul.f32 %v1014, %v1762
      %v1827 = vmul.f32 %v1016, %v1763
      %v1828 = vmul.f32 %v859, %v1764
      %v1829 = vmul.f32 %v861, %v1765
      %v1830 = vmul.f32 %v1020, %v1766
      %v1831 = vmul.f32 %v1022, %v1767
      %v1832 = vmul.f32 %v865, %v1768
      %v1833 = vmul.f32 %v867, %v1769
      %v1834 = vmul.f32 %v1026, %v1770
      %v1835 = vmul.f32 %v1028, %v1771
      %v1836 = vmul.f32 %v871, %v1772
      %v1837 = vmul.f32 %v873, %v1773
      %v1838 = vmul.f32 %v1032, %v1774
      %v1839 = vmul.f32 %v1034, %v1775
      %v1840 = vmul.f32 %v877, %v1776
      %v1841 = vmul.f32 %v879, %v1777
      %v1842 = vmul.f32 %v1038, %v1778
      %v1843 = vmul.f32 %v1040, %v1779
      %v1844 = vmul.f32 %v883, %v1780
      %v1845 = vmul.f32 %v885, %v1781
      %v1846 = vmul.f32 %v1044, %v1782
      %v1847 = vmul.f32 %v1046, %v1783
      %v1848 = vmul.f32 %v889, %v1784
      %v1849 = vmul.f32 %v891, %v1785
      %v1850 = vmul.f32 %v1050, %v1786
      %v1851 = vmul.f32 %v1052, %v1787
      %v1852 = vmul.f32 %v895, %v1788
      %v1853 = vmul.f32 %v897, %v1789
      %v1854 = vmul.f32 %v1056, %v1790
      %v1855 = vmul.f32 %v1058, %v1791
      %v1856 = vmul.f32 %v901, %v1792
      %v1857 = vmul.f32 %v903, %v1793
      %v1858 = vmul.f32 %v1062, %v1794
      %v1859 = vmul.f32 %v1064, %v1795
      %v1860 = vmul.f32 %v907, %v1796
      %v1861 = vmul.f32 %v909, %v1797
      %v1862 = vmul.f32 %v1068, %v1798
      %v1863 = vmul.f32 %v1070, %v1799
      %1864 = vst [vmem:[%s386] sm:$0xff] %v1800
      %1865 = vst [vmem:[%s386 + $0x8] sm:$0xff] %v1801
      %1866 = vst [vmem:[%s386 + $0x10] sm:$0xff] %v1802
      %1867 = vst [vmem:[%s386 + $0x18] sm:$0xff] %v1803
      %1868 = vst [vmem:[%s386 + $0x20] sm:$0xff] %v1804
      %1869 = vst [vmem:[%s386 + $0x28] sm:$0xff] %v1805
      %1870 = vst [vmem:[%s386 + $0x30] sm:$0xff] %v1806
      %1871 = vst [vmem:[%s386 + $0x38] sm:$0xff] %v1807
      %1872 = vst [vmem:[%s386 + $0x40] sm:$0xff] %v1808
      %1873 = vst [vmem:[%s386 + $0x48] sm:$0xff] %v1809
      %1874 = vst [vmem:[%s386 + $0x50] sm:$0xff] %v1810
      %1875 = vst [vmem:[%s386 + $0x58] sm:$0xff] %v1811
      %1876 = vst [vmem:[%s386 + $0x60] sm:$0xff] %v1812
      %1877 = vst [vmem:[%s386 + $0x68] sm:$0xff] %v1813
      %1878 = vst [vmem:[%s386 + $0x70] sm:$0xff] %v1814
      %1879 = vst [vmem:[%s386 + $0x78] sm:$0xff] %v1815
      %1880 = vst [vmem:[%s386 + $0x80] sm:$0xff] %v1816
      %1881 = vst [vmem:[%s386 + $0x88] sm:$0xff] %v1817
      %1882 = vst [vmem:[%s386 + $0x90] sm:$0xff] %v1818
      %1883 = vst [vmem:[%s386 + $0x98] sm:$0xff] %v1819
      %1884 = vst [vmem:[%s386 + $0xa0] sm:$0xff] %v1820
      %1885 = vst [vmem:[%s386 + $0xa8] sm:$0xff] %v1821
      %1886 = vst [vmem:[%s386 + $0xb0] sm:$0xff] %v1822
      %1887 = vst [vmem:[%s386 + $0xb8] sm:$0xff] %v1823
      %1888 = vst [vmem:[%s386 + $0xc0] sm:$0xff] %v1824
      %1889 = vst [vmem:[%s386 + $0xc8] sm:$0xff] %v1825
      %1890 = vst [vmem:[%s386 + $0xd0] sm:$0xff] %v1826
      %1891 = vst [vmem:[%s386 + $0xd8] sm:$0xff] %v1827
      %1892 = vst [vmem:[%s386 + $0xe0] sm:$0xff] %v1828
      %1893 = vst [vmem:[%s386 + $0xe8] sm:$0xff] %v1829
      %1894 = vst [vmem:[%s386 + $0xf0] sm:$0xff] %v1830
      %1895 = vst [vmem:[%s386 + $0xf8] sm:$0xff] %v1831
      %1896 = vst [vmem:[%s386 + $0x100] sm:$0xff] %v1832
      %1897 = vst [vmem:[%s386 + $0x108] sm:$0xff] %v1833
      %1898 = vst [vmem:[%s386 + $0x110] sm:$0xff] %v1834
      %1899 = vst [vmem:[%s386 + $0x118] sm:$0xff] %v1835
      %1900 = vst [vmem:[%s386 + $0x120] sm:$0xff] %v1836
      %1901 = vst [vmem:[%s386 + $0x128] sm:$0xff] %v1837
      %1902 = vst [vmem:[%s386 + $0x130] sm:$0xff] %v1838
      %1903 = vst [vmem:[%s386 + $0x138] sm:$0xff] %v1839
      %1904 = vst [vmem:[%s386 + $0x140] sm:$0xff] %v1840
      %1905 = vst [vmem:[%s386 + $0x148] sm:$0xff] %v1841
      %1906 = vst [vmem:[%s386 + $0x150] sm:$0xff] %v1842
      %1907 = vst [vmem:[%s386 + $0x158] sm:$0xff] %v1843
      %1908 = vst [vmem:[%s386 + $0x160] sm:$0xff] %v1844
      %1909 = vst [vmem:[%s386 + $0x168] sm:$0xff] %v1845
      %1910 = vst [vmem:[%s386 + $0x170] sm:$0xff] %v1846
      %1911 = vst [vmem:[%s386 + $0x178] sm:$0xff] %v1847
      %1912 = vst [vmem:[%s386 + $0x180] sm:$0xff] %v1848
      %1913 = vst [vmem:[%s386 + $0x188] sm:$0xff] %v1849
      %1914 = vst [vmem:[%s386 + $0x190] sm:$0xff] %v1850
      %1915 = vst [vmem:[%s386 + $0x198] sm:$0xff] %v1851
      %1916 = vst [vmem:[%s386 + $0x1a0] sm:$0xff] %v1852
      %1917 = vst [vmem:[%s386 + $0x1a8] sm:$0xff] %v1853
      %1918 = vst [vmem:[%s386 + $0x1b0] sm:$0xff] %v1854
      %1919 = vst [vmem:[%s386 + $0x1b8] sm:$0xff] %v1855
      %1920 = vst [vmem:[%s386 + $0x1c0] sm:$0xff] %v1856
      %1921 = vst [vmem:[%s386 + $0x1c8] sm:$0xff] %v1857
      %1922 = vst [vmem:[%s386 + $0x1d0] sm:$0xff] %v1858
      %1923 = vst [vmem:[%s386 + $0x1d8] sm:$0xff] %v1859
      %1924 = vst [vmem:[%s386 + $0x1e0] sm:$0xff] %v1860
      %1925 = vst [vmem:[%s386 + $0x1e8] sm:$0xff] %v1861
      %1926 = vst [vmem:[%s386 + $0x1f0] sm:$0xff] %v1862
      %1927 = vst [vmem:[%s386 + $0x1f8] sm:$0xff] %v1863
      %s1928 = smul.u32 16, %s22
      %s1929 = smul.u32 4, %s23
      %p1930 = scmp.lt.s32.totalorder %s1928, 63
      %s1931 = scalar_select %p1930, %s1928, 63
      %p1932 = scmp.lt.s32.totalorder %s1929, 3
      %s1933 = scalar_select %p1932, %s1929, 3
      %s1934 = smul.addr %s1931, 4
      %s1935 = sadd.s32 %s1933, %s1934
      %s1936 = smul.addr %s1935, 8
      %s1937 = scalar_lea.vmem %s7, %s1936
      // Predicated region
      $region53: #{basic_transformer_block_forward.8} parent=47 // pred_check
        %p1938 = pneg %p222
      $region54: #{basic_transformer_block_forward.8} parent=47 // pred_check_branch
        %1940 = sbr.rel (%p1938) target = $region56
      $region55: #{basic_transformer_block_forward.8} parent=47 // pred_region
        %s1941 = smul.u32 16, %s22
        %s1942 = smul.u32 4, %s23
      $region56: #{basic_transformer_block_forward.8} parent=47 // pred_fallthru
        _
    $region48: #{basic_transformer_block_forward.8} parent=5 // pred_fallthru
      _
    %p1943 = scmp.le.s32.totalorder 2, %s13
    // Predicated region
    $region57: #{basic_transformer_block_forward.8} parent=5 // pred_check
      %p1944 = pneg %p1943
    $region58: #{basic_transformer_block_forward.8} parent=5 // pred_check_branch
      %1946 = sbr.rel (%p1944) target = $region60
    $region59: #{basic_transformer_block_forward.8} parent=5 // pred_region
      %s1947 = ssub.s32 %s13, 2
      // Predicated region
      $region61: #{basic_transformer_block_forward.8} parent=59 // pred_check
        %p1948 = pneg %p228
      $region62: #{basic_transformer_block_forward.8} parent=59 // pred_check_branch
        %1950 = sbr.rel (%p1948) target = $region64
      $region63: #{basic_transformer_block_forward.8} parent=59 // pred_region
        %s1951 = smul.u32 16, %s24
        %s1952 = smul.u32 4, %s25
        %p1953 = scmp.lt.s32.totalorder %s1951, 63
        %s1954 = scalar_select %p1953, %s1951, 63
        %p1955 = scmp.lt.s32.totalorder %s1952, 3
        %s1956 = scalar_select %p1955, %s1952, 3
        %s1957 = smul.addr %s1954, 4
        %s1958 = sadd.s32 %s1956, %s1957
        %s1959 = smul.addr %s1958, 8
        %s1960 = scalar_lea.vmem %s7, %s1959
      $region64: #{basic_transformer_block_forward.8} parent=59 // pred_fallthru
        _
    $region60: #{basic_transformer_block_forward.8} parent=5 // pred_fallthru
      _
  $region6: #{basic_transformer_block_forward.8} parent=0 // loop_footer
    %s17 = sadd.s32 1, %s13
  $region7: #{basic_transformer_block_forward.8} parent=0 // loop_footer_branch
    %12 = sbr.rel target = $region3
  $region8: #{basic_transformer_block_forward.8} parent=0 // loop_exit
    _

// kernel: basic_transformer_block_forward.9
$region0: #{basic_transformer_block_forward.9}
  #allocation0 [shape = 'u32[]', space=smem, size = 0x4, offset = 0x4, fixed_abs, tag = 'smem constant byte address 0x4 - core index']
  #allocation1 [shape = 'u32[144,128]{1,0:T(1,128)}', space=vmem, size = 0x12000, scoped, tag = 'internal scratch']
  #allocation2 [shape = 'f32[128,128]{1,0:T(8,128)}', space=vmem, size = 0x10000, scoped, tag = 'scratch operand']
  %s0 = inlined_call_operand.vmem [shape: f32[512,512], index: 0, kind: input, shape index: {}]
  %s1 = inlined_call_operand.vmem [shape: f32[512,128], index: 1, kind: input, shape index: {}]
  %s2 = inlined_call_operand.vmem [shape: f32[1,128], index: 2, kind: input, shape index: {}]
  %s3 = inlined_call_operand.vmem [shape: f32[512,128], index: 3, kind: input, shape index: {}]
  %s4 = inlined_call_operand.hbm [shape: f32[512,128], index: 4, kind: output, shape index: {}]
  %s5 = sld [smem:[#allocation0]]
  $region80: #{basic_transformer_block_forward.9} parent=0
    _
  %s7 = ssub.s32 1, %s5
  %s8 = scalar_select 0, %s7, %s5
  $region1: #{basic_transformer_block_forward.9} parent=0
    #allocation3 [shape = 'u8[262144]{0}', space=vmem, size = 0x40000, scoped, tag = 'input window, operand 0']
    #allocation4 [shape = 'u8[131072]{0}', space=vmem, size = 0x20000, scoped, tag = 'output window, operand 0']
    #allocation5 [shape = 's32[2]{0}', space=sflag, size = 0x8, scoped, tag = 'scoped memory for basic_transformer_block_forward.9']
    %9 = vsyncpa [#allocation5], 0
    %s10 = scalar_lea.sflag [#allocation5], 1
    %11 = vsyncpa %s10, 0
    loop: start=0, step=1, limit=10
    $region2: #{basic_transformer_block_forward.9} parent=1 // loop_pre_header
      _
    $region3: #{basic_transformer_block_forward.9} parent=1 // loop_header
      %s13 = sphi 0, %s17
      %p14 = scmp.ge.s32.totalorder %s13, 10
      %s20 = sphi 0, %s39
      %s21 = sphi 0, %s35
      %s22 = sphi 0, %s31
      %s23 = sphi 0, %s20
      %s24 = sphi 0, %s21
      %s25 = sphi 0, %s22
      %s26 = sphi 0, %s23
      %s27 = sphi 0, %s24
      %s28 = sphi 0, %s25
      %s44 = sphi 0, %s46
      %s47 = sphi 0, %s44
      %s48 = sphi 0, %s47
      %s64 = sphi 0, %s48
      %s72 = sphi 0, %s74
      %s75 = sphi 0, %s72
      %s76 = sphi 0, %s75
      %s92 = sphi 0, %s76
      %s98 = sphi 0, %s100
      %s101 = sphi 0, %s98
      %s102 = sphi 0, %s101
      %s118 = sphi 0, %s102
      %s126 = sphi 0, %s128
      %s129 = sphi 0, %s126
      %s130 = sphi 0, %s129
      %s146 = sphi 0, %s130
      %s154 = sphi 0, %s156
      %s157 = sphi 0, %s154
      %s158 = sphi 0, %s157
      %s174 = sphi 0, %s158
    $region4: #{basic_transformer_block_forward.9} parent=1 // loop_header_branch
      %16 = sbr.rel (%p14) target = $region8
    $region5: #{basic_transformer_block_forward.9} parent=1 // loop_body
      %s18 = ssub.s32 %s13, 1
      %s19 = ssub.s32 %s13, 2
      %s29 = sadd.s32 1, %s22
      %p30 = scmp.ge.s32.totalorder %s29, 2
      %s31 = scalar_select %p30, 0, %s29
      %s32 = sadd.s32 1, %s21
      %s33 = scalar_select %p30, %s32, %s21
      %p34 = scmp.ge.s32.totalorder %s33, 1
      %s35 = scalar_select %p34, 0, %s33
      %s36 = sadd.s32 1, %s20
      %s37 = scalar_select %p34, %s36, %s20
      %p38 = scmp.ge.s32.totalorder %s37, 4
      %s39 = scalar_select %p38, 0, %s37
      %s40 = ssub.s32 %s20, %s39
      %s41 = ssub.s32 %s22, %s31
      %s42 = sor.u32 %s40, %s41
      %p43 = scmp.eq.s32.totalorder %s42, 0
      %s45 = sadd.s32 %s44, 1
      %s46 = scalar_select %p43, %s44, %s45
      %p49 = pneg %p43
      %p50 = scmp.eq.s32.totalorder %s13, 7
      %p51 = por %p49, %p50
      %p52 = scmp.ne.s32.totalorder %s44, %s47
      %p53 = scmp.eq.s32.totalorder %s13, 0
      %p54 = por %p52, %p53
      %p55 = scmp.ne.s32.totalorder %s44, %s47
      %p56 = scmp.eq.s32.totalorder %s18, 7
      %p57 = por %p55, %p56
      %p58 = scmp.ne.s32.totalorder %s47, %s48
      %p59 = scmp.eq.s32.totalorder %s18, 0
      %p60 = por %p58, %p59
      %p61 = scmp.ne.s32.totalorder %s47, %s48
      %p62 = scmp.eq.s32.totalorder %s19, 7
      %p63 = por %p61, %p62
      %p65 = scmp.ne.s32.totalorder %s48, %s64
      %p66 = scmp.eq.s32.totalorder %s19, 0
      %p67 = por %p65, %p66
      %s68 = ssub.s32 %s22, %s31
      %s69 = ssub.s32 %s21, %s35
      %s70 = sor.u32 %s68, %s69
      %p71 = scmp.eq.s32.totalorder %s70, 0
      %s73 = sadd.s32 %s72, 1
      %s74 = scalar_select %p71, %s72, %s73
      %p77 = pneg %p71
      %p78 = scmp.eq.s32.totalorder %s13, 7
      %p79 = por %p77, %p78
      %p80 = scmp.ne.s32.totalorder %s72, %s75
      %p81 = scmp.eq.s32.totalorder %s13, 0
      %p82 = por %p80, %p81
      %p83 = scmp.ne.s32.totalorder %s72, %s75
      %p84 = scmp.eq.s32.totalorder %s18, 7
      %p85 = por %p83, %p84
      %p86 = scmp.ne.s32.totalorder %s75, %s76
      %p87 = scmp.eq.s32.totalorder %s18, 0
      %p88 = por %p86, %p87
      %p89 = scmp.ne.s32.totalorder %s75, %s76
      %p90 = scmp.eq.s32.totalorder %s19, 7
      %p91 = por %p89, %p90
      %p93 = scmp.ne.s32.totalorder %s76, %s92
      %p94 = scmp.eq.s32.totalorder %s19, 0
      %p95 = por %p93, %p94
      %s96 = ssub.s32 %s21, %s35
      %p97 = scmp.eq.s32.totalorder %s96, 0
      %s99 = sadd.s32 %s98, 1
      %s100 = scalar_select %p97, %s98, %s99
      %p103 = pneg %p97
      %p104 = scmp.eq.s32.totalorder %s13, 7
      %p105 = por %p103, %p104
      %p106 = scmp.ne.s32.totalorder %s98, %s101
      %p107 = scmp.eq.s32.totalorder %s13, 0
      %p108 = por %p106, %p107
      %p109 = scmp.ne.s32.totalorder %s98, %s101
      %p110 = scmp.eq.s32.totalorder %s18, 7
      %p111 = por %p109, %p110
      %p112 = scmp.ne.s32.totalorder %s101, %s102
      %p113 = scmp.eq.s32.totalorder %s18, 0
      %p114 = por %p112, %p113
      %p115 = scmp.ne.s32.totalorder %s101, %s102
      %p116 = scmp.eq.s32.totalorder %s19, 7
      %p117 = por %p115, %p116
      %p119 = scmp.ne.s32.totalorder %s102, %s118
      %p120 = scmp.eq.s32.totalorder %s19, 0
      %p121 = por %p119, %p120
      %s122 = ssub.s32 %s20, %s39
      %s123 = ssub.s32 %s21, %s35
      %s124 = sor.u32 %s122, %s123
      %p125 = scmp.eq.s32.totalorder %s124, 0
      %s127 = sadd.s32 %s126, 1
      %s128 = scalar_select %p125, %s126, %s127
      %p131 = pneg %p125
      %p132 = scmp.eq.s32.totalorder %s13, 7
      %p133 = por %p131, %p132
      %p134 = scmp.ne.s32.totalorder %s126, %s129
      %p135 = scmp.eq.s32.totalorder %s13, 0
      %p136 = por %p134, %p135
      %p137 = scmp.ne.s32.totalorder %s126, %s129
      %p138 = scmp.eq.s32.totalorder %s18, 7
      %p139 = por %p137, %p138
      %p140 = scmp.ne.s32.totalorder %s129, %s130
      %p141 = scmp.eq.s32.totalorder %s18, 0
      %p142 = por %p140, %p141
      %p143 = scmp.ne.s32.totalorder %s129, %s130
      %p144 = scmp.eq.s32.totalorder %s19, 7
      %p145 = por %p143, %p144
      %p147 = scmp.ne.s32.totalorder %s130, %s146
      %p148 = scmp.eq.s32.totalorder %s19, 0
      %p149 = por %p147, %p148
      %s150 = ssub.s32 %s20, %s39
      %s151 = ssub.s32 %s21, %s35
      %s152 = sor.u32 %s150, %s151
      %p153 = scmp.eq.s32.totalorder %s152, 0
      %s155 = sadd.s32 %s154, 1
      %s156 = scalar_select %p153, %s154, %s155
      %p159 = pneg %p153
      %p160 = scmp.eq.s32.totalorder %s13, 7
      %p161 = por %p159, %p160
      %p162 = scmp.ne.s32.totalorder %s154, %s157
      %p163 = scmp.eq.s32.totalorder %s13, 0
      %p164 = por %p162, %p163
      %p165 = scmp.ne.s32.totalorder %s154, %s157
      %p166 = scmp.eq.s32.totalorder %s18, 7
      %p167 = por %p165, %p166
      %p168 = scmp.ne.s32.totalorder %s157, %s158
      %p169 = scmp.eq.s32.totalorder %s18, 0
      %p170 = por %p168, %p169
      %p171 = scmp.ne.s32.totalorder %s157, %s158
      %p172 = scmp.eq.s32.totalorder %s19, 7
      %p173 = por %p171, %p172
      %p175 = scmp.ne.s32.totalorder %s158, %s174
      %p176 = scmp.eq.s32.totalorder %s19, 0
      %p177 = por %p175, %p176
      %p178 = scmp.le.s32.totalorder 1, %s13
      %p179 = scmp.lt.s32.totalorder %s13, 9
      %p180 = pnand %p178, %p179
      %p181 = pneg %p180
      // Predicated region
      $region9: #{basic_transformer_block_forward.9} parent=5 // pred_check
        _
      $region10: #{basic_transformer_block_forward.9} parent=5 // pred_check_branch
        %183 = sbr.rel (%p180) target = $region12
      $region11: #{basic_transformer_block_forward.9} parent=5 // pred_region
        %s184 = ssub.s32 %s13, 1
        // Predicated region
        $region13: #{basic_transformer_block_forward.9} parent=11 // pred_check
          %p185 = pneg %p114
        $region14: #{basic_transformer_block_forward.9} parent=11 // pred_check_branch
          %187 = sbr.rel (%p185) target = $region16
        $region15: #{basic_transformer_block_forward.9} parent=11 // pred_region
          %p188 = scmp.lt.s32.totalorder %s24, 0
          %s189 = scalar_select %p188, %s24, 0
          %s190 = scalar_lea.vmem %s2, %s189
        $region16: #{basic_transformer_block_forward.9} parent=11 // pred_fallthru
          _
      $region12: #{basic_transformer_block_forward.9} parent=5 // pred_fallthru
        _
      %p191 = scmp.lt.s32.totalorder %s13, 8
      // Predicated region
      $region17: #{basic_transformer_block_forward.9} parent=5 // pred_check
        %p192 = pneg %p191
      $region18: #{basic_transformer_block_forward.9} parent=5 // pred_check_branch
        %194 = sbr.rel (%p192) target = $region20
      $region19: #{basic_transformer_block_forward.9} parent=5 // pred_region
        // Predicated region
        $region21: #{basic_transformer_block_forward.9} parent=19 // pred_check
          %p195 = pneg %p54
        $region22: #{basic_transformer_block_forward.9} parent=19 // pred_check_branch
          %197 = sbr.rel (%p195) target = $region24
        $region23: #{basic_transformer_block_forward.9} parent=19 // pred_region
          %s198 = sand.u32 %s44, 1
          %s199 = sand.u32 %s44, 1
          %s200 = smul.addr %s199, 256
          %s201 = scalar_lea.vmem [#allocation3], %s200
          %s202 = smul.u32 16, %s20
          %s203 = smul.u32 2, %s22
          %s204 = smul.addr %s202, 4
          %s205 = sadd.s32 %s203, %s204
          %s206 = smul.addr %s205, 8
          %s207 = scalar_lea.vmem %s0, %s206
          // Predicated region
          $region25: #{basic_transformer_block_forward.9} parent=23 // pred_check
            _
          $region26: #{basic_transformer_block_forward.9} parent=23 // pred_check_branch
            %209 = sbr.rel (0) target = $region28
          $region27: #{basic_transformer_block_forward.9} parent=23 // pred_region
            // Predicated region
            $region29: #{basic_transformer_block_forward.9} parent=27 // pred_check
              _
            $region30: #{basic_transformer_block_forward.9} parent=27 // pred_check_branch
              %211 = sbr.rel (0) target = $region32
            $region31: #{basic_transformer_block_forward.9} parent=27 // pred_region
              loop: start=0, step=1, limit=1
              $region33: #{basic_transformer_block_forward.9} parent=31 // loop_pre_header
                _
              $region34: #{basic_transformer_block_forward.9} parent=31 // loop_header
                %s213 = sphi 0, %s217
                %p214 = scmp.ge.s32.totalorder %s213, 1
                %s218 = sphi %s207, %s207
                %s219 = sphi %s201, %s201
              $region35: #{basic_transformer_block_forward.9} parent=31 // loop_header_branch
                %216 = sbr.rel (%p214) target = $region39
              $region36: #{basic_transformer_block_forward.9} parent=31 // loop_body
                %v220 = vld [vmem:[%s218] sm:$0xff]
                %221 = vst [vmem:[%s219] sm:$0xff] %v220
                %v222 = vld [vmem:[%s218 + $0x8] sm:$0xff]
                %223 = vst [vmem:[%s219 + $0x8] sm:$0xff] %v222
                %v224 = vld [vmem:[%s218 + $0x20] sm:$0xff]
                %225 = vst [vmem:[%s219 + $0x10] sm:$0xff] %v224
                %v226 = vld [vmem:[%s218 + $0x28] sm:$0xff]
                %227 = vst [vmem:[%s219 + $0x18] sm:$0xff] %v226
                %v228 = vld [vmem:[%s218 + $0x40] sm:$0xff]
                %229 = vst [vmem:[%s219 + $0x20] sm:$0xff] %v228
                %v230 = vld [vmem:[%s218 + $0x48] sm:$0xff]
                %231 = vst [vmem:[%s219 + $0x28] sm:$0xff] %v230
                %v232 = vld [vmem:[%s218 + $0x60] sm:$0xff]
                %233 = vst [vmem:[%s219 + $0x30] sm:$0xff] %v232
                %v234 = vld [vmem:[%s218 + $0x68] sm:$0xff]
                %235 = vst [vmem:[%s219 + $0x38] sm:$0xff] %v234
                %v236 = vld [vmem:[%s218 + $0x80] sm:$0xff]
                %237 = vst [vmem:[%s219 + $0x40] sm:$0xff] %v236
                %v238 = vld [vmem:[%s218 + $0x88] sm:$0xff]
                %239 = vst [vmem:[%s219 + $0x48] sm:$0xff] %v238
                %v240 = vld [vmem:[%s218 + $0xa0] sm:$0xff]
                %241 = vst [vmem:[%s219 + $0x50] sm:$0xff] %v240
                %v242 = vld [vmem:[%s218 + $0xa8] sm:$0xff]
                %243 = vst [vmem:[%s219 + $0x58] sm:$0xff] %v242
                %v244 = vld [vmem:[%s218 + $0xc0] sm:$0xff]
                %245 = vst [vmem:[%s219 + $0x60] sm:$0xff] %v244
                %v246 = vld [vmem:[%s218 + $0xc8] sm:$0xff]
                %247 = vst [vmem:[%s219 + $0x68] sm:$0xff] %v246
                %v248 = vld [vmem:[%s218 + $0xe0] sm:$0xff]
                %249 = vst [vmem:[%s219 + $0x70] sm:$0xff] %v248
                %v250 = vld [vmem:[%s218 + $0xe8] sm:$0xff]
                %251 = vst [vmem:[%s219 + $0x78] sm:$0xff] %v250
                %v252 = vld [vmem:[%s218 + $0x100] sm:$0xff]
                %253 = vst [vmem:[%s219 + $0x80] sm:$0xff] %v252
                %v254 = vld [vmem:[%s218 + $0x108] sm:$0xff]
                %255 = vst [vmem:[%s219 + $0x88] sm:$0xff] %v254
                %v256 = vld [vmem:[%s218 + $0x120] sm:$0xff]
                %257 = vst [vmem:[%s219 + $0x90] sm:$0xff] %v256
                %v258 = vld [vmem:[%s218 + $0x128] sm:$0xff]
                %259 = vst [vmem:[%s219 + $0x98] sm:$0xff] %v258
                %v260 = vld [vmem:[%s218 + $0x140] sm:$0xff]
                %261 = vst [vmem:[%s219 + $0xa0] sm:$0xff] %v260
                %v262 = vld [vmem:[%s218 + $0x148] sm:$0xff]
                %263 = vst [vmem:[%s219 + $0xa8] sm:$0xff] %v262
                %v264 = vld [vmem:[%s218 + $0x160] sm:$0xff]
                %265 = vst [vmem:[%s219 + $0xb0] sm:$0xff] %v264
                %v266 = vld [vmem:[%s218 + $0x168] sm:$0xff]
                %267 = vst [vmem:[%s219 + $0xb8] sm:$0xff] %v266
                %v268 = vld [vmem:[%s218 + $0x180] sm:$0xff]
                %269 = vst [vmem:[%s219 + $0xc0] sm:$0xff] %v268
                %v270 = vld [vmem:[%s218 + $0x188] sm:$0xff]
                %271 = vst [vmem:[%s219 + $0xc8] sm:$0xff] %v270
                %v272 = vld [vmem:[%s218 + $0x1a0] sm:$0xff]
                %273 = vst [vmem:[%s219 + $0xd0] sm:$0xff] %v272
                %v274 = vld [vmem:[%s218 + $0x1a8] sm:$0xff]
                %275 = vst [vmem:[%s219 + $0xd8] sm:$0xff] %v274
                %v276 = vld [vmem:[%s218 + $0x1c0] sm:$0xff]
                %277 = vst [vmem:[%s219 + $0xe0] sm:$0xff] %v276
                %v278 = vld [vmem:[%s218 + $0x1c8] sm:$0xff]
                %279 = vst [vmem:[%s219 + $0xe8] sm:$0xff] %v278
                %v280 = vld [vmem:[%s218 + $0x1e0] sm:$0xff]
                %281 = vst [vmem:[%s219 + $0xf0] sm:$0xff] %v280
                %v282 = vld [vmem:[%s218 + $0x1e8] sm:$0xff]
                %283 = vst [vmem:[%s219 + $0xf8] sm:$0xff] %v282
              $region37: #{basic_transformer_block_forward.9} parent=31 // loop_footer
                %s217 = sadd.s32 1, %s213
              $region38: #{basic_transformer_block_forward.9} parent=31 // loop_footer_branch
                %212 = sbr.rel target = $region34
              $region39: #{basic_transformer_block_forward.9} parent=31 // loop_exit
                _
            $region32: #{basic_transformer_block_forward.9} parent=27 // pred_fallthru
              _
            // Predicated region
            $region40: #{basic_transformer_block_forward.9} parent=27 // pred_check
              _
            $region41: #{basic_transformer_block_forward.9} parent=27 // pred_check_branch
              %285 = sbr.rel target = $region43
            $region42: #{basic_transformer_block_forward.9} parent=27 // pred_region
              _
            $region43: #{basic_transformer_block_forward.9} parent=27 // pred_fallthru
              _
          $region28: #{basic_transformer_block_forward.9} parent=23 // pred_fallthru
            _
          %286 = vnop
        $region24: #{basic_transformer_block_forward.9} parent=19 // pred_fallthru
          _
        // Predicated region
        $region44: #{basic_transformer_block_forward.9} parent=19 // pred_check
          %p287 = pneg %p82
        $region45: #{basic_transformer_block_forward.9} parent=19 // pred_check_branch
          %289 = sbr.rel (%p287) target = $region47
        $region46: #{basic_transformer_block_forward.9} parent=19 // pred_region
          %s290 = smul.u32 32, %s22
          %p291 = scmp.lt.s32.totalorder %s290, 63
          %s292 = scalar_select %p291, %s290, 63
          %p293 = scmp.lt.s32.totalorder %s21, 0
          %s294 = scalar_select %p293, %s21, 0
          %s295 = sadd.s32 %s294, %s292
          %s296 = smul.addr %s295, 8
          %s297 = scalar_lea.vmem %s1, %s296
          %s298 = smul.u32 32, %s22
        $region47: #{basic_transformer_block_forward.9} parent=19 // pred_fallthru
          _
        // Predicated region
        $region48: #{basic_transformer_block_forward.9} parent=19 // pred_check
          %p299 = pneg %p136
        $region49: #{basic_transformer_block_forward.9} parent=19 // pred_check_branch
          %301 = sbr.rel (%p299) target = $region51
        $region50: #{basic_transformer_block_forward.9} parent=19 // pred_region
          %s302 = smul.u32 16, %s20
          %p303 = scmp.lt.s32.totalorder %s302, 63
          %s304 = scalar_select %p303, %s302, 63
          %p305 = scmp.lt.s32.totalorder %s21, 0
          %s306 = scalar_select %p305, %s21, 0
          %s307 = sadd.s32 %s306, %s304
          %s308 = smul.addr %s307, 8
          %s309 = scalar_lea.vmem %s3, %s308
          %s310 = smul.u32 16, %s20
        $region51: #{basic_transformer_block_forward.9} parent=19 // pred_fallthru
          _
      $region20: #{basic_transformer_block_forward.9} parent=5 // pred_fallthru
        _
      %p311 = scmp.le.s32.totalorder 1, %s13
      %p312 = scmp.lt.s32.totalorder %s13, 9
      %p313 = pnand %p311, %p312
      %p314 = pneg %p313
      // Predicated region
      $region52: #{basic_transformer_block_forward.9} parent=5 // pred_check
        _
      $region53: #{basic_transformer_block_forward.9} parent=5 // pred_check_branch
        %316 = sbr.rel (%p313) target = $region55
      $region54: #{basic_transformer_block_forward.9} parent=5 // pred_region
        %s317 = ssub.s32 %s13, 1
        %s318 = sand.u32 %s47, 1
        %s319 = sand.u32 %s47, 1
        %s320 = smul.addr %s319, 256
        %s321 = scalar_lea.vmem [#allocation3], %s320
        // Predicated region
        $region56: #{basic_transformer_block_forward.9} parent=54 // pred_check
          %p322 = pneg %p60
        $region57: #{basic_transformer_block_forward.9} parent=54 // pred_check_branch
          %324 = sbr.rel (%p322) target = $region59
        $region58: #{basic_transformer_block_forward.9} parent=54 // pred_region
          _
        $region59: #{basic_transformer_block_forward.9} parent=54 // pred_fallthru
          _
        %s325 = sand.u32 %s47, 1
        %s326 = sand.u32 %s47, 1
        %s327 = smul.addr %s326, 256
        %s328 = scalar_lea.vmem [#allocation3], %s327
        %p329 = pneg %p60
        %p330 = pneg %p57
        %s331 = smul.u32 32, %s25
        %p332 = scmp.lt.s32.totalorder %s331, 63
        %s333 = scalar_select %p332, %s331, 63
        %p334 = scmp.lt.s32.totalorder %s24, 0
        %s335 = scalar_select %p334, %s24, 0
        %s336 = sadd.s32 %s335, %s333
        %s337 = smul.addr %s336, 8
        %s338 = scalar_lea.vmem %s1, %s337
        %p339 = pneg %p88
        %p340 = pneg %p85
        %p341 = scmp.lt.s32.totalorder %s24, 0
        %s342 = scalar_select %p341, %s24, 0
        %s343 = scalar_lea.vmem %s2, %s342
        %p344 = pneg %p114
        %p345 = pneg %p111
        %s346 = smul.u32 16, %s23
        %p347 = scmp.lt.s32.totalorder %s346, 63
        %s348 = scalar_select %p347, %s346, 63
        %p349 = scmp.lt.s32.totalorder %s24, 0
        %s350 = scalar_select %p349, %s24, 0
        %s351 = sadd.s32 %s350, %s348
        %s352 = smul.addr %s351, 8
        %s353 = scalar_lea.vmem %s3, %s352
        %p354 = pneg %p142
        %p355 = pneg %p139
        %p356 = pneg %p170
        %p357 = pneg %p167
        %s358 = sand.u32 %s157, 1
        %s359 = scalar_lea.sflag [#allocation5], %s358
        %s360 = sand.u32 %s157, 1
        %s361 = smul.addr %s360, 128
        %s362 = scalar_lea.vmem [#allocation4], %s361
        %s363 = smul.u32 16, %s23
        %s364 = smul.u32 2, %s25
        %s365 = smul.u32 32, %s25
        %p366 = scmp.lt.s32.totalorder %s365, 63
        %s367 = scalar_select %p366, %s365, 63
        %p368 = scmp.lt.s32.totalorder %s24, 0
        %s369 = scalar_select %p368, %s24, 0
        %s370 = sadd.s32 %s369, %s367
        %s371 = smul.addr %s370, 8
        %s372 = scalar_lea.vmem %s1, %s371
        %s373 = smul.u32 32, %s25
        %p374 = scmp.lt.s32.totalorder %s24, 0
        %s375 = scalar_select %p374, %s24, 0
        %s376 = scalar_lea.vmem %s2, %s375
        %s377 = smul.u32 16, %s23
        %p378 = scmp.lt.s32.totalorder %s377, 63
        %s379 = scalar_select %p378, %s377, 63
        %p380 = scmp.lt.s32.totalorder %s24, 0
        %s381 = scalar_select %p380, %s24, 0
        %s382 = sadd.s32 %s381, %s379
        %s383 = smul.addr %s382, 8
        %s384 = scalar_lea.vmem %s3, %s383
        %s385 = smul.u32 16, %s23
        %s386 = smul.u32 16, %s23
        %p387 = scmp.eq.s32.totalorder %s25, 0
        // Predicated region
        $region60: #{basic_transformer_block_forward.9} parent=54 // pred_check
          %p388 = pneg %p387
        $region61: #{basic_transformer_block_forward.9} parent=54 // pred_check_branch
          %390 = sbr.rel (%p388) target = $region63
        $region62: #{basic_transformer_block_forward.9} parent=54 // pred_region
          %391 = vst [vmem:[#allocation2] sm:$0xff] 0.0
          %392 = vst [vmem:[#allocation2 + $0x8] sm:$0xff] 0.0
          %393 = vst [vmem:[#allocation2 + $0x10] sm:$0xff] 0.0
          %394 = vst [vmem:[#allocation2 + $0x18] sm:$0xff] 0.0
          %395 = vst [vmem:[#allocation2 + $0x20] sm:$0xff] 0.0
          %396 = vst [vmem:[#allocation2 + $0x28] sm:$0xff] 0.0
          %397 = vst [vmem:[#allocation2 + $0x30] sm:$0xff] 0.0
          %398 = vst [vmem:[#allocation2 + $0x38] sm:$0xff] 0.0
          %399 = vst [vmem:[#allocation2 + $0x40] sm:$0xff] 0.0
          %400 = vst [vmem:[#allocation2 + $0x48] sm:$0xff] 0.0
          %401 = vst [vmem:[#allocation2 + $0x50] sm:$0xff] 0.0
          %402 = vst [vmem:[#allocation2 + $0x58] sm:$0xff] 0.0
          %403 = vst [vmem:[#allocation2 + $0x60] sm:$0xff] 0.0
          %404 = vst [vmem:[#allocation2 + $0x68] sm:$0xff] 0.0
          %405 = vst [vmem:[#allocation2 + $0x70] sm:$0xff] 0.0
          %406 = vst [vmem:[#allocation2 + $0x78] sm:$0xff] 0.0
        $region63: #{basic_transformer_block_forward.9} parent=54 // pred_fallthru
          _
        %v407 = vld [vmem:[#allocation2] sm:$0xff]
        %v408 = vld [vmem:[#allocation2 + $0x8] sm:$0xff]
        %v409 = vld [vmem:[#allocation2 + $0x10] sm:$0xff]
        %v410 = vld [vmem:[#allocation2 + $0x18] sm:$0xff]
        %v411 = vld [vmem:[#allocation2 + $0x20] sm:$0xff]
        %v412 = vld [vmem:[#allocation2 + $0x28] sm:$0xff]
        %v413 = vld [vmem:[#allocation2 + $0x30] sm:$0xff]
        %v414 = vld [vmem:[#allocation2 + $0x38] sm:$0xff]
        %v415 = vld [vmem:[#allocation2 + $0x40] sm:$0xff]
        %v416 = vld [vmem:[#allocation2 + $0x48] sm:$0xff]
        %v417 = vld [vmem:[#allocation2 + $0x50] sm:$0xff]
        %v418 = vld [vmem:[#allocation2 + $0x58] sm:$0xff]
        %v419 = vld [vmem:[#allocation2 + $0x60] sm:$0xff]
        %v420 = vld [vmem:[#allocation2 + $0x68] sm:$0xff]
        %v421 = vld [vmem:[#allocation2 + $0x70] sm:$0xff]
        %v422 = vld [vmem:[#allocation2 + $0x78] sm:$0xff]
        %v423 = vld [vmem:[%s321] sm:$0xff]
        %v424 = vld [vmem:[%s321 + $0x8] sm:$0xff]
        %v425 = vld [vmem:[%s321 + $0x10] sm:$0xff]
        %v426 = vld [vmem:[%s321 + $0x18] sm:$0xff]
        %v427 = vld [vmem:[%s321 + $0x20] sm:$0xff]
        %v428 = vld [vmem:[%s321 + $0x28] sm:$0xff]
        %v429 = vld [vmem:[%s321 + $0x30] sm:$0xff]
        %v430 = vld [vmem:[%s321 + $0x38] sm:$0xff]
        %v431 = vld [vmem:[%s321 + $0x40] sm:$0xff]
        %v432 = vld [vmem:[%s321 + $0x48] sm:$0xff]
        %v433 = vld [vmem:[%s321 + $0x50] sm:$0xff]
        %v434 = vld [vmem:[%s321 + $0x58] sm:$0xff]
        %v435 = vld [vmem:[%s321 + $0x60] sm:$0xff]
        %v436 = vld [vmem:[%s321 + $0x68] sm:$0xff]
        %v437 = vld [vmem:[%s321 + $0x70] sm:$0xff]
        %v438 = vld [vmem:[%s321 + $0x78] sm:$0xff]
        %v439 = vld [vmem:[%s321 + $0x80] sm:$0xff]
        %v440 = vld [vmem:[%s321 + $0x88] sm:$0xff]
        %v441 = vld [vmem:[%s321 + $0x90] sm:$0xff]
        %v442 = vld [vmem:[%s321 + $0x98] sm:$0xff]
        %v443 = vld [vmem:[%s321 + $0xa0] sm:$0xff]
        %v444 = vld [vmem:[%s321 + $0xa8] sm:$0xff]
        %v445 = vld [vmem:[%s321 + $0xb0] sm:$0xff]
        %v446 = vld [vmem:[%s321 + $0xb8] sm:$0xff]
        %v447 = vld [vmem:[%s321 + $0xc0] sm:$0xff]
        %v448 = vld [vmem:[%s321 + $0xc8] sm:$0xff]
        %v449 = vld [vmem:[%s321 + $0xd0] sm:$0xff]
        %v450 = vld [vmem:[%s321 + $0xd8] sm:$0xff]
        %v451 = vld [vmem:[%s321 + $0xe0] sm:$0xff]
        %v452 = vld [vmem:[%s321 + $0xe8] sm:$0xff]
        %v453 = vld [vmem:[%s321 + $0xf0] sm:$0xff]
        %v454 = vld [vmem:[%s321 + $0xf8] sm:$0xff]
        %v455 = vld [vmem:[%s372] sm:$0xff]
        %v456 = vld [vmem:[%s372 + $0x8] sm:$0xff]
        %v457 = vld [vmem:[%s372 + $0x10] sm:$0xff]
        %v458 = vld [vmem:[%s372 + $0x18] sm:$0xff]
        %v459 = vld [vmem:[%s372 + $0x20] sm:$0xff]
        %v460 = vld [vmem:[%s372 + $0x28] sm:$0xff]
        %v461 = vld [vmem:[%s372 + $0x30] sm:$0xff]
        %v462 = vld [vmem:[%s372 + $0x38] sm:$0xff]
        %v463 = vld [vmem:[%s372 + $0x40] sm:$0xff]
        %v464 = vld [vmem:[%s372 + $0x48] sm:$0xff]
        %v465 = vld [vmem:[%s372 + $0x50] sm:$0xff]
        %v466 = vld [vmem:[%s372 + $0x58] sm:$0xff]
        %v467 = vld [vmem:[%s372 + $0x60] sm:$0xff]
        %v468 = vld [vmem:[%s372 + $0x68] sm:$0xff]
        %v469 = vld [vmem:[%s372 + $0x70] sm:$0xff]
        %v470 = vld [vmem:[%s372 + $0x78] sm:$0xff]
        %v471 = vld [vmem:[%s372 + $0x80] sm:$0xff]
        %v472 = vld [vmem:[%s372 + $0x88] sm:$0xff]
        %v473 = vld [vmem:[%s372 + $0x90] sm:$0xff]
        %v474 = vld [vmem:[%s372 + $0x98] sm:$0xff]
        %v475 = vld [vmem:[%s372 + $0xa0] sm:$0xff]
        %v476 = vld [vmem:[%s372 + $0xa8] sm:$0xff]
        %v477 = vld [vmem:[%s372 + $0xb0] sm:$0xff]
        %v478 = vld [vmem:[%s372 + $0xb8] sm:$0xff]
        %v479 = vld [vmem:[%s372 + $0xc0] sm:$0xff]
        %v480 = vld [vmem:[%s372 + $0xc8] sm:$0xff]
        %v481 = vld [vmem:[%s372 + $0xd0] sm:$0xff]
        %v482 = vld [vmem:[%s372 + $0xd8] sm:$0xff]
        %v483 = vld [vmem:[%s372 + $0xe0] sm:$0xff]
        %v484 = vld [vmem:[%s372 + $0xe8] sm:$0xff]
        %v485 = vld [vmem:[%s372 + $0xf0] sm:$0xff]
        %v486 = vld [vmem:[%s372 + $0xf8] sm:$0xff]
        %487 = vmatprep.subr.mxu0 0.0
        %488 = vmatpush1.msra.mxu0 %v455
        %489 = vmatprep.subr.mxu0 0.0
        %490 = vmatpush1.msra.mxu0 %v456
        %491 = vmatprep.subr.mxu0 0.0
        %492 = vmatpush1.msra.mxu0 %v457
        %493 = vmatprep.subr.mxu0 0.0
        %494 = vmatpush1.msra.mxu0 %v458
        %495 = vmatprep.subr.mxu0 0.0
        %496 = vmatpush1.msra.mxu0 %v459
        %497 = vmatprep.subr.mxu0 0.0
        %498 = vmatpush1.msra.mxu0 %v460
        %499 = vmatprep.subr.mxu0 0.0
        %500 = vmatpush1.msra.mxu0 %v461
        %501 = vmatprep.subr.mxu0 0.0
        %502 = vmatpush1.msra.mxu0 %v462
        %503 = vmatprep.subr.mxu0 0.0
        %504 = vmatpush1.msra.mxu0 %v463
        %505 = vmatprep.subr.mxu0 0.0
        %506 = vmatpush1.msra.mxu0 %v464
        %507 = vmatprep.subr.mxu0 0.0
        %508 = vmatpush1.msra.mxu0 %v465
        %509 = vmatprep.subr.mxu0 0.0
        %510 = vmatpush1.msra.mxu0 %v466
        %511 = vmatprep.subr.mxu0 0.0
        %512 = vmatpush1.msra.mxu0 %v467
        %513 = vmatprep.subr.mxu0 0.0
        %514 = vmatpush1.msra.mxu0 %v468
        %515 = vmatprep.subr.mxu0 0.0
        %516 = vmatpush1.msra.mxu0 %v469
        %517 = vmatprep.subr.mxu0 0.0
        %518 = vmatpush1.msra.mxu0 %v470
        %519 = vmatprep.subr.mxu0 0.0
        %520 = vmatpush1.msra.mxu0 %v471
        %521 = vmatprep.subr.mxu0 0.0
        %522 = vmatpush1.msra.mxu0 %v472
        %523 = vmatprep.subr.mxu0 0.0
        %524 = vmatpush1.msra.mxu0 %v473
        %525 = vmatprep.subr.mxu0 0.0
        %526 = vmatpush1.msra.mxu0 %v474
        %527 = vmatprep.subr.mxu0 0.0
        %528 = vmatpush1.msra.mxu0 %v475
        %529 = vmatprep.subr.mxu0 0.0
        %530 = vmatpush1.msra.mxu0 %v476
        %531 = vmatprep.subr.mxu0 0.0
        %532 = vmatpush1.msra.mxu0 %v477
        %533 = vmatprep.subr.mxu0 0.0
        %534 = vmatpush1.msra.mxu0 %v478
        %535 = vmatprep.subr.mxu0 0.0
        %536 = vmatpush1.msra.mxu0 %v479
        %537 = vmatprep.subr.mxu0 0.0
        %538 = vmatpush1.msra.mxu0 %v480
        %539 = vmatprep.subr.mxu0 0.0
        %540 = vmatpush1.msra.mxu0 %v481
        %541 = vmatprep.subr.mxu0 0.0
        %542 = vmatpush1.msra.mxu0 %v482
        %543 = vmatprep.subr.mxu0 0.0
        %544 = vmatpush1.msra.mxu0 %v483
        %545 = vmatprep.subr.mxu0 0.0
        %546 = vmatpush1.msra.mxu0 %v484
        %547 = vmatprep.subr.mxu0 0.0
        %548 = vmatpush1.msra.mxu0 %v485
        %549 = vmatprep.subr.mxu0 0.0
        %550 = vmatpush1.msra.mxu0 %v486
        %551 = vmatprep.mubr.f32.mxu0 %v424
        %552 = vmatmul.mubr.f32.gmra.mrb[0].mxu0 %v423
        %v553 = vpop.f32.mrb[0].mxu0
        %v554 = vadd.f32 0.0, %v553
        %v555 = vpop.f32.mrb[0].mxu0
        %556 = vmatprep.mubr.f32.mxu0 %v426
        %557 = vmatmul.mubr.f32.gmra.mrb[0].mxu0 %v425
        %v558 = vpop.f32.mrb[0].mxu0
        %v559 = vadd.f32 0.0, %v558
        %v560 = vpop.f32.mrb[0].mxu0
        %561 = vmatprep.mubr.f32.mxu0 %v428
        %562 = vmatmul.mubr.f32.gmra.mrb[0].mxu0 %v427
        %v563 = vpop.f32.mrb[0].mxu0
        %v564 = vadd.f32 0.0, %v563
        %v565 = vpop.f32.mrb[0].mxu0
        %566 = vmatprep.mubr.f32.mxu0 %v430
        %567 = vmatmul.mubr.f32.gmra.mrb[0].mxu0 %v429
        %v568 = vpop.f32.mrb[0].mxu0
        %v569 = vadd.f32 0.0, %v568
        %v570 = vpop.f32.mrb[0].mxu0
        %571 = vmatprep.mubr.f32.mxu0 %v432
        %572 = vmatmul.mubr.f32.gmra.mrb[0].mxu0 %v431
        %v573 = vpop.f32.mrb[0].mxu0
        %v574 = vadd.f32 0.0, %v573
        %v575 = vpop.f32.mrb[0].mxu0
        %576 = vmatprep.mubr.f32.mxu0 %v434
        %577 = vmatmul.mubr.f32.gmra.mrb[0].mxu0 %v433
        %v578 = vpop.f32.mrb[0].mxu0
        %v579 = vadd.f32 0.0, %v578
        %v580 = vpop.f32.mrb[0].mxu0
        %581 = vmatprep.mubr.f32.mxu0 %v436
        %582 = vmatmul.mubr.f32.gmra.mrb[0].mxu0 %v435
        %v583 = vpop.f32.mrb[0].mxu0
        %v584 = vadd.f32 0.0, %v583
        %v585 = vpop.f32.mrb[0].mxu0
        %586 = vmatprep.mubr.f32.mxu0 %v438
        %587 = vmatmul.mubr.f32.gmra.mrb[0].mxu0 %v437
        %v588 = vpop.f32.mrb[0].mxu0
        %v589 = vadd.f32 0.0, %v588
        %v590 = vpop.f32.mrb[0].mxu0
        %591 = vmatprep.mubr.f32.mxu0 %v440
        %592 = vmatmul.mubr.f32.gmra.mrb[0].mxu0 %v439
        %v593 = vpop.f32.mrb[0].mxu0
        %v594 = vadd.f32 0.0, %v593
        %v595 = vpop.f32.mrb[0].mxu0
        %596 = vmatprep.mubr.f32.mxu0 %v442
        %597 = vmatmul.mubr.f32.gmra.mrb[0].mxu0 %v441
        %v598 = vpop.f32.mrb[0].mxu0
        %v599 = vadd.f32 0.0, %v598
        %v600 = vpop.f32.mrb[0].mxu0
        %601 = vmatprep.mubr.f32.mxu0 %v444
        %602 = vmatmul.mubr.f32.gmra.mrb[0].mxu0 %v443
        %v603 = vpop.f32.mrb[0].mxu0
        %v604 = vadd.f32 0.0, %v603
        %v605 = vpop.f32.mrb[0].mxu0
        %606 = vmatprep.mubr.f32.mxu0 %v446
        %607 = vmatmul.mubr.f32.gmra.mrb[0].mxu0 %v445
        %v608 = vpop.f32.mrb[0].mxu0
        %v609 = vadd.f32 0.0, %v608
        %v610 = vpop.f32.mrb[0].mxu0
        %611 = vmatprep.mubr.f32.mxu0 %v448
        %612 = vmatmul.mubr.f32.gmra.mrb[0].mxu0 %v447
        %v613 = vpop.f32.mrb[0].mxu0
        %v614 = vadd.f32 0.0, %v613
        %v615 = vpop.f32.mrb[0].mxu0
        %616 = vmatprep.mubr.f32.mxu0 %v450
        %617 = vmatmul.mubr.f32.gmra.mrb[0].mxu0 %v449
        %v618 = vpop.f32.mrb[0].mxu0
        %v619 = vadd.f32 0.0, %v618
        %v620 = vpop.f32.mrb[0].mxu0
        %621 = vmatprep.mubr.f32.mxu0 %v452
        %622 = vmatmul.mubr.f32.gmra.mrb[0].mxu0 %v451
        %v623 = vpop.f32.mrb[0].mxu0
        %v624 = vadd.f32 0.0, %v623
        %v625 = vpop.f32.mrb[0].mxu0
        %626 = vmatprep.mubr.f32.mxu0 %v454
        %627 = vmatmul.mubr.f32.gmra.mrb[0].mxu0 %v453
        %v628 = vpop.f32.mrb[0].mxu0
        %v629 = vadd.f32 0.0, %v628
        %v630 = vpop.f32.mrb[0].mxu0
        %631 = vdwg.mxu0
        %v632 = vadd.f32 %v407, %v554
        %v633 = vadd.f32 %v408, %v559
        %v634 = vadd.f32 %v409, %v564
        %v635 = vadd.f32 %v410, %v569
        %v636 = vadd.f32 %v411, %v574
        %v637 = vadd.f32 %v412, %v579
        %v638 = vadd.f32 %v413, %v584
        %v639 = vadd.f32 %v414, %v589
        %v640 = vadd.f32 %v415, %v594
        %v641 = vadd.f32 %v416, %v599
        %v642 = vadd.f32 %v417, %v604
        %v643 = vadd.f32 %v418, %v609
        %v644 = vadd.f32 %v419, %v614
        %v645 = vadd.f32 %v420, %v619
        %v646 = vadd.f32 %v421, %v624
        %v647 = vadd.f32 %v422, %v629
        %648 = vst [vmem:[#allocation2] sm:$0xff] %v632
        %649 = vst [vmem:[#allocation2 + $0x8] sm:$0xff] %v633
        %650 = vst [vmem:[#allocation2 + $0x10] sm:$0xff] %v634
        %651 = vst [vmem:[#allocation2 + $0x18] sm:$0xff] %v635
        %652 = vst [vmem:[#allocation2 + $0x20] sm:$0xff] %v636
        %653 = vst [vmem:[#allocation2 + $0x28] sm:$0xff] %v637
        %654 = vst [vmem:[#allocation2 + $0x30] sm:$0xff] %v638
        %655 = vst [vmem:[#allocation2 + $0x38] sm:$0xff] %v639
        %656 = vst [vmem:[#allocation2 + $0x40] sm:$0xff] %v640
        %657 = vst [vmem:[#allocation2 + $0x48] sm:$0xff] %v641
        %658 = vst [vmem:[#allocation2 + $0x50] sm:$0xff] %v642
        %659 = vst [vmem:[#allocation2 + $0x58] sm:$0xff] %v643
        %660 = vst [vmem:[#allocation2 + $0x60] sm:$0xff] %v644
        %661 = vst [vmem:[#allocation2 + $0x68] sm:$0xff] %v645
        %662 = vst [vmem:[#allocation2 + $0x70] sm:$0xff] %v646
        %663 = vst [vmem:[#allocation2 + $0x78] sm:$0xff] %v647
        %p664 = scmp.eq.s32.totalorder %s25, 1
        // Predicated region
        $region64: #{basic_transformer_block_forward.9} parent=54 // pred_check
          %p665 = pneg %p664
        $region65: #{basic_transformer_block_forward.9} parent=54 // pred_check_branch
          %667 = sbr.rel (%p665) target = $region67
        $region66: #{basic_transformer_block_forward.9} parent=54 // pred_region
          %v668 = vld [vmem:[#allocation2] sm:$0xff]
          %v669 = vld [vmem:[#allocation2 + $0x8] sm:$0xff]
          %v670 = vld [vmem:[#allocation2 + $0x10] sm:$0xff]
          %v671 = vld [vmem:[#allocation2 + $0x18] sm:$0xff]
          %v672 = vld [vmem:[#allocation2 + $0x20] sm:$0xff]
          %v673 = vld [vmem:[#allocation2 + $0x28] sm:$0xff]
          %v674 = vld [vmem:[#allocation2 + $0x30] sm:$0xff]
          %v675 = vld [vmem:[#allocation2 + $0x38] sm:$0xff]
          %v676 = vld [vmem:[#allocation2 + $0x40] sm:$0xff]
          %v677 = vld [vmem:[#allocation2 + $0x48] sm:$0xff]
          %v678 = vld [vmem:[#allocation2 + $0x50] sm:$0xff]
          %v679 = vld [vmem:[#allocation2 + $0x58] sm:$0xff]
          %v680 = vld [vmem:[#allocation2 + $0x60] sm:$0xff]
          %v681 = vld [vmem:[#allocation2 + $0x68] sm:$0xff]
          %v682 = vld [vmem:[#allocation2 + $0x70] sm:$0xff]
          %v683 = vld [vmem:[#allocation2 + $0x78] sm:$0xff]
          %v684 = vld [vmem:[%s376] sm:$0x1]
          %v686 = vlaneseq
          %v687 = vshrl.u32 %v686, 7
          %v688 = vsub.s32 0, %v687
          %v689 = vrot.slane %v684, %v688
          %v691 = vadd.f32 %v668, %v689
          %v692 = vadd.f32 %v669, %v689
          %v693 = vadd.f32 %v670, %v689
          %v694 = vadd.f32 %v671, %v689
          %v695 = vadd.f32 %v672, %v689
          %v696 = vadd.f32 %v673, %v689
          %v697 = vadd.f32 %v674, %v689
          %v698 = vadd.f32 %v675, %v689
          %v699 = vadd.f32 %v676, %v689
          %v700 = vadd.f32 %v677, %v689
          %v701 = vadd.f32 %v678, %v689
          %v702 = vadd.f32 %v679, %v689
          %v703 = vadd.f32 %v680, %v689
          %v704 = vadd.f32 %v681, %v689
          %v705 = vadd.f32 %v682, %v689
          %v706 = vadd.f32 %v683, %v689
          %v707 = vld [vmem:[%s384] sm:$0xff]
          %v708 = vld [vmem:[%s384 + $0x8] sm:$0xff]
          %v709 = vld [vmem:[%s384 + $0x10] sm:$0xff]
          %v710 = vld [vmem:[%s384 + $0x18] sm:$0xff]
          %v711 = vld [vmem:[%s384 + $0x20] sm:$0xff]
          %v712 = vld [vmem:[%s384 + $0x28] sm:$0xff]
          %v713 = vld [vmem:[%s384 + $0x30] sm:$0xff]
          %v714 = vld [vmem:[%s384 + $0x38] sm:$0xff]
          %v715 = vld [vmem:[%s384 + $0x40] sm:$0xff]
          %v716 = vld [vmem:[%s384 + $0x48] sm:$0xff]
          %v717 = vld [vmem:[%s384 + $0x50] sm:$0xff]
          %v718 = vld [vmem:[%s384 + $0x58] sm:$0xff]
          %v719 = vld [vmem:[%s384 + $0x60] sm:$0xff]
          %v720 = vld [vmem:[%s384 + $0x68] sm:$0xff]
          %v721 = vld [vmem:[%s384 + $0x70] sm:$0xff]
          %v722 = vld [vmem:[%s384 + $0x78] sm:$0xff]
          %v723 = vadd.f32 %v691, %v707
          %v724 = vadd.f32 %v692, %v708
          %v725 = vadd.f32 %v693, %v709
          %v726 = vadd.f32 %v694, %v710
          %v727 = vadd.f32 %v695, %v711
          %v728 = vadd.f32 %v696, %v712
          %v729 = vadd.f32 %v697, %v713
          %v730 = vadd.f32 %v698, %v714
          %v731 = vadd.f32 %v699, %v715
          %v732 = vadd.f32 %v700, %v716
          %v733 = vadd.f32 %v701, %v717
          %v734 = vadd.f32 %v702, %v718
          %v735 = vadd.f32 %v703, %v719
          %v736 = vadd.f32 %v704, %v720
          %v737 = vadd.f32 %v705, %v721
          %v738 = vadd.f32 %v706, %v722
          %739 = vst [vmem:[%s362] sm:$0xff] %v723
          %740 = vst [vmem:[%s362 + $0x8] sm:$0xff] %v724
          %741 = vst [vmem:[%s362 + $0x10] sm:$0xff] %v725
          %742 = vst [vmem:[%s362 + $0x18] sm:$0xff] %v726
          %743 = vst [vmem:[%s362 + $0x20] sm:$0xff] %v727
          %744 = vst [vmem:[%s362 + $0x28] sm:$0xff] %v728
          %745 = vst [vmem:[%s362 + $0x30] sm:$0xff] %v729
          %746 = vst [vmem:[%s362 + $0x38] sm:$0xff] %v730
          %747 = vst [vmem:[%s362 + $0x40] sm:$0xff] %v731
          %748 = vst [vmem:[%s362 + $0x48] sm:$0xff] %v732
          %749 = vst [vmem:[%s362 + $0x50] sm:$0xff] %v733
          %750 = vst [vmem:[%s362 + $0x58] sm:$0xff] %v734
          %751 = vst [vmem:[%s362 + $0x60] sm:$0xff] %v735
          %752 = vst [vmem:[%s362 + $0x68] sm:$0xff] %v736
          %753 = vst [vmem:[%s362 + $0x70] sm:$0xff] %v737
          %754 = vst [vmem:[%s362 + $0x78] sm:$0xff] %v738
        $region67: #{basic_transformer_block_forward.9} parent=54 // pred_fallthru
          _
        %s755 = sand.u32 %s157, 1
        %s756 = scalar_lea.sflag [#allocation5], %s755
        %s757 = sand.u32 %s157, 1
        %s758 = smul.addr %s757, 128
        %s759 = scalar_lea.vmem [#allocation4], %s758
        // Predicated region
        $region68: #{basic_transformer_block_forward.9} parent=54 // pred_check
          %p760 = pneg %p167
        $region69: #{basic_transformer_block_forward.9} parent=54 // pred_check_branch
          %762 = sbr.rel (%p760) target = $region71
        $region70: #{basic_transformer_block_forward.9} parent=54 // pred_region
          %s763 = smul.u32 16, %s23
          %s765 = ssub.s32 2048, 2048
          %766 = vsyncadd %s756, %s765
          %s767 = sadd.s32 %s24, %s763
          %s768 = smul.addr %s767, 128
          %s769 = scalar_lea.hbm %s4, %s768
          %s770 = sshll.u32 %s759, 4
          %s771 = int_to_ptr.vmem [resolvable:$true] %s770
          %776 = dma.vmem_to_hbm [thread:$0]  %s771, 2048, %s769, %s756, 128, 128, 8
        $region71: #{basic_transformer_block_forward.9} parent=54 // pred_fallthru
          _
      $region55: #{basic_transformer_block_forward.9} parent=5 // pred_fallthru
        _
      %p777 = scmp.le.s32.totalorder 2, %s13
      // Predicated region
      $region72: #{basic_transformer_block_forward.9} parent=5 // pred_check
        %p778 = pneg %p777
      $region73: #{basic_transformer_block_forward.9} parent=5 // pred_check_branch
        %780 = sbr.rel (%p778) target = $region75
      $region74: #{basic_transformer_block_forward.9} parent=5 // pred_region
        %s781 = ssub.s32 %s13, 2
        // Predicated region
        $region76: #{basic_transformer_block_forward.9} parent=74 // pred_check
          %p782 = pneg %p173
        $region77: #{basic_transformer_block_forward.9} parent=74 // pred_check_branch
          %784 = sbr.rel (%p782) target = $region79
        $region78: #{basic_transformer_block_forward.9} parent=74 // pred_region
          %s785 = sand.u32 %s158, 1
          %s786 = scalar_lea.sflag [#allocation5], %s785
          %s787 = sand.u32 %s158, 1
          %s788 = smul.addr %s787, 128
          %s789 = scalar_lea.vmem [#allocation4], %s788
          %790 = dma.done %s786, 2048
        $region79: #{basic_transformer_block_forward.9} parent=74 // pred_fallthru
          _
      $region75: #{basic_transformer_block_forward.9} parent=5 // pred_fallthru
        _
    $region6: #{basic_transformer_block_forward.9} parent=1 // loop_footer
      %s17 = sadd.s32 1, %s13
    $region7: #{basic_transformer_block_forward.9} parent=1 // loop_footer_branch
      %12 = sbr.rel target = $region3
    $region8: #{basic_transformer_block_forward.9} parent=1 // loop_exit
      _
    %791 = vsyncpa [#allocation5], 1
    %s792 = scalar_lea.sflag [#allocation5], 1
    %793 = vsyncpa %s792, 1

</llo_original>
